<compile_context>
chip_gen: v7x
topology: tpu7x:2x2x1
jax: 0.10.0
libtpu: 0.0.40
codegen_flags: <defaults>
</compile_context>

<pallas_src>
import functools

import jax
import jax.numpy as jnp
from jax.experimental import pallas as pl
from jax.experimental.pallas import tpu as pltpu


EPS = 1e-5
NEG_SLOPE = 0.01  # F.leaky_relu default
_HIGHEST = jax.lax.Precision.HIGHEST


def find_group_number(channels, min_group_channels=4, max_group_channels=32):
    for num_groups in range(channels, 0, -1):
        group_channels = channels // num_groups
        if (channels % num_groups == 0
                and group_channels >= min_group_channels
                and group_channels <= max_group_channels):
            return num_groups
    return 1


def _leaky_relu(x):
    return jnp.where(x >= 0, x, NEG_SLOPE * x)


def _group_norm_cm(x, member_t, member_gamma, beta, inv_group_size):
    # Channel-major GroupNorm.
    #   x:            (C, TB)  activations, batch on lanes
    #   member_t:     (G, C)   one-hot group membership (transposed)
    #   member_gamma: (C, G)   one-hot membership pre-scaled by gamma
    #   beta:         (C, 1)
    gsum = jnp.dot(member_t, x, preferred_element_type=jnp.float32,
                   precision=_HIGHEST)                                   # (G, TB)
    gsum2 = jnp.dot(member_t, x * x, preferred_element_type=jnp.float32,
                    precision=_HIGHEST)                                  # (G, TB)
    mean = gsum * inv_group_size
    var = jnp.maximum(gsum2 * inv_group_size - mean * mean, 0.0)  # clamp: no rsqrt(<0)
    s = jax.lax.rsqrt(var + EPS)   # per-group rsqrt: G per lane instead of C
    t = -mean * s
    # Broadcast back to channels with gamma already folded in:
    #   (x - mean) * rsqrt(var+eps) * gamma + beta  ==  x * sg + (tg + beta)
    sg = jnp.dot(member_gamma, s, preferred_element_type=jnp.float32,
                 precision=_HIGHEST)                                     # (C, TB)
    tg = jnp.dot(member_gamma, t, preferred_element_type=jnp.float32,
                 precision=_HIGHEST)                                     # (C, TB)
    return x * sg + (tg + beta)


def noise_embedder_kernel(cond_ref,
                          w1_ref, b1_ref, mg1_ref, bt1_ref, m1t_ref,
                          w2_ref, b2_ref, mg2_ref, bt2_ref, m2t_ref,
                          out_ref,
                          *, inv_gs1, inv_gs2):
    # dense:  (hidden, TB) = W1 (hidden, nc) @ cond (nc, TB)
    x = jnp.dot(w1_ref[...], cond_ref[...], preferred_element_type=jnp.float32,
                precision=_HIGHEST) + b1_ref[...]
    # norm + leaky_relu
    x = _leaky_relu(_group_norm_cm(x, m1t_ref[...], mg1_ref[...],
                                   bt1_ref[...], inv_gs1))
    # dropout -> identity  # TODO(synk): training-mode dropout not implemented
    # dense_2: (embedding, TB) = W2 (embedding, hidden) @ x (hidden, TB)
    x = jnp.dot(w2_ref[...], x, preferred_element_type=jnp.float32,
                precision=_HIGHEST) + b2_ref[...]
    # norm_2 + leaky_relu
    x = _leaky_relu(_group_norm_cm(x, m2t_ref[...], mg2_ref[...],
                                   bt2_ref[...], inv_gs2))
    # In-kernel transpose (XLU slot is idle) -> store a (TB, embed) block so the
    # kernel's HBM output is already (B, embedding_dim): no post-kernel transpose pass.
    out_ref[...] = x.T.astype(out_ref.dtype)


def noise_embedder(condition, params, *, batch_tile=8192, out_dtype=jnp.float32):
    """condition: (B, num_conditions) float32 -> (B, embedding_dim) out_dtype."""
    B, nc = condition.shape
    hidden = params["w1"].shape[0]
    embed = params["w2"].shape[0]
    g1 = params["m1t"].shape[0]
    g2 = params["m2t"].shape[0]

    # Batch on the lane axis for lane-dense compute inside the kernel.
    # TODO(synk): producers could emit (num_conditions, B) directly and skip this
    # tiny (16 B/row) wrapper transpose.
    cond_t = condition.T  # (nc, B)

    # Batch tile (lane axis).  For B > 128 use at least 2 grid steps so the
    # "parallel" grid axis shards across both TensorCores on v7x; cap at a
    # 128-aligned batch_tile.
    max_tb = max((batch_tile // 128) * 128, 128)
    if B <= 128:
        tb = B
    else:
        half = ((B + 1) // 2 + 127) // 128 * 128
        tb = min(half, max_tb)
    grid = (pl.cdiv(B, tb),)

    def const_spec(arr):
        shape = arr.shape
        return pl.BlockSpec(shape, lambda i, _n=len(shape): (0,) * _n)

    in_specs = [
        pl.BlockSpec((nc, tb), lambda i: (0, i)),   # condition tile (streamed)
        const_spec(params["w1"]),                   # weights: VMEM-resident
        const_spec(params["b1"]),
        const_spec(params["mg1"]),
        const_spec(params["beta1"]),
        const_spec(params["m1t"]),
        const_spec(params["w2"]),
        const_spec(params["b2"]),
        const_spec(params["mg2"]),
        const_spec(params["beta2"]),
        const_spec(params["m2t"]),
    ]
    # (tb, embed) output blocks -> kernel emits (B, embedding_dim) directly.
    out_spec = pl.BlockSpec((tb, embed), lambda i: (i, 0))

    # Advisory cost estimate for the XLA scheduler.
    kernel_param_names = ("w1", "b1", "mg1", "beta1", "m1t",
                          "w2", "b2", "mg2", "beta2", "m2t")
    param_bytes = int(sum(int(params[k].size) * params[k].dtype.itemsize
                          for k in kernel_param_names))
    flops = int(2 * B * (nc * hidden + hidden * embed
                         + 4 * hidden * g1 + 4 * embed * g2))
    transcendentals = int(B * (g1 + g2))
    bytes_accessed = int(4 * B * nc
                         + jnp.dtype(out_dtype).itemsize * B * embed
                         + param_bytes)

    kernel = functools.partial(
        noise_embedder_kernel,
        inv_gs1=1.0 / float(hidden // g1),
        inv_gs2=1.0 / float(embed // g2),
    )

    out = pl.pallas_call(
        kernel,
        out_shape=jax.ShapeDtypeStruct((B, embed), out_dtype),
        grid=grid,
        in_specs=in_specs,
        out_specs=out_spec,
        compiler_params=pltpu.CompilerParams(
            dimension_semantics=("parallel",),
            vmem_limit_bytes=64 * 1024 * 1024),
        cost_estimate=pl.CostEstimate(
            flops=flops,
            transcendentals=transcendentals,
            bytes_accessed=bytes_accessed),
    )(cond_t,
      params["w1"], params["b1"], params["mg1"], params["beta1"], params["m1t"],
      params["w2"], params["b2"], params["mg2"], params["beta2"], params["m2t"])

    return out  # already (B, embedding_dim)


def init_params(key, num_conditions, hidden_dim=16, embedding_dim=64):
    k1, k2, k3, k4, k5, k6, k7, k8 = jax.random.split(key, 8)
    # Synthetic deterministic init; weights kept in PyTorch (out, in) layout.
    w1 = jax.random.normal(k1, (hidden_dim, num_conditions), jnp.float32) * 0.1
    b1 = jax.random.normal(k2, (hidden_dim,), jnp.float32) * 0.1
    w2 = jax.random.normal(k3, (embedding_dim, hidden_dim), jnp.float32) * 0.1
    b2 = jax.random.normal(k4, (embedding_dim,), jnp.float32) * 0.1
    gamma1 = 1.0 + 0.1 * jax.random.normal(k5, (hidden_dim,), jnp.float32)
    beta1 = 0.1 * jax.random.normal(k6, (hidden_dim,), jnp.float32)
    gamma2 = 1.0 + 0.1 * jax.random.normal(k7, (embedding_dim,), jnp.float32)
    beta2 = 0.1 * jax.random.normal(k8, (embedding_dim,), jnp.float32)

    g1 = find_group_number(hidden_dim)       # 16 -> 4 groups of 4
    g2 = find_group_number(embedding_dim)    # 64 -> 16 groups of 4

    def membership(channels, groups):
        gsz = channels // groups
        c = jnp.arange(channels)[:, None]
        g = jnp.arange(groups)[None, :]
        return (c // gsz == g).astype(jnp.float32)   # (C, G)

    m1 = membership(hidden_dim, g1)
    m2 = membership(embedding_dim, g2)

    return {
        # kernel operands
        "w1": w1,                           # (hidden, num_conditions)
        "b1": b1[:, None],                  # (hidden, 1)
        "mg1": m1 * gamma1[:, None],        # (hidden, g1)  one-hot * gamma
        "beta1": beta1[:, None],            # (hidden, 1)
        "m1t": m1.T,                        # (g1, hidden)
        "w2": w2,                           # (embedding, hidden)
        "b2": b2[:, None],                  # (embedding, 1)
        "mg2": m2 * gamma2[:, None],        # (embedding, g2)
        "beta2": beta2[:, None],            # (embedding, 1)
        "m2t": m2.T,                        # (g2, embedding)
        # reference-only
        "gamma1": gamma1[:, None],
        "gamma2": gamma2[:, None],
    }


def noise_embedder_ref(condition, params):
    # Pure-JAX reference (two-pass GroupNorm, (B, C) orientation).
    def gn(x, groups, gamma, beta):
        B, C = x.shape
        xg = x.reshape(B, groups, C // groups)
        mean = xg.mean(-1, keepdims=True)
        var = xg.var(-1, keepdims=True)
        xn = ((xg - mean) / jnp.sqrt(var + EPS)).reshape(B, C)
        return xn * gamma[:, 0] + beta[:, 0]

    x = condition @ params["w1"].T + params["b1"][:, 0]
    x = gn(x, params["m1t"].shape[0], params["gamma1"], params["beta1"])
    x = jnp.where(x >= 0, x, NEG_SLOPE * x)
    x = x @ params["w2"].T + params["b2"][:, 0]
    x = gn(x, params["m2t"].shape[0], params["gamma2"], params["beta2"])
    return jnp.where(x >= 0, x, NEG_SLOPE * x)


if __name__ == "__main__":
    key = jax.random.PRNGKey(0)
    kc, kp, kc2 = jax.random.split(key, 3)

    num_conditions, hidden_dim, embedding_dim = 4, 16, 64
    params = init_params(kp, num_conditions, hidden_dim, embedding_dim)

    # Small shape: single full-extent tile (grid = 1).
    B = 8
    condition = jax.random.normal(kc, (B, num_conditions), jnp.float32)
    out = jax.block_until_ready(noise_embedder(condition, params))
    ref = noise_embedder_ref(condition, params)
    assert out.shape == (B, embedding_dim)
    assert jnp.allclose(out, ref, atol=1e-4, rtol=1e-4), "mismatch vs JAX reference (B=8)"

    # Exercise the batch grid: 3 lane tiles of 128 incl. a partial last tile.
    B2 = 300
    condition2 = jax.random.normal(kc2, (B2, num_conditions), jnp.float32)
    out2 = jax.block_until_ready(noise_embedder(condition2, params, batch_tile=128))
    ref2 = noise_embedder_ref(condition2, params)
    assert out2.shape == (B2, embedding_dim)
    assert jnp.allclose(out2, ref2, atol=1e-4, rtol=1e-4), "mismatch vs JAX reference (B=300)"

    print("KERNEL_OK")
</pallas_src>

<mosaic_0001>
module attributes {stable_mosaic.version = 11 : i64} {
  func.func @noise_embedder_kernel(%arg0: i32, %arg1: memref<4x8xf32, #tpu.memory_space<vmem>>, %arg2: memref<16x4xf32, #tpu.memory_space<vmem>>, %arg3: memref<16x1xf32, #tpu.memory_space<vmem>>, %arg4: memref<16x4xf32, #tpu.memory_space<vmem>>, %arg5: memref<16x1xf32, #tpu.memory_space<vmem>>, %arg6: memref<4x16xf32, #tpu.memory_space<vmem>>, %arg7: memref<64x16xf32, #tpu.memory_space<vmem>>, %arg8: memref<64x1xf32, #tpu.memory_space<vmem>>, %arg9: memref<64x16xf32, #tpu.memory_space<vmem>>, %arg10: memref<64x1xf32, #tpu.memory_space<vmem>>, %arg11: memref<16x64xf32, #tpu.memory_space<vmem>>, %arg12: memref<8x64xf32, #tpu.memory_space<vmem>>) attributes {dimension_semantics = [#tpu.dimension_semantics<parallel>], iteration_bounds = array<i64: 1>, scalar_prefetch = 0 : i64, scratch_operands = 0 : i64, tpu.core_type = #tpu.core_type<tc>, window_params = [{transform_indices = @transform_0, window_bounds = array<i64: 4, 8>}, {pipeline_mode = #tpu.pipeline_mode<synchronous>, transform_indices = @transform_1, window_bounds = array<i64: 16, 4>}, {pipeline_mode = #tpu.pipeline_mode<synchronous>, transform_indices = @transform_2, window_bounds = array<i64: 16, 1>}, {pipeline_mode = #tpu.pipeline_mode<synchronous>, transform_indices = @transform_3, window_bounds = array<i64: 16, 4>}, {pipeline_mode = #tpu.pipeline_mode<synchronous>, transform_indices = @transform_4, window_bounds = array<i64: 16, 1>}, {pipeline_mode = #tpu.pipeline_mode<synchronous>, transform_indices = @transform_5, window_bounds = array<i64: 4, 16>}, {pipeline_mode = #tpu.pipeline_mode<synchronous>, transform_indices = @transform_6, window_bounds = array<i64: 64, 16>}, {pipeline_mode = #tpu.pipeline_mode<synchronous>, transform_indices = @transform_7, window_bounds = array<i64: 64, 1>}, {pipeline_mode = #tpu.pipeline_mode<synchronous>, transform_indices = @transform_8, window_bounds = array<i64: 64, 16>}, {pipeline_mode = #tpu.pipeline_mode<synchronous>, transform_indices = @transform_9, window_bounds = array<i64: 64, 1>}, {pipeline_mode = #tpu.pipeline_mode<synchronous>, transform_indices = @transform_10, window_bounds = array<i64: 16, 64>}, {transform_indices = @transform_11, window_bounds = array<i64: 8, 64>}]} {
    %c0 = arith.constant 0 : index
    %c0_0 = arith.constant 0 : index
    %0 = vector.load %arg2[%c0, %c0_0] : memref<16x4xf32, #tpu.memory_space<vmem>>, vector<16x4xf32>
    %c0_1 = arith.constant 0 : index
    %c0_2 = arith.constant 0 : index
    %1 = vector.load %arg1[%c0_1, %c0_2] : memref<4x8xf32, #tpu.memory_space<vmem>>, vector<4x8xf32>
    %cst = arith.constant dense<0.000000e+00> : vector<16x8xf32>
    %2 = tpu.matmul %0, %1, %cst {dimension_numbers = #tpu.dot_dimension_numbers<[1], [0], [0], [1], [0, 0, 1, 1], [], []>, precision = #tpu.contract_precision<fp32>} : vector<16x4xf32>, vector<4x8xf32>, vector<16x8xf32> -> vector<16x8xf32>
    %c0_3 = arith.constant 0 : index
    %c0_4 = arith.constant 0 : index
    %3 = vector.load %arg3[%c0_3, %c0_4] : memref<16x1xf32, #tpu.memory_space<vmem>>, vector<16x1xf32>
    %4 = vector.broadcast %3 : vector<16x1xf32> to vector<16x8xf32>
    %5 = arith.addf %2, %4 : vector<16x8xf32>
    %c0_5 = arith.constant 0 : index
    %c0_6 = arith.constant 0 : index
    %6 = vector.load %arg6[%c0_5, %c0_6] : memref<4x16xf32, #tpu.memory_space<vmem>>, vector<4x16xf32>
    %c0_7 = arith.constant 0 : index
    %c0_8 = arith.constant 0 : index
    %7 = vector.load %arg4[%c0_7, %c0_8] : memref<16x4xf32, #tpu.memory_space<vmem>>, vector<16x4xf32>
    %c0_9 = arith.constant 0 : index
    %c0_10 = arith.constant 0 : index
    %8 = vector.load %arg5[%c0_9, %c0_10] : memref<16x1xf32, #tpu.memory_space<vmem>>, vector<16x1xf32>
    %cst_11 = arith.constant dense<0.000000e+00> : vector<4x8xf32>
    %9 = tpu.matmul %6, %5, %cst_11 {dimension_numbers = #tpu.dot_dimension_numbers<[1], [0], [0], [1], [0, 0, 1, 1], [], []>, precision = #tpu.contract_precision<fp32>} : vector<4x16xf32>, vector<16x8xf32>, vector<4x8xf32> -> vector<4x8xf32>
    %10 = arith.mulf %5, %5 : vector<16x8xf32>
    %cst_12 = arith.constant dense<0.000000e+00> : vector<4x8xf32>
    %11 = tpu.matmul %6, %10, %cst_12 {dimension_numbers = #tpu.dot_dimension_numbers<[1], [0], [0], [1], [0, 0, 1, 1], [], []>, precision = #tpu.contract_precision<fp32>} : vector<4x16xf32>, vector<16x8xf32>, vector<4x8xf32> -> vector<4x8xf32>
    %cst_13 = arith.constant 2.500000e-01 : f32
    %12 = vector.broadcast %cst_13 : f32 to vector<4x8xf32>
    %13 = arith.mulf %9, %12 : vector<4x8xf32>
    %cst_14 = arith.constant 2.500000e-01 : f32
    %14 = vector.broadcast %cst_14 : f32 to vector<4x8xf32>
    %15 = arith.mulf %11, %14 : vector<4x8xf32>
    %16 = arith.mulf %13, %13 : vector<4x8xf32>
    %17 = arith.subf %15, %16 : vector<4x8xf32>
    %cst_15 = arith.constant 0.000000e+00 : f32
    %18 = vector.broadcast %cst_15 : f32 to vector<4x8xf32>
    %19 = arith.maximumf %17, %18 : vector<4x8xf32>
    %cst_16 = arith.constant 9.99999974E-6 : f32
    %20 = vector.broadcast %cst_16 : f32 to vector<4x8xf32>
    %21 = arith.addf %19, %20 : vector<4x8xf32>
    %22 = math.rsqrt %21 : vector<4x8xf32>
    %cst_17 = arith.constant 0.000000e+00 : f32
    %23 = vector.broadcast %cst_17 : f32 to vector<4x8xf32>
    %24 = arith.subf %23, %13 : vector<4x8xf32>
    %25 = arith.mulf %24, %22 : vector<4x8xf32>
    %cst_18 = arith.constant dense<0.000000e+00> : vector<16x8xf32>
    %26 = tpu.matmul %7, %22, %cst_18 {dimension_numbers = #tpu.dot_dimension_numbers<[1], [0], [0], [1], [0, 0, 1, 1], [], []>, precision = #tpu.contract_precision<fp32>} : vector<16x4xf32>, vector<4x8xf32>, vector<16x8xf32> -> vector<16x8xf32>
    %cst_19 = arith.constant dense<0.000000e+00> : vector<16x8xf32>
    %27 = tpu.matmul %7, %25, %cst_19 {dimension_numbers = #tpu.dot_dimension_numbers<[1], [0], [0], [1], [0, 0, 1, 1], [], []>, precision = #tpu.contract_precision<fp32>} : vector<16x4xf32>, vector<4x8xf32>, vector<16x8xf32> -> vector<16x8xf32>
    %28 = arith.mulf %5, %26 : vector<16x8xf32>
    %29 = vector.broadcast %8 : vector<16x1xf32> to vector<16x8xf32>
    %30 = arith.addf %27, %29 : vector<16x8xf32>
    %31 = arith.addf %28, %30 : vector<16x8xf32>
    %cst_20 = arith.constant 0.000000e+00 : f32
    %32 = vector.broadcast %cst_20 : f32 to vector<16x8xf32>
    %33 = arith.cmpf oge, %31, %32 : vector<16x8xf32>
    %cst_21 = arith.constant 0.00999999977 : f32
    %34 = vector.broadcast %cst_21 : f32 to vector<16x8xf32>
    %35 = arith.mulf %34, %31 : vector<16x8xf32>
    %36 = arith.select %33, %31, %35 : vector<16x8xi1>, vector<16x8xf32>
    %c0_22 = arith.constant 0 : index
    %c0_23 = arith.constant 0 : index
    %37 = vector.load %arg7[%c0_22, %c0_23] : memref<64x16xf32, #tpu.memory_space<vmem>>, vector<64x16xf32>
    %cst_24 = arith.constant dense<0.000000e+00> : vector<64x8xf32>
    %38 = tpu.matmul %37, %36, %cst_24 {dimension_numbers = #tpu.dot_dimension_numbers<[1], [0], [0], [1], [0, 0, 1, 1], [], []>, precision = #tpu.contract_precision<fp32>} : vector<64x16xf32>, vector<16x8xf32>, vector<64x8xf32> -> vector<64x8xf32>
    %c0_25 = arith.constant 0 : index
    %c0_26 = arith.constant 0 : index
    %39 = vector.load %arg8[%c0_25, %c0_26] : memref<64x1xf32, #tpu.memory_space<vmem>>, vector<64x1xf32>
    %40 = vector.broadcast %39 : vector<64x1xf32> to vector<64x8xf32>
    %41 = arith.addf %38, %40 : vector<64x8xf32>
    %c0_27 = arith.constant 0 : index
    %c0_28 = arith.constant 0 : index
    %42 = vector.load %arg11[%c0_27, %c0_28] : memref<16x64xf32, #tpu.memory_space<vmem>>, vector<16x64xf32>
    %c0_29 = arith.constant 0 : index
    %c0_30 = arith.constant 0 : index
    %43 = vector.load %arg9[%c0_29, %c0_30] : memref<64x16xf32, #tpu.memory_space<vmem>>, vector<64x16xf32>
    %c0_31 = arith.constant 0 : index
    %c0_32 = arith.constant 0 : index
    %44 = vector.load %arg10[%c0_31, %c0_32] : memref<64x1xf32, #tpu.memory_space<vmem>>, vector<64x1xf32>
    %cst_33 = arith.constant dense<0.000000e+00> : vector<16x8xf32>
    %45 = tpu.matmul %42, %41, %cst_33 {dimension_numbers = #tpu.dot_dimension_numbers<[1], [0], [0], [1], [0, 0, 1, 1], [], []>, precision = #tpu.contract_precision<fp32>} : vector<16x64xf32>, vector<64x8xf32>, vector<16x8xf32> -> vector<16x8xf32>
    %46 = arith.mulf %41, %41 : vector<64x8xf32>
    %cst_34 = arith.constant dense<0.000000e+00> : vector<16x8xf32>
    %47 = tpu.matmul %42, %46, %cst_34 {dimension_numbers = #tpu.dot_dimension_numbers<[1], [0], [0], [1], [0, 0, 1, 1], [], []>, precision = #tpu.contract_precision<fp32>} : vector<16x64xf32>, vector<64x8xf32>, vector<16x8xf32> -> vector<16x8xf32>
    %cst_35 = arith.constant 2.500000e-01 : f32
    %48 = vector.broadcast %cst_35 : f32 to vector<16x8xf32>
    %49 = arith.mulf %45, %48 : vector<16x8xf32>
    %cst_36 = arith.constant 2.500000e-01 : f32
    %50 = vector.broadcast %cst_36 : f32 to vector<16x8xf32>
    %51 = arith.mulf %47, %50 : vector<16x8xf32>
    %52 = arith.mulf %49, %49 : vector<16x8xf32>
    %53 = arith.subf %51, %52 : vector<16x8xf32>
    %cst_37 = arith.constant 0.000000e+00 : f32
    %54 = vector.broadcast %cst_37 : f32 to vector<16x8xf32>
    %55 = arith.maximumf %53, %54 : vector<16x8xf32>
    %cst_38 = arith.constant 9.99999974E-6 : f32
    %56 = vector.broadcast %cst_38 : f32 to vector<16x8xf32>
    %57 = arith.addf %55, %56 : vector<16x8xf32>
    %58 = math.rsqrt %57 : vector<16x8xf32>
    %cst_39 = arith.constant 0.000000e+00 : f32
    %59 = vector.broadcast %cst_39 : f32 to vector<16x8xf32>
    %60 = arith.subf %59, %49 : vector<16x8xf32>
    %61 = arith.mulf %60, %58 : vector<16x8xf32>
    %cst_40 = arith.constant dense<0.000000e+00> : vector<64x8xf32>
    %62 = tpu.matmul %43, %58, %cst_40 {dimension_numbers = #tpu.dot_dimension_numbers<[1], [0], [0], [1], [0, 0, 1, 1], [], []>, precision = #tpu.contract_precision<fp32>} : vector<64x16xf32>, vector<16x8xf32>, vector<64x8xf32> -> vector<64x8xf32>
    %cst_41 = arith.constant dense<0.000000e+00> : vector<64x8xf32>
    %63 = tpu.matmul %43, %61, %cst_41 {dimension_numbers = #tpu.dot_dimension_numbers<[1], [0], [0], [1], [0, 0, 1, 1], [], []>, precision = #tpu.contract_precision<fp32>} : vector<64x16xf32>, vector<16x8xf32>, vector<64x8xf32> -> vector<64x8xf32>
    %64 = arith.mulf %41, %62 : vector<64x8xf32>
    %65 = vector.broadcast %44 : vector<64x1xf32> to vector<64x8xf32>
    %66 = arith.addf %63, %65 : vector<64x8xf32>
    %67 = arith.addf %64, %66 : vector<64x8xf32>
    %cst_42 = arith.constant 0.000000e+00 : f32
    %68 = vector.broadcast %cst_42 : f32 to vector<64x8xf32>
    %69 = arith.cmpf oge, %67, %68 : vector<64x8xf32>
    %cst_43 = arith.constant 0.00999999977 : f32
    %70 = vector.broadcast %cst_43 : f32 to vector<64x8xf32>
    %71 = arith.mulf %70, %67 : vector<64x8xf32>
    %72 = arith.select %69, %67, %71 : vector<64x8xi1>, vector<64x8xf32>
    %73 = tpu.transpose %72, [1, 0] : vector<64x8xf32> -> vector<8x64xf32>
    %c0_44 = arith.constant 0 : index
    %c0_45 = arith.constant 0 : index
    %74 = vector.load %arg12[%c0_44, %c0_45] : memref<8x64xf32, #tpu.memory_space<vmem>>, vector<8x64xf32>
    tpu.vector_store %arg12[%c0_44, %c0_45], %73 {strides = array<i32>} : memref<8x64xf32, #tpu.memory_space<vmem>>, vector<8x64xf32>,
    return
  }
  func.func @transform_0(%arg0: i32) -> (i32, i32) {
    %c0_i32 = arith.constant 0 : i32
    %c0_i32_0 = arith.constant 0 : i32
    return %c0_i32, %arg0 : i32, i32
  }
  func.func @transform_1(%arg0: i32) -> (i32, i32) {
    %c0_i32 = arith.constant 0 : i32
    %c0_i32_0 = arith.constant 0 : i32
    %c0_i32_1 = arith.constant 0 : i32
    return %c0_i32, %c0_i32_0 : i32, i32
  }
  func.func @transform_2(%arg0: i32) -> (i32, i32) {
    %c0_i32 = arith.constant 0 : i32
    %c0_i32_0 = arith.constant 0 : i32
    %c0_i32_1 = arith.constant 0 : i32
    return %c0_i32, %c0_i32_0 : i32, i32
  }
  func.func @transform_3(%arg0: i32) -> (i32, i32) {
    %c0_i32 = arith.constant 0 : i32
    %c0_i32_0 = arith.constant 0 : i32
    %c0_i32_1 = arith.constant 0 : i32
    return %c0_i32, %c0_i32_0 : i32, i32
  }
  func.func @transform_4(%arg0: i32) -> (i32, i32) {
    %c0_i32 = arith.constant 0 : i32
    %c0_i32_0 = arith.constant 0 : i32
    %c0_i32_1 = arith.constant 0 : i32
    return %c0_i32, %c0_i32_0 : i32, i32
  }
  func.func @transform_5(%arg0: i32) -> (i32, i32) {
    %c0_i32 = arith.constant 0 : i32
    %c0_i32_0 = arith.constant 0 : i32
    %c0_i32_1 = arith.constant 0 : i32
    return %c0_i32, %c0_i32_0 : i32, i32
  }
  func.func @transform_6(%arg0: i32) -> (i32, i32) {
    %c0_i32 = arith.constant 0 : i32
    %c0_i32_0 = arith.constant 0 : i32
    %c0_i32_1 = arith.constant 0 : i32
    return %c0_i32, %c0_i32_0 : i32, i32
  }
  func.func @transform_7(%arg0: i32) -> (i32, i32) {
    %c0_i32 = arith.constant 0 : i32
    %c0_i32_0 = arith.constant 0 : i32
    %c0_i32_1 = arith.constant 0 : i32
    return %c0_i32, %c0_i32_0 : i32, i32
  }
  func.func @transform_8(%arg0: i32) -> (i32, i32) {
    %c0_i32 = arith.constant 0 : i32
    %c0_i32_0 = arith.constant 0 : i32
    %c0_i32_1 = arith.constant 0 : i32
    return %c0_i32, %c0_i32_0 : i32, i32
  }
  func.func @transform_9(%arg0: i32) -> (i32, i32) {
    %c0_i32 = arith.constant 0 : i32
    %c0_i32_0 = arith.constant 0 : i32
    %c0_i32_1 = arith.constant 0 : i32
    return %c0_i32, %c0_i32_0 : i32, i32
  }
  func.func @transform_10(%arg0: i32) -> (i32, i32) {
    %c0_i32 = arith.constant 0 : i32
    %c0_i32_0 = arith.constant 0 : i32
    %c0_i32_1 = arith.constant 0 : i32
    return %c0_i32, %c0_i32_0 : i32, i32
  }
  func.func @transform_11(%arg0: i32) -> (i32, i32) {
    %c0_i32 = arith.constant 0 : i32
    %c0_i32_0 = arith.constant 0 : i32
    return %arg0, %c0_i32 : i32, i32
  }
}

</mosaic_0001>

<llo_original>
// kernel: tpu_custom_call.1
$region0: #{tpu_custom_call.1}
  #allocation0 [shape = 'u32[]', space=smem, size = 0x4, offset = 0x4, fixed_abs, tag = 'smem constant byte address 0x4 - core index']
  #allocation1 [shape = 'u32[144,128]{1,0:T(1,128)}', space=vmem, size = 0x12000, scoped, tag = 'internal scratch']
  %s0 = inlined_call_operand.hbm [shape: f32[4,8], index: 0, kind: input, shape index: {}]
  %s1 = inlined_call_operand.hbm [shape: f32[16,4], index: 1, kind: input, shape index: {}]
  %s2 = inlined_call_operand.hbm [shape: f32[16,1], index: 2, kind: input, shape index: {}]
  %s3 = inlined_call_operand.hbm [shape: f32[16,4], index: 3, kind: input, shape index: {}]
  %s4 = inlined_call_operand.hbm [shape: f32[16,1], index: 4, kind: input, shape index: {}]
  %s5 = inlined_call_operand.hbm [shape: f32[4,16], index: 5, kind: input, shape index: {}]
  %s6 = inlined_call_operand.hbm [shape: f32[64,16], index: 6, kind: input, shape index: {}]
  %s7 = inlined_call_operand.hbm [shape: f32[64,1], index: 7, kind: input, shape index: {}]
  %s8 = inlined_call_operand.hbm [shape: f32[64,16], index: 8, kind: input, shape index: {}]
  %s9 = inlined_call_operand.hbm [shape: f32[64,1], index: 9, kind: input, shape index: {}]
  %s10 = inlined_call_operand.hbm [shape: f32[16,64], index: 10, kind: input, shape index: {}]
  %s11 = inlined_call_operand.hbm [shape: f32[8,64], index: 11, kind: output, shape index: {}]
  %s12 = sld [smem:[#allocation0]]
  $region98: #{tpu_custom_call.1} parent=0
    _
  %s14 = ssub.s32 1, %s12
  %s15 = scalar_select 0, %s14, %s12
  $region1: #{tpu_custom_call.1} parent=0
    #allocation2 [shape = 'u8[2048]{0}', space=vmem, size = 0x800, scoped, tag = 'input window, operand 0, single buffered']
    #allocation3 [shape = 's32[1]{0}', space=sflag, size = 0x4, scoped, tag = 'scoped memory for tpu_custom_call.1']
    #allocation4 [shape = 's32[1]{0}', space=sflag, size = 0x4, scoped, tag = 'scoped memory for tpu_custom_call.1']
    #allocation5 [shape = 'u8[8192]{0}', space=vmem, size = 0x2000, scoped, tag = 'input window, operand 1, single buffered']
    #allocation6 [shape = 's32[1]{0}', space=sflag, size = 0x4, scoped, tag = 'scoped memory for tpu_custom_call.1']
    #allocation7 [shape = 'u8[8192]{0}', space=vmem, size = 0x2000, scoped, tag = 'input window, operand 2, single buffered']
    #allocation8 [shape = 'u8[8192]{0}', space=vmem, size = 0x2000, scoped, tag = 'input window, operand 3, single buffered']
    #allocation9 [shape = 's32[1]{0}', space=sflag, size = 0x4, scoped, tag = 'scoped memory for tpu_custom_call.1']
    #allocation10 [shape = 'u8[8192]{0}', space=vmem, size = 0x2000, scoped, tag = 'input window, operand 4, single buffered']
    #allocation11 [shape = 'u8[2048]{0}', space=vmem, size = 0x800, scoped, tag = 'input window, operand 5, single buffered']
    #allocation12 [shape = 's32[1]{0}', space=sflag, size = 0x4, scoped, tag = 'scoped memory for tpu_custom_call.1']
    #allocation13 [shape = 'u8[32768]{0}', space=vmem, size = 0x8000, scoped, tag = 'input window, operand 6, single buffered']
    #allocation14 [shape = 'u8[32768]{0}', space=vmem, size = 0x8000, scoped, tag = 'input window, operand 7, single buffered']
    #allocation15 [shape = 's32[1]{0}', space=sflag, size = 0x4, scoped, tag = 'scoped memory for tpu_custom_call.1']
    #allocation16 [shape = 'u8[32768]{0}', space=vmem, size = 0x8000, scoped, tag = 'input window, operand 8, single buffered']
    #allocation17 [shape = 'u8[32768]{0}', space=vmem, size = 0x8000, scoped, tag = 'input window, operand 9, single buffered']
    #allocation18 [shape = 's32[1]{0}', space=sflag, size = 0x4, scoped, tag = 'scoped memory for tpu_custom_call.1']
    #allocation19 [shape = 'u8[8192]{0}', space=vmem, size = 0x2000, scoped, tag = 'input window, operand 10, single buffered']
    #allocation20 [shape = 'u8[4096]{0}', space=vmem, size = 0x1000, scoped, tag = 'output window, operand 0, single buffered']
    %16 = vsyncpa [#allocation3], 0
    %17 = vsyncpa [#allocation6], 0
    %18 = vsyncpa [#allocation9], 0
    %19 = vsyncpa [#allocation12], 0
    %20 = vsyncpa [#allocation15], 0
    %21 = vsyncpa [#allocation18], 0
    %22 = vsyncpa [#allocation4], 0
    // Predicated region
    $region2: #{tpu_custom_call.1} parent=1 // pred_check
      _
    $region3: #{tpu_custom_call.1} parent=1 // pred_check_branch
      %24 = sbr.rel (0) target = $region5
    $region4: #{tpu_custom_call.1} parent=1 // pred_region
      %s26 = ssub.s32 64, 64
      %27 = vsyncadd [#allocation3], %s26
      %s29 = sshll.u32 [#allocation2], 4
      %s30 = int_to_ptr.vmem [resolvable:$true] %s29
      %32 = dma.hbm_to_vmem [thread:$0]  %s0, 64, %s30, [#allocation3]
    $region5: #{tpu_custom_call.1} parent=1 // pred_fallthru
      _
    // Predicated region
    $region6: #{tpu_custom_call.1} parent=1 // pred_check
      _
    $region7: #{tpu_custom_call.1} parent=1 // pred_check_branch
      %34 = sbr.rel (0) target = $region9
    $region8: #{tpu_custom_call.1} parent=1 // pred_region
      %s36 = ssub.s32 256, 256
      %37 = vsyncadd [#allocation6], %s36
      %s38 = sshll.u32 [#allocation5], 4
      %s39 = int_to_ptr.vmem [resolvable:$true] %s38
      %44 = dma.hbm_to_vmem [thread:$0]  %s1, 256, %s39, [#allocation6], 128, 128, 8
    $region9: #{tpu_custom_call.1} parent=1 // pred_fallthru
      _
    // Predicated region
    $region10: #{tpu_custom_call.1} parent=1 // pred_check
      _
    $region11: #{tpu_custom_call.1} parent=1 // pred_check_branch
      %46 = sbr.rel (0) target = $region13
    $region12: #{tpu_custom_call.1} parent=1 // pred_region
      %s48 = ssub.s32 256, 256
      %49 = vsyncadd [#allocation6], %s48
      %s50 = sshll.u32 [#allocation7], 4
      %s51 = int_to_ptr.vmem [resolvable:$true] %s50
      %56 = dma.hbm_to_vmem [thread:$0]  %s2, 256, %s51, [#allocation6], 128, 128, 8
    $region13: #{tpu_custom_call.1} parent=1 // pred_fallthru
      _
    // Predicated region
    $region14: #{tpu_custom_call.1} parent=1 // pred_check
      _
    $region15: #{tpu_custom_call.1} parent=1 // pred_check_branch
      %58 = sbr.rel (0) target = $region17
    $region16: #{tpu_custom_call.1} parent=1 // pred_region
      %s60 = ssub.s32 256, 256
      %61 = vsyncadd [#allocation9], %s60
      %s62 = sshll.u32 [#allocation8], 4
      %s63 = int_to_ptr.vmem [resolvable:$true] %s62
      %68 = dma.hbm_to_vmem [thread:$0]  %s3, 256, %s63, [#allocation9], 128, 128, 8
    $region17: #{tpu_custom_call.1} parent=1 // pred_fallthru
      _
    // Predicated region
    $region18: #{tpu_custom_call.1} parent=1 // pred_check
      _
    $region19: #{tpu_custom_call.1} parent=1 // pred_check_branch
      %70 = sbr.rel (0) target = $region21
    $region20: #{tpu_custom_call.1} parent=1 // pred_region
      %s72 = ssub.s32 256, 256
      %73 = vsyncadd [#allocation9], %s72
      %s74 = sshll.u32 [#allocation10], 4
      %s75 = int_to_ptr.vmem [resolvable:$true] %s74
      %80 = dma.hbm_to_vmem [thread:$0]  %s4, 256, %s75, [#allocation9], 128, 128, 8
    $region21: #{tpu_custom_call.1} parent=1 // pred_fallthru
      _
    // Predicated region
    $region22: #{tpu_custom_call.1} parent=1 // pred_check
      _
    $region23: #{tpu_custom_call.1} parent=1 // pred_check_branch
      %82 = sbr.rel (0) target = $region25
    $region24: #{tpu_custom_call.1} parent=1 // pred_region
      %s84 = ssub.s32 64, 64
      %85 = vsyncadd [#allocation12], %s84
      %s87 = sshll.u32 [#allocation11], 4
      %s88 = int_to_ptr.vmem [resolvable:$true] %s87
      %90 = dma.hbm_to_vmem [thread:$0]  %s5, 64, %s88, [#allocation12]
    $region25: #{tpu_custom_call.1} parent=1 // pred_fallthru
      _
    // Predicated region
    $region26: #{tpu_custom_call.1} parent=1 // pred_check
      _
    $region27: #{tpu_custom_call.1} parent=1 // pred_check_branch
      %92 = sbr.rel (0) target = $region29
    $region28: #{tpu_custom_call.1} parent=1 // pred_region
      %s94 = ssub.s32 1024, 1024
      %95 = vsyncadd [#allocation12], %s94
      %s96 = sshll.u32 [#allocation13], 4
      %s97 = int_to_ptr.vmem [resolvable:$true] %s96
      %102 = dma.hbm_to_vmem [thread:$0]  %s6, 1024, %s97, [#allocation12], 128, 128, 8
    $region29: #{tpu_custom_call.1} parent=1 // pred_fallthru
      _
    // Predicated region
    $region30: #{tpu_custom_call.1} parent=1 // pred_check
      _
    $region31: #{tpu_custom_call.1} parent=1 // pred_check_branch
      %104 = sbr.rel (0) target = $region33
    $region32: #{tpu_custom_call.1} parent=1 // pred_region
      %s106 = ssub.s32 1024, 1024
      %107 = vsyncadd [#allocation15], %s106
      %s108 = sshll.u32 [#allocation14], 4
      %s109 = int_to_ptr.vmem [resolvable:$true] %s108
      %114 = dma.hbm_to_vmem [thread:$0]  %s7, 1024, %s109, [#allocation15], 128, 128, 8
    $region33: #{tpu_custom_call.1} parent=1 // pred_fallthru
      _
    // Predicated region
    $region34: #{tpu_custom_call.1} parent=1 // pred_check
      _
    $region35: #{tpu_custom_call.1} parent=1 // pred_check_branch
      %116 = sbr.rel (0) target = $region37
    $region36: #{tpu_custom_call.1} parent=1 // pred_region
      %s118 = ssub.s32 1024, 1024
      %119 = vsyncadd [#allocation15], %s118
      %s120 = sshll.u32 [#allocation16], 4
      %s121 = int_to_ptr.vmem [resolvable:$true] %s120
      %126 = dma.hbm_to_vmem [thread:$0]  %s8, 1024, %s121, [#allocation15], 128, 128, 8
    $region37: #{tpu_custom_call.1} parent=1 // pred_fallthru
      _
    // Predicated region
    $region38: #{tpu_custom_call.1} parent=1 // pred_check
      _
    $region39: #{tpu_custom_call.1} parent=1 // pred_check_branch
      %128 = sbr.rel (0) target = $region41
    $region40: #{tpu_custom_call.1} parent=1 // pred_region
      %s130 = ssub.s32 1024, 1024
      %131 = vsyncadd [#allocation18], %s130
      %s132 = sshll.u32 [#allocation17], 4
      %s133 = int_to_ptr.vmem [resolvable:$true] %s132
      %138 = dma.hbm_to_vmem [thread:$0]  %s9, 1024, %s133, [#allocation18], 128, 128, 8
    $region41: #{tpu_custom_call.1} parent=1 // pred_fallthru
      _
    // Predicated region
    $region42: #{tpu_custom_call.1} parent=1 // pred_check
      _
    $region43: #{tpu_custom_call.1} parent=1 // pred_check_branch
      %140 = sbr.rel (0) target = $region45
    $region44: #{tpu_custom_call.1} parent=1 // pred_region
      %s142 = ssub.s32 256, 256
      %143 = vsyncadd [#allocation18], %s142
      %s144 = sshll.u32 [#allocation19], 4
      %s145 = int_to_ptr.vmem [resolvable:$true] %s144
      %150 = dma.hbm_to_vmem [thread:$0]  %s10, 256, %s145, [#allocation18], 128, 128, 8
    $region45: #{tpu_custom_call.1} parent=1 // pred_fallthru
      _
    // Predicated region
    $region46: #{tpu_custom_call.1} parent=1 // pred_check
      _
    $region47: #{tpu_custom_call.1} parent=1 // pred_check_branch
      %152 = sbr.rel (0) target = $region49
    $region48: #{tpu_custom_call.1} parent=1 // pred_region
      %153 = dma.done [#allocation3], 64
    $region49: #{tpu_custom_call.1} parent=1 // pred_fallthru
      _
    // Predicated region
    $region50: #{tpu_custom_call.1} parent=1 // pred_check
      _
    $region51: #{tpu_custom_call.1} parent=1 // pred_check_branch
      %155 = sbr.rel (0) target = $region53
    $region52: #{tpu_custom_call.1} parent=1 // pred_region
      %156 = dma.done [#allocation6], 256
    $region53: #{tpu_custom_call.1} parent=1 // pred_fallthru
      _
    // Predicated region
    $region54: #{tpu_custom_call.1} parent=1 // pred_check
      _
    $region55: #{tpu_custom_call.1} parent=1 // pred_check_branch
      %158 = sbr.rel (0) target = $region57
    $region56: #{tpu_custom_call.1} parent=1 // pred_region
      %159 = dma.done [#allocation6], 256
    $region57: #{tpu_custom_call.1} parent=1 // pred_fallthru
      _
    // Predicated region
    $region58: #{tpu_custom_call.1} parent=1 // pred_check
      _
    $region59: #{tpu_custom_call.1} parent=1 // pred_check_branch
      %161 = sbr.rel (0) target = $region61
    $region60: #{tpu_custom_call.1} parent=1 // pred_region
      %162 = dma.done [#allocation9], 256
    $region61: #{tpu_custom_call.1} parent=1 // pred_fallthru
      _
    // Predicated region
    $region62: #{tpu_custom_call.1} parent=1 // pred_check
      _
    $region63: #{tpu_custom_call.1} parent=1 // pred_check_branch
      %164 = sbr.rel (0) target = $region65
    $region64: #{tpu_custom_call.1} parent=1 // pred_region
      %165 = dma.done [#allocation9], 256
    $region65: #{tpu_custom_call.1} parent=1 // pred_fallthru
      _
    // Predicated region
    $region66: #{tpu_custom_call.1} parent=1 // pred_check
      _
    $region67: #{tpu_custom_call.1} parent=1 // pred_check_branch
      %167 = sbr.rel (0) target = $region69
    $region68: #{tpu_custom_call.1} parent=1 // pred_region
      %168 = dma.done [#allocation12], 64
    $region69: #{tpu_custom_call.1} parent=1 // pred_fallthru
      _
    // Predicated region
    $region70: #{tpu_custom_call.1} parent=1 // pred_check
      _
    $region71: #{tpu_custom_call.1} parent=1 // pred_check_branch
      %170 = sbr.rel (0) target = $region73
    $region72: #{tpu_custom_call.1} parent=1 // pred_region
      %171 = dma.done [#allocation12], 1024
    $region73: #{tpu_custom_call.1} parent=1 // pred_fallthru
      _
    // Predicated region
    $region74: #{tpu_custom_call.1} parent=1 // pred_check
      _
    $region75: #{tpu_custom_call.1} parent=1 // pred_check_branch
      %173 = sbr.rel (0) target = $region77
    $region76: #{tpu_custom_call.1} parent=1 // pred_region
      %174 = dma.done [#allocation15], 1024
    $region77: #{tpu_custom_call.1} parent=1 // pred_fallthru
      _
    // Predicated region
    $region78: #{tpu_custom_call.1} parent=1 // pred_check
      _
    $region79: #{tpu_custom_call.1} parent=1 // pred_check_branch
      %176 = sbr.rel (0) target = $region81
    $region80: #{tpu_custom_call.1} parent=1 // pred_region
      %177 = dma.done [#allocation15], 1024
    $region81: #{tpu_custom_call.1} parent=1 // pred_fallthru
      _
    // Predicated region
    $region82: #{tpu_custom_call.1} parent=1 // pred_check
      _
    $region83: #{tpu_custom_call.1} parent=1 // pred_check_branch
      %179 = sbr.rel (0) target = $region85
    $region84: #{tpu_custom_call.1} parent=1 // pred_region
      %180 = dma.done [#allocation18], 1024
    $region85: #{tpu_custom_call.1} parent=1 // pred_fallthru
      _
    // Predicated region
    $region86: #{tpu_custom_call.1} parent=1 // pred_check
      _
    $region87: #{tpu_custom_call.1} parent=1 // pred_check_branch
      %182 = sbr.rel (0) target = $region89
    $region88: #{tpu_custom_call.1} parent=1 // pred_region
      %183 = dma.done [#allocation18], 256
    $region89: #{tpu_custom_call.1} parent=1 // pred_fallthru
      _
    %v184 = vld [vmem:[#allocation5] sm:$0xff]
    %v185 = vld [vmem:[#allocation5 + $0x8] sm:$0xff]
    %v186 = vld [vmem:[#allocation2] sm:$0xf]
    %v187 = vld [vmem:[#allocation7] sm:$0xff]
    %v188 = vld [vmem:[#allocation7 + $0x8] sm:$0xff]
    %190 = vset.pattern.permute.xlu0 0
    %191 = vperm.xlu0 %190, %v187
    %v192 = vpop.permute.xlu0 %191
    %195 = vset.pattern.permute.xlu0 0
    %196 = vperm.xlu0 %195, %v188
    %v197 = vpop.permute.xlu0 %196
    %vm199 = vcmask 31744
    %v201 = vsel %vm199, %v184, 0
    %v204 = vsel %vm199, %v185, 0
    %vm206 = vcmask 1043456
    %v208 = vsel %vm206, %v186, 0
    %210 = vmatprep.subr.mxu0 0.0
    %v211 = vand.u32 %v208, 4294901760
    %212 = vmatpush1.msra.mxu0 %v211
    %213 = vmatprep.subr.mxu0 0.0
    %214 = vmatpush1.msra.mxu0 0.0
    %215 = vmatprep.subr.mxu0 0.0
    %216 = vmatpush1.msra.mxu0 0.0
    %217 = vmatprep.subr.mxu0 0.0
    %218 = vmatpush1.msra.mxu0 0.0
    %219 = vmatprep.subr.mxu0 0.0
    %220 = vmatpush1.msra.mxu0 0.0
    %221 = vmatprep.subr.mxu0 0.0
    %222 = vmatpush1.msra.mxu0 0.0
    %223 = vmatprep.subr.mxu0 0.0
    %224 = vmatpush1.msra.mxu0 0.0
    %225 = vmatprep.subr.mxu0 0.0
    %226 = vmatpush1.msra.mxu0 0.0
    %227 = vmatprep.subr.mxu0 0.0
    %228 = vmatpush1.msra.mxu0 0.0
    %229 = vmatprep.subr.mxu0 0.0
    %230 = vmatpush1.msra.mxu0 0.0
    %231 = vmatprep.subr.mxu0 0.0
    %232 = vmatpush1.msra.mxu0 0.0
    %233 = vmatprep.subr.mxu0 0.0
    %234 = vmatpush1.msra.mxu0 0.0
    %235 = vmatprep.subr.mxu0 0.0
    %236 = vmatpush1.msra.mxu0 0.0
    %237 = vmatprep.subr.mxu0 0.0
    %238 = vmatpush1.msra.mxu0 0.0
    %239 = vmatprep.subr.mxu0 0.0
    %240 = vmatpush1.msra.mxu0 0.0
    %241 = vmatprep.subr.mxu0 0.0
    %242 = vmatpush1.msra.mxu0 0.0
    %243 = vmatprep.subr.mxu0 0.0
    %244 = vmatpush1.msra.mxu0 0.0
    %245 = vmatprep.subr.mxu0 0.0
    %246 = vmatpush1.msra.mxu0 0.0
    %247 = vmatprep.subr.mxu0 0.0
    %248 = vmatpush1.msra.mxu0 0.0
    %249 = vmatprep.subr.mxu0 0.0
    %250 = vmatpush1.msra.mxu0 0.0
    %251 = vmatprep.subr.mxu0 0.0
    %252 = vmatpush1.msra.mxu0 0.0
    %253 = vmatprep.subr.mxu0 0.0
    %254 = vmatpush1.msra.mxu0 0.0
    %255 = vmatprep.subr.mxu0 0.0
    %256 = vmatpush1.msra.mxu0 0.0
    %257 = vmatprep.subr.mxu0 0.0
    %258 = vmatpush1.msra.mxu0 0.0
    %259 = vmatprep.subr.mxu0 0.0
    %260 = vmatpush1.msra.mxu0 0.0
    %261 = vmatprep.subr.mxu0 0.0
    %262 = vmatpush1.msra.mxu0 0.0
    %263 = vmatprep.subr.mxu0 0.0
    %264 = vmatpush1.msra.mxu0 0.0
    %265 = vmatprep.subr.mxu0 0.0
    %266 = vmatpush1.msra.mxu0 0.0
    %267 = vmatprep.subr.mxu0 0.0
    %268 = vmatpush1.msra.mxu0 0.0
    %269 = vmatprep.subr.mxu0 0.0
    %270 = vmatpush1.msra.mxu0 0.0
    %271 = vmatprep.subr.mxu0 0.0
    %272 = vmatpush1.msra.mxu0 0.0
    %273 = vmatprep.subr.mxu0 0.0
    %274 = vmatpush1.msra.mxu0 0.0
    %275 = vmatprep.mubr.f32.mxu0 0.0
    %v276 = vand.u32 %v201, 4294901760
    %v277 = vsub.f32 %v201, %v276
    %v278 = vand.u32 %v277, 4294901760
    %v279 = vsub.f32 %v277, %v278
    %v280 = vand.u32 %v279, 4294901760
    %281 = vmatmul.mubr.f32.gmra.mrb[0].mxu0 %v280
    %v282 = vpop.f32.mrb[0].mxu0
    %v283 = vadd.f32 %v192, %v282
    %v284 = vpop.f32.mrb[0].mxu0
    %285 = vmatprep.mubr.f32.mxu0 0.0
    %v286 = vand.u32 %v204, 4294901760
    %v287 = vsub.f32 %v204, %v286
    %v288 = vand.u32 %v287, 4294901760
    %v289 = vsub.f32 %v287, %v288
    %v290 = vand.u32 %v289, 4294901760
    %291 = vmatmul.mubr.f32.gmra.mrb[0].mxu0 %v290
    %v292 = vpop.f32.mrb[0].mxu0
    %v293 = vadd.f32 %v197, %v292
    %v294 = vpop.f32.mrb[0].mxu0
    %295 = vdwg.mxu0
    %296 = vmatprep.subr.mxu0 0.0
    %v297 = vand.u32 %v208, 4294901760
    %v298 = vsub.f32 %v208, %v297
    %v299 = vand.u32 %v298, 4294901760
    %v300 = vsub.f32 %v298, %v299
    %v301 = vand.u32 %v300, 4294901760
    %302 = vmatpush1.msra.mxu0 %v301
    %303 = vmatprep.subr.mxu0 0.0
    %304 = vmatpush1.msra.mxu0 0.0
    %305 = vmatprep.subr.mxu0 0.0
    %306 = vmatpush1.msra.mxu0 0.0
    %307 = vmatprep.subr.mxu0 0.0
    %308 = vmatpush1.msra.mxu0 0.0
    %309 = vmatprep.subr.mxu0 0.0
    %310 = vmatpush1.msra.mxu0 0.0
    %311 = vmatprep.subr.mxu0 0.0
    %312 = vmatpush1.msra.mxu0 0.0
    %313 = vmatprep.subr.mxu0 0.0
    %314 = vmatpush1.msra.mxu0 0.0
    %315 = vmatprep.subr.mxu0 0.0
    %316 = vmatpush1.msra.mxu0 0.0
    %317 = vmatprep.subr.mxu0 0.0
    %318 = vmatpush1.msra.mxu0 0.0
    %319 = vmatprep.subr.mxu0 0.0
    %320 = vmatpush1.msra.mxu0 0.0
    %321 = vmatprep.subr.mxu0 0.0
    %322 = vmatpush1.msra.mxu0 0.0
    %323 = vmatprep.subr.mxu0 0.0
    %324 = vmatpush1.msra.mxu0 0.0
    %325 = vmatprep.subr.mxu0 0.0
    %326 = vmatpush1.msra.mxu0 0.0
    %327 = vmatprep.subr.mxu0 0.0
    %328 = vmatpush1.msra.mxu0 0.0
    %329 = vmatprep.subr.mxu0 0.0
    %330 = vmatpush1.msra.mxu0 0.0
    %331 = vmatprep.subr.mxu0 0.0
    %332 = vmatpush1.msra.mxu0 0.0
    %333 = vmatprep.subr.mxu0 0.0
    %334 = vmatpush1.msra.mxu0 0.0
    %335 = vmatprep.subr.mxu0 0.0
    %336 = vmatpush1.msra.mxu0 0.0
    %337 = vmatprep.subr.mxu0 0.0
    %338 = vmatpush1.msra.mxu0 0.0
    %339 = vmatprep.subr.mxu0 0.0
    %340 = vmatpush1.msra.mxu0 0.0
    %341 = vmatprep.subr.mxu0 0.0
    %342 = vmatpush1.msra.mxu0 0.0
    %343 = vmatprep.subr.mxu0 0.0
    %344 = vmatpush1.msra.mxu0 0.0
    %345 = vmatprep.subr.mxu0 0.0
    %346 = vmatpush1.msra.mxu0 0.0
    %347 = vmatprep.subr.mxu0 0.0
    %348 = vmatpush1.msra.mxu0 0.0
    %349 = vmatprep.subr.mxu0 0.0
    %350 = vmatpush1.msra.mxu0 0.0
    %351 = vmatprep.subr.mxu0 0.0
    %352 = vmatpush1.msra.mxu0 0.0
    %353 = vmatprep.subr.mxu0 0.0
    %354 = vmatpush1.msra.mxu0 0.0
    %355 = vmatprep.subr.mxu0 0.0
    %356 = vmatpush1.msra.mxu0 0.0
    %357 = vmatprep.subr.mxu0 0.0
    %358 = vmatpush1.msra.mxu0 0.0
    %359 = vmatprep.subr.mxu0 0.0
    %360 = vmatpush1.msra.mxu0 0.0
    %361 = vmatprep.subr.mxu0 0.0
    %362 = vmatpush1.msra.mxu0 0.0
    %363 = vmatprep.subr.mxu0 0.0
    %364 = vmatpush1.msra.mxu0 0.0
    %365 = vmatprep.mubr.f32.mxu0 0.0
    %v366 = vand.u32 %v201, 4294901760
    %367 = vmatmul.mubr.f32.gmra.mrb[0].mxu0 %v366
    %v368 = vpop.f32.mrb[0].mxu0
    %v369 = vadd.f32 %v283, %v368
    %v370 = vpop.f32.mrb[0].mxu0
    %371 = vmatprep.mubr.f32.mxu0 0.0
    %v372 = vand.u32 %v204, 4294901760
    %373 = vmatmul.mubr.f32.gmra.mrb[0].mxu0 %v372
    %v374 = vpop.f32.mrb[0].mxu0
    %v375 = vadd.f32 %v293, %v374
    %v376 = vpop.f32.mrb[0].mxu0
    %377 = vdwg.mxu0
    %378 = vmatprep.subr.mxu0 0.0
    %v379 = vand.u32 %v208, 4294901760
    %v380 = vsub.f32 %v208, %v379
    %381 = vmatpush1.msra.mxu0 %v380
    %382 = vmatprep.subr.mxu0 0.0
    %383 = vmatpush1.msra.mxu0 0.0
    %384 = vmatprep.subr.mxu0 0.0
    %385 = vmatpush1.msra.mxu0 0.0
    %386 = vmatprep.subr.mxu0 0.0
    %387 = vmatpush1.msra.mxu0 0.0
    %388 = vmatprep.subr.mxu0 0.0
    %389 = vmatpush1.msra.mxu0 0.0
    %390 = vmatprep.subr.mxu0 0.0
    %391 = vmatpush1.msra.mxu0 0.0
    %392 = vmatprep.subr.mxu0 0.0
    %393 = vmatpush1.msra.mxu0 0.0
    %394 = vmatprep.subr.mxu0 0.0
    %395 = vmatpush1.msra.mxu0 0.0
    %396 = vmatprep.subr.mxu0 0.0
    %397 = vmatpush1.msra.mxu0 0.0
    %398 = vmatprep.subr.mxu0 0.0
    %399 = vmatpush1.msra.mxu0 0.0
    %400 = vmatprep.subr.mxu0 0.0
    %401 = vmatpush1.msra.mxu0 0.0
    %402 = vmatprep.subr.mxu0 0.0
    %403 = vmatpush1.msra.mxu0 0.0
    %404 = vmatprep.subr.mxu0 0.0
    %405 = vmatpush1.msra.mxu0 0.0
    %406 = vmatprep.subr.mxu0 0.0
    %407 = vmatpush1.msra.mxu0 0.0
    %408 = vmatprep.subr.mxu0 0.0
    %409 = vmatpush1.msra.mxu0 0.0
    %410 = vmatprep.subr.mxu0 0.0
    %411 = vmatpush1.msra.mxu0 0.0
    %412 = vmatprep.subr.mxu0 0.0
    %413 = vmatpush1.msra.mxu0 0.0
    %414 = vmatprep.subr.mxu0 0.0
    %415 = vmatpush1.msra.mxu0 0.0
    %416 = vmatprep.subr.mxu0 0.0
    %417 = vmatpush1.msra.mxu0 0.0
    %418 = vmatprep.subr.mxu0 0.0
    %419 = vmatpush1.msra.mxu0 0.0
    %420 = vmatprep.subr.mxu0 0.0
    %421 = vmatpush1.msra.mxu0 0.0
    %422 = vmatprep.subr.mxu0 0.0
    %423 = vmatpush1.msra.mxu0 0.0
    %424 = vmatprep.subr.mxu0 0.0
    %425 = vmatpush1.msra.mxu0 0.0
    %426 = vmatprep.subr.mxu0 0.0
    %427 = vmatpush1.msra.mxu0 0.0
    %428 = vmatprep.subr.mxu0 0.0
    %429 = vmatpush1.msra.mxu0 0.0
    %430 = vmatprep.subr.mxu0 0.0
    %431 = vmatpush1.msra.mxu0 0.0
    %432 = vmatprep.subr.mxu0 0.0
    %433 = vmatpush1.msra.mxu0 0.0
    %434 = vmatprep.subr.mxu0 0.0
    %435 = vmatpush1.msra.mxu0 0.0
    %436 = vmatprep.subr.mxu0 0.0
    %437 = vmatpush1.msra.mxu0 0.0
    %438 = vmatprep.subr.mxu0 0.0
    %439 = vmatpush1.msra.mxu0 0.0
    %440 = vmatprep.subr.mxu0 0.0
    %441 = vmatpush1.msra.mxu0 0.0
    %442 = vmatprep.subr.mxu0 0.0
    %443 = vmatpush1.msra.mxu0 0.0
    %444 = vmatprep.mubr.f32.mxu0 0.0
    %v445 = vand.u32 %v201, 4294901760
    %v446 = vsub.f32 %v201, %v445
    %447 = vmatmul.mubr.f32.gmra.mrb[0].mxu0 %v446
    %v448 = vpop.f32.mrb[0].mxu0
    %v449 = vadd.f32 %v369, %v448
    %v450 = vpop.f32.mrb[0].mxu0
    %451 = vmatprep.mubr.f32.mxu0 0.0
    %v452 = vand.u32 %v204, 4294901760
    %v453 = vsub.f32 %v204, %v452
    %454 = vmatmul.mubr.f32.gmra.mrb[0].mxu0 %v453
    %v455 = vpop.f32.mrb[0].mxu0
    %v456 = vadd.f32 %v375, %v455
    %v457 = vpop.f32.mrb[0].mxu0
    %458 = vdwg.mxu0
    %459 = vmatprep.subr.mxu0 0.0
    %v460 = vand.u32 %v208, 4294901760
    %461 = vmatpush1.msra.mxu0 %v460
    %462 = vmatprep.subr.mxu0 0.0
    %463 = vmatpush1.msra.mxu0 0.0
    %464 = vmatprep.subr.mxu0 0.0
    %465 = vmatpush1.msra.mxu0 0.0
    %466 = vmatprep.subr.mxu0 0.0
    %467 = vmatpush1.msra.mxu0 0.0
    %468 = vmatprep.subr.mxu0 0.0
    %469 = vmatpush1.msra.mxu0 0.0
    %470 = vmatprep.subr.mxu0 0.0
    %471 = vmatpush1.msra.mxu0 0.0
    %472 = vmatprep.subr.mxu0 0.0
    %473 = vmatpush1.msra.mxu0 0.0
    %474 = vmatprep.subr.mxu0 0.0
    %475 = vmatpush1.msra.mxu0 0.0
    %476 = vmatprep.subr.mxu0 0.0
    %477 = vmatpush1.msra.mxu0 0.0
    %478 = vmatprep.subr.mxu0 0.0
    %479 = vmatpush1.msra.mxu0 0.0
    %480 = vmatprep.subr.mxu0 0.0
    %481 = vmatpush1.msra.mxu0 0.0
    %482 = vmatprep.subr.mxu0 0.0
    %483 = vmatpush1.msra.mxu0 0.0
    %484 = vmatprep.subr.mxu0 0.0
    %485 = vmatpush1.msra.mxu0 0.0
    %486 = vmatprep.subr.mxu0 0.0
    %487 = vmatpush1.msra.mxu0 0.0
    %488 = vmatprep.subr.mxu0 0.0
    %489 = vmatpush1.msra.mxu0 0.0
    %490 = vmatprep.subr.mxu0 0.0
    %491 = vmatpush1.msra.mxu0 0.0
    %492 = vmatprep.subr.mxu0 0.0
    %493 = vmatpush1.msra.mxu0 0.0
    %494 = vmatprep.subr.mxu0 0.0
    %495 = vmatpush1.msra.mxu0 0.0
    %496 = vmatprep.subr.mxu0 0.0
    %497 = vmatpush1.msra.mxu0 0.0
    %498 = vmatprep.subr.mxu0 0.0
    %499 = vmatpush1.msra.mxu0 0.0
    %500 = vmatprep.subr.mxu0 0.0
    %501 = vmatpush1.msra.mxu0 0.0
    %502 = vmatprep.subr.mxu0 0.0
    %503 = vmatpush1.msra.mxu0 0.0
    %504 = vmatprep.subr.mxu0 0.0
    %505 = vmatpush1.msra.mxu0 0.0
    %506 = vmatprep.subr.mxu0 0.0
    %507 = vmatpush1.msra.mxu0 0.0
    %508 = vmatprep.subr.mxu0 0.0
    %509 = vmatpush1.msra.mxu0 0.0
    %510 = vmatprep.subr.mxu0 0.0
    %511 = vmatpush1.msra.mxu0 0.0
    %512 = vmatprep.subr.mxu0 0.0
    %513 = vmatpush1.msra.mxu0 0.0
    %514 = vmatprep.subr.mxu0 0.0
    %515 = vmatpush1.msra.mxu0 0.0
    %516 = vmatprep.subr.mxu0 0.0
    %517 = vmatpush1.msra.mxu0 0.0
    %518 = vmatprep.subr.mxu0 0.0
    %519 = vmatpush1.msra.mxu0 0.0
    %520 = vmatprep.subr.mxu0 0.0
    %521 = vmatpush1.msra.mxu0 0.0
    %522 = vmatprep.subr.mxu0 0.0
    %523 = vmatpush1.msra.mxu0 0.0
    %524 = vmatprep.mubr.f32.mxu0 0.0
    %v525 = vand.u32 %v201, 4294901760
    %v526 = vsub.f32 %v201, %v525
    %v527 = vand.u32 %v526, 4294901760
    %528 = vmatmul.mubr.f32.gmra.mrb[0].mxu0 %v527
    %v529 = vpop.f32.mrb[0].mxu0
    %v530 = vadd.f32 %v449, %v529
    %v531 = vpop.f32.mrb[0].mxu0
    %532 = vmatprep.mubr.f32.mxu0 0.0
    %v533 = vand.u32 %v204, 4294901760
    %v534 = vsub.f32 %v204, %v533
    %v535 = vand.u32 %v534, 4294901760
    %536 = vmatmul.mubr.f32.gmra.mrb[0].mxu0 %v535
    %v537 = vpop.f32.mrb[0].mxu0
    %v538 = vadd.f32 %v456, %v537
    %v539 = vpop.f32.mrb[0].mxu0
    %540 = vdwg.mxu0
    %541 = vmatprep.subr.mxu0 0.0
    %v542 = vand.u32 %v208, 4294901760
    %v543 = vsub.f32 %v208, %v542
    %v544 = vand.u32 %v543, 4294901760
    %545 = vmatpush1.msra.mxu0 %v544
    %546 = vmatprep.subr.mxu0 0.0
    %547 = vmatpush1.msra.mxu0 0.0
    %548 = vmatprep.subr.mxu0 0.0
    %549 = vmatpush1.msra.mxu0 0.0
    %550 = vmatprep.subr.mxu0 0.0
    %551 = vmatpush1.msra.mxu0 0.0
    %552 = vmatprep.subr.mxu0 0.0
    %553 = vmatpush1.msra.mxu0 0.0
    %554 = vmatprep.subr.mxu0 0.0
    %555 = vmatpush1.msra.mxu0 0.0
    %556 = vmatprep.subr.mxu0 0.0
    %557 = vmatpush1.msra.mxu0 0.0
    %558 = vmatprep.subr.mxu0 0.0
    %559 = vmatpush1.msra.mxu0 0.0
    %560 = vmatprep.subr.mxu0 0.0
    %561 = vmatpush1.msra.mxu0 0.0
    %562 = vmatprep.subr.mxu0 0.0
    %563 = vmatpush1.msra.mxu0 0.0
    %564 = vmatprep.subr.mxu0 0.0
    %565 = vmatpush1.msra.mxu0 0.0
    %566 = vmatprep.subr.mxu0 0.0
    %567 = vmatpush1.msra.mxu0 0.0
    %568 = vmatprep.subr.mxu0 0.0
    %569 = vmatpush1.msra.mxu0 0.0
    %570 = vmatprep.subr.mxu0 0.0
    %571 = vmatpush1.msra.mxu0 0.0
    %572 = vmatprep.subr.mxu0 0.0
    %573 = vmatpush1.msra.mxu0 0.0
    %574 = vmatprep.subr.mxu0 0.0
    %575 = vmatpush1.msra.mxu0 0.0
    %576 = vmatprep.subr.mxu0 0.0
    %577 = vmatpush1.msra.mxu0 0.0
    %578 = vmatprep.subr.mxu0 0.0
    %579 = vmatpush1.msra.mxu0 0.0
    %580 = vmatprep.subr.mxu0 0.0
    %581 = vmatpush1.msra.mxu0 0.0
    %582 = vmatprep.subr.mxu0 0.0
    %583 = vmatpush1.msra.mxu0 0.0
    %584 = vmatprep.subr.mxu0 0.0
    %585 = vmatpush1.msra.mxu0 0.0
    %586 = vmatprep.subr.mxu0 0.0
    %587 = vmatpush1.msra.mxu0 0.0
    %588 = vmatprep.subr.mxu0 0.0
    %589 = vmatpush1.msra.mxu0 0.0
    %590 = vmatprep.subr.mxu0 0.0
    %591 = vmatpush1.msra.mxu0 0.0
    %592 = vmatprep.subr.mxu0 0.0
    %593 = vmatpush1.msra.mxu0 0.0
    %594 = vmatprep.subr.mxu0 0.0
    %595 = vmatpush1.msra.mxu0 0.0
    %596 = vmatprep.subr.mxu0 0.0
    %597 = vmatpush1.msra.mxu0 0.0
    %598 = vmatprep.subr.mxu0 0.0
    %599 = vmatpush1.msra.mxu0 0.0
    %600 = vmatprep.subr.mxu0 0.0
    %601 = vmatpush1.msra.mxu0 0.0
    %602 = vmatprep.subr.mxu0 0.0
    %603 = vmatpush1.msra.mxu0 0.0
    %604 = vmatprep.subr.mxu0 0.0
    %605 = vmatpush1.msra.mxu0 0.0
    %606 = vmatprep.subr.mxu0 0.0
    %607 = vmatpush1.msra.mxu0 0.0
    %608 = vmatprep.mubr.f32.mxu0 0.0
    %v609 = vand.u32 %v201, 4294901760
    %610 = vmatmul.mubr.f32.gmra.mrb[0].mxu0 %v609
    %v611 = vpop.f32.mrb[0].mxu0
    %v612 = vadd.f32 %v530, %v611
    %v613 = vpop.f32.mrb[0].mxu0
    %614 = vmatprep.mubr.f32.mxu0 0.0
    %v615 = vand.u32 %v204, 4294901760
    %616 = vmatmul.mubr.f32.gmra.mrb[0].mxu0 %v615
    %v617 = vpop.f32.mrb[0].mxu0
    %v618 = vadd.f32 %v538, %v617
    %v619 = vpop.f32.mrb[0].mxu0
    %620 = vdwg.mxu0
    %621 = vmatprep.subr.mxu0 0.0
    %v622 = vand.u32 %v208, 4294901760
    %623 = vmatpush1.msra.mxu0 %v622
    %624 = vmatprep.subr.mxu0 0.0
    %625 = vmatpush1.msra.mxu0 0.0
    %626 = vmatprep.subr.mxu0 0.0
    %627 = vmatpush1.msra.mxu0 0.0
    %628 = vmatprep.subr.mxu0 0.0
    %629 = vmatpush1.msra.mxu0 0.0
    %630 = vmatprep.subr.mxu0 0.0
    %631 = vmatpush1.msra.mxu0 0.0
    %632 = vmatprep.subr.mxu0 0.0
    %633 = vmatpush1.msra.mxu0 0.0
    %634 = vmatprep.subr.mxu0 0.0
    %635 = vmatpush1.msra.mxu0 0.0
    %636 = vmatprep.subr.mxu0 0.0
    %637 = vmatpush1.msra.mxu0 0.0
    %638 = vmatprep.subr.mxu0 0.0
    %639 = vmatpush1.msra.mxu0 0.0
    %640 = vmatprep.subr.mxu0 0.0
    %641 = vmatpush1.msra.mxu0 0.0
    %642 = vmatprep.subr.mxu0 0.0
    %643 = vmatpush1.msra.mxu0 0.0
    %644 = vmatprep.subr.mxu0 0.0
    %645 = vmatpush1.msra.mxu0 0.0
    %646 = vmatprep.subr.mxu0 0.0
    %647 = vmatpush1.msra.mxu0 0.0
    %648 = vmatprep.subr.mxu0 0.0
    %649 = vmatpush1.msra.mxu0 0.0
    %650 = vmatprep.subr.mxu0 0.0
    %651 = vmatpush1.msra.mxu0 0.0
    %652 = vmatprep.subr.mxu0 0.0
    %653 = vmatpush1.msra.mxu0 0.0
    %654 = vmatprep.subr.mxu0 0.0
    %655 = vmatpush1.msra.mxu0 0.0
    %656 = vmatprep.subr.mxu0 0.0
    %657 = vmatpush1.msra.mxu0 0.0
    %658 = vmatprep.subr.mxu0 0.0
    %659 = vmatpush1.msra.mxu0 0.0
    %660 = vmatprep.subr.mxu0 0.0
    %661 = vmatpush1.msra.mxu0 0.0
    %662 = vmatprep.subr.mxu0 0.0
    %663 = vmatpush1.msra.mxu0 0.0
    %664 = vmatprep.subr.mxu0 0.0
    %665 = vmatpush1.msra.mxu0 0.0
    %666 = vmatprep.subr.mxu0 0.0
    %667 = vmatpush1.msra.mxu0 0.0
    %668 = vmatprep.subr.mxu0 0.0
    %669 = vmatpush1.msra.mxu0 0.0
    %670 = vmatprep.subr.mxu0 0.0
    %671 = vmatpush1.msra.mxu0 0.0
    %672 = vmatprep.subr.mxu0 0.0
    %673 = vmatpush1.msra.mxu0 0.0
    %674 = vmatprep.subr.mxu0 0.0
    %675 = vmatpush1.msra.mxu0 0.0
    %676 = vmatprep.subr.mxu0 0.0
    %677 = vmatpush1.msra.mxu0 0.0
    %678 = vmatprep.subr.mxu0 0.0
    %679 = vmatpush1.msra.mxu0 0.0
    %680 = vmatprep.subr.mxu0 0.0
    %681 = vmatpush1.msra.mxu0 0.0
    %682 = vmatprep.subr.mxu0 0.0
    %683 = vmatpush1.msra.mxu0 0.0
    %684 = vmatprep.subr.mxu0 0.0
    %685 = vmatpush1.msra.mxu0 0.0
    %686 = vmatprep.mubr.f32.mxu0 0.0
    %v687 = vand.u32 %v201, 4294901760
    %688 = vmatmul.mubr.f32.gmra.mrb[0].mxu0 %v687
    %v689 = vpop.f32.mrb[0].mxu0
    %v690 = vadd.f32 %v612, %v689
    %v691 = vpop.f32.mrb[0].mxu0
    %692 = vmatprep.mubr.f32.mxu0 0.0
    %v693 = vand.u32 %v204, 4294901760
    %694 = vmatmul.mubr.f32.gmra.mrb[0].mxu0 %v693
    %v695 = vpop.f32.mrb[0].mxu0
    %v696 = vadd.f32 %v618, %v695
    %v697 = vpop.f32.mrb[0].mxu0
    %698 = vdwg.mxu0
    %v699 = vld [vmem:[#allocation11] sm:$0xf]
    %v700 = vld [vmem:[#allocation8] sm:$0xff]
    %v701 = vld [vmem:[#allocation8 + $0x8] sm:$0xff]
    %v702 = vld [vmem:[#allocation10] sm:$0xff]
    %v703 = vld [vmem:[#allocation10 + $0x8] sm:$0xff]
    %vm704 = vcmask 130048
    %v706 = vsel %vm704, %v699, 0
    %708 = vmatprep.subr.mxu0 0.0
    %v709 = vand.u32 %v690, 4294901760
    %710 = vmatpush1.msra.mxu0 %v709
    %711 = vmatprep.subr.mxu0 0.0
    %v712 = vand.u32 %v696, 4294901760
    %713 = vmatpush1.msra.mxu0 %v712
    %714 = vmatprep.subr.mxu0 0.0
    %715 = vmatpush1.msra.mxu0 0.0
    %716 = vmatprep.subr.mxu0 0.0
    %717 = vmatpush1.msra.mxu0 0.0
    %718 = vmatprep.subr.mxu0 0.0
    %719 = vmatpush1.msra.mxu0 0.0
    %720 = vmatprep.subr.mxu0 0.0
    %721 = vmatpush1.msra.mxu0 0.0
    %722 = vmatprep.subr.mxu0 0.0
    %723 = vmatpush1.msra.mxu0 0.0
    %724 = vmatprep.subr.mxu0 0.0
    %725 = vmatpush1.msra.mxu0 0.0
    %726 = vmatprep.subr.mxu0 0.0
    %727 = vmatpush1.msra.mxu0 0.0
    %728 = vmatprep.subr.mxu0 0.0
    %729 = vmatpush1.msra.mxu0 0.0
    %730 = vmatprep.subr.mxu0 0.0
    %731 = vmatpush1.msra.mxu0 0.0
    %732 = vmatprep.subr.mxu0 0.0
    %733 = vmatpush1.msra.mxu0 0.0
    %734 = vmatprep.subr.mxu0 0.0
    %735 = vmatpush1.msra.mxu0 0.0
    %736 = vmatprep.subr.mxu0 0.0
    %737 = vmatpush1.msra.mxu0 0.0
    %738 = vmatprep.subr.mxu0 0.0
    %739 = vmatpush1.msra.mxu0 0.0
    %740 = vmatprep.subr.mxu0 0.0
    %741 = vmatpush1.msra.mxu0 0.0
    %742 = vmatprep.subr.mxu0 0.0
    %743 = vmatpush1.msra.mxu0 0.0
    %744 = vmatprep.subr.mxu0 0.0
    %745 = vmatpush1.msra.mxu0 0.0
    %746 = vmatprep.subr.mxu0 0.0
    %747 = vmatpush1.msra.mxu0 0.0
    %748 = vmatprep.subr.mxu0 0.0
    %749 = vmatpush1.msra.mxu0 0.0
    %750 = vmatprep.subr.mxu0 0.0
    %751 = vmatpush1.msra.mxu0 0.0
    %752 = vmatprep.subr.mxu0 0.0
    %753 = vmatpush1.msra.mxu0 0.0
    %754 = vmatprep.subr.mxu0 0.0
    %755 = vmatpush1.msra.mxu0 0.0
    %756 = vmatprep.subr.mxu0 0.0
    %757 = vmatpush1.msra.mxu0 0.0
    %758 = vmatprep.subr.mxu0 0.0
    %759 = vmatpush1.msra.mxu0 0.0
    %760 = vmatprep.subr.mxu0 0.0
    %761 = vmatpush1.msra.mxu0 0.0
    %762 = vmatprep.subr.mxu0 0.0
    %763 = vmatpush1.msra.mxu0 0.0
    %764 = vmatprep.subr.mxu0 0.0
    %765 = vmatpush1.msra.mxu0 0.0
    %766 = vmatprep.subr.mxu0 0.0
    %767 = vmatpush1.msra.mxu0 0.0
    %768 = vmatprep.subr.mxu0 0.0
    %769 = vmatpush1.msra.mxu0 0.0
    %770 = vmatprep.subr.mxu0 0.0
    %771 = vmatpush1.msra.mxu0 0.0
    %772 = vmatprep.subr.mxu0 0.0
    %773 = vmatpush1.msra.mxu0 0.0
    %774 = vmatprep.mubr.f32.mxu0 0.0
    %v775 = vand.u32 %v706, 4294901760
    %v776 = vsub.f32 %v706, %v775
    %v777 = vand.u32 %v776, 4294901760
    %v778 = vsub.f32 %v776, %v777
    %v779 = vand.u32 %v778, 4294901760
    %780 = vmatmul.mubr.f32.gmra.mrb[0].mxu0 %v779
    %v781 = vpop.f32.mrb[0].mxu0
    %v782 = vadd.f32 0.0, %v781
    %v783 = vpop.f32.mrb[0].mxu0
    %784 = vdwg.mxu0
    %785 = vmatprep.subr.mxu0 0.0
    %v786 = vand.u32 %v690, 4294901760
    %v787 = vsub.f32 %v690, %v786
    %v788 = vand.u32 %v787, 4294901760
    %v789 = vsub.f32 %v787, %v788
    %v790 = vand.u32 %v789, 4294901760
    %791 = vmatpush1.msra.mxu0 %v790
    %792 = vmatprep.subr.mxu0 0.0
    %v793 = vand.u32 %v696, 4294901760
    %v794 = vsub.f32 %v696, %v793
    %v795 = vand.u32 %v794, 4294901760
    %v796 = vsub.f32 %v794, %v795
    %v797 = vand.u32 %v796, 4294901760
    %798 = vmatpush1.msra.mxu0 %v797
    %799 = vmatprep.subr.mxu0 0.0
    %800 = vmatpush1.msra.mxu0 0.0
    %801 = vmatprep.subr.mxu0 0.0
    %802 = vmatpush1.msra.mxu0 0.0
    %803 = vmatprep.subr.mxu0 0.0
    %804 = vmatpush1.msra.mxu0 0.0
    %805 = vmatprep.subr.mxu0 0.0
    %806 = vmatpush1.msra.mxu0 0.0
    %807 = vmatprep.subr.mxu0 0.0
    %808 = vmatpush1.msra.mxu0 0.0
    %809 = vmatprep.subr.mxu0 0.0
    %810 = vmatpush1.msra.mxu0 0.0
    %811 = vmatprep.subr.mxu0 0.0
    %812 = vmatpush1.msra.mxu0 0.0
    %813 = vmatprep.subr.mxu0 0.0
    %814 = vmatpush1.msra.mxu0 0.0
    %815 = vmatprep.subr.mxu0 0.0
    %816 = vmatpush1.msra.mxu0 0.0
    %817 = vmatprep.subr.mxu0 0.0
    %818 = vmatpush1.msra.mxu0 0.0
    %819 = vmatprep.subr.mxu0 0.0
    %820 = vmatpush1.msra.mxu0 0.0
    %821 = vmatprep.subr.mxu0 0.0
    %822 = vmatpush1.msra.mxu0 0.0
    %823 = vmatprep.subr.mxu0 0.0
    %824 = vmatpush1.msra.mxu0 0.0
    %825 = vmatprep.subr.mxu0 0.0
    %826 = vmatpush1.msra.mxu0 0.0
    %827 = vmatprep.subr.mxu0 0.0
    %828 = vmatpush1.msra.mxu0 0.0
    %829 = vmatprep.subr.mxu0 0.0
    %830 = vmatpush1.msra.mxu0 0.0
    %831 = vmatprep.subr.mxu0 0.0
    %832 = vmatpush1.msra.mxu0 0.0
    %833 = vmatprep.subr.mxu0 0.0
    %834 = vmatpush1.msra.mxu0 0.0
    %835 = vmatprep.subr.mxu0 0.0
    %836 = vmatpush1.msra.mxu0 0.0
    %837 = vmatprep.subr.mxu0 0.0
    %838 = vmatpush1.msra.mxu0 0.0
    %839 = vmatprep.subr.mxu0 0.0
    %840 = vmatpush1.msra.mxu0 0.0
    %841 = vmatprep.subr.mxu0 0.0
    %842 = vmatpush1.msra.mxu0 0.0
    %843 = vmatprep.subr.mxu0 0.0
    %844 = vmatpush1.msra.mxu0 0.0
    %845 = vmatprep.subr.mxu0 0.0
    %846 = vmatpush1.msra.mxu0 0.0
    %847 = vmatprep.subr.mxu0 0.0
    %848 = vmatpush1.msra.mxu0 0.0
    %849 = vmatprep.subr.mxu0 0.0
    %850 = vmatpush1.msra.mxu0 0.0
    %851 = vmatprep.subr.mxu0 0.0
    %852 = vmatpush1.msra.mxu0 0.0
    %853 = vmatprep.subr.mxu0 0.0
    %854 = vmatpush1.msra.mxu0 0.0
    %855 = vmatprep.subr.mxu0 0.0
    %856 = vmatpush1.msra.mxu0 0.0
    %857 = vmatprep.subr.mxu0 0.0
    %858 = vmatpush1.msra.mxu0 0.0
    %859 = vmatprep.mubr.f32.mxu0 0.0
    %v860 = vand.u32 %v706, 4294901760
    %861 = vmatmul.mubr.f32.gmra.mrb[0].mxu0 %v860
    %v862 = vpop.f32.mrb[0].mxu0
    %v863 = vadd.f32 %v782, %v862
    %v864 = vpop.f32.mrb[0].mxu0
    %865 = vdwg.mxu0
    %866 = vmatprep.subr.mxu0 0.0
    %v867 = vand.u32 %v690, 4294901760
    %v868 = vsub.f32 %v690, %v867
    %869 = vmatpush1.msra.mxu0 %v868
    %870 = vmatprep.subr.mxu0 0.0
    %v871 = vand.u32 %v696, 4294901760
    %v872 = vsub.f32 %v696, %v871
    %873 = vmatpush1.msra.mxu0 %v872
    %874 = vmatprep.subr.mxu0 0.0
    %875 = vmatpush1.msra.mxu0 0.0
    %876 = vmatprep.subr.mxu0 0.0
    %877 = vmatpush1.msra.mxu0 0.0
    %878 = vmatprep.subr.mxu0 0.0
    %879 = vmatpush1.msra.mxu0 0.0
    %880 = vmatprep.subr.mxu0 0.0
    %881 = vmatpush1.msra.mxu0 0.0
    %882 = vmatprep.subr.mxu0 0.0
    %883 = vmatpush1.msra.mxu0 0.0
    %884 = vmatprep.subr.mxu0 0.0
    %885 = vmatpush1.msra.mxu0 0.0
    %886 = vmatprep.subr.mxu0 0.0
    %887 = vmatpush1.msra.mxu0 0.0
    %888 = vmatprep.subr.mxu0 0.0
    %889 = vmatpush1.msra.mxu0 0.0
    %890 = vmatprep.subr.mxu0 0.0
    %891 = vmatpush1.msra.mxu0 0.0
    %892 = vmatprep.subr.mxu0 0.0
    %893 = vmatpush1.msra.mxu0 0.0
    %894 = vmatprep.subr.mxu0 0.0
    %895 = vmatpush1.msra.mxu0 0.0
    %896 = vmatprep.subr.mxu0 0.0
    %897 = vmatpush1.msra.mxu0 0.0
    %898 = vmatprep.subr.mxu0 0.0
    %899 = vmatpush1.msra.mxu0 0.0
    %900 = vmatprep.subr.mxu0 0.0
    %901 = vmatpush1.msra.mxu0 0.0
    %902 = vmatprep.subr.mxu0 0.0
    %903 = vmatpush1.msra.mxu0 0.0
    %904 = vmatprep.subr.mxu0 0.0
    %905 = vmatpush1.msra.mxu0 0.0
    %906 = vmatprep.subr.mxu0 0.0
    %907 = vmatpush1.msra.mxu0 0.0
    %908 = vmatprep.subr.mxu0 0.0
    %909 = vmatpush1.msra.mxu0 0.0
    %910 = vmatprep.subr.mxu0 0.0
    %911 = vmatpush1.msra.mxu0 0.0
    %912 = vmatprep.subr.mxu0 0.0
    %913 = vmatpush1.msra.mxu0 0.0
    %914 = vmatprep.subr.mxu0 0.0
    %915 = vmatpush1.msra.mxu0 0.0
    %916 = vmatprep.subr.mxu0 0.0
    %917 = vmatpush1.msra.mxu0 0.0
    %918 = vmatprep.subr.mxu0 0.0
    %919 = vmatpush1.msra.mxu0 0.0
    %920 = vmatprep.subr.mxu0 0.0
    %921 = vmatpush1.msra.mxu0 0.0
    %922 = vmatprep.subr.mxu0 0.0
    %923 = vmatpush1.msra.mxu0 0.0
    %924 = vmatprep.subr.mxu0 0.0
    %925 = vmatpush1.msra.mxu0 0.0
    %926 = vmatprep.subr.mxu0 0.0
    %927 = vmatpush1.msra.mxu0 0.0
    %928 = vmatprep.subr.mxu0 0.0
    %929 = vmatpush1.msra.mxu0 0.0
    %930 = vmatprep.subr.mxu0 0.0
    %931 = vmatpush1.msra.mxu0 0.0
    %932 = vmatprep.subr.mxu0 0.0
    %933 = vmatpush1.msra.mxu0 0.0
    %934 = vmatprep.mubr.f32.mxu0 0.0
    %v935 = vand.u32 %v706, 4294901760
    %v936 = vsub.f32 %v706, %v935
    %937 = vmatmul.mubr.f32.gmra.mrb[0].mxu0 %v936
    %v938 = vpop.f32.mrb[0].mxu0
    %v939 = vadd.f32 %v863, %v938
    %v940 = vpop.f32.mrb[0].mxu0
    %941 = vdwg.mxu0
    %942 = vmatprep.subr.mxu0 0.0
    %v943 = vand.u32 %v690, 4294901760
    %944 = vmatpush1.msra.mxu0 %v943
    %945 = vmatprep.subr.mxu0 0.0
    %v946 = vand.u32 %v696, 4294901760
    %947 = vmatpush1.msra.mxu0 %v946
    %948 = vmatprep.subr.mxu0 0.0
    %949 = vmatpush1.msra.mxu0 0.0
    %950 = vmatprep.subr.mxu0 0.0
    %951 = vmatpush1.msra.mxu0 0.0
    %952 = vmatprep.subr.mxu0 0.0
    %953 = vmatpush1.msra.mxu0 0.0
    %954 = vmatprep.subr.mxu0 0.0
    %955 = vmatpush1.msra.mxu0 0.0
    %956 = vmatprep.subr.mxu0 0.0
    %957 = vmatpush1.msra.mxu0 0.0
    %958 = vmatprep.subr.mxu0 0.0
    %959 = vmatpush1.msra.mxu0 0.0
    %960 = vmatprep.subr.mxu0 0.0
    %961 = vmatpush1.msra.mxu0 0.0
    %962 = vmatprep.subr.mxu0 0.0
    %963 = vmatpush1.msra.mxu0 0.0
    %964 = vmatprep.subr.mxu0 0.0
    %965 = vmatpush1.msra.mxu0 0.0
    %966 = vmatprep.subr.mxu0 0.0
    %967 = vmatpush1.msra.mxu0 0.0
    %968 = vmatprep.subr.mxu0 0.0
    %969 = vmatpush1.msra.mxu0 0.0
    %970 = vmatprep.subr.mxu0 0.0
    %971 = vmatpush1.msra.mxu0 0.0
    %972 = vmatprep.subr.mxu0 0.0
    %973 = vmatpush1.msra.mxu0 0.0
    %974 = vmatprep.subr.mxu0 0.0
    %975 = vmatpush1.msra.mxu0 0.0
    %976 = vmatprep.subr.mxu0 0.0
    %977 = vmatpush1.msra.mxu0 0.0
    %978 = vmatprep.subr.mxu0 0.0
    %979 = vmatpush1.msra.mxu0 0.0
    %980 = vmatprep.subr.mxu0 0.0
    %981 = vmatpush1.msra.mxu0 0.0
    %982 = vmatprep.subr.mxu0 0.0
    %983 = vmatpush1.msra.mxu0 0.0
    %984 = vmatprep.subr.mxu0 0.0
    %985 = vmatpush1.msra.mxu0 0.0
    %986 = vmatprep.subr.mxu0 0.0
    %987 = vmatpush1.msra.mxu0 0.0
    %988 = vmatprep.subr.mxu0 0.0
    %989 = vmatpush1.msra.mxu0 0.0
    %990 = vmatprep.subr.mxu0 0.0
    %991 = vmatpush1.msra.mxu0 0.0
    %992 = vmatprep.subr.mxu0 0.0
    %993 = vmatpush1.msra.mxu0 0.0
    %994 = vmatprep.subr.mxu0 0.0
    %995 = vmatpush1.msra.mxu0 0.0
    %996 = vmatprep.subr.mxu0 0.0
    %997 = vmatpush1.msra.mxu0 0.0
    %998 = vmatprep.subr.mxu0 0.0
    %999 = vmatpush1.msra.mxu0 0.0
    %1000 = vmatprep.subr.mxu0 0.0
    %1001 = vmatpush1.msra.mxu0 0.0
    %1002 = vmatprep.subr.mxu0 0.0
    %1003 = vmatpush1.msra.mxu0 0.0
    %1004 = vmatprep.subr.mxu0 0.0
    %1005 = vmatpush1.msra.mxu0 0.0
    %1006 = vmatprep.subr.mxu0 0.0
    %1007 = vmatpush1.msra.mxu0 0.0
    %1008 = vmatprep.mubr.f32.mxu0 0.0
    %v1009 = vand.u32 %v706, 4294901760
    %v1010 = vsub.f32 %v706, %v1009
    %v1011 = vand.u32 %v1010, 4294901760
    %1012 = vmatmul.mubr.f32.gmra.mrb[0].mxu0 %v1011
    %v1013 = vpop.f32.mrb[0].mxu0
    %v1014 = vadd.f32 %v939, %v1013
    %v1015 = vpop.f32.mrb[0].mxu0
    %1016 = vdwg.mxu0
    %1017 = vmatprep.subr.mxu0 0.0
    %v1018 = vand.u32 %v690, 4294901760
    %v1019 = vsub.f32 %v690, %v1018
    %v1020 = vand.u32 %v1019, 4294901760
    %1021 = vmatpush1.msra.mxu0 %v1020
    %1022 = vmatprep.subr.mxu0 0.0
    %v1023 = vand.u32 %v696, 4294901760
    %v1024 = vsub.f32 %v696, %v1023
    %v1025 = vand.u32 %v1024, 4294901760
    %1026 = vmatpush1.msra.mxu0 %v1025
    %1027 = vmatprep.subr.mxu0 0.0
    %1028 = vmatpush1.msra.mxu0 0.0
    %1029 = vmatprep.subr.mxu0 0.0
    %1030 = vmatpush1.msra.mxu0 0.0
    %1031 = vmatprep.subr.mxu0 0.0
    %1032 = vmatpush1.msra.mxu0 0.0
    %1033 = vmatprep.subr.mxu0 0.0
    %1034 = vmatpush1.msra.mxu0 0.0
    %1035 = vmatprep.subr.mxu0 0.0
    %1036 = vmatpush1.msra.mxu0 0.0
    %1037 = vmatprep.subr.mxu0 0.0
    %1038 = vmatpush1.msra.mxu0 0.0
    %1039 = vmatprep.subr.mxu0 0.0
    %1040 = vmatpush1.msra.mxu0 0.0
    %1041 = vmatprep.subr.mxu0 0.0
    %1042 = vmatpush1.msra.mxu0 0.0
    %1043 = vmatprep.subr.mxu0 0.0
    %1044 = vmatpush1.msra.mxu0 0.0
    %1045 = vmatprep.subr.mxu0 0.0
    %1046 = vmatpush1.msra.mxu0 0.0
    %1047 = vmatprep.subr.mxu0 0.0
    %1048 = vmatpush1.msra.mxu0 0.0
    %1049 = vmatprep.subr.mxu0 0.0
    %1050 = vmatpush1.msra.mxu0 0.0
    %1051 = vmatprep.subr.mxu0 0.0
    %1052 = vmatpush1.msra.mxu0 0.0
    %1053 = vmatprep.subr.mxu0 0.0
    %1054 = vmatpush1.msra.mxu0 0.0
    %1055 = vmatprep.subr.mxu0 0.0
    %1056 = vmatpush1.msra.mxu0 0.0
    %1057 = vmatprep.subr.mxu0 0.0
    %1058 = vmatpush1.msra.mxu0 0.0
    %1059 = vmatprep.subr.mxu0 0.0
    %1060 = vmatpush1.msra.mxu0 0.0
    %1061 = vmatprep.subr.mxu0 0.0
    %1062 = vmatpush1.msra.mxu0 0.0
    %1063 = vmatprep.subr.mxu0 0.0
    %1064 = vmatpush1.msra.mxu0 0.0
    %1065 = vmatprep.subr.mxu0 0.0
    %1066 = vmatpush1.msra.mxu0 0.0
    %1067 = vmatprep.subr.mxu0 0.0
    %1068 = vmatpush1.msra.mxu0 0.0
    %1069 = vmatprep.subr.mxu0 0.0
    %1070 = vmatpush1.msra.mxu0 0.0
    %1071 = vmatprep.subr.mxu0 0.0
    %1072 = vmatpush1.msra.mxu0 0.0
    %1073 = vmatprep.subr.mxu0 0.0
    %1074 = vmatpush1.msra.mxu0 0.0
    %1075 = vmatprep.subr.mxu0 0.0
    %1076 = vmatpush1.msra.mxu0 0.0
    %1077 = vmatprep.subr.mxu0 0.0
    %1078 = vmatpush1.msra.mxu0 0.0
    %1079 = vmatprep.subr.mxu0 0.0
    %1080 = vmatpush1.msra.mxu0 0.0
    %1081 = vmatprep.subr.mxu0 0.0
    %1082 = vmatpush1.msra.mxu0 0.0
    %1083 = vmatprep.subr.mxu0 0.0
    %1084 = vmatpush1.msra.mxu0 0.0
    %1085 = vmatprep.subr.mxu0 0.0
    %1086 = vmatpush1.msra.mxu0 0.0
    %1087 = vmatprep.mubr.f32.mxu0 0.0
    %v1088 = vand.u32 %v706, 4294901760
    %1089 = vmatmul.mubr.f32.gmra.mrb[0].mxu0 %v1088
    %v1090 = vpop.f32.mrb[0].mxu0
    %v1091 = vadd.f32 %v1014, %v1090
    %v1092 = vpop.f32.mrb[0].mxu0
    %1093 = vdwg.mxu0
    %1094 = vmatprep.subr.mxu0 0.0
    %v1095 = vand.u32 %v690, 4294901760
    %1096 = vmatpush1.msra.mxu0 %v1095
    %1097 = vmatprep.subr.mxu0 0.0
    %v1098 = vand.u32 %v696, 4294901760
    %1099 = vmatpush1.msra.mxu0 %v1098
    %1100 = vmatprep.subr.mxu0 0.0
    %1101 = vmatpush1.msra.mxu0 0.0
    %1102 = vmatprep.subr.mxu0 0.0
    %1103 = vmatpush1.msra.mxu0 0.0
    %1104 = vmatprep.subr.mxu0 0.0
    %1105 = vmatpush1.msra.mxu0 0.0
    %1106 = vmatprep.subr.mxu0 0.0
    %1107 = vmatpush1.msra.mxu0 0.0
    %1108 = vmatprep.subr.mxu0 0.0
    %1109 = vmatpush1.msra.mxu0 0.0
    %1110 = vmatprep.subr.mxu0 0.0
    %1111 = vmatpush1.msra.mxu0 0.0
    %1112 = vmatprep.subr.mxu0 0.0
    %1113 = vmatpush1.msra.mxu0 0.0
    %1114 = vmatprep.subr.mxu0 0.0
    %1115 = vmatpush1.msra.mxu0 0.0
    %1116 = vmatprep.subr.mxu0 0.0
    %1117 = vmatpush1.msra.mxu0 0.0
    %1118 = vmatprep.subr.mxu0 0.0
    %1119 = vmatpush1.msra.mxu0 0.0
    %1120 = vmatprep.subr.mxu0 0.0
    %1121 = vmatpush1.msra.mxu0 0.0
    %1122 = vmatprep.subr.mxu0 0.0
    %1123 = vmatpush1.msra.mxu0 0.0
    %1124 = vmatprep.subr.mxu0 0.0
    %1125 = vmatpush1.msra.mxu0 0.0
    %1126 = vmatprep.subr.mxu0 0.0
    %1127 = vmatpush1.msra.mxu0 0.0
    %1128 = vmatprep.subr.mxu0 0.0
    %1129 = vmatpush1.msra.mxu0 0.0
    %1130 = vmatprep.subr.mxu0 0.0
    %1131 = vmatpush1.msra.mxu0 0.0
    %1132 = vmatprep.subr.mxu0 0.0
    %1133 = vmatpush1.msra.mxu0 0.0
    %1134 = vmatprep.subr.mxu0 0.0
    %1135 = vmatpush1.msra.mxu0 0.0
    %1136 = vmatprep.subr.mxu0 0.0
    %1137 = vmatpush1.msra.mxu0 0.0
    %1138 = vmatprep.subr.mxu0 0.0
    %1139 = vmatpush1.msra.mxu0 0.0
    %1140 = vmatprep.subr.mxu0 0.0
    %1141 = vmatpush1.msra.mxu0 0.0
    %1142 = vmatprep.subr.mxu0 0.0
    %1143 = vmatpush1.msra.mxu0 0.0
    %1144 = vmatprep.subr.mxu0 0.0
    %1145 = vmatpush1.msra.mxu0 0.0
    %1146 = vmatprep.subr.mxu0 0.0
    %1147 = vmatpush1.msra.mxu0 0.0
    %1148 = vmatprep.subr.mxu0 0.0
    %1149 = vmatpush1.msra.mxu0 0.0
    %1150 = vmatprep.subr.mxu0 0.0
    %1151 = vmatpush1.msra.mxu0 0.0
    %1152 = vmatprep.subr.mxu0 0.0
    %1153 = vmatpush1.msra.mxu0 0.0
    %1154 = vmatprep.subr.mxu0 0.0
    %1155 = vmatpush1.msra.mxu0 0.0
    %1156 = vmatprep.subr.mxu0 0.0
    %1157 = vmatpush1.msra.mxu0 0.0
    %1158 = vmatprep.subr.mxu0 0.0
    %1159 = vmatpush1.msra.mxu0 0.0
    %1160 = vmatprep.mubr.f32.mxu0 0.0
    %v1161 = vand.u32 %v706, 4294901760
    %1162 = vmatmul.mubr.f32.gmra.mrb[0].mxu0 %v1161
    %v1163 = vpop.f32.mrb[0].mxu0
    %v1164 = vadd.f32 %v1091, %v1163
    %v1165 = vpop.f32.mrb[0].mxu0
    %1166 = vdwg.mxu0
    %v1167 = vmul.f32 %v690, %v690
    %v1168 = vmul.f32 %v696, %v696
    %1169 = vmatprep.subr.mxu0 0.0
    %v1170 = vand.u32 %v1167, 4294901760
    %1171 = vmatpush1.msra.mxu0 %v1170
    %1172 = vmatprep.subr.mxu0 0.0
    %v1173 = vand.u32 %v1168, 4294901760
    %1174 = vmatpush1.msra.mxu0 %v1173
    %1175 = vmatprep.subr.mxu0 0.0
    %1176 = vmatpush1.msra.mxu0 0.0
    %1177 = vmatprep.subr.mxu0 0.0
    %1178 = vmatpush1.msra.mxu0 0.0
    %1179 = vmatprep.subr.mxu0 0.0
    %1180 = vmatpush1.msra.mxu0 0.0
    %1181 = vmatprep.subr.mxu0 0.0
    %1182 = vmatpush1.msra.mxu0 0.0
    %1183 = vmatprep.subr.mxu0 0.0
    %1184 = vmatpush1.msra.mxu0 0.0
    %1185 = vmatprep.subr.mxu0 0.0
    %1186 = vmatpush1.msra.mxu0 0.0
    %1187 = vmatprep.subr.mxu0 0.0
    %1188 = vmatpush1.msra.mxu0 0.0
    %1189 = vmatprep.subr.mxu0 0.0
    %1190 = vmatpush1.msra.mxu0 0.0
    %1191 = vmatprep.subr.mxu0 0.0
    %1192 = vmatpush1.msra.mxu0 0.0
    %1193 = vmatprep.subr.mxu0 0.0
    %1194 = vmatpush1.msra.mxu0 0.0
    %1195 = vmatprep.subr.mxu0 0.0
    %1196 = vmatpush1.msra.mxu0 0.0
    %1197 = vmatprep.subr.mxu0 0.0
    %1198 = vmatpush1.msra.mxu0 0.0
    %1199 = vmatprep.subr.mxu0 0.0
    %1200 = vmatpush1.msra.mxu0 0.0
    %1201 = vmatprep.subr.mxu0 0.0
    %1202 = vmatpush1.msra.mxu0 0.0
    %1203 = vmatprep.subr.mxu0 0.0
    %1204 = vmatpush1.msra.mxu0 0.0
    %1205 = vmatprep.subr.mxu0 0.0
    %1206 = vmatpush1.msra.mxu0 0.0
    %1207 = vmatprep.subr.mxu0 0.0
    %1208 = vmatpush1.msra.mxu0 0.0
    %1209 = vmatprep.subr.mxu0 0.0
    %1210 = vmatpush1.msra.mxu0 0.0
    %1211 = vmatprep.subr.mxu0 0.0
    %1212 = vmatpush1.msra.mxu0 0.0
    %1213 = vmatprep.subr.mxu0 0.0
    %1214 = vmatpush1.msra.mxu0 0.0
    %1215 = vmatprep.subr.mxu0 0.0
    %1216 = vmatpush1.msra.mxu0 0.0
    %1217 = vmatprep.subr.mxu0 0.0
    %1218 = vmatpush1.msra.mxu0 0.0
    %1219 = vmatprep.subr.mxu0 0.0
    %1220 = vmatpush1.msra.mxu0 0.0
    %1221 = vmatprep.subr.mxu0 0.0
    %1222 = vmatpush1.msra.mxu0 0.0
    %1223 = vmatprep.subr.mxu0 0.0
    %1224 = vmatpush1.msra.mxu0 0.0
    %1225 = vmatprep.subr.mxu0 0.0
    %1226 = vmatpush1.msra.mxu0 0.0
    %1227 = vmatprep.subr.mxu0 0.0
    %1228 = vmatpush1.msra.mxu0 0.0
    %1229 = vmatprep.subr.mxu0 0.0
    %1230 = vmatpush1.msra.mxu0 0.0
    %1231 = vmatprep.subr.mxu0 0.0
    %1232 = vmatpush1.msra.mxu0 0.0
    %1233 = vmatprep.subr.mxu0 0.0
    %1234 = vmatpush1.msra.mxu0 0.0
    %1235 = vmatprep.mubr.f32.mxu0 0.0
    %v1236 = vand.u32 %v706, 4294901760
    %v1237 = vsub.f32 %v706, %v1236
    %v1238 = vand.u32 %v1237, 4294901760
    %v1239 = vsub.f32 %v1237, %v1238
    %v1240 = vand.u32 %v1239, 4294901760
    %1241 = vmatmul.mubr.f32.gmra.mrb[0].mxu0 %v1240
    %v1242 = vpop.f32.mrb[0].mxu0
    %v1243 = vadd.f32 0.0, %v1242
    %v1244 = vpop.f32.mrb[0].mxu0
    %1245 = vdwg.mxu0
    %1246 = vmatprep.subr.mxu0 0.0
    %v1247 = vand.u32 %v1167, 4294901760
    %v1248 = vsub.f32 %v1167, %v1247
    %v1249 = vand.u32 %v1248, 4294901760
    %v1250 = vsub.f32 %v1248, %v1249
    %v1251 = vand.u32 %v1250, 4294901760
    %1252 = vmatpush1.msra.mxu0 %v1251
    %1253 = vmatprep.subr.mxu0 0.0
    %v1254 = vand.u32 %v1168, 4294901760
    %v1255 = vsub.f32 %v1168, %v1254
    %v1256 = vand.u32 %v1255, 4294901760
    %v1257 = vsub.f32 %v1255, %v1256
    %v1258 = vand.u32 %v1257, 4294901760
    %1259 = vmatpush1.msra.mxu0 %v1258
    %1260 = vmatprep.subr.mxu0 0.0
    %1261 = vmatpush1.msra.mxu0 0.0
    %1262 = vmatprep.subr.mxu0 0.0
    %1263 = vmatpush1.msra.mxu0 0.0
    %1264 = vmatprep.subr.mxu0 0.0
    %1265 = vmatpush1.msra.mxu0 0.0
    %1266 = vmatprep.subr.mxu0 0.0
    %1267 = vmatpush1.msra.mxu0 0.0
    %1268 = vmatprep.subr.mxu0 0.0
    %1269 = vmatpush1.msra.mxu0 0.0
    %1270 = vmatprep.subr.mxu0 0.0
    %1271 = vmatpush1.msra.mxu0 0.0
    %1272 = vmatprep.subr.mxu0 0.0
    %1273 = vmatpush1.msra.mxu0 0.0
    %1274 = vmatprep.subr.mxu0 0.0
    %1275 = vmatpush1.msra.mxu0 0.0
    %1276 = vmatprep.subr.mxu0 0.0
    %1277 = vmatpush1.msra.mxu0 0.0
    %1278 = vmatprep.subr.mxu0 0.0
    %1279 = vmatpush1.msra.mxu0 0.0
    %1280 = vmatprep.subr.mxu0 0.0
    %1281 = vmatpush1.msra.mxu0 0.0
    %1282 = vmatprep.subr.mxu0 0.0
    %1283 = vmatpush1.msra.mxu0 0.0
    %1284 = vmatprep.subr.mxu0 0.0
    %1285 = vmatpush1.msra.mxu0 0.0
    %1286 = vmatprep.subr.mxu0 0.0
    %1287 = vmatpush1.msra.mxu0 0.0
    %1288 = vmatprep.subr.mxu0 0.0
    %1289 = vmatpush1.msra.mxu0 0.0
    %1290 = vmatprep.subr.mxu0 0.0
    %1291 = vmatpush1.msra.mxu0 0.0
    %1292 = vmatprep.subr.mxu0 0.0
    %1293 = vmatpush1.msra.mxu0 0.0
    %1294 = vmatprep.subr.mxu0 0.0
    %1295 = vmatpush1.msra.mxu0 0.0
    %1296 = vmatprep.subr.mxu0 0.0
    %1297 = vmatpush1.msra.mxu0 0.0
    %1298 = vmatprep.subr.mxu0 0.0
    %1299 = vmatpush1.msra.mxu0 0.0
    %1300 = vmatprep.subr.mxu0 0.0
    %1301 = vmatpush1.msra.mxu0 0.0
    %1302 = vmatprep.subr.mxu0 0.0
    %1303 = vmatpush1.msra.mxu0 0.0
    %1304 = vmatprep.subr.mxu0 0.0
    %1305 = vmatpush1.msra.mxu0 0.0
    %1306 = vmatprep.subr.mxu0 0.0
    %1307 = vmatpush1.msra.mxu0 0.0
    %1308 = vmatprep.subr.mxu0 0.0
    %1309 = vmatpush1.msra.mxu0 0.0
    %1310 = vmatprep.subr.mxu0 0.0
    %1311 = vmatpush1.msra.mxu0 0.0
    %1312 = vmatprep.subr.mxu0 0.0
    %1313 = vmatpush1.msra.mxu0 0.0
    %1314 = vmatprep.subr.mxu0 0.0
    %1315 = vmatpush1.msra.mxu0 0.0
    %1316 = vmatprep.subr.mxu0 0.0
    %1317 = vmatpush1.msra.mxu0 0.0
    %1318 = vmatprep.subr.mxu0 0.0
    %1319 = vmatpush1.msra.mxu0 0.0
    %1320 = vmatprep.mubr.f32.mxu0 0.0
    %v1321 = vand.u32 %v706, 4294901760
    %1322 = vmatmul.mubr.f32.gmra.mrb[0].mxu0 %v1321
    %v1323 = vpop.f32.mrb[0].mxu0
    %v1324 = vadd.f32 %v1243, %v1323
    %v1325 = vpop.f32.mrb[0].mxu0
    %1326 = vdwg.mxu0
    %1327 = vmatprep.subr.mxu0 0.0
    %v1328 = vand.u32 %v1167, 4294901760
    %v1329 = vsub.f32 %v1167, %v1328
    %1330 = vmatpush1.msra.mxu0 %v1329
    %1331 = vmatprep.subr.mxu0 0.0
    %v1332 = vand.u32 %v1168, 4294901760
    %v1333 = vsub.f32 %v1168, %v1332
    %1334 = vmatpush1.msra.mxu0 %v1333
    %1335 = vmatprep.subr.mxu0 0.0
    %1336 = vmatpush1.msra.mxu0 0.0
    %1337 = vmatprep.subr.mxu0 0.0
    %1338 = vmatpush1.msra.mxu0 0.0
    %1339 = vmatprep.subr.mxu0 0.0
    %1340 = vmatpush1.msra.mxu0 0.0
    %1341 = vmatprep.subr.mxu0 0.0
    %1342 = vmatpush1.msra.mxu0 0.0
    %1343 = vmatprep.subr.mxu0 0.0
    %1344 = vmatpush1.msra.mxu0 0.0
    %1345 = vmatprep.subr.mxu0 0.0
    %1346 = vmatpush1.msra.mxu0 0.0
    %1347 = vmatprep.subr.mxu0 0.0
    %1348 = vmatpush1.msra.mxu0 0.0
    %1349 = vmatprep.subr.mxu0 0.0
    %1350 = vmatpush1.msra.mxu0 0.0
    %1351 = vmatprep.subr.mxu0 0.0
    %1352 = vmatpush1.msra.mxu0 0.0
    %1353 = vmatprep.subr.mxu0 0.0
    %1354 = vmatpush1.msra.mxu0 0.0
    %1355 = vmatprep.subr.mxu0 0.0
    %1356 = vmatpush1.msra.mxu0 0.0
    %1357 = vmatprep.subr.mxu0 0.0
    %1358 = vmatpush1.msra.mxu0 0.0
    %1359 = vmatprep.subr.mxu0 0.0
    %1360 = vmatpush1.msra.mxu0 0.0
    %1361 = vmatprep.subr.mxu0 0.0
    %1362 = vmatpush1.msra.mxu0 0.0
    %1363 = vmatprep.subr.mxu0 0.0
    %1364 = vmatpush1.msra.mxu0 0.0
    %1365 = vmatprep.subr.mxu0 0.0
    %1366 = vmatpush1.msra.mxu0 0.0
    %1367 = vmatprep.subr.mxu0 0.0
    %1368 = vmatpush1.msra.mxu0 0.0
    %1369 = vmatprep.subr.mxu0 0.0
    %1370 = vmatpush1.msra.mxu0 0.0
    %1371 = vmatprep.subr.mxu0 0.0
    %1372 = vmatpush1.msra.mxu0 0.0
    %1373 = vmatprep.subr.mxu0 0.0
    %1374 = vmatpush1.msra.mxu0 0.0
    %1375 = vmatprep.subr.mxu0 0.0
    %1376 = vmatpush1.msra.mxu0 0.0
    %1377 = vmatprep.subr.mxu0 0.0
    %1378 = vmatpush1.msra.mxu0 0.0
    %1379 = vmatprep.subr.mxu0 0.0
    %1380 = vmatpush1.msra.mxu0 0.0
    %1381 = vmatprep.subr.mxu0 0.0
    %1382 = vmatpush1.msra.mxu0 0.0
    %1383 = vmatprep.subr.mxu0 0.0
    %1384 = vmatpush1.msra.mxu0 0.0
    %1385 = vmatprep.subr.mxu0 0.0
    %1386 = vmatpush1.msra.mxu0 0.0
    %1387 = vmatprep.subr.mxu0 0.0
    %1388 = vmatpush1.msra.mxu0 0.0
    %1389 = vmatprep.subr.mxu0 0.0
    %1390 = vmatpush1.msra.mxu0 0.0
    %1391 = vmatprep.subr.mxu0 0.0
    %1392 = vmatpush1.msra.mxu0 0.0
    %1393 = vmatprep.subr.mxu0 0.0
    %1394 = vmatpush1.msra.mxu0 0.0
    %1395 = vmatprep.mubr.f32.mxu0 0.0
    %v1396 = vand.u32 %v706, 4294901760
    %v1397 = vsub.f32 %v706, %v1396
    %1398 = vmatmul.mubr.f32.gmra.mrb[0].mxu0 %v1397
    %v1399 = vpop.f32.mrb[0].mxu0
    %v1400 = vadd.f32 %v1324, %v1399
    %v1401 = vpop.f32.mrb[0].mxu0
    %1402 = vdwg.mxu0
    %1403 = vmatprep.subr.mxu0 0.0
    %v1404 = vand.u32 %v1167, 4294901760
    %1405 = vmatpush1.msra.mxu0 %v1404
    %1406 = vmatprep.subr.mxu0 0.0
    %v1407 = vand.u32 %v1168, 4294901760
    %1408 = vmatpush1.msra.mxu0 %v1407
    %1409 = vmatprep.subr.mxu0 0.0
    %1410 = vmatpush1.msra.mxu0 0.0
    %1411 = vmatprep.subr.mxu0 0.0
    %1412 = vmatpush1.msra.mxu0 0.0
    %1413 = vmatprep.subr.mxu0 0.0
    %1414 = vmatpush1.msra.mxu0 0.0
    %1415 = vmatprep.subr.mxu0 0.0
    %1416 = vmatpush1.msra.mxu0 0.0
    %1417 = vmatprep.subr.mxu0 0.0
    %1418 = vmatpush1.msra.mxu0 0.0
    %1419 = vmatprep.subr.mxu0 0.0
    %1420 = vmatpush1.msra.mxu0 0.0
    %1421 = vmatprep.subr.mxu0 0.0
    %1422 = vmatpush1.msra.mxu0 0.0
    %1423 = vmatprep.subr.mxu0 0.0
    %1424 = vmatpush1.msra.mxu0 0.0
    %1425 = vmatprep.subr.mxu0 0.0
    %1426 = vmatpush1.msra.mxu0 0.0
    %1427 = vmatprep.subr.mxu0 0.0
    %1428 = vmatpush1.msra.mxu0 0.0
    %1429 = vmatprep.subr.mxu0 0.0
    %1430 = vmatpush1.msra.mxu0 0.0
    %1431 = vmatprep.subr.mxu0 0.0
    %1432 = vmatpush1.msra.mxu0 0.0
    %1433 = vmatprep.subr.mxu0 0.0
    %1434 = vmatpush1.msra.mxu0 0.0
    %1435 = vmatprep.subr.mxu0 0.0
    %1436 = vmatpush1.msra.mxu0 0.0
    %1437 = vmatprep.subr.mxu0 0.0
    %1438 = vmatpush1.msra.mxu0 0.0
    %1439 = vmatprep.subr.mxu0 0.0
    %1440 = vmatpush1.msra.mxu0 0.0
    %1441 = vmatprep.subr.mxu0 0.0
    %1442 = vmatpush1.msra.mxu0 0.0
    %1443 = vmatprep.subr.mxu0 0.0
    %1444 = vmatpush1.msra.mxu0 0.0
    %1445 = vmatprep.subr.mxu0 0.0
    %1446 = vmatpush1.msra.mxu0 0.0
    %1447 = vmatprep.subr.mxu0 0.0
    %1448 = vmatpush1.msra.mxu0 0.0
    %1449 = vmatprep.subr.mxu0 0.0
    %1450 = vmatpush1.msra.mxu0 0.0
    %1451 = vmatprep.subr.mxu0 0.0
    %1452 = vmatpush1.msra.mxu0 0.0
    %1453 = vmatprep.subr.mxu0 0.0
    %1454 = vmatpush1.msra.mxu0 0.0
    %1455 = vmatprep.subr.mxu0 0.0
    %1456 = vmatpush1.msra.mxu0 0.0
    %1457 = vmatprep.subr.mxu0 0.0
    %1458 = vmatpush1.msra.mxu0 0.0
    %1459 = vmatprep.subr.mxu0 0.0
    %1460 = vmatpush1.msra.mxu0 0.0
    %1461 = vmatprep.subr.mxu0 0.0
    %1462 = vmatpush1.msra.mxu0 0.0
    %1463 = vmatprep.subr.mxu0 0.0
    %1464 = vmatpush1.msra.mxu0 0.0
    %1465 = vmatprep.subr.mxu0 0.0
    %1466 = vmatpush1.msra.mxu0 0.0
    %1467 = vmatprep.subr.mxu0 0.0
    %1468 = vmatpush1.msra.mxu0 0.0
    %1469 = vmatprep.mubr.f32.mxu0 0.0
    %v1470 = vand.u32 %v706, 4294901760
    %v1471 = vsub.f32 %v706, %v1470
    %v1472 = vand.u32 %v1471, 4294901760
    %1473 = vmatmul.mubr.f32.gmra.mrb[0].mxu0 %v1472
    %v1474 = vpop.f32.mrb[0].mxu0
    %v1475 = vadd.f32 %v1400, %v1474
    %v1476 = vpop.f32.mrb[0].mxu0
    %1477 = vdwg.mxu0
    %1478 = vmatprep.subr.mxu0 0.0
    %v1479 = vand.u32 %v1167, 4294901760
    %v1480 = vsub.f32 %v1167, %v1479
    %v1481 = vand.u32 %v1480, 4294901760
    %1482 = vmatpush1.msra.mxu0 %v1481
    %1483 = vmatprep.subr.mxu0 0.0
    %v1484 = vand.u32 %v1168, 4294901760
    %v1485 = vsub.f32 %v1168, %v1484
    %v1486 = vand.u32 %v1485, 4294901760
    %1487 = vmatpush1.msra.mxu0 %v1486
    %1488 = vmatprep.subr.mxu0 0.0
    %1489 = vmatpush1.msra.mxu0 0.0
    %1490 = vmatprep.subr.mxu0 0.0
    %1491 = vmatpush1.msra.mxu0 0.0
    %1492 = vmatprep.subr.mxu0 0.0
    %1493 = vmatpush1.msra.mxu0 0.0
    %1494 = vmatprep.subr.mxu0 0.0
    %1495 = vmatpush1.msra.mxu0 0.0
    %1496 = vmatprep.subr.mxu0 0.0
    %1497 = vmatpush1.msra.mxu0 0.0
    %1498 = vmatprep.subr.mxu0 0.0
    %1499 = vmatpush1.msra.mxu0 0.0
    %1500 = vmatprep.subr.mxu0 0.0
    %1501 = vmatpush1.msra.mxu0 0.0
    %1502 = vmatprep.subr.mxu0 0.0
    %1503 = vmatpush1.msra.mxu0 0.0
    %1504 = vmatprep.subr.mxu0 0.0
    %1505 = vmatpush1.msra.mxu0 0.0
    %1506 = vmatprep.subr.mxu0 0.0
    %1507 = vmatpush1.msra.mxu0 0.0
    %1508 = vmatprep.subr.mxu0 0.0
    %1509 = vmatpush1.msra.mxu0 0.0
    %1510 = vmatprep.subr.mxu0 0.0
    %1511 = vmatpush1.msra.mxu0 0.0
    %1512 = vmatprep.subr.mxu0 0.0
    %1513 = vmatpush1.msra.mxu0 0.0
    %1514 = vmatprep.subr.mxu0 0.0
    %1515 = vmatpush1.msra.mxu0 0.0
    %1516 = vmatprep.subr.mxu0 0.0
    %1517 = vmatpush1.msra.mxu0 0.0
    %1518 = vmatprep.subr.mxu0 0.0
    %1519 = vmatpush1.msra.mxu0 0.0
    %1520 = vmatprep.subr.mxu0 0.0
    %1521 = vmatpush1.msra.mxu0 0.0
    %1522 = vmatprep.subr.mxu0 0.0
    %1523 = vmatpush1.msra.mxu0 0.0
    %1524 = vmatprep.subr.mxu0 0.0
    %1525 = vmatpush1.msra.mxu0 0.0
    %1526 = vmatprep.subr.mxu0 0.0
    %1527 = vmatpush1.msra.mxu0 0.0
    %1528 = vmatprep.subr.mxu0 0.0
    %1529 = vmatpush1.msra.mxu0 0.0
    %1530 = vmatprep.subr.mxu0 0.0
    %1531 = vmatpush1.msra.mxu0 0.0
    %1532 = vmatprep.subr.mxu0 0.0
    %1533 = vmatpush1.msra.mxu0 0.0
    %1534 = vmatprep.subr.mxu0 0.0
    %1535 = vmatpush1.msra.mxu0 0.0
    %1536 = vmatprep.subr.mxu0 0.0
    %1537 = vmatpush1.msra.mxu0 0.0
    %1538 = vmatprep.subr.mxu0 0.0
    %1539 = vmatpush1.msra.mxu0 0.0
    %1540 = vmatprep.subr.mxu0 0.0
    %1541 = vmatpush1.msra.mxu0 0.0
    %1542 = vmatprep.subr.mxu0 0.0
    %1543 = vmatpush1.msra.mxu0 0.0
    %1544 = vmatprep.subr.mxu0 0.0
    %1545 = vmatpush1.msra.mxu0 0.0
    %1546 = vmatprep.subr.mxu0 0.0
    %1547 = vmatpush1.msra.mxu0 0.0
    %1548 = vmatprep.mubr.f32.mxu0 0.0
    %v1549 = vand.u32 %v706, 4294901760
    %1550 = vmatmul.mubr.f32.gmra.mrb[0].mxu0 %v1549
    %v1551 = vpop.f32.mrb[0].mxu0
    %v1552 = vadd.f32 %v1475, %v1551
    %v1553 = vpop.f32.mrb[0].mxu0
    %1554 = vdwg.mxu0
    %1555 = vmatprep.subr.mxu0 0.0
    %v1556 = vand.u32 %v1167, 4294901760
    %1557 = vmatpush1.msra.mxu0 %v1556
    %1558 = vmatprep.subr.mxu0 0.0
    %v1559 = vand.u32 %v1168, 4294901760
    %1560 = vmatpush1.msra.mxu0 %v1559
    %1561 = vmatprep.subr.mxu0 0.0
    %1562 = vmatpush1.msra.mxu0 0.0
    %1563 = vmatprep.subr.mxu0 0.0
    %1564 = vmatpush1.msra.mxu0 0.0
    %1565 = vmatprep.subr.mxu0 0.0
    %1566 = vmatpush1.msra.mxu0 0.0
    %1567 = vmatprep.subr.mxu0 0.0
    %1568 = vmatpush1.msra.mxu0 0.0
    %1569 = vmatprep.subr.mxu0 0.0
    %1570 = vmatpush1.msra.mxu0 0.0
    %1571 = vmatprep.subr.mxu0 0.0
    %1572 = vmatpush1.msra.mxu0 0.0
    %1573 = vmatprep.subr.mxu0 0.0
    %1574 = vmatpush1.msra.mxu0 0.0
    %1575 = vmatprep.subr.mxu0 0.0
    %1576 = vmatpush1.msra.mxu0 0.0
    %1577 = vmatprep.subr.mxu0 0.0
    %1578 = vmatpush1.msra.mxu0 0.0
    %1579 = vmatprep.subr.mxu0 0.0
    %1580 = vmatpush1.msra.mxu0 0.0
    %1581 = vmatprep.subr.mxu0 0.0
    %1582 = vmatpush1.msra.mxu0 0.0
    %1583 = vmatprep.subr.mxu0 0.0
    %1584 = vmatpush1.msra.mxu0 0.0
    %1585 = vmatprep.subr.mxu0 0.0
    %1586 = vmatpush1.msra.mxu0 0.0
    %1587 = vmatprep.subr.mxu0 0.0
    %1588 = vmatpush1.msra.mxu0 0.0
    %1589 = vmatprep.subr.mxu0 0.0
    %1590 = vmatpush1.msra.mxu0 0.0
    %1591 = vmatprep.subr.mxu0 0.0
    %1592 = vmatpush1.msra.mxu0 0.0
    %1593 = vmatprep.subr.mxu0 0.0
    %1594 = vmatpush1.msra.mxu0 0.0
    %1595 = vmatprep.subr.mxu0 0.0
    %1596 = vmatpush1.msra.mxu0 0.0
    %1597 = vmatprep.subr.mxu0 0.0
    %1598 = vmatpush1.msra.mxu0 0.0
    %1599 = vmatprep.subr.mxu0 0.0
    %1600 = vmatpush1.msra.mxu0 0.0
    %1601 = vmatprep.subr.mxu0 0.0
    %1602 = vmatpush1.msra.mxu0 0.0
    %1603 = vmatprep.subr.mxu0 0.0
    %1604 = vmatpush1.msra.mxu0 0.0
    %1605 = vmatprep.subr.mxu0 0.0
    %1606 = vmatpush1.msra.mxu0 0.0
    %1607 = vmatprep.subr.mxu0 0.0
    %1608 = vmatpush1.msra.mxu0 0.0
    %1609 = vmatprep.subr.mxu0 0.0
    %1610 = vmatpush1.msra.mxu0 0.0
    %1611 = vmatprep.subr.mxu0 0.0
    %1612 = vmatpush1.msra.mxu0 0.0
    %1613 = vmatprep.subr.mxu0 0.0
    %1614 = vmatpush1.msra.mxu0 0.0
    %1615 = vmatprep.subr.mxu0 0.0
    %1616 = vmatpush1.msra.mxu0 0.0
    %1617 = vmatprep.subr.mxu0 0.0
    %1618 = vmatpush1.msra.mxu0 0.0
    %1619 = vmatprep.subr.mxu0 0.0
    %1620 = vmatpush1.msra.mxu0 0.0
    %1621 = vmatprep.mubr.f32.mxu0 0.0
    %v1622 = vand.u32 %v706, 4294901760
    %1623 = vmatmul.mubr.f32.gmra.mrb[0].mxu0 %v1622
    %v1624 = vpop.f32.mrb[0].mxu0
    %v1625 = vadd.f32 %v1552, %v1624
    %v1626 = vpop.f32.mrb[0].mxu0
    %1627 = vdwg.mxu0
    %v1628 = vmul.f32 %v1164, 0.25
    %v1629 = vmul.f32 %v1625, 0.25
    %v1630 = vmul.f32 %v1628, %v1628
    %v1631 = vsub.f32 %v1629, %v1630
    %v1632 = vmax.f32 %v1631, 0.0
    %v1633 = vadd.f32 %v1632, 1e-05
    %v1634 = vrsqrt.pop %v1633
    %v1635 = vsub.f32 0.0, %v1628
    %v1636 = vmul.f32 %v1635, %v1634
    %v1638 = vsel %vm199, %v700, 0
    %v1641 = vsel %vm199, %v701, 0
    %v1644 = vsel %vm206, %v1634, 0
    %1646 = vmatprep.subr.mxu0 0.0
    %v1647 = vand.u32 %v1644, 4294901760
    %1648 = vmatpush1.msra.mxu0 %v1647
    %1649 = vmatprep.subr.mxu0 0.0
    %1650 = vmatpush1.msra.mxu0 0.0
    %1651 = vmatprep.subr.mxu0 0.0
    %1652 = vmatpush1.msra.mxu0 0.0
    %1653 = vmatprep.subr.mxu0 0.0
    %1654 = vmatpush1.msra.mxu0 0.0
    %1655 = vmatprep.subr.mxu0 0.0
    %1656 = vmatpush1.msra.mxu0 0.0
    %1657 = vmatprep.subr.mxu0 0.0
    %1658 = vmatpush1.msra.mxu0 0.0
    %1659 = vmatprep.subr.mxu0 0.0
    %1660 = vmatpush1.msra.mxu0 0.0
    %1661 = vmatprep.subr.mxu0 0.0
    %1662 = vmatpush1.msra.mxu0 0.0
    %1663 = vmatprep.subr.mxu0 0.0
    %1664 = vmatpush1.msra.mxu0 0.0
    %1665 = vmatprep.subr.mxu0 0.0
    %1666 = vmatpush1.msra.mxu0 0.0
    %1667 = vmatprep.subr.mxu0 0.0
    %1668 = vmatpush1.msra.mxu0 0.0
    %1669 = vmatprep.subr.mxu0 0.0
    %1670 = vmatpush1.msra.mxu0 0.0
    %1671 = vmatprep.subr.mxu0 0.0
    %1672 = vmatpush1.msra.mxu0 0.0
    %1673 = vmatprep.subr.mxu0 0.0
    %1674 = vmatpush1.msra.mxu0 0.0
    %1675 = vmatprep.subr.mxu0 0.0
    %1676 = vmatpush1.msra.mxu0 0.0
    %1677 = vmatprep.subr.mxu0 0.0
    %1678 = vmatpush1.msra.mxu0 0.0
    %1679 = vmatprep.subr.mxu0 0.0
    %1680 = vmatpush1.msra.mxu0 0.0
    %1681 = vmatprep.subr.mxu0 0.0
    %1682 = vmatpush1.msra.mxu0 0.0
    %1683 = vmatprep.subr.mxu0 0.0
    %1684 = vmatpush1.msra.mxu0 0.0
    %1685 = vmatprep.subr.mxu0 0.0
    %1686 = vmatpush1.msra.mxu0 0.0
    %1687 = vmatprep.subr.mxu0 0.0
    %1688 = vmatpush1.msra.mxu0 0.0
    %1689 = vmatprep.subr.mxu0 0.0
    %1690 = vmatpush1.msra.mxu0 0.0
    %1691 = vmatprep.subr.mxu0 0.0
    %1692 = vmatpush1.msra.mxu0 0.0
    %1693 = vmatprep.subr.mxu0 0.0
    %1694 = vmatpush1.msra.mxu0 0.0
    %1695 = vmatprep.subr.mxu0 0.0
    %1696 = vmatpush1.msra.mxu0 0.0
    %1697 = vmatprep.subr.mxu0 0.0
    %1698 = vmatpush1.msra.mxu0 0.0
    %1699 = vmatprep.subr.mxu0 0.0
    %1700 = vmatpush1.msra.mxu0 0.0
    %1701 = vmatprep.subr.mxu0 0.0
    %1702 = vmatpush1.msra.mxu0 0.0
    %1703 = vmatprep.subr.mxu0 0.0
    %1704 = vmatpush1.msra.mxu0 0.0
    %1705 = vmatprep.subr.mxu0 0.0
    %1706 = vmatpush1.msra.mxu0 0.0
    %1707 = vmatprep.subr.mxu0 0.0
    %1708 = vmatpush1.msra.mxu0 0.0
    %1709 = vmatprep.subr.mxu0 0.0
    %1710 = vmatpush1.msra.mxu0 0.0
    %1711 = vmatprep.mubr.f32.mxu0 0.0
    %v1712 = vand.u32 %v1638, 4294901760
    %v1713 = vsub.f32 %v1638, %v1712
    %v1714 = vand.u32 %v1713, 4294901760
    %v1715 = vsub.f32 %v1713, %v1714
    %v1716 = vand.u32 %v1715, 4294901760
    %1717 = vmatmul.mubr.f32.gmra.mrb[0].mxu0 %v1716
    %v1718 = vpop.f32.mrb[0].mxu0
    %v1719 = vadd.f32 0.0, %v1718
    %v1720 = vpop.f32.mrb[0].mxu0
    %1721 = vmatprep.mubr.f32.mxu0 0.0
    %v1722 = vand.u32 %v1641, 4294901760
    %v1723 = vsub.f32 %v1641, %v1722
    %v1724 = vand.u32 %v1723, 4294901760
    %v1725 = vsub.f32 %v1723, %v1724
    %v1726 = vand.u32 %v1725, 4294901760
    %1727 = vmatmul.mubr.f32.gmra.mrb[0].mxu0 %v1726
    %v1728 = vpop.f32.mrb[0].mxu0
    %v1729 = vadd.f32 0.0, %v1728
    %v1730 = vpop.f32.mrb[0].mxu0
    %1731 = vdwg.mxu0
    %1732 = vmatprep.subr.mxu0 0.0
    %v1733 = vand.u32 %v1644, 4294901760
    %v1734 = vsub.f32 %v1644, %v1733
    %v1735 = vand.u32 %v1734, 4294901760
    %v1736 = vsub.f32 %v1734, %v1735
    %v1737 = vand.u32 %v1736, 4294901760
    %1738 = vmatpush1.msra.mxu0 %v1737
    %1739 = vmatprep.subr.mxu0 0.0
    %1740 = vmatpush1.msra.mxu0 0.0
    %1741 = vmatprep.subr.mxu0 0.0
    %1742 = vmatpush1.msra.mxu0 0.0
    %1743 = vmatprep.subr.mxu0 0.0
    %1744 = vmatpush1.msra.mxu0 0.0
    %1745 = vmatprep.subr.mxu0 0.0
    %1746 = vmatpush1.msra.mxu0 0.0
    %1747 = vmatprep.subr.mxu0 0.0
    %1748 = vmatpush1.msra.mxu0 0.0
    %1749 = vmatprep.subr.mxu0 0.0
    %1750 = vmatpush1.msra.mxu0 0.0
    %1751 = vmatprep.subr.mxu0 0.0
    %1752 = vmatpush1.msra.mxu0 0.0
    %1753 = vmatprep.subr.mxu0 0.0
    %1754 = vmatpush1.msra.mxu0 0.0
    %1755 = vmatprep.subr.mxu0 0.0
    %1756 = vmatpush1.msra.mxu0 0.0
    %1757 = vmatprep.subr.mxu0 0.0
    %1758 = vmatpush1.msra.mxu0 0.0
    %1759 = vmatprep.subr.mxu0 0.0
    %1760 = vmatpush1.msra.mxu0 0.0
    %1761 = vmatprep.subr.mxu0 0.0
    %1762 = vmatpush1.msra.mxu0 0.0
    %1763 = vmatprep.subr.mxu0 0.0
    %1764 = vmatpush1.msra.mxu0 0.0
    %1765 = vmatprep.subr.mxu0 0.0
    %1766 = vmatpush1.msra.mxu0 0.0
    %1767 = vmatprep.subr.mxu0 0.0
    %1768 = vmatpush1.msra.mxu0 0.0
    %1769 = vmatprep.subr.mxu0 0.0
    %1770 = vmatpush1.msra.mxu0 0.0
    %1771 = vmatprep.subr.mxu0 0.0
    %1772 = vmatpush1.msra.mxu0 0.0
    %1773 = vmatprep.subr.mxu0 0.0
    %1774 = vmatpush1.msra.mxu0 0.0
    %1775 = vmatprep.subr.mxu0 0.0
    %1776 = vmatpush1.msra.mxu0 0.0
    %1777 = vmatprep.subr.mxu0 0.0
    %1778 = vmatpush1.msra.mxu0 0.0
    %1779 = vmatprep.subr.mxu0 0.0
    %1780 = vmatpush1.msra.mxu0 0.0
    %1781 = vmatprep.subr.mxu0 0.0
    %1782 = vmatpush1.msra.mxu0 0.0
    %1783 = vmatprep.subr.mxu0 0.0
    %1784 = vmatpush1.msra.mxu0 0.0
    %1785 = vmatprep.subr.mxu0 0.0
    %1786 = vmatpush1.msra.mxu0 0.0
    %1787 = vmatprep.subr.mxu0 0.0
    %1788 = vmatpush1.msra.mxu0 0.0
    %1789 = vmatprep.subr.mxu0 0.0
    %1790 = vmatpush1.msra.mxu0 0.0
    %1791 = vmatprep.subr.mxu0 0.0
    %1792 = vmatpush1.msra.mxu0 0.0
    %1793 = vmatprep.subr.mxu0 0.0
    %1794 = vmatpush1.msra.mxu0 0.0
    %1795 = vmatprep.subr.mxu0 0.0
    %1796 = vmatpush1.msra.mxu0 0.0
    %1797 = vmatprep.subr.mxu0 0.0
    %1798 = vmatpush1.msra.mxu0 0.0
    %1799 = vmatprep.subr.mxu0 0.0
    %1800 = vmatpush1.msra.mxu0 0.0
    %1801 = vmatprep.mubr.f32.mxu0 0.0
    %v1802 = vand.u32 %v1638, 4294901760
    %1803 = vmatmul.mubr.f32.gmra.mrb[0].mxu0 %v1802
    %v1804 = vpop.f32.mrb[0].mxu0
    %v1805 = vadd.f32 %v1719, %v1804
    %v1806 = vpop.f32.mrb[0].mxu0
    %1807 = vmatprep.mubr.f32.mxu0 0.0
    %v1808 = vand.u32 %v1641, 4294901760
    %1809 = vmatmul.mubr.f32.gmra.mrb[0].mxu0 %v1808
    %v1810 = vpop.f32.mrb[0].mxu0
    %v1811 = vadd.f32 %v1729, %v1810
    %v1812 = vpop.f32.mrb[0].mxu0
    %1813 = vdwg.mxu0
    %1814 = vmatprep.subr.mxu0 0.0
    %v1815 = vand.u32 %v1644, 4294901760
    %v1816 = vsub.f32 %v1644, %v1815
    %1817 = vmatpush1.msra.mxu0 %v1816
    %1818 = vmatprep.subr.mxu0 0.0
    %1819 = vmatpush1.msra.mxu0 0.0
    %1820 = vmatprep.subr.mxu0 0.0
    %1821 = vmatpush1.msra.mxu0 0.0
    %1822 = vmatprep.subr.mxu0 0.0
    %1823 = vmatpush1.msra.mxu0 0.0
    %1824 = vmatprep.subr.mxu0 0.0
    %1825 = vmatpush1.msra.mxu0 0.0
    %1826 = vmatprep.subr.mxu0 0.0
    %1827 = vmatpush1.msra.mxu0 0.0
    %1828 = vmatprep.subr.mxu0 0.0
    %1829 = vmatpush1.msra.mxu0 0.0
    %1830 = vmatprep.subr.mxu0 0.0
    %1831 = vmatpush1.msra.mxu0 0.0
    %1832 = vmatprep.subr.mxu0 0.0
    %1833 = vmatpush1.msra.mxu0 0.0
    %1834 = vmatprep.subr.mxu0 0.0
    %1835 = vmatpush1.msra.mxu0 0.0
    %1836 = vmatprep.subr.mxu0 0.0
    %1837 = vmatpush1.msra.mxu0 0.0
    %1838 = vmatprep.subr.mxu0 0.0
    %1839 = vmatpush1.msra.mxu0 0.0
    %1840 = vmatprep.subr.mxu0 0.0
    %1841 = vmatpush1.msra.mxu0 0.0
    %1842 = vmatprep.subr.mxu0 0.0
    %1843 = vmatpush1.msra.mxu0 0.0
    %1844 = vmatprep.subr.mxu0 0.0
    %1845 = vmatpush1.msra.mxu0 0.0
    %1846 = vmatprep.subr.mxu0 0.0
    %1847 = vmatpush1.msra.mxu0 0.0
    %1848 = vmatprep.subr.mxu0 0.0
    %1849 = vmatpush1.msra.mxu0 0.0
    %1850 = vmatprep.subr.mxu0 0.0
    %1851 = vmatpush1.msra.mxu0 0.0
    %1852 = vmatprep.subr.mxu0 0.0
    %1853 = vmatpush1.msra.mxu0 0.0
    %1854 = vmatprep.subr.mxu0 0.0
    %1855 = vmatpush1.msra.mxu0 0.0
    %1856 = vmatprep.subr.mxu0 0.0
    %1857 = vmatpush1.msra.mxu0 0.0
    %1858 = vmatprep.subr.mxu0 0.0
    %1859 = vmatpush1.msra.mxu0 0.0
    %1860 = vmatprep.subr.mxu0 0.0
    %1861 = vmatpush1.msra.mxu0 0.0
    %1862 = vmatprep.subr.mxu0 0.0
    %1863 = vmatpush1.msra.mxu0 0.0
    %1864 = vmatprep.subr.mxu0 0.0
    %1865 = vmatpush1.msra.mxu0 0.0
    %1866 = vmatprep.subr.mxu0 0.0
    %1867 = vmatpush1.msra.mxu0 0.0
    %1868 = vmatprep.subr.mxu0 0.0
    %1869 = vmatpush1.msra.mxu0 0.0
    %1870 = vmatprep.subr.mxu0 0.0
    %1871 = vmatpush1.msra.mxu0 0.0
    %1872 = vmatprep.subr.mxu0 0.0
    %1873 = vmatpush1.msra.mxu0 0.0
    %1874 = vmatprep.subr.mxu0 0.0
    %1875 = vmatpush1.msra.mxu0 0.0
    %1876 = vmatprep.subr.mxu0 0.0
    %1877 = vmatpush1.msra.mxu0 0.0
    %1878 = vmatprep.subr.mxu0 0.0
    %1879 = vmatpush1.msra.mxu0 0.0
    %1880 = vmatprep.mubr.f32.mxu0 0.0
    %v1881 = vand.u32 %v1638, 4294901760
    %v1882 = vsub.f32 %v1638, %v1881
    %1883 = vmatmul.mubr.f32.gmra.mrb[0].mxu0 %v1882
    %v1884 = vpop.f32.mrb[0].mxu0
    %v1885 = vadd.f32 %v1805, %v1884
    %v1886 = vpop.f32.mrb[0].mxu0
    %1887 = vmatprep.mubr.f32.mxu0 0.0
    %v1888 = vand.u32 %v1641, 4294901760
    %v1889 = vsub.f32 %v1641, %v1888
    %1890 = vmatmul.mubr.f32.gmra.mrb[0].mxu0 %v1889
    %v1891 = vpop.f32.mrb[0].mxu0
    %v1892 = vadd.f32 %v1811, %v1891
    %v1893 = vpop.f32.mrb[0].mxu0
    %1894 = vdwg.mxu0
    %1895 = vmatprep.subr.mxu0 0.0
    %v1896 = vand.u32 %v1644, 4294901760
    %1897 = vmatpush1.msra.mxu0 %v1896
    %1898 = vmatprep.subr.mxu0 0.0
    %1899 = vmatpush1.msra.mxu0 0.0
    %1900 = vmatprep.subr.mxu0 0.0
    %1901 = vmatpush1.msra.mxu0 0.0
    %1902 = vmatprep.subr.mxu0 0.0
    %1903 = vmatpush1.msra.mxu0 0.0
    %1904 = vmatprep.subr.mxu0 0.0
    %1905 = vmatpush1.msra.mxu0 0.0
    %1906 = vmatprep.subr.mxu0 0.0
    %1907 = vmatpush1.msra.mxu0 0.0
    %1908 = vmatprep.subr.mxu0 0.0
    %1909 = vmatpush1.msra.mxu0 0.0
    %1910 = vmatprep.subr.mxu0 0.0
    %1911 = vmatpush1.msra.mxu0 0.0
    %1912 = vmatprep.subr.mxu0 0.0
    %1913 = vmatpush1.msra.mxu0 0.0
    %1914 = vmatprep.subr.mxu0 0.0
    %1915 = vmatpush1.msra.mxu0 0.0
    %1916 = vmatprep.subr.mxu0 0.0
    %1917 = vmatpush1.msra.mxu0 0.0
    %1918 = vmatprep.subr.mxu0 0.0
    %1919 = vmatpush1.msra.mxu0 0.0
    %1920 = vmatprep.subr.mxu0 0.0
    %1921 = vmatpush1.msra.mxu0 0.0
    %1922 = vmatprep.subr.mxu0 0.0
    %1923 = vmatpush1.msra.mxu0 0.0
    %1924 = vmatprep.subr.mxu0 0.0
    %1925 = vmatpush1.msra.mxu0 0.0
    %1926 = vmatprep.subr.mxu0 0.0
    %1927 = vmatpush1.msra.mxu0 0.0
    %1928 = vmatprep.subr.mxu0 0.0
    %1929 = vmatpush1.msra.mxu0 0.0
    %1930 = vmatprep.subr.mxu0 0.0
    %1931 = vmatpush1.msra.mxu0 0.0
    %1932 = vmatprep.subr.mxu0 0.0
    %1933 = vmatpush1.msra.mxu0 0.0
    %1934 = vmatprep.subr.mxu0 0.0
    %1935 = vmatpush1.msra.mxu0 0.0
    %1936 = vmatprep.subr.mxu0 0.0
    %1937 = vmatpush1.msra.mxu0 0.0
    %1938 = vmatprep.subr.mxu0 0.0
    %1939 = vmatpush1.msra.mxu0 0.0
    %1940 = vmatprep.subr.mxu0 0.0
    %1941 = vmatpush1.msra.mxu0 0.0
    %1942 = vmatprep.subr.mxu0 0.0
    %1943 = vmatpush1.msra.mxu0 0.0
    %1944 = vmatprep.subr.mxu0 0.0
    %1945 = vmatpush1.msra.mxu0 0.0
    %1946 = vmatprep.subr.mxu0 0.0
    %1947 = vmatpush1.msra.mxu0 0.0
    %1948 = vmatprep.subr.mxu0 0.0
    %1949 = vmatpush1.msra.mxu0 0.0
    %1950 = vmatprep.subr.mxu0 0.0
    %1951 = vmatpush1.msra.mxu0 0.0
    %1952 = vmatprep.subr.mxu0 0.0
    %1953 = vmatpush1.msra.mxu0 0.0
    %1954 = vmatprep.subr.mxu0 0.0
    %1955 = vmatpush1.msra.mxu0 0.0
    %1956 = vmatprep.subr.mxu0 0.0
    %1957 = vmatpush1.msra.mxu0 0.0
    %1958 = vmatprep.subr.mxu0 0.0
    %1959 = vmatpush1.msra.mxu0 0.0
    %1960 = vmatprep.mubr.f32.mxu0 0.0
    %v1961 = vand.u32 %v1638, 4294901760
    %v1962 = vsub.f32 %v1638, %v1961
    %v1963 = vand.u32 %v1962, 4294901760
    %1964 = vmatmul.mubr.f32.gmra.mrb[0].mxu0 %v1963
    %v1965 = vpop.f32.mrb[0].mxu0
    %v1966 = vadd.f32 %v1885, %v1965
    %v1967 = vpop.f32.mrb[0].mxu0
    %1968 = vmatprep.mubr.f32.mxu0 0.0
    %v1969 = vand.u32 %v1641, 4294901760
    %v1970 = vsub.f32 %v1641, %v1969
    %v1971 = vand.u32 %v1970, 4294901760
    %1972 = vmatmul.mubr.f32.gmra.mrb[0].mxu0 %v1971
    %v1973 = vpop.f32.mrb[0].mxu0
    %v1974 = vadd.f32 %v1892, %v1973
    %v1975 = vpop.f32.mrb[0].mxu0
    %1976 = vdwg.mxu0
    %1977 = vmatprep.subr.mxu0 0.0
    %v1978 = vand.u32 %v1644, 4294901760
    %v1979 = vsub.f32 %v1644, %v1978
    %v1980 = vand.u32 %v1979, 4294901760
    %1981 = vmatpush1.msra.mxu0 %v1980
    %1982 = vmatprep.subr.mxu0 0.0
    %1983 = vmatpush1.msra.mxu0 0.0
    %1984 = vmatprep.subr.mxu0 0.0
    %1985 = vmatpush1.msra.mxu0 0.0
    %1986 = vmatprep.subr.mxu0 0.0
    %1987 = vmatpush1.msra.mxu0 0.0
    %1988 = vmatprep.subr.mxu0 0.0
    %1989 = vmatpush1.msra.mxu0 0.0
    %1990 = vmatprep.subr.mxu0 0.0
    %1991 = vmatpush1.msra.mxu0 0.0
    %1992 = vmatprep.subr.mxu0 0.0
    %1993 = vmatpush1.msra.mxu0 0.0
    %1994 = vmatprep.subr.mxu0 0.0
    %1995 = vmatpush1.msra.mxu0 0.0
    %1996 = vmatprep.subr.mxu0 0.0
    %1997 = vmatpush1.msra.mxu0 0.0
    %1998 = vmatprep.subr.mxu0 0.0
    %1999 = vmatpush1.msra.mxu0 0.0
    %2000 = vmatprep.subr.mxu0 0.0
    %2001 = vmatpush1.msra.mxu0 0.0
    %2002 = vmatprep.subr.mxu0 0.0
    %2003 = vmatpush1.msra.mxu0 0.0
    %2004 = vmatprep.subr.mxu0 0.0
    %2005 = vmatpush1.msra.mxu0 0.0
    %2006 = vmatprep.subr.mxu0 0.0
    %2007 = vmatpush1.msra.mxu0 0.0
    %2008 = vmatprep.subr.mxu0 0.0
    %2009 = vmatpush1.msra.mxu0 0.0
    %2010 = vmatprep.subr.mxu0 0.0
    %2011 = vmatpush1.msra.mxu0 0.0
    %2012 = vmatprep.subr.mxu0 0.0
    %2013 = vmatpush1.msra.mxu0 0.0
    %2014 = vmatprep.subr.mxu0 0.0
    %2015 = vmatpush1.msra.mxu0 0.0
    %2016 = vmatprep.subr.mxu0 0.0
    %2017 = vmatpush1.msra.mxu0 0.0
    %2018 = vmatprep.subr.mxu0 0.0
    %2019 = vmatpush1.msra.mxu0 0.0
    %2020 = vmatprep.subr.mxu0 0.0
    %2021 = vmatpush1.msra.mxu0 0.0
    %2022 = vmatprep.subr.mxu0 0.0
    %2023 = vmatpush1.msra.mxu0 0.0
    %2024 = vmatprep.subr.mxu0 0.0
    %2025 = vmatpush1.msra.mxu0 0.0
    %2026 = vmatprep.subr.mxu0 0.0
    %2027 = vmatpush1.msra.mxu0 0.0
    %2028 = vmatprep.subr.mxu0 0.0
    %2029 = vmatpush1.msra.mxu0 0.0
    %2030 = vmatprep.subr.mxu0 0.0
    %2031 = vmatpush1.msra.mxu0 0.0
    %2032 = vmatprep.subr.mxu0 0.0
    %2033 = vmatpush1.msra.mxu0 0.0
    %2034 = vmatprep.subr.mxu0 0.0
    %2035 = vmatpush1.msra.mxu0 0.0
    %2036 = vmatprep.subr.mxu0 0.0
    %2037 = vmatpush1.msra.mxu0 0.0
    %2038 = vmatprep.subr.mxu0 0.0
    %2039 = vmatpush1.msra.mxu0 0.0
    %2040 = vmatprep.subr.mxu0 0.0
    %2041 = vmatpush1.msra.mxu0 0.0
    %2042 = vmatprep.subr.mxu0 0.0
    %2043 = vmatpush1.msra.mxu0 0.0
    %2044 = vmatprep.mubr.f32.mxu0 0.0
    %v2045 = vand.u32 %v1638, 4294901760
    %2046 = vmatmul.mubr.f32.gmra.mrb[0].mxu0 %v2045
    %v2047 = vpop.f32.mrb[0].mxu0
    %v2048 = vadd.f32 %v1966, %v2047
    %v2049 = vpop.f32.mrb[0].mxu0
    %2050 = vmatprep.mubr.f32.mxu0 0.0
    %v2051 = vand.u32 %v1641, 4294901760
    %2052 = vmatmul.mubr.f32.gmra.mrb[0].mxu0 %v2051
    %v2053 = vpop.f32.mrb[0].mxu0
    %v2054 = vadd.f32 %v1974, %v2053
    %v2055 = vpop.f32.mrb[0].mxu0
    %2056 = vdwg.mxu0
    %2057 = vmatprep.subr.mxu0 0.0
    %v2058 = vand.u32 %v1644, 4294901760
    %2059 = vmatpush1.msra.mxu0 %v2058
    %2060 = vmatprep.subr.mxu0 0.0
    %2061 = vmatpush1.msra.mxu0 0.0
    %2062 = vmatprep.subr.mxu0 0.0
    %2063 = vmatpush1.msra.mxu0 0.0
    %2064 = vmatprep.subr.mxu0 0.0
    %2065 = vmatpush1.msra.mxu0 0.0
    %2066 = vmatprep.subr.mxu0 0.0
    %2067 = vmatpush1.msra.mxu0 0.0
    %2068 = vmatprep.subr.mxu0 0.0
    %2069 = vmatpush1.msra.mxu0 0.0
    %2070 = vmatprep.subr.mxu0 0.0
    %2071 = vmatpush1.msra.mxu0 0.0
    %2072 = vmatprep.subr.mxu0 0.0
    %2073 = vmatpush1.msra.mxu0 0.0
    %2074 = vmatprep.subr.mxu0 0.0
    %2075 = vmatpush1.msra.mxu0 0.0
    %2076 = vmatprep.subr.mxu0 0.0
    %2077 = vmatpush1.msra.mxu0 0.0
    %2078 = vmatprep.subr.mxu0 0.0
    %2079 = vmatpush1.msra.mxu0 0.0
    %2080 = vmatprep.subr.mxu0 0.0
    %2081 = vmatpush1.msra.mxu0 0.0
    %2082 = vmatprep.subr.mxu0 0.0
    %2083 = vmatpush1.msra.mxu0 0.0
    %2084 = vmatprep.subr.mxu0 0.0
    %2085 = vmatpush1.msra.mxu0 0.0
    %2086 = vmatprep.subr.mxu0 0.0
    %2087 = vmatpush1.msra.mxu0 0.0
    %2088 = vmatprep.subr.mxu0 0.0
    %2089 = vmatpush1.msra.mxu0 0.0
    %2090 = vmatprep.subr.mxu0 0.0
    %2091 = vmatpush1.msra.mxu0 0.0
    %2092 = vmatprep.subr.mxu0 0.0
    %2093 = vmatpush1.msra.mxu0 0.0
    %2094 = vmatprep.subr.mxu0 0.0
    %2095 = vmatpush1.msra.mxu0 0.0
    %2096 = vmatprep.subr.mxu0 0.0
    %2097 = vmatpush1.msra.mxu0 0.0
    %2098 = vmatprep.subr.mxu0 0.0
    %2099 = vmatpush1.msra.mxu0 0.0
    %2100 = vmatprep.subr.mxu0 0.0
    %2101 = vmatpush1.msra.mxu0 0.0
    %2102 = vmatprep.subr.mxu0 0.0
    %2103 = vmatpush1.msra.mxu0 0.0
    %2104 = vmatprep.subr.mxu0 0.0
    %2105 = vmatpush1.msra.mxu0 0.0
    %2106 = vmatprep.subr.mxu0 0.0
    %2107 = vmatpush1.msra.mxu0 0.0
    %2108 = vmatprep.subr.mxu0 0.0
    %2109 = vmatpush1.msra.mxu0 0.0
    %2110 = vmatprep.subr.mxu0 0.0
    %2111 = vmatpush1.msra.mxu0 0.0
    %2112 = vmatprep.subr.mxu0 0.0
    %2113 = vmatpush1.msra.mxu0 0.0
    %2114 = vmatprep.subr.mxu0 0.0
    %2115 = vmatpush1.msra.mxu0 0.0
    %2116 = vmatprep.subr.mxu0 0.0
    %2117 = vmatpush1.msra.mxu0 0.0
    %2118 = vmatprep.subr.mxu0 0.0
    %2119 = vmatpush1.msra.mxu0 0.0
    %2120 = vmatprep.subr.mxu0 0.0
    %2121 = vmatpush1.msra.mxu0 0.0
    %2122 = vmatprep.mubr.f32.mxu0 0.0
    %v2123 = vand.u32 %v1638, 4294901760
    %2124 = vmatmul.mubr.f32.gmra.mrb[0].mxu0 %v2123
    %v2125 = vpop.f32.mrb[0].mxu0
    %v2126 = vadd.f32 %v2048, %v2125
    %v2127 = vpop.f32.mrb[0].mxu0
    %2128 = vmatprep.mubr.f32.mxu0 0.0
    %v2129 = vand.u32 %v1641, 4294901760
    %2130 = vmatmul.mubr.f32.gmra.mrb[0].mxu0 %v2129
    %v2131 = vpop.f32.mrb[0].mxu0
    %v2132 = vadd.f32 %v2054, %v2131
    %v2133 = vpop.f32.mrb[0].mxu0
    %2134 = vdwg.mxu0
    %v2135 = vmul.f32 %v690, %v2126
    %v2136 = vmul.f32 %v696, %v2132
    %2138 = vset.pattern.permute.xlu0 0
    %2139 = vperm.xlu0 %2138, %v702
    %v2140 = vpop.permute.xlu0 %2139
    %2143 = vset.pattern.permute.xlu0 0
    %2144 = vperm.xlu0 %2143, %v703
    %v2145 = vpop.permute.xlu0 %2144
    %v2148 = vsel %vm206, %v1636, 0
    %2150 = vmatprep.subr.mxu0 0.0
    %v2151 = vand.u32 %v2148, 4294901760
    %2152 = vmatpush1.msra.mxu0 %v2151
    %2153 = vmatprep.subr.mxu0 0.0
    %2154 = vmatpush1.msra.mxu0 0.0
    %2155 = vmatprep.subr.mxu0 0.0
    %2156 = vmatpush1.msra.mxu0 0.0
    %2157 = vmatprep.subr.mxu0 0.0
    %2158 = vmatpush1.msra.mxu0 0.0
    %2159 = vmatprep.subr.mxu0 0.0
    %2160 = vmatpush1.msra.mxu0 0.0
    %2161 = vmatprep.subr.mxu0 0.0
    %2162 = vmatpush1.msra.mxu0 0.0
    %2163 = vmatprep.subr.mxu0 0.0
    %2164 = vmatpush1.msra.mxu0 0.0
    %2165 = vmatprep.subr.mxu0 0.0
    %2166 = vmatpush1.msra.mxu0 0.0
    %2167 = vmatprep.subr.mxu0 0.0
    %2168 = vmatpush1.msra.mxu0 0.0
    %2169 = vmatprep.subr.mxu0 0.0
    %2170 = vmatpush1.msra.mxu0 0.0
    %2171 = vmatprep.subr.mxu0 0.0
    %2172 = vmatpush1.msra.mxu0 0.0
    %2173 = vmatprep.subr.mxu0 0.0
    %2174 = vmatpush1.msra.mxu0 0.0
    %2175 = vmatprep.subr.mxu0 0.0
    %2176 = vmatpush1.msra.mxu0 0.0
    %2177 = vmatprep.subr.mxu0 0.0
    %2178 = vmatpush1.msra.mxu0 0.0
    %2179 = vmatprep.subr.mxu0 0.0
    %2180 = vmatpush1.msra.mxu0 0.0
    %2181 = vmatprep.subr.mxu0 0.0
    %2182 = vmatpush1.msra.mxu0 0.0
    %2183 = vmatprep.subr.mxu0 0.0
    %2184 = vmatpush1.msra.mxu0 0.0
    %2185 = vmatprep.subr.mxu0 0.0
    %2186 = vmatpush1.msra.mxu0 0.0
    %2187 = vmatprep.subr.mxu0 0.0
    %2188 = vmatpush1.msra.mxu0 0.0
    %2189 = vmatprep.subr.mxu0 0.0
    %2190 = vmatpush1.msra.mxu0 0.0
    %2191 = vmatprep.subr.mxu0 0.0
    %2192 = vmatpush1.msra.mxu0 0.0
    %2193 = vmatprep.subr.mxu0 0.0
    %2194 = vmatpush1.msra.mxu0 0.0
    %2195 = vmatprep.subr.mxu0 0.0
    %2196 = vmatpush1.msra.mxu0 0.0
    %2197 = vmatprep.subr.mxu0 0.0
    %2198 = vmatpush1.msra.mxu0 0.0
    %2199 = vmatprep.subr.mxu0 0.0
    %2200 = vmatpush1.msra.mxu0 0.0
    %2201 = vmatprep.subr.mxu0 0.0
    %2202 = vmatpush1.msra.mxu0 0.0
    %2203 = vmatprep.subr.mxu0 0.0
    %2204 = vmatpush1.msra.mxu0 0.0
    %2205 = vmatprep.subr.mxu0 0.0
    %2206 = vmatpush1.msra.mxu0 0.0
    %2207 = vmatprep.subr.mxu0 0.0
    %2208 = vmatpush1.msra.mxu0 0.0
    %2209 = vmatprep.subr.mxu0 0.0
    %2210 = vmatpush1.msra.mxu0 0.0
    %2211 = vmatprep.subr.mxu0 0.0
    %2212 = vmatpush1.msra.mxu0 0.0
    %2213 = vmatprep.subr.mxu0 0.0
    %2214 = vmatpush1.msra.mxu0 0.0
    %2215 = vmatprep.mubr.f32.mxu0 0.0
    %v2216 = vand.u32 %v1638, 4294901760
    %v2217 = vsub.f32 %v1638, %v2216
    %v2218 = vand.u32 %v2217, 4294901760
    %v2219 = vsub.f32 %v2217, %v2218
    %v2220 = vand.u32 %v2219, 4294901760
    %2221 = vmatmul.mubr.f32.gmra.mrb[0].mxu0 %v2220
    %v2222 = vpop.f32.mrb[0].mxu0
    %v2223 = vadd.f32 %v2140, %v2222
    %v2224 = vpop.f32.mrb[0].mxu0
    %2225 = vmatprep.mubr.f32.mxu0 0.0
    %v2226 = vand.u32 %v1641, 4294901760
    %v2227 = vsub.f32 %v1641, %v2226
    %v2228 = vand.u32 %v2227, 4294901760
    %v2229 = vsub.f32 %v2227, %v2228
    %v2230 = vand.u32 %v2229, 4294901760
    %2231 = vmatmul.mubr.f32.gmra.mrb[0].mxu0 %v2230
    %v2232 = vpop.f32.mrb[0].mxu0
    %v2233 = vadd.f32 %v2145, %v2232
    %v2234 = vpop.f32.mrb[0].mxu0
    %2235 = vdwg.mxu0
    %2236 = vmatprep.subr.mxu0 0.0
    %v2237 = vand.u32 %v2148, 4294901760
    %v2238 = vsub.f32 %v2148, %v2237
    %v2239 = vand.u32 %v2238, 4294901760
    %v2240 = vsub.f32 %v2238, %v2239
    %v2241 = vand.u32 %v2240, 4294901760
    %2242 = vmatpush1.msra.mxu0 %v2241
    %2243 = vmatprep.subr.mxu0 0.0
    %2244 = vmatpush1.msra.mxu0 0.0
    %2245 = vmatprep.subr.mxu0 0.0
    %2246 = vmatpush1.msra.mxu0 0.0
    %2247 = vmatprep.subr.mxu0 0.0
    %2248 = vmatpush1.msra.mxu0 0.0
    %2249 = vmatprep.subr.mxu0 0.0
    %2250 = vmatpush1.msra.mxu0 0.0
    %2251 = vmatprep.subr.mxu0 0.0
    %2252 = vmatpush1.msra.mxu0 0.0
    %2253 = vmatprep.subr.mxu0 0.0
    %2254 = vmatpush1.msra.mxu0 0.0
    %2255 = vmatprep.subr.mxu0 0.0
    %2256 = vmatpush1.msra.mxu0 0.0
    %2257 = vmatprep.subr.mxu0 0.0
    %2258 = vmatpush1.msra.mxu0 0.0
    %2259 = vmatprep.subr.mxu0 0.0
    %2260 = vmatpush1.msra.mxu0 0.0
    %2261 = vmatprep.subr.mxu0 0.0
    %2262 = vmatpush1.msra.mxu0 0.0
    %2263 = vmatprep.subr.mxu0 0.0
    %2264 = vmatpush1.msra.mxu0 0.0
    %2265 = vmatprep.subr.mxu0 0.0
    %2266 = vmatpush1.msra.mxu0 0.0
    %2267 = vmatprep.subr.mxu0 0.0
    %2268 = vmatpush1.msra.mxu0 0.0
    %2269 = vmatprep.subr.mxu0 0.0
    %2270 = vmatpush1.msra.mxu0 0.0
    %2271 = vmatprep.subr.mxu0 0.0
    %2272 = vmatpush1.msra.mxu0 0.0
    %2273 = vmatprep.subr.mxu0 0.0
    %2274 = vmatpush1.msra.mxu0 0.0
    %2275 = vmatprep.subr.mxu0 0.0
    %2276 = vmatpush1.msra.mxu0 0.0
    %2277 = vmatprep.subr.mxu0 0.0
    %2278 = vmatpush1.msra.mxu0 0.0
    %2279 = vmatprep.subr.mxu0 0.0
    %2280 = vmatpush1.msra.mxu0 0.0
    %2281 = vmatprep.subr.mxu0 0.0
    %2282 = vmatpush1.msra.mxu0 0.0
    %2283 = vmatprep.subr.mxu0 0.0
    %2284 = vmatpush1.msra.mxu0 0.0
    %2285 = vmatprep.subr.mxu0 0.0
    %2286 = vmatpush1.msra.mxu0 0.0
    %2287 = vmatprep.subr.mxu0 0.0
    %2288 = vmatpush1.msra.mxu0 0.0
    %2289 = vmatprep.subr.mxu0 0.0
    %2290 = vmatpush1.msra.mxu0 0.0
    %2291 = vmatprep.subr.mxu0 0.0
    %2292 = vmatpush1.msra.mxu0 0.0
    %2293 = vmatprep.subr.mxu0 0.0
    %2294 = vmatpush1.msra.mxu0 0.0
    %2295 = vmatprep.subr.mxu0 0.0
    %2296 = vmatpush1.msra.mxu0 0.0
    %2297 = vmatprep.subr.mxu0 0.0
    %2298 = vmatpush1.msra.mxu0 0.0
    %2299 = vmatprep.subr.mxu0 0.0
    %2300 = vmatpush1.msra.mxu0 0.0
    %2301 = vmatprep.subr.mxu0 0.0
    %2302 = vmatpush1.msra.mxu0 0.0
    %2303 = vmatprep.subr.mxu0 0.0
    %2304 = vmatpush1.msra.mxu0 0.0
    %2305 = vmatprep.mubr.f32.mxu0 0.0
    %v2306 = vand.u32 %v1638, 4294901760
    %2307 = vmatmul.mubr.f32.gmra.mrb[0].mxu0 %v2306
    %v2308 = vpop.f32.mrb[0].mxu0
    %v2309 = vadd.f32 %v2223, %v2308
    %v2310 = vpop.f32.mrb[0].mxu0
    %2311 = vmatprep.mubr.f32.mxu0 0.0
    %v2312 = vand.u32 %v1641, 4294901760
    %2313 = vmatmul.mubr.f32.gmra.mrb[0].mxu0 %v2312
    %v2314 = vpop.f32.mrb[0].mxu0
    %v2315 = vadd.f32 %v2233, %v2314
    %v2316 = vpop.f32.mrb[0].mxu0
    %2317 = vdwg.mxu0
    %2318 = vmatprep.subr.mxu0 0.0
    %v2319 = vand.u32 %v2148, 4294901760
    %v2320 = vsub.f32 %v2148, %v2319
    %2321 = vmatpush1.msra.mxu0 %v2320
    %2322 = vmatprep.subr.mxu0 0.0
    %2323 = vmatpush1.msra.mxu0 0.0
    %2324 = vmatprep.subr.mxu0 0.0
    %2325 = vmatpush1.msra.mxu0 0.0
    %2326 = vmatprep.subr.mxu0 0.0
    %2327 = vmatpush1.msra.mxu0 0.0
    %2328 = vmatprep.subr.mxu0 0.0
    %2329 = vmatpush1.msra.mxu0 0.0
    %2330 = vmatprep.subr.mxu0 0.0
    %2331 = vmatpush1.msra.mxu0 0.0
    %2332 = vmatprep.subr.mxu0 0.0
    %2333 = vmatpush1.msra.mxu0 0.0
    %2334 = vmatprep.subr.mxu0 0.0
    %2335 = vmatpush1.msra.mxu0 0.0
    %2336 = vmatprep.subr.mxu0 0.0
    %2337 = vmatpush1.msra.mxu0 0.0
    %2338 = vmatprep.subr.mxu0 0.0
    %2339 = vmatpush1.msra.mxu0 0.0
    %2340 = vmatprep.subr.mxu0 0.0
    %2341 = vmatpush1.msra.mxu0 0.0
    %2342 = vmatprep.subr.mxu0 0.0
    %2343 = vmatpush1.msra.mxu0 0.0
    %2344 = vmatprep.subr.mxu0 0.0
    %2345 = vmatpush1.msra.mxu0 0.0
    %2346 = vmatprep.subr.mxu0 0.0
    %2347 = vmatpush1.msra.mxu0 0.0
    %2348 = vmatprep.subr.mxu0 0.0
    %2349 = vmatpush1.msra.mxu0 0.0
    %2350 = vmatprep.subr.mxu0 0.0
    %2351 = vmatpush1.msra.mxu0 0.0
    %2352 = vmatprep.subr.mxu0 0.0
    %2353 = vmatpush1.msra.mxu0 0.0
    %2354 = vmatprep.subr.mxu0 0.0
    %2355 = vmatpush1.msra.mxu0 0.0
    %2356 = vmatprep.subr.mxu0 0.0
    %2357 = vmatpush1.msra.mxu0 0.0
    %2358 = vmatprep.subr.mxu0 0.0
    %2359 = vmatpush1.msra.mxu0 0.0
    %2360 = vmatprep.subr.mxu0 0.0
    %2361 = vmatpush1.msra.mxu0 0.0
    %2362 = vmatprep.subr.mxu0 0.0
    %2363 = vmatpush1.msra.mxu0 0.0
    %2364 = vmatprep.subr.mxu0 0.0
    %2365 = vmatpush1.msra.mxu0 0.0
    %2366 = vmatprep.subr.mxu0 0.0
    %2367 = vmatpush1.msra.mxu0 0.0
    %2368 = vmatprep.subr.mxu0 0.0
    %2369 = vmatpush1.msra.mxu0 0.0
    %2370 = vmatprep.subr.mxu0 0.0
    %2371 = vmatpush1.msra.mxu0 0.0
    %2372 = vmatprep.subr.mxu0 0.0
    %2373 = vmatpush1.msra.mxu0 0.0
    %2374 = vmatprep.subr.mxu0 0.0
    %2375 = vmatpush1.msra.mxu0 0.0
    %2376 = vmatprep.subr.mxu0 0.0
    %2377 = vmatpush1.msra.mxu0 0.0
    %2378 = vmatprep.subr.mxu0 0.0
    %2379 = vmatpush1.msra.mxu0 0.0
    %2380 = vmatprep.subr.mxu0 0.0
    %2381 = vmatpush1.msra.mxu0 0.0
    %2382 = vmatprep.subr.mxu0 0.0
    %2383 = vmatpush1.msra.mxu0 0.0
    %2384 = vmatprep.mubr.f32.mxu0 0.0
    %v2385 = vand.u32 %v1638, 4294901760
    %v2386 = vsub.f32 %v1638, %v2385
    %2387 = vmatmul.mubr.f32.gmra.mrb[0].mxu0 %v2386
    %v2388 = vpop.f32.mrb[0].mxu0
    %v2389 = vadd.f32 %v2309, %v2388
    %v2390 = vpop.f32.mrb[0].mxu0
    %2391 = vmatprep.mubr.f32.mxu0 0.0
    %v2392 = vand.u32 %v1641, 4294901760
    %v2393 = vsub.f32 %v1641, %v2392
    %2394 = vmatmul.mubr.f32.gmra.mrb[0].mxu0 %v2393
    %v2395 = vpop.f32.mrb[0].mxu0
    %v2396 = vadd.f32 %v2315, %v2395
    %v2397 = vpop.f32.mrb[0].mxu0
    %2398 = vdwg.mxu0
    %2399 = vmatprep.subr.mxu0 0.0
    %v2400 = vand.u32 %v2148, 4294901760
    %2401 = vmatpush1.msra.mxu0 %v2400
    %2402 = vmatprep.subr.mxu0 0.0
    %2403 = vmatpush1.msra.mxu0 0.0
    %2404 = vmatprep.subr.mxu0 0.0
    %2405 = vmatpush1.msra.mxu0 0.0
    %2406 = vmatprep.subr.mxu0 0.0
    %2407 = vmatpush1.msra.mxu0 0.0
    %2408 = vmatprep.subr.mxu0 0.0
    %2409 = vmatpush1.msra.mxu0 0.0
    %2410 = vmatprep.subr.mxu0 0.0
    %2411 = vmatpush1.msra.mxu0 0.0
    %2412 = vmatprep.subr.mxu0 0.0
    %2413 = vmatpush1.msra.mxu0 0.0
    %2414 = vmatprep.subr.mxu0 0.0
    %2415 = vmatpush1.msra.mxu0 0.0
    %2416 = vmatprep.subr.mxu0 0.0
    %2417 = vmatpush1.msra.mxu0 0.0
    %2418 = vmatprep.subr.mxu0 0.0
    %2419 = vmatpush1.msra.mxu0 0.0
    %2420 = vmatprep.subr.mxu0 0.0
    %2421 = vmatpush1.msra.mxu0 0.0
    %2422 = vmatprep.subr.mxu0 0.0
    %2423 = vmatpush1.msra.mxu0 0.0
    %2424 = vmatprep.subr.mxu0 0.0
    %2425 = vmatpush1.msra.mxu0 0.0
    %2426 = vmatprep.subr.mxu0 0.0
    %2427 = vmatpush1.msra.mxu0 0.0
    %2428 = vmatprep.subr.mxu0 0.0
    %2429 = vmatpush1.msra.mxu0 0.0
    %2430 = vmatprep.subr.mxu0 0.0
    %2431 = vmatpush1.msra.mxu0 0.0
    %2432 = vmatprep.subr.mxu0 0.0
    %2433 = vmatpush1.msra.mxu0 0.0
    %2434 = vmatprep.subr.mxu0 0.0
    %2435 = vmatpush1.msra.mxu0 0.0
    %2436 = vmatprep.subr.mxu0 0.0
    %2437 = vmatpush1.msra.mxu0 0.0
    %2438 = vmatprep.subr.mxu0 0.0
    %2439 = vmatpush1.msra.mxu0 0.0
    %2440 = vmatprep.subr.mxu0 0.0
    %2441 = vmatpush1.msra.mxu0 0.0
    %2442 = vmatprep.subr.mxu0 0.0
    %2443 = vmatpush1.msra.mxu0 0.0
    %2444 = vmatprep.subr.mxu0 0.0
    %2445 = vmatpush1.msra.mxu0 0.0
    %2446 = vmatprep.subr.mxu0 0.0
    %2447 = vmatpush1.msra.mxu0 0.0
    %2448 = vmatprep.subr.mxu0 0.0
    %2449 = vmatpush1.msra.mxu0 0.0
    %2450 = vmatprep.subr.mxu0 0.0
    %2451 = vmatpush1.msra.mxu0 0.0
    %2452 = vmatprep.subr.mxu0 0.0
    %2453 = vmatpush1.msra.mxu0 0.0
    %2454 = vmatprep.subr.mxu0 0.0
    %2455 = vmatpush1.msra.mxu0 0.0
    %2456 = vmatprep.subr.mxu0 0.0
    %2457 = vmatpush1.msra.mxu0 0.0
    %2458 = vmatprep.subr.mxu0 0.0
    %2459 = vmatpush1.msra.mxu0 0.0
    %2460 = vmatprep.subr.mxu0 0.0
    %2461 = vmatpush1.msra.mxu0 0.0
    %2462 = vmatprep.subr.mxu0 0.0
    %2463 = vmatpush1.msra.mxu0 0.0
    %2464 = vmatprep.mubr.f32.mxu0 0.0
    %v2465 = vand.u32 %v1638, 4294901760
    %v2466 = vsub.f32 %v1638, %v2465
    %v2467 = vand.u32 %v2466, 4294901760
    %2468 = vmatmul.mubr.f32.gmra.mrb[0].mxu0 %v2467
    %v2469 = vpop.f32.mrb[0].mxu0
    %v2470 = vadd.f32 %v2389, %v2469
    %v2471 = vpop.f32.mrb[0].mxu0
    %2472 = vmatprep.mubr.f32.mxu0 0.0
    %v2473 = vand.u32 %v1641, 4294901760
    %v2474 = vsub.f32 %v1641, %v2473
    %v2475 = vand.u32 %v2474, 4294901760
    %2476 = vmatmul.mubr.f32.gmra.mrb[0].mxu0 %v2475
    %v2477 = vpop.f32.mrb[0].mxu0
    %v2478 = vadd.f32 %v2396, %v2477
    %v2479 = vpop.f32.mrb[0].mxu0
    %2480 = vdwg.mxu0
    %2481 = vmatprep.subr.mxu0 0.0
    %v2482 = vand.u32 %v2148, 4294901760
    %v2483 = vsub.f32 %v2148, %v2482
    %v2484 = vand.u32 %v2483, 4294901760
    %2485 = vmatpush1.msra.mxu0 %v2484
    %2486 = vmatprep.subr.mxu0 0.0
    %2487 = vmatpush1.msra.mxu0 0.0
    %2488 = vmatprep.subr.mxu0 0.0
    %2489 = vmatpush1.msra.mxu0 0.0
    %2490 = vmatprep.subr.mxu0 0.0
    %2491 = vmatpush1.msra.mxu0 0.0
    %2492 = vmatprep.subr.mxu0 0.0
    %2493 = vmatpush1.msra.mxu0 0.0
    %2494 = vmatprep.subr.mxu0 0.0
    %2495 = vmatpush1.msra.mxu0 0.0
    %2496 = vmatprep.subr.mxu0 0.0
    %2497 = vmatpush1.msra.mxu0 0.0
    %2498 = vmatprep.subr.mxu0 0.0
    %2499 = vmatpush1.msra.mxu0 0.0
    %2500 = vmatprep.subr.mxu0 0.0
    %2501 = vmatpush1.msra.mxu0 0.0
    %2502 = vmatprep.subr.mxu0 0.0
    %2503 = vmatpush1.msra.mxu0 0.0
    %2504 = vmatprep.subr.mxu0 0.0
    %2505 = vmatpush1.msra.mxu0 0.0
    %2506 = vmatprep.subr.mxu0 0.0
    %2507 = vmatpush1.msra.mxu0 0.0
    %2508 = vmatprep.subr.mxu0 0.0
    %2509 = vmatpush1.msra.mxu0 0.0
    %2510 = vmatprep.subr.mxu0 0.0
    %2511 = vmatpush1.msra.mxu0 0.0
    %2512 = vmatprep.subr.mxu0 0.0
    %2513 = vmatpush1.msra.mxu0 0.0
    %2514 = vmatprep.subr.mxu0 0.0
    %2515 = vmatpush1.msra.mxu0 0.0
    %2516 = vmatprep.subr.mxu0 0.0
    %2517 = vmatpush1.msra.mxu0 0.0
    %2518 = vmatprep.subr.mxu0 0.0
    %2519 = vmatpush1.msra.mxu0 0.0
    %2520 = vmatprep.subr.mxu0 0.0
    %2521 = vmatpush1.msra.mxu0 0.0
    %2522 = vmatprep.subr.mxu0 0.0
    %2523 = vmatpush1.msra.mxu0 0.0
    %2524 = vmatprep.subr.mxu0 0.0
    %2525 = vmatpush1.msra.mxu0 0.0
    %2526 = vmatprep.subr.mxu0 0.0
    %2527 = vmatpush1.msra.mxu0 0.0
    %2528 = vmatprep.subr.mxu0 0.0
    %2529 = vmatpush1.msra.mxu0 0.0
    %2530 = vmatprep.subr.mxu0 0.0
    %2531 = vmatpush1.msra.mxu0 0.0
    %2532 = vmatprep.subr.mxu0 0.0
    %2533 = vmatpush1.msra.mxu0 0.0
    %2534 = vmatprep.subr.mxu0 0.0
    %2535 = vmatpush1.msra.mxu0 0.0
    %2536 = vmatprep.subr.mxu0 0.0
    %2537 = vmatpush1.msra.mxu0 0.0
    %2538 = vmatprep.subr.mxu0 0.0
    %2539 = vmatpush1.msra.mxu0 0.0
    %2540 = vmatprep.subr.mxu0 0.0
    %2541 = vmatpush1.msra.mxu0 0.0
    %2542 = vmatprep.subr.mxu0 0.0
    %2543 = vmatpush1.msra.mxu0 0.0
    %2544 = vmatprep.subr.mxu0 0.0
    %2545 = vmatpush1.msra.mxu0 0.0
    %2546 = vmatprep.subr.mxu0 0.0
    %2547 = vmatpush1.msra.mxu0 0.0
    %2548 = vmatprep.mubr.f32.mxu0 0.0
    %v2549 = vand.u32 %v1638, 4294901760
    %2550 = vmatmul.mubr.f32.gmra.mrb[0].mxu0 %v2549
    %v2551 = vpop.f32.mrb[0].mxu0
    %v2552 = vadd.f32 %v2470, %v2551
    %v2553 = vpop.f32.mrb[0].mxu0
    %2554 = vmatprep.mubr.f32.mxu0 0.0
    %v2555 = vand.u32 %v1641, 4294901760
    %2556 = vmatmul.mubr.f32.gmra.mrb[0].mxu0 %v2555
    %v2557 = vpop.f32.mrb[0].mxu0
    %v2558 = vadd.f32 %v2478, %v2557
    %v2559 = vpop.f32.mrb[0].mxu0
    %2560 = vdwg.mxu0
    %2561 = vmatprep.subr.mxu0 0.0
    %v2562 = vand.u32 %v2148, 4294901760
    %2563 = vmatpush1.msra.mxu0 %v2562
    %2564 = vmatprep.subr.mxu0 0.0
    %2565 = vmatpush1.msra.mxu0 0.0
    %2566 = vmatprep.subr.mxu0 0.0
    %2567 = vmatpush1.msra.mxu0 0.0
    %2568 = vmatprep.subr.mxu0 0.0
    %2569 = vmatpush1.msra.mxu0 0.0
    %2570 = vmatprep.subr.mxu0 0.0
    %2571 = vmatpush1.msra.mxu0 0.0
    %2572 = vmatprep.subr.mxu0 0.0
    %2573 = vmatpush1.msra.mxu0 0.0
    %2574 = vmatprep.subr.mxu0 0.0
    %2575 = vmatpush1.msra.mxu0 0.0
    %2576 = vmatprep.subr.mxu0 0.0
    %2577 = vmatpush1.msra.mxu0 0.0
    %2578 = vmatprep.subr.mxu0 0.0
    %2579 = vmatpush1.msra.mxu0 0.0
    %2580 = vmatprep.subr.mxu0 0.0
    %2581 = vmatpush1.msra.mxu0 0.0
    %2582 = vmatprep.subr.mxu0 0.0
    %2583 = vmatpush1.msra.mxu0 0.0
    %2584 = vmatprep.subr.mxu0 0.0
    %2585 = vmatpush1.msra.mxu0 0.0
    %2586 = vmatprep.subr.mxu0 0.0
    %2587 = vmatpush1.msra.mxu0 0.0
    %2588 = vmatprep.subr.mxu0 0.0
    %2589 = vmatpush1.msra.mxu0 0.0
    %2590 = vmatprep.subr.mxu0 0.0
    %2591 = vmatpush1.msra.mxu0 0.0
    %2592 = vmatprep.subr.mxu0 0.0
    %2593 = vmatpush1.msra.mxu0 0.0
    %2594 = vmatprep.subr.mxu0 0.0
    %2595 = vmatpush1.msra.mxu0 0.0
    %2596 = vmatprep.subr.mxu0 0.0
    %2597 = vmatpush1.msra.mxu0 0.0
    %2598 = vmatprep.subr.mxu0 0.0
    %2599 = vmatpush1.msra.mxu0 0.0
    %2600 = vmatprep.subr.mxu0 0.0
    %2601 = vmatpush1.msra.mxu0 0.0
    %2602 = vmatprep.subr.mxu0 0.0
    %2603 = vmatpush1.msra.mxu0 0.0
    %2604 = vmatprep.subr.mxu0 0.0
    %2605 = vmatpush1.msra.mxu0 0.0
    %2606 = vmatprep.subr.mxu0 0.0
    %2607 = vmatpush1.msra.mxu0 0.0
    %2608 = vmatprep.subr.mxu0 0.0
    %2609 = vmatpush1.msra.mxu0 0.0
    %2610 = vmatprep.subr.mxu0 0.0
    %2611 = vmatpush1.msra.mxu0 0.0
    %2612 = vmatprep.subr.mxu0 0.0
    %2613 = vmatpush1.msra.mxu0 0.0
    %2614 = vmatprep.subr.mxu0 0.0
    %2615 = vmatpush1.msra.mxu0 0.0
    %2616 = vmatprep.subr.mxu0 0.0
    %2617 = vmatpush1.msra.mxu0 0.0
    %2618 = vmatprep.subr.mxu0 0.0
    %2619 = vmatpush1.msra.mxu0 0.0
    %2620 = vmatprep.subr.mxu0 0.0
    %2621 = vmatpush1.msra.mxu0 0.0
    %2622 = vmatprep.subr.mxu0 0.0
    %2623 = vmatpush1.msra.mxu0 0.0
    %2624 = vmatprep.subr.mxu0 0.0
    %2625 = vmatpush1.msra.mxu0 0.0
    %2626 = vmatprep.mubr.f32.mxu0 0.0
    %v2627 = vand.u32 %v1638, 4294901760
    %2628 = vmatmul.mubr.f32.gmra.mrb[0].mxu0 %v2627
    %v2629 = vpop.f32.mrb[0].mxu0
    %v2630 = vadd.f32 %v2552, %v2629
    %v2631 = vpop.f32.mrb[0].mxu0
    %2632 = vmatprep.mubr.f32.mxu0 0.0
    %v2633 = vand.u32 %v1641, 4294901760
    %2634 = vmatmul.mubr.f32.gmra.mrb[0].mxu0 %v2633
    %v2635 = vpop.f32.mrb[0].mxu0
    %v2636 = vadd.f32 %v2558, %v2635
    %v2637 = vpop.f32.mrb[0].mxu0
    %2638 = vdwg.mxu0
    %v2639 = vadd.f32 %v2135, %v2630
    %v2640 = vadd.f32 %v2136, %v2636
    %vm2641 = vcmp.ge.f32.partialorder %v2639, 0.0
    %vm2642 = vcmp.ge.f32.partialorder %v2640, 0.0
    %v2643 = vmul.f32 %v2639, 0.01
    %v2644 = vmul.f32 %v2640, 0.01
    %v2645 = vsel %vm2641, %v2639, %v2643
    %v2646 = vsel %vm2642, %v2640, %v2644
    %v2647 = vld [vmem:[#allocation13] sm:$0xff]
    %v2648 = vld [vmem:[#allocation13 + $0x8] sm:$0xff]
    %v2649 = vld [vmem:[#allocation13 + $0x10] sm:$0xff]
    %v2650 = vld [vmem:[#allocation13 + $0x18] sm:$0xff]
    %v2651 = vld [vmem:[#allocation13 + $0x20] sm:$0xff]
    %v2652 = vld [vmem:[#allocation13 + $0x28] sm:$0xff]
    %v2653 = vld [vmem:[#allocation13 + $0x30] sm:$0xff]
    %v2654 = vld [vmem:[#allocation13 + $0x38] sm:$0xff]
    %v2655 = vld [vmem:[#allocation14] sm:$0xff]
    %v2656 = vld [vmem:[#allocation14 + $0x8] sm:$0xff]
    %v2657 = vld [vmem:[#allocation14 + $0x10] sm:$0xff]
    %v2658 = vld [vmem:[#allocation14 + $0x18] sm:$0xff]
    %v2659 = vld [vmem:[#allocation14 + $0x20] sm:$0xff]
    %v2660 = vld [vmem:[#allocation14 + $0x28] sm:$0xff]
    %v2661 = vld [vmem:[#allocation14 + $0x30] sm:$0xff]
    %v2662 = vld [vmem:[#allocation14 + $0x38] sm:$0xff]
    %2664 = vset.pattern.permute.xlu0 0
    %2665 = vperm.xlu0 %2664, %v2655
    %v2666 = vpop.permute.xlu0 %2665
    %2669 = vset.pattern.permute.xlu0 0
    %2670 = vperm.xlu0 %2669, %v2656
    %v2671 = vpop.permute.xlu0 %2670
    %2674 = vset.pattern.permute.xlu0 0
    %2675 = vperm.xlu0 %2674, %v2657
    %v2676 = vpop.permute.xlu0 %2675
    %2679 = vset.pattern.permute.xlu0 0
    %2680 = vperm.xlu0 %2679, %v2658
    %v2681 = vpop.permute.xlu0 %2680
    %2684 = vset.pattern.permute.xlu0 0
    %2685 = vperm.xlu0 %2684, %v2659
    %v2686 = vpop.permute.xlu0 %2685
    %2689 = vset.pattern.permute.xlu0 0
    %2690 = vperm.xlu0 %2689, %v2660
    %v2691 = vpop.permute.xlu0 %2690
    %2694 = vset.pattern.permute.xlu0 0
    %2695 = vperm.xlu0 %2694, %v2661
    %v2696 = vpop.permute.xlu0 %2695
    %2699 = vset.pattern.permute.xlu0 0
    %2700 = vperm.xlu0 %2699, %v2662
    %v2701 = vpop.permute.xlu0 %2700
    %v2704 = vsel %vm704, %v2647, 0
    %v2707 = vsel %vm704, %v2648, 0
    %v2710 = vsel %vm704, %v2649, 0
    %v2713 = vsel %vm704, %v2650, 0
    %v2716 = vsel %vm704, %v2651, 0
    %v2719 = vsel %vm704, %v2652, 0
    %v2722 = vsel %vm704, %v2653, 0
    %v2725 = vsel %vm704, %v2654, 0
    %2727 = vmatprep.subr.mxu0 0.0
    %v2728 = vand.u32 %v2645, 4294901760
    %2729 = vmatpush1.msra.mxu0 %v2728
    %2730 = vmatprep.subr.mxu0 0.0
    %v2731 = vand.u32 %v2646, 4294901760
    %2732 = vmatpush1.msra.mxu0 %v2731
    %2733 = vmatprep.subr.mxu0 0.0
    %2734 = vmatpush1.msra.mxu0 0.0
    %2735 = vmatprep.subr.mxu0 0.0
    %2736 = vmatpush1.msra.mxu0 0.0
    %2737 = vmatprep.subr.mxu0 0.0
    %2738 = vmatpush1.msra.mxu0 0.0
    %2739 = vmatprep.subr.mxu0 0.0
    %2740 = vmatpush1.msra.mxu0 0.0
    %2741 = vmatprep.subr.mxu0 0.0
    %2742 = vmatpush1.msra.mxu0 0.0
    %2743 = vmatprep.subr.mxu0 0.0
    %2744 = vmatpush1.msra.mxu0 0.0
    %2745 = vmatprep.subr.mxu0 0.0
    %2746 = vmatpush1.msra.mxu0 0.0
    %2747 = vmatprep.subr.mxu0 0.0
    %2748 = vmatpush1.msra.mxu0 0.0
    %2749 = vmatprep.subr.mxu0 0.0
    %2750 = vmatpush1.msra.mxu0 0.0
    %2751 = vmatprep.subr.mxu0 0.0
    %2752 = vmatpush1.msra.mxu0 0.0
    %2753 = vmatprep.subr.mxu0 0.0
    %2754 = vmatpush1.msra.mxu0 0.0
    %2755 = vmatprep.subr.mxu0 0.0
    %2756 = vmatpush1.msra.mxu0 0.0
    %2757 = vmatprep.subr.mxu0 0.0
    %2758 = vmatpush1.msra.mxu0 0.0
    %2759 = vmatprep.subr.mxu0 0.0
    %2760 = vmatpush1.msra.mxu0 0.0
    %2761 = vmatprep.subr.mxu0 0.0
    %2762 = vmatpush1.msra.mxu0 0.0
    %2763 = vmatprep.subr.mxu0 0.0
    %2764 = vmatpush1.msra.mxu0 0.0
    %2765 = vmatprep.subr.mxu0 0.0
    %2766 = vmatpush1.msra.mxu0 0.0
    %2767 = vmatprep.subr.mxu0 0.0
    %2768 = vmatpush1.msra.mxu0 0.0
    %2769 = vmatprep.subr.mxu0 0.0
    %2770 = vmatpush1.msra.mxu0 0.0
    %2771 = vmatprep.subr.mxu0 0.0
    %2772 = vmatpush1.msra.mxu0 0.0
    %2773 = vmatprep.subr.mxu0 0.0
    %2774 = vmatpush1.msra.mxu0 0.0
    %2775 = vmatprep.subr.mxu0 0.0
    %2776 = vmatpush1.msra.mxu0 0.0
    %2777 = vmatprep.subr.mxu0 0.0
    %2778 = vmatpush1.msra.mxu0 0.0
    %2779 = vmatprep.subr.mxu0 0.0
    %2780 = vmatpush1.msra.mxu0 0.0
    %2781 = vmatprep.subr.mxu0 0.0
    %2782 = vmatpush1.msra.mxu0 0.0
    %2783 = vmatprep.subr.mxu0 0.0
    %2784 = vmatpush1.msra.mxu0 0.0
    %2785 = vmatprep.subr.mxu0 0.0
    %2786 = vmatpush1.msra.mxu0 0.0
    %2787 = vmatprep.subr.mxu0 0.0
    %2788 = vmatpush1.msra.mxu0 0.0
    %2789 = vmatprep.subr.mxu0 0.0
    %2790 = vmatpush1.msra.mxu0 0.0
    %2791 = vmatprep.subr.mxu0 0.0
    %2792 = vmatpush1.msra.mxu0 0.0
    %2793 = vmatprep.mubr.f32.mxu0 0.0
    %v2794 = vand.u32 %v2704, 4294901760
    %v2795 = vsub.f32 %v2704, %v2794
    %v2796 = vand.u32 %v2795, 4294901760
    %v2797 = vsub.f32 %v2795, %v2796
    %v2798 = vand.u32 %v2797, 4294901760
    %2799 = vmatmul.mubr.f32.gmra.mrb[0].mxu0 %v2798
    %v2800 = vpop.f32.mrb[0].mxu0
    %v2801 = vadd.f32 %v2666, %v2800
    %v2802 = vpop.f32.mrb[0].mxu0
    %2803 = vmatprep.mubr.f32.mxu0 0.0
    %v2804 = vand.u32 %v2707, 4294901760
    %v2805 = vsub.f32 %v2707, %v2804
    %v2806 = vand.u32 %v2805, 4294901760
    %v2807 = vsub.f32 %v2805, %v2806
    %v2808 = vand.u32 %v2807, 4294901760
    %2809 = vmatmul.mubr.f32.gmra.mrb[0].mxu0 %v2808
    %v2810 = vpop.f32.mrb[0].mxu0
    %v2811 = vadd.f32 %v2671, %v2810
    %v2812 = vpop.f32.mrb[0].mxu0
    %2813 = vmatprep.mubr.f32.mxu0 0.0
    %v2814 = vand.u32 %v2710, 4294901760
    %v2815 = vsub.f32 %v2710, %v2814
    %v2816 = vand.u32 %v2815, 4294901760
    %v2817 = vsub.f32 %v2815, %v2816
    %v2818 = vand.u32 %v2817, 4294901760
    %2819 = vmatmul.mubr.f32.gmra.mrb[0].mxu0 %v2818
    %v2820 = vpop.f32.mrb[0].mxu0
    %v2821 = vadd.f32 %v2676, %v2820
    %v2822 = vpop.f32.mrb[0].mxu0
    %2823 = vmatprep.mubr.f32.mxu0 0.0
    %v2824 = vand.u32 %v2713, 4294901760
    %v2825 = vsub.f32 %v2713, %v2824
    %v2826 = vand.u32 %v2825, 4294901760
    %v2827 = vsub.f32 %v2825, %v2826
    %v2828 = vand.u32 %v2827, 4294901760
    %2829 = vmatmul.mubr.f32.gmra.mrb[0].mxu0 %v2828
    %v2830 = vpop.f32.mrb[0].mxu0
    %v2831 = vadd.f32 %v2681, %v2830
    %v2832 = vpop.f32.mrb[0].mxu0
    %2833 = vmatprep.mubr.f32.mxu0 0.0
    %v2834 = vand.u32 %v2716, 4294901760
    %v2835 = vsub.f32 %v2716, %v2834
    %v2836 = vand.u32 %v2835, 4294901760
    %v2837 = vsub.f32 %v2835, %v2836
    %v2838 = vand.u32 %v2837, 4294901760
    %2839 = vmatmul.mubr.f32.gmra.mrb[0].mxu0 %v2838
    %v2840 = vpop.f32.mrb[0].mxu0
    %v2841 = vadd.f32 %v2686, %v2840
    %v2842 = vpop.f32.mrb[0].mxu0
    %2843 = vmatprep.mubr.f32.mxu0 0.0
    %v2844 = vand.u32 %v2719, 4294901760
    %v2845 = vsub.f32 %v2719, %v2844
    %v2846 = vand.u32 %v2845, 4294901760
    %v2847 = vsub.f32 %v2845, %v2846
    %v2848 = vand.u32 %v2847, 4294901760
    %2849 = vmatmul.mubr.f32.gmra.mrb[0].mxu0 %v2848
    %v2850 = vpop.f32.mrb[0].mxu0
    %v2851 = vadd.f32 %v2691, %v2850
    %v2852 = vpop.f32.mrb[0].mxu0
    %2853 = vmatprep.mubr.f32.mxu0 0.0
    %v2854 = vand.u32 %v2722, 4294901760
    %v2855 = vsub.f32 %v2722, %v2854
    %v2856 = vand.u32 %v2855, 4294901760
    %v2857 = vsub.f32 %v2855, %v2856
    %v2858 = vand.u32 %v2857, 4294901760
    %2859 = vmatmul.mubr.f32.gmra.mrb[0].mxu0 %v2858
    %v2860 = vpop.f32.mrb[0].mxu0
    %v2861 = vadd.f32 %v2696, %v2860
    %v2862 = vpop.f32.mrb[0].mxu0
    %2863 = vmatprep.mubr.f32.mxu0 0.0
    %v2864 = vand.u32 %v2725, 4294901760
    %v2865 = vsub.f32 %v2725, %v2864
    %v2866 = vand.u32 %v2865, 4294901760
    %v2867 = vsub.f32 %v2865, %v2866
    %v2868 = vand.u32 %v2867, 4294901760
    %2869 = vmatmul.mubr.f32.gmra.mrb[0].mxu0 %v2868
    %v2870 = vpop.f32.mrb[0].mxu0
    %v2871 = vadd.f32 %v2701, %v2870
    %v2872 = vpop.f32.mrb[0].mxu0
    %2873 = vdwg.mxu0
    %2874 = vmatprep.subr.mxu0 0.0
    %v2875 = vand.u32 %v2645, 4294901760
    %v2876 = vsub.f32 %v2645, %v2875
    %v2877 = vand.u32 %v2876, 4294901760
    %v2878 = vsub.f32 %v2876, %v2877
    %v2879 = vand.u32 %v2878, 4294901760
    %2880 = vmatpush1.msra.mxu0 %v2879
    %2881 = vmatprep.subr.mxu0 0.0
    %v2882 = vand.u32 %v2646, 4294901760
    %v2883 = vsub.f32 %v2646, %v2882
    %v2884 = vand.u32 %v2883, 4294901760
    %v2885 = vsub.f32 %v2883, %v2884
    %v2886 = vand.u32 %v2885, 4294901760
    %2887 = vmatpush1.msra.mxu0 %v2886
    %2888 = vmatprep.subr.mxu0 0.0
    %2889 = vmatpush1.msra.mxu0 0.0
    %2890 = vmatprep.subr.mxu0 0.0
    %2891 = vmatpush1.msra.mxu0 0.0
    %2892 = vmatprep.subr.mxu0 0.0
    %2893 = vmatpush1.msra.mxu0 0.0
    %2894 = vmatprep.subr.mxu0 0.0
    %2895 = vmatpush1.msra.mxu0 0.0
    %2896 = vmatprep.subr.mxu0 0.0
    %2897 = vmatpush1.msra.mxu0 0.0
    %2898 = vmatprep.subr.mxu0 0.0
    %2899 = vmatpush1.msra.mxu0 0.0
    %2900 = vmatprep.subr.mxu0 0.0
    %2901 = vmatpush1.msra.mxu0 0.0
    %2902 = vmatprep.subr.mxu0 0.0
    %2903 = vmatpush1.msra.mxu0 0.0
    %2904 = vmatprep.subr.mxu0 0.0
    %2905 = vmatpush1.msra.mxu0 0.0
    %2906 = vmatprep.subr.mxu0 0.0
    %2907 = vmatpush1.msra.mxu0 0.0
    %2908 = vmatprep.subr.mxu0 0.0
    %2909 = vmatpush1.msra.mxu0 0.0
    %2910 = vmatprep.subr.mxu0 0.0
    %2911 = vmatpush1.msra.mxu0 0.0
    %2912 = vmatprep.subr.mxu0 0.0
    %2913 = vmatpush1.msra.mxu0 0.0
    %2914 = vmatprep.subr.mxu0 0.0
    %2915 = vmatpush1.msra.mxu0 0.0
    %2916 = vmatprep.subr.mxu0 0.0
    %2917 = vmatpush1.msra.mxu0 0.0
    %2918 = vmatprep.subr.mxu0 0.0
    %2919 = vmatpush1.msra.mxu0 0.0
    %2920 = vmatprep.subr.mxu0 0.0
    %2921 = vmatpush1.msra.mxu0 0.0
    %2922 = vmatprep.subr.mxu0 0.0
    %2923 = vmatpush1.msra.mxu0 0.0
    %2924 = vmatprep.subr.mxu0 0.0
    %2925 = vmatpush1.msra.mxu0 0.0
    %2926 = vmatprep.subr.mxu0 0.0
    %2927 = vmatpush1.msra.mxu0 0.0
    %2928 = vmatprep.subr.mxu0 0.0
    %2929 = vmatpush1.msra.mxu0 0.0
    %2930 = vmatprep.subr.mxu0 0.0
    %2931 = vmatpush1.msra.mxu0 0.0
    %2932 = vmatprep.subr.mxu0 0.0
    %2933 = vmatpush1.msra.mxu0 0.0
    %2934 = vmatprep.subr.mxu0 0.0
    %2935 = vmatpush1.msra.mxu0 0.0
    %2936 = vmatprep.subr.mxu0 0.0
    %2937 = vmatpush1.msra.mxu0 0.0
    %2938 = vmatprep.subr.mxu0 0.0
    %2939 = vmatpush1.msra.mxu0 0.0
    %2940 = vmatprep.subr.mxu0 0.0
    %2941 = vmatpush1.msra.mxu0 0.0
    %2942 = vmatprep.subr.mxu0 0.0
    %2943 = vmatpush1.msra.mxu0 0.0
    %2944 = vmatprep.subr.mxu0 0.0
    %2945 = vmatpush1.msra.mxu0 0.0
    %2946 = vmatprep.subr.mxu0 0.0
    %2947 = vmatpush1.msra.mxu0 0.0
    %2948 = vmatprep.mubr.f32.mxu0 0.0
    %v2949 = vand.u32 %v2704, 4294901760
    %2950 = vmatmul.mubr.f32.gmra.mrb[0].mxu0 %v2949
    %v2951 = vpop.f32.mrb[0].mxu0
    %v2952 = vadd.f32 %v2801, %v2951
    %v2953 = vpop.f32.mrb[0].mxu0
    %2954 = vmatprep.mubr.f32.mxu0 0.0
    %v2955 = vand.u32 %v2707, 4294901760
    %2956 = vmatmul.mubr.f32.gmra.mrb[0].mxu0 %v2955
    %v2957 = vpop.f32.mrb[0].mxu0
    %v2958 = vadd.f32 %v2811, %v2957
    %v2959 = vpop.f32.mrb[0].mxu0
    %2960 = vmatprep.mubr.f32.mxu0 0.0
    %v2961 = vand.u32 %v2710, 4294901760
    %2962 = vmatmul.mubr.f32.gmra.mrb[0].mxu0 %v2961
    %v2963 = vpop.f32.mrb[0].mxu0
    %v2964 = vadd.f32 %v2821, %v2963
    %v2965 = vpop.f32.mrb[0].mxu0
    %2966 = vmatprep.mubr.f32.mxu0 0.0
    %v2967 = vand.u32 %v2713, 4294901760
    %2968 = vmatmul.mubr.f32.gmra.mrb[0].mxu0 %v2967
    %v2969 = vpop.f32.mrb[0].mxu0
    %v2970 = vadd.f32 %v2831, %v2969
    %v2971 = vpop.f32.mrb[0].mxu0
    %2972 = vmatprep.mubr.f32.mxu0 0.0
    %v2973 = vand.u32 %v2716, 4294901760
    %2974 = vmatmul.mubr.f32.gmra.mrb[0].mxu0 %v2973
    %v2975 = vpop.f32.mrb[0].mxu0
    %v2976 = vadd.f32 %v2841, %v2975
    %v2977 = vpop.f32.mrb[0].mxu0
    %2978 = vmatprep.mubr.f32.mxu0 0.0
    %v2979 = vand.u32 %v2719, 4294901760
    %2980 = vmatmul.mubr.f32.gmra.mrb[0].mxu0 %v2979
    %v2981 = vpop.f32.mrb[0].mxu0
    %v2982 = vadd.f32 %v2851, %v2981
    %v2983 = vpop.f32.mrb[0].mxu0
    %2984 = vmatprep.mubr.f32.mxu0 0.0
    %v2985 = vand.u32 %v2722, 4294901760
    %2986 = vmatmul.mubr.f32.gmra.mrb[0].mxu0 %v2985
    %v2987 = vpop.f32.mrb[0].mxu0
    %v2988 = vadd.f32 %v2861, %v2987
    %v2989 = vpop.f32.mrb[0].mxu0
    %2990 = vmatprep.mubr.f32.mxu0 0.0
    %v2991 = vand.u32 %v2725, 4294901760
    %2992 = vmatmul.mubr.f32.gmra.mrb[0].mxu0 %v2991
    %v2993 = vpop.f32.mrb[0].mxu0
    %v2994 = vadd.f32 %v2871, %v2993
    %v2995 = vpop.f32.mrb[0].mxu0
    %2996 = vdwg.mxu0
    %2997 = vmatprep.subr.mxu0 0.0
    %v2998 = vand.u32 %v2645, 4294901760
    %v2999 = vsub.f32 %v2645, %v2998
    %3000 = vmatpush1.msra.mxu0 %v2999
    %3001 = vmatprep.subr.mxu0 0.0
    %v3002 = vand.u32 %v2646, 4294901760
    %v3003 = vsub.f32 %v2646, %v3002
    %3004 = vmatpush1.msra.mxu0 %v3003
    %3005 = vmatprep.subr.mxu0 0.0
    %3006 = vmatpush1.msra.mxu0 0.0
    %3007 = vmatprep.subr.mxu0 0.0
    %3008 = vmatpush1.msra.mxu0 0.0
    %3009 = vmatprep.subr.mxu0 0.0
    %3010 = vmatpush1.msra.mxu0 0.0
    %3011 = vmatprep.subr.mxu0 0.0
    %3012 = vmatpush1.msra.mxu0 0.0
    %3013 = vmatprep.subr.mxu0 0.0
    %3014 = vmatpush1.msra.mxu0 0.0
    %3015 = vmatprep.subr.mxu0 0.0
    %3016 = vmatpush1.msra.mxu0 0.0
    %3017 = vmatprep.subr.mxu0 0.0
    %3018 = vmatpush1.msra.mxu0 0.0
    %3019 = vmatprep.subr.mxu0 0.0
    %3020 = vmatpush1.msra.mxu0 0.0
    %3021 = vmatprep.subr.mxu0 0.0
    %3022 = vmatpush1.msra.mxu0 0.0
    %3023 = vmatprep.subr.mxu0 0.0
    %3024 = vmatpush1.msra.mxu0 0.0
    %3025 = vmatprep.subr.mxu0 0.0
    %3026 = vmatpush1.msra.mxu0 0.0
    %3027 = vmatprep.subr.mxu0 0.0
    %3028 = vmatpush1.msra.mxu0 0.0
    %3029 = vmatprep.subr.mxu0 0.0
    %3030 = vmatpush1.msra.mxu0 0.0
    %3031 = vmatprep.subr.mxu0 0.0
    %3032 = vmatpush1.msra.mxu0 0.0
    %3033 = vmatprep.subr.mxu0 0.0
    %3034 = vmatpush1.msra.mxu0 0.0
    %3035 = vmatprep.subr.mxu0 0.0
    %3036 = vmatpush1.msra.mxu0 0.0
    %3037 = vmatprep.subr.mxu0 0.0
    %3038 = vmatpush1.msra.mxu0 0.0
    %3039 = vmatprep.subr.mxu0 0.0
    %3040 = vmatpush1.msra.mxu0 0.0
    %3041 = vmatprep.subr.mxu0 0.0
    %3042 = vmatpush1.msra.mxu0 0.0
    %3043 = vmatprep.subr.mxu0 0.0
    %3044 = vmatpush1.msra.mxu0 0.0
    %3045 = vmatprep.subr.mxu0 0.0
    %3046 = vmatpush1.msra.mxu0 0.0
    %3047 = vmatprep.subr.mxu0 0.0
    %3048 = vmatpush1.msra.mxu0 0.0
    %3049 = vmatprep.subr.mxu0 0.0
    %3050 = vmatpush1.msra.mxu0 0.0
    %3051 = vmatprep.subr.mxu0 0.0
    %3052 = vmatpush1.msra.mxu0 0.0
    %3053 = vmatprep.subr.mxu0 0.0
    %3054 = vmatpush1.msra.mxu0 0.0
    %3055 = vmatprep.subr.mxu0 0.0
    %3056 = vmatpush1.msra.mxu0 0.0
    %3057 = vmatprep.subr.mxu0 0.0
    %3058 = vmatpush1.msra.mxu0 0.0
    %3059 = vmatprep.subr.mxu0 0.0
    %3060 = vmatpush1.msra.mxu0 0.0
    %3061 = vmatprep.subr.mxu0 0.0
    %3062 = vmatpush1.msra.mxu0 0.0
    %3063 = vmatprep.subr.mxu0 0.0
    %3064 = vmatpush1.msra.mxu0 0.0
    %3065 = vmatprep.mubr.f32.mxu0 0.0
    %v3066 = vand.u32 %v2704, 4294901760
    %v3067 = vsub.f32 %v2704, %v3066
    %3068 = vmatmul.mubr.f32.gmra.mrb[0].mxu0 %v3067
    %v3069 = vpop.f32.mrb[0].mxu0
    %v3070 = vadd.f32 %v2952, %v3069
    %v3071 = vpop.f32.mrb[0].mxu0
    %3072 = vmatprep.mubr.f32.mxu0 0.0
    %v3073 = vand.u32 %v2707, 4294901760
    %v3074 = vsub.f32 %v2707, %v3073
    %3075 = vmatmul.mubr.f32.gmra.mrb[0].mxu0 %v3074
    %v3076 = vpop.f32.mrb[0].mxu0
    %v3077 = vadd.f32 %v2958, %v3076
    %v3078 = vpop.f32.mrb[0].mxu0
    %3079 = vmatprep.mubr.f32.mxu0 0.0
    %v3080 = vand.u32 %v2710, 4294901760
    %v3081 = vsub.f32 %v2710, %v3080
    %3082 = vmatmul.mubr.f32.gmra.mrb[0].mxu0 %v3081
    %v3083 = vpop.f32.mrb[0].mxu0
    %v3084 = vadd.f32 %v2964, %v3083
    %v3085 = vpop.f32.mrb[0].mxu0
    %3086 = vmatprep.mubr.f32.mxu0 0.0
    %v3087 = vand.u32 %v2713, 4294901760
    %v3088 = vsub.f32 %v2713, %v3087
    %3089 = vmatmul.mubr.f32.gmra.mrb[0].mxu0 %v3088
    %v3090 = vpop.f32.mrb[0].mxu0
    %v3091 = vadd.f32 %v2970, %v3090
    %v3092 = vpop.f32.mrb[0].mxu0
    %3093 = vmatprep.mubr.f32.mxu0 0.0
    %v3094 = vand.u32 %v2716, 4294901760
    %v3095 = vsub.f32 %v2716, %v3094
    %3096 = vmatmul.mubr.f32.gmra.mrb[0].mxu0 %v3095
    %v3097 = vpop.f32.mrb[0].mxu0
    %v3098 = vadd.f32 %v2976, %v3097
    %v3099 = vpop.f32.mrb[0].mxu0
    %3100 = vmatprep.mubr.f32.mxu0 0.0
    %v3101 = vand.u32 %v2719, 4294901760
    %v3102 = vsub.f32 %v2719, %v3101
    %3103 = vmatmul.mubr.f32.gmra.mrb[0].mxu0 %v3102
    %v3104 = vpop.f32.mrb[0].mxu0
    %v3105 = vadd.f32 %v2982, %v3104
    %v3106 = vpop.f32.mrb[0].mxu0
    %3107 = vmatprep.mubr.f32.mxu0 0.0
    %v3108 = vand.u32 %v2722, 4294901760
    %v3109 = vsub.f32 %v2722, %v3108
    %3110 = vmatmul.mubr.f32.gmra.mrb[0].mxu0 %v3109
    %v3111 = vpop.f32.mrb[0].mxu0
    %v3112 = vadd.f32 %v2988, %v3111
    %v3113 = vpop.f32.mrb[0].mxu0
    %3114 = vmatprep.mubr.f32.mxu0 0.0
    %v3115 = vand.u32 %v2725, 4294901760
    %v3116 = vsub.f32 %v2725, %v3115
    %3117 = vmatmul.mubr.f32.gmra.mrb[0].mxu0 %v3116
    %v3118 = vpop.f32.mrb[0].mxu0
    %v3119 = vadd.f32 %v2994, %v3118
    %v3120 = vpop.f32.mrb[0].mxu0
    %3121 = vdwg.mxu0
    %3122 = vmatprep.subr.mxu0 0.0
    %v3123 = vand.u32 %v2645, 4294901760
    %3124 = vmatpush1.msra.mxu0 %v3123
    %3125 = vmatprep.subr.mxu0 0.0
    %v3126 = vand.u32 %v2646, 4294901760
    %3127 = vmatpush1.msra.mxu0 %v3126
    %3128 = vmatprep.subr.mxu0 0.0
    %3129 = vmatpush1.msra.mxu0 0.0
    %3130 = vmatprep.subr.mxu0 0.0
    %3131 = vmatpush1.msra.mxu0 0.0
    %3132 = vmatprep.subr.mxu0 0.0
    %3133 = vmatpush1.msra.mxu0 0.0
    %3134 = vmatprep.subr.mxu0 0.0
    %3135 = vmatpush1.msra.mxu0 0.0
    %3136 = vmatprep.subr.mxu0 0.0
    %3137 = vmatpush1.msra.mxu0 0.0
    %3138 = vmatprep.subr.mxu0 0.0
    %3139 = vmatpush1.msra.mxu0 0.0
    %3140 = vmatprep.subr.mxu0 0.0
    %3141 = vmatpush1.msra.mxu0 0.0
    %3142 = vmatprep.subr.mxu0 0.0
    %3143 = vmatpush1.msra.mxu0 0.0
    %3144 = vmatprep.subr.mxu0 0.0
    %3145 = vmatpush1.msra.mxu0 0.0
    %3146 = vmatprep.subr.mxu0 0.0
    %3147 = vmatpush1.msra.mxu0 0.0
    %3148 = vmatprep.subr.mxu0 0.0
    %3149 = vmatpush1.msra.mxu0 0.0
    %3150 = vmatprep.subr.mxu0 0.0
    %3151 = vmatpush1.msra.mxu0 0.0
    %3152 = vmatprep.subr.mxu0 0.0
    %3153 = vmatpush1.msra.mxu0 0.0
    %3154 = vmatprep.subr.mxu0 0.0
    %3155 = vmatpush1.msra.mxu0 0.0
    %3156 = vmatprep.subr.mxu0 0.0
    %3157 = vmatpush1.msra.mxu0 0.0
    %3158 = vmatprep.subr.mxu0 0.0
    %3159 = vmatpush1.msra.mxu0 0.0
    %3160 = vmatprep.subr.mxu0 0.0
    %3161 = vmatpush1.msra.mxu0 0.0
    %3162 = vmatprep.subr.mxu0 0.0
    %3163 = vmatpush1.msra.mxu0 0.0
    %3164 = vmatprep.subr.mxu0 0.0
    %3165 = vmatpush1.msra.mxu0 0.0
    %3166 = vmatprep.subr.mxu0 0.0
    %3167 = vmatpush1.msra.mxu0 0.0
    %3168 = vmatprep.subr.mxu0 0.0
    %3169 = vmatpush1.msra.mxu0 0.0
    %3170 = vmatprep.subr.mxu0 0.0
    %3171 = vmatpush1.msra.mxu0 0.0
    %3172 = vmatprep.subr.mxu0 0.0
    %3173 = vmatpush1.msra.mxu0 0.0
    %3174 = vmatprep.subr.mxu0 0.0
    %3175 = vmatpush1.msra.mxu0 0.0
    %3176 = vmatprep.subr.mxu0 0.0
    %3177 = vmatpush1.msra.mxu0 0.0
    %3178 = vmatprep.subr.mxu0 0.0
    %3179 = vmatpush1.msra.mxu0 0.0
    %3180 = vmatprep.subr.mxu0 0.0
    %3181 = vmatpush1.msra.mxu0 0.0
    %3182 = vmatprep.subr.mxu0 0.0
    %3183 = vmatpush1.msra.mxu0 0.0
    %3184 = vmatprep.subr.mxu0 0.0
    %3185 = vmatpush1.msra.mxu0 0.0
    %3186 = vmatprep.subr.mxu0 0.0
    %3187 = vmatpush1.msra.mxu0 0.0
    %3188 = vmatprep.mubr.f32.mxu0 0.0
    %v3189 = vand.u32 %v2704, 4294901760
    %v3190 = vsub.f32 %v2704, %v3189
    %v3191 = vand.u32 %v3190, 4294901760
    %3192 = vmatmul.mubr.f32.gmra.mrb[0].mxu0 %v3191
    %v3193 = vpop.f32.mrb[0].mxu0
    %v3194 = vadd.f32 %v3070, %v3193
    %v3195 = vpop.f32.mrb[0].mxu0
    %3196 = vmatprep.mubr.f32.mxu0 0.0
    %v3197 = vand.u32 %v2707, 4294901760
    %v3198 = vsub.f32 %v2707, %v3197
    %v3199 = vand.u32 %v3198, 4294901760
    %3200 = vmatmul.mubr.f32.gmra.mrb[0].mxu0 %v3199
    %v3201 = vpop.f32.mrb[0].mxu0
    %v3202 = vadd.f32 %v3077, %v3201
    %v3203 = vpop.f32.mrb[0].mxu0
    %3204 = vmatprep.mubr.f32.mxu0 0.0
    %v3205 = vand.u32 %v2710, 4294901760
    %v3206 = vsub.f32 %v2710, %v3205
    %v3207 = vand.u32 %v3206, 4294901760
    %3208 = vmatmul.mubr.f32.gmra.mrb[0].mxu0 %v3207
    %v3209 = vpop.f32.mrb[0].mxu0
    %v3210 = vadd.f32 %v3084, %v3209
    %v3211 = vpop.f32.mrb[0].mxu0
    %3212 = vmatprep.mubr.f32.mxu0 0.0
    %v3213 = vand.u32 %v2713, 4294901760
    %v3214 = vsub.f32 %v2713, %v3213
    %v3215 = vand.u32 %v3214, 4294901760
    %3216 = vmatmul.mubr.f32.gmra.mrb[0].mxu0 %v3215
    %v3217 = vpop.f32.mrb[0].mxu0
    %v3218 = vadd.f32 %v3091, %v3217
    %v3219 = vpop.f32.mrb[0].mxu0
    %3220 = vmatprep.mubr.f32.mxu0 0.0
    %v3221 = vand.u32 %v2716, 4294901760
    %v3222 = vsub.f32 %v2716, %v3221
    %v3223 = vand.u32 %v3222, 4294901760
    %3224 = vmatmul.mubr.f32.gmra.mrb[0].mxu0 %v3223
    %v3225 = vpop.f32.mrb[0].mxu0
    %v3226 = vadd.f32 %v3098, %v3225
    %v3227 = vpop.f32.mrb[0].mxu0
    %3228 = vmatprep.mubr.f32.mxu0 0.0
    %v3229 = vand.u32 %v2719, 4294901760
    %v3230 = vsub.f32 %v2719, %v3229
    %v3231 = vand.u32 %v3230, 4294901760
    %3232 = vmatmul.mubr.f32.gmra.mrb[0].mxu0 %v3231
    %v3233 = vpop.f32.mrb[0].mxu0
    %v3234 = vadd.f32 %v3105, %v3233
    %v3235 = vpop.f32.mrb[0].mxu0
    %3236 = vmatprep.mubr.f32.mxu0 0.0
    %v3237 = vand.u32 %v2722, 4294901760
    %v3238 = vsub.f32 %v2722, %v3237
    %v3239 = vand.u32 %v3238, 4294901760
    %3240 = vmatmul.mubr.f32.gmra.mrb[0].mxu0 %v3239
    %v3241 = vpop.f32.mrb[0].mxu0
    %v3242 = vadd.f32 %v3112, %v3241
    %v3243 = vpop.f32.mrb[0].mxu0
    %3244 = vmatprep.mubr.f32.mxu0 0.0
    %v3245 = vand.u32 %v2725, 4294901760
    %v3246 = vsub.f32 %v2725, %v3245
    %v3247 = vand.u32 %v3246, 4294901760
    %3248 = vmatmul.mubr.f32.gmra.mrb[0].mxu0 %v3247
    %v3249 = vpop.f32.mrb[0].mxu0
    %v3250 = vadd.f32 %v3119, %v3249
    %v3251 = vpop.f32.mrb[0].mxu0
    %3252 = vdwg.mxu0
    %3253 = vmatprep.subr.mxu0 0.0
    %v3254 = vand.u32 %v2645, 4294901760
    %v3255 = vsub.f32 %v2645, %v3254
    %v3256 = vand.u32 %v3255, 4294901760
    %3257 = vmatpush1.msra.mxu0 %v3256
    %3258 = vmatprep.subr.mxu0 0.0
    %v3259 = vand.u32 %v2646, 4294901760
    %v3260 = vsub.f32 %v2646, %v3259
    %v3261 = vand.u32 %v3260, 4294901760
    %3262 = vmatpush1.msra.mxu0 %v3261
    %3263 = vmatprep.subr.mxu0 0.0
    %3264 = vmatpush1.msra.mxu0 0.0
    %3265 = vmatprep.subr.mxu0 0.0
    %3266 = vmatpush1.msra.mxu0 0.0
    %3267 = vmatprep.subr.mxu0 0.0
    %3268 = vmatpush1.msra.mxu0 0.0
    %3269 = vmatprep.subr.mxu0 0.0
    %3270 = vmatpush1.msra.mxu0 0.0
    %3271 = vmatprep.subr.mxu0 0.0
    %3272 = vmatpush1.msra.mxu0 0.0
    %3273 = vmatprep.subr.mxu0 0.0
    %3274 = vmatpush1.msra.mxu0 0.0
    %3275 = vmatprep.subr.mxu0 0.0
    %3276 = vmatpush1.msra.mxu0 0.0
    %3277 = vmatprep.subr.mxu0 0.0
    %3278 = vmatpush1.msra.mxu0 0.0
    %3279 = vmatprep.subr.mxu0 0.0
    %3280 = vmatpush1.msra.mxu0 0.0
    %3281 = vmatprep.subr.mxu0 0.0
    %3282 = vmatpush1.msra.mxu0 0.0
    %3283 = vmatprep.subr.mxu0 0.0
    %3284 = vmatpush1.msra.mxu0 0.0
    %3285 = vmatprep.subr.mxu0 0.0
    %3286 = vmatpush1.msra.mxu0 0.0
    %3287 = vmatprep.subr.mxu0 0.0
    %3288 = vmatpush1.msra.mxu0 0.0
    %3289 = vmatprep.subr.mxu0 0.0
    %3290 = vmatpush1.msra.mxu0 0.0
    %3291 = vmatprep.subr.mxu0 0.0
    %3292 = vmatpush1.msra.mxu0 0.0
    %3293 = vmatprep.subr.mxu0 0.0
    %3294 = vmatpush1.msra.mxu0 0.0
    %3295 = vmatprep.subr.mxu0 0.0
    %3296 = vmatpush1.msra.mxu0 0.0
    %3297 = vmatprep.subr.mxu0 0.0
    %3298 = vmatpush1.msra.mxu0 0.0
    %3299 = vmatprep.subr.mxu0 0.0
    %3300 = vmatpush1.msra.mxu0 0.0
    %3301 = vmatprep.subr.mxu0 0.0
    %3302 = vmatpush1.msra.mxu0 0.0
    %3303 = vmatprep.subr.mxu0 0.0
    %3304 = vmatpush1.msra.mxu0 0.0
    %3305 = vmatprep.subr.mxu0 0.0
    %3306 = vmatpush1.msra.mxu0 0.0
    %3307 = vmatprep.subr.mxu0 0.0
    %3308 = vmatpush1.msra.mxu0 0.0
    %3309 = vmatprep.subr.mxu0 0.0
    %3310 = vmatpush1.msra.mxu0 0.0
    %3311 = vmatprep.subr.mxu0 0.0
    %3312 = vmatpush1.msra.mxu0 0.0
    %3313 = vmatprep.subr.mxu0 0.0
    %3314 = vmatpush1.msra.mxu0 0.0
    %3315 = vmatprep.subr.mxu0 0.0
    %3316 = vmatpush1.msra.mxu0 0.0
    %3317 = vmatprep.subr.mxu0 0.0
    %3318 = vmatpush1.msra.mxu0 0.0
    %3319 = vmatprep.subr.mxu0 0.0
    %3320 = vmatpush1.msra.mxu0 0.0
    %3321 = vmatprep.subr.mxu0 0.0
    %3322 = vmatpush1.msra.mxu0 0.0
    %3323 = vmatprep.mubr.f32.mxu0 0.0
    %v3324 = vand.u32 %v2704, 4294901760
    %3325 = vmatmul.mubr.f32.gmra.mrb[0].mxu0 %v3324
    %v3326 = vpop.f32.mrb[0].mxu0
    %v3327 = vadd.f32 %v3194, %v3326
    %v3328 = vpop.f32.mrb[0].mxu0
    %3329 = vmatprep.mubr.f32.mxu0 0.0
    %v3330 = vand.u32 %v2707, 4294901760
    %3331 = vmatmul.mubr.f32.gmra.mrb[0].mxu0 %v3330
    %v3332 = vpop.f32.mrb[0].mxu0
    %v3333 = vadd.f32 %v3202, %v3332
    %v3334 = vpop.f32.mrb[0].mxu0
    %3335 = vmatprep.mubr.f32.mxu0 0.0
    %v3336 = vand.u32 %v2710, 4294901760
    %3337 = vmatmul.mubr.f32.gmra.mrb[0].mxu0 %v3336
    %v3338 = vpop.f32.mrb[0].mxu0
    %v3339 = vadd.f32 %v3210, %v3338
    %v3340 = vpop.f32.mrb[0].mxu0
    %3341 = vmatprep.mubr.f32.mxu0 0.0
    %v3342 = vand.u32 %v2713, 4294901760
    %3343 = vmatmul.mubr.f32.gmra.mrb[0].mxu0 %v3342
    %v3344 = vpop.f32.mrb[0].mxu0
    %v3345 = vadd.f32 %v3218, %v3344
    %v3346 = vpop.f32.mrb[0].mxu0
    %3347 = vmatprep.mubr.f32.mxu0 0.0
    %v3348 = vand.u32 %v2716, 4294901760
    %3349 = vmatmul.mubr.f32.gmra.mrb[0].mxu0 %v3348
    %v3350 = vpop.f32.mrb[0].mxu0
    %v3351 = vadd.f32 %v3226, %v3350
    %v3352 = vpop.f32.mrb[0].mxu0
    %3353 = vmatprep.mubr.f32.mxu0 0.0
    %v3354 = vand.u32 %v2719, 4294901760
    %3355 = vmatmul.mubr.f32.gmra.mrb[0].mxu0 %v3354
    %v3356 = vpop.f32.mrb[0].mxu0
    %v3357 = vadd.f32 %v3234, %v3356
    %v3358 = vpop.f32.mrb[0].mxu0
    %3359 = vmatprep.mubr.f32.mxu0 0.0
    %v3360 = vand.u32 %v2722, 4294901760
    %3361 = vmatmul.mubr.f32.gmra.mrb[0].mxu0 %v3360
    %v3362 = vpop.f32.mrb[0].mxu0
    %v3363 = vadd.f32 %v3242, %v3362
    %v3364 = vpop.f32.mrb[0].mxu0
    %3365 = vmatprep.mubr.f32.mxu0 0.0
    %v3366 = vand.u32 %v2725, 4294901760
    %3367 = vmatmul.mubr.f32.gmra.mrb[0].mxu0 %v3366
    %v3368 = vpop.f32.mrb[0].mxu0
    %v3369 = vadd.f32 %v3250, %v3368
    %v3370 = vpop.f32.mrb[0].mxu0
    %3371 = vdwg.mxu0
    %3372 = vmatprep.subr.mxu0 0.0
    %v3373 = vand.u32 %v2645, 4294901760
    %3374 = vmatpush1.msra.mxu0 %v3373
    %3375 = vmatprep.subr.mxu0 0.0
    %v3376 = vand.u32 %v2646, 4294901760
    %3377 = vmatpush1.msra.mxu0 %v3376
    %3378 = vmatprep.subr.mxu0 0.0
    %3379 = vmatpush1.msra.mxu0 0.0
    %3380 = vmatprep.subr.mxu0 0.0
    %3381 = vmatpush1.msra.mxu0 0.0
    %3382 = vmatprep.subr.mxu0 0.0
    %3383 = vmatpush1.msra.mxu0 0.0
    %3384 = vmatprep.subr.mxu0 0.0
    %3385 = vmatpush1.msra.mxu0 0.0
    %3386 = vmatprep.subr.mxu0 0.0
    %3387 = vmatpush1.msra.mxu0 0.0
    %3388 = vmatprep.subr.mxu0 0.0
    %3389 = vmatpush1.msra.mxu0 0.0
    %3390 = vmatprep.subr.mxu0 0.0
    %3391 = vmatpush1.msra.mxu0 0.0
    %3392 = vmatprep.subr.mxu0 0.0
    %3393 = vmatpush1.msra.mxu0 0.0
    %3394 = vmatprep.subr.mxu0 0.0
    %3395 = vmatpush1.msra.mxu0 0.0
    %3396 = vmatprep.subr.mxu0 0.0
    %3397 = vmatpush1.msra.mxu0 0.0
    %3398 = vmatprep.subr.mxu0 0.0
    %3399 = vmatpush1.msra.mxu0 0.0
    %3400 = vmatprep.subr.mxu0 0.0
    %3401 = vmatpush1.msra.mxu0 0.0
    %3402 = vmatprep.subr.mxu0 0.0
    %3403 = vmatpush1.msra.mxu0 0.0
    %3404 = vmatprep.subr.mxu0 0.0
    %3405 = vmatpush1.msra.mxu0 0.0
    %3406 = vmatprep.subr.mxu0 0.0
    %3407 = vmatpush1.msra.mxu0 0.0
    %3408 = vmatprep.subr.mxu0 0.0
    %3409 = vmatpush1.msra.mxu0 0.0
    %3410 = vmatprep.subr.mxu0 0.0
    %3411 = vmatpush1.msra.mxu0 0.0
    %3412 = vmatprep.subr.mxu0 0.0
    %3413 = vmatpush1.msra.mxu0 0.0
    %3414 = vmatprep.subr.mxu0 0.0
    %3415 = vmatpush1.msra.mxu0 0.0
    %3416 = vmatprep.subr.mxu0 0.0
    %3417 = vmatpush1.msra.mxu0 0.0
    %3418 = vmatprep.subr.mxu0 0.0
    %3419 = vmatpush1.msra.mxu0 0.0
    %3420 = vmatprep.subr.mxu0 0.0
    %3421 = vmatpush1.msra.mxu0 0.0
    %3422 = vmatprep.subr.mxu0 0.0
    %3423 = vmatpush1.msra.mxu0 0.0
    %3424 = vmatprep.subr.mxu0 0.0
    %3425 = vmatpush1.msra.mxu0 0.0
    %3426 = vmatprep.subr.mxu0 0.0
    %3427 = vmatpush1.msra.mxu0 0.0
    %3428 = vmatprep.subr.mxu0 0.0
    %3429 = vmatpush1.msra.mxu0 0.0
    %3430 = vmatprep.subr.mxu0 0.0
    %3431 = vmatpush1.msra.mxu0 0.0
    %3432 = vmatprep.subr.mxu0 0.0
    %3433 = vmatpush1.msra.mxu0 0.0
    %3434 = vmatprep.subr.mxu0 0.0
    %3435 = vmatpush1.msra.mxu0 0.0
    %3436 = vmatprep.subr.mxu0 0.0
    %3437 = vmatpush1.msra.mxu0 0.0
    %3438 = vmatprep.mubr.f32.mxu0 0.0
    %v3439 = vand.u32 %v2704, 4294901760
    %3440 = vmatmul.mubr.f32.gmra.mrb[0].mxu0 %v3439
    %v3441 = vpop.f32.mrb[0].mxu0
    %v3442 = vadd.f32 %v3327, %v3441
    %v3443 = vpop.f32.mrb[0].mxu0
    %3444 = vmatprep.mubr.f32.mxu0 0.0
    %v3445 = vand.u32 %v2707, 4294901760
    %3446 = vmatmul.mubr.f32.gmra.mrb[0].mxu0 %v3445
    %v3447 = vpop.f32.mrb[0].mxu0
    %v3448 = vadd.f32 %v3333, %v3447
    %v3449 = vpop.f32.mrb[0].mxu0
    %3450 = vmatprep.mubr.f32.mxu0 0.0
    %v3451 = vand.u32 %v2710, 4294901760
    %3452 = vmatmul.mubr.f32.gmra.mrb[0].mxu0 %v3451
    %v3453 = vpop.f32.mrb[0].mxu0
    %v3454 = vadd.f32 %v3339, %v3453
    %v3455 = vpop.f32.mrb[0].mxu0
    %3456 = vmatprep.mubr.f32.mxu0 0.0
    %v3457 = vand.u32 %v2713, 4294901760
    %3458 = vmatmul.mubr.f32.gmra.mrb[0].mxu0 %v3457
    %v3459 = vpop.f32.mrb[0].mxu0
    %v3460 = vadd.f32 %v3345, %v3459
    %v3461 = vpop.f32.mrb[0].mxu0
    %3462 = vmatprep.mubr.f32.mxu0 0.0
    %v3463 = vand.u32 %v2716, 4294901760
    %3464 = vmatmul.mubr.f32.gmra.mrb[0].mxu0 %v3463
    %v3465 = vpop.f32.mrb[0].mxu0
    %v3466 = vadd.f32 %v3351, %v3465
    %v3467 = vpop.f32.mrb[0].mxu0
    %3468 = vmatprep.mubr.f32.mxu0 0.0
    %v3469 = vand.u32 %v2719, 4294901760
    %3470 = vmatmul.mubr.f32.gmra.mrb[0].mxu0 %v3469
    %v3471 = vpop.f32.mrb[0].mxu0
    %v3472 = vadd.f32 %v3357, %v3471
    %v3473 = vpop.f32.mrb[0].mxu0
    %3474 = vmatprep.mubr.f32.mxu0 0.0
    %v3475 = vand.u32 %v2722, 4294901760
    %3476 = vmatmul.mubr.f32.gmra.mrb[0].mxu0 %v3475
    %v3477 = vpop.f32.mrb[0].mxu0
    %v3478 = vadd.f32 %v3363, %v3477
    %v3479 = vpop.f32.mrb[0].mxu0
    %3480 = vmatprep.mubr.f32.mxu0 0.0
    %v3481 = vand.u32 %v2725, 4294901760
    %3482 = vmatmul.mubr.f32.gmra.mrb[0].mxu0 %v3481
    %v3483 = vpop.f32.mrb[0].mxu0
    %v3484 = vadd.f32 %v3369, %v3483
    %v3485 = vpop.f32.mrb[0].mxu0
    %3486 = vdwg.mxu0
    %v3487 = vld [vmem:[#allocation19] sm:$0xff]
    %v3488 = vld [vmem:[#allocation19 + $0x8] sm:$0xff]
    %v3489 = vld [vmem:[#allocation16] sm:$0xff]
    %v3490 = vld [vmem:[#allocation16 + $0x8] sm:$0xff]
    %v3491 = vld [vmem:[#allocation16 + $0x10] sm:$0xff]
    %v3492 = vld [vmem:[#allocation16 + $0x18] sm:$0xff]
    %v3493 = vld [vmem:[#allocation16 + $0x20] sm:$0xff]
    %v3494 = vld [vmem:[#allocation16 + $0x28] sm:$0xff]
    %v3495 = vld [vmem:[#allocation16 + $0x30] sm:$0xff]
    %v3496 = vld [vmem:[#allocation16 + $0x38] sm:$0xff]
    %v3497 = vld [vmem:[#allocation17] sm:$0xff]
    %v3498 = vld [vmem:[#allocation17 + $0x8] sm:$0xff]
    %v3499 = vld [vmem:[#allocation17 + $0x10] sm:$0xff]
    %v3500 = vld [vmem:[#allocation17 + $0x18] sm:$0xff]
    %v3501 = vld [vmem:[#allocation17 + $0x20] sm:$0xff]
    %v3502 = vld [vmem:[#allocation17 + $0x28] sm:$0xff]
    %v3503 = vld [vmem:[#allocation17 + $0x30] sm:$0xff]
    %v3504 = vld [vmem:[#allocation17 + $0x38] sm:$0xff]
    %vm3505 = vcmask 523264
    %v3507 = vsel %vm3505, %v3487, 0
    %v3510 = vsel %vm3505, %v3488, 0
    %3512 = vmatprep.subr.mxu0 0.0
    %v3513 = vand.u32 %v3442, 4294901760
    %3514 = vmatpush1.msra.mxu0 %v3513
    %3515 = vmatprep.subr.mxu0 0.0
    %v3516 = vand.u32 %v3448, 4294901760
    %3517 = vmatpush1.msra.mxu0 %v3516
    %3518 = vmatprep.subr.mxu0 0.0
    %v3519 = vand.u32 %v3454, 4294901760
    %3520 = vmatpush1.msra.mxu0 %v3519
    %3521 = vmatprep.subr.mxu0 0.0
    %v3522 = vand.u32 %v3460, 4294901760
    %3523 = vmatpush1.msra.mxu0 %v3522
    %3524 = vmatprep.subr.mxu0 0.0
    %v3525 = vand.u32 %v3466, 4294901760
    %3526 = vmatpush1.msra.mxu0 %v3525
    %3527 = vmatprep.subr.mxu0 0.0
    %v3528 = vand.u32 %v3472, 4294901760
    %3529 = vmatpush1.msra.mxu0 %v3528
    %3530 = vmatprep.subr.mxu0 0.0
    %v3531 = vand.u32 %v3478, 4294901760
    %3532 = vmatpush1.msra.mxu0 %v3531
    %3533 = vmatprep.subr.mxu0 0.0
    %v3534 = vand.u32 %v3484, 4294901760
    %3535 = vmatpush1.msra.mxu0 %v3534
    %3536 = vmatprep.subr.mxu0 0.0
    %3537 = vmatpush1.msra.mxu0 0.0
    %3538 = vmatprep.subr.mxu0 0.0
    %3539 = vmatpush1.msra.mxu0 0.0
    %3540 = vmatprep.subr.mxu0 0.0
    %3541 = vmatpush1.msra.mxu0 0.0
    %3542 = vmatprep.subr.mxu0 0.0
    %3543 = vmatpush1.msra.mxu0 0.0
    %3544 = vmatprep.subr.mxu0 0.0
    %3545 = vmatpush1.msra.mxu0 0.0
    %3546 = vmatprep.subr.mxu0 0.0
    %3547 = vmatpush1.msra.mxu0 0.0
    %3548 = vmatprep.subr.mxu0 0.0
    %3549 = vmatpush1.msra.mxu0 0.0
    %3550 = vmatprep.subr.mxu0 0.0
    %3551 = vmatpush1.msra.mxu0 0.0
    %3552 = vmatprep.subr.mxu0 0.0
    %3553 = vmatpush1.msra.mxu0 0.0
    %3554 = vmatprep.subr.mxu0 0.0
    %3555 = vmatpush1.msra.mxu0 0.0
    %3556 = vmatprep.subr.mxu0 0.0
    %3557 = vmatpush1.msra.mxu0 0.0
    %3558 = vmatprep.subr.mxu0 0.0
    %3559 = vmatpush1.msra.mxu0 0.0
    %3560 = vmatprep.subr.mxu0 0.0
    %3561 = vmatpush1.msra.mxu0 0.0
    %3562 = vmatprep.subr.mxu0 0.0
    %3563 = vmatpush1.msra.mxu0 0.0
    %3564 = vmatprep.subr.mxu0 0.0
    %3565 = vmatpush1.msra.mxu0 0.0
    %3566 = vmatprep.subr.mxu0 0.0
    %3567 = vmatpush1.msra.mxu0 0.0
    %3568 = vmatprep.subr.mxu0 0.0
    %3569 = vmatpush1.msra.mxu0 0.0
    %3570 = vmatprep.subr.mxu0 0.0
    %3571 = vmatpush1.msra.mxu0 0.0
    %3572 = vmatprep.subr.mxu0 0.0
    %3573 = vmatpush1.msra.mxu0 0.0
    %3574 = vmatprep.subr.mxu0 0.0
    %3575 = vmatpush1.msra.mxu0 0.0
    %3576 = vmatprep.subr.mxu0 0.0
    %3577 = vmatpush1.msra.mxu0 0.0
    %3578 = vmatprep.subr.mxu0 0.0
    %3579 = vmatpush1.msra.mxu0 0.0
    %3580 = vmatprep.subr.mxu0 0.0
    %3581 = vmatpush1.msra.mxu0 0.0
    %3582 = vmatprep.subr.mxu0 0.0
    %3583 = vmatpush1.msra.mxu0 0.0
    %3584 = vmatprep.mubr.f32.mxu0 0.0
    %v3585 = vand.u32 %v3507, 4294901760
    %v3586 = vsub.f32 %v3507, %v3585
    %v3587 = vand.u32 %v3586, 4294901760
    %v3588 = vsub.f32 %v3586, %v3587
    %v3589 = vand.u32 %v3588, 4294901760
    %3590 = vmatmul.mubr.f32.gmra.mrb[0].mxu0 %v3589
    %v3591 = vpop.f32.mrb[0].mxu0
    %v3592 = vadd.f32 0.0, %v3591
    %v3593 = vpop.f32.mrb[0].mxu0
    %3594 = vmatprep.mubr.f32.mxu0 0.0
    %v3595 = vand.u32 %v3510, 4294901760
    %v3596 = vsub.f32 %v3510, %v3595
    %v3597 = vand.u32 %v3596, 4294901760
    %v3598 = vsub.f32 %v3596, %v3597
    %v3599 = vand.u32 %v3598, 4294901760
    %3600 = vmatmul.mubr.f32.gmra.mrb[0].mxu0 %v3599
    %v3601 = vpop.f32.mrb[0].mxu0
    %v3602 = vadd.f32 0.0, %v3601
    %v3603 = vpop.f32.mrb[0].mxu0
    %3604 = vdwg.mxu0
    %3605 = vmatprep.subr.mxu0 0.0
    %v3606 = vand.u32 %v3442, 4294901760
    %v3607 = vsub.f32 %v3442, %v3606
    %v3608 = vand.u32 %v3607, 4294901760
    %v3609 = vsub.f32 %v3607, %v3608
    %v3610 = vand.u32 %v3609, 4294901760
    %3611 = vmatpush1.msra.mxu0 %v3610
    %3612 = vmatprep.subr.mxu0 0.0
    %v3613 = vand.u32 %v3448, 4294901760
    %v3614 = vsub.f32 %v3448, %v3613
    %v3615 = vand.u32 %v3614, 4294901760
    %v3616 = vsub.f32 %v3614, %v3615
    %v3617 = vand.u32 %v3616, 4294901760
    %3618 = vmatpush1.msra.mxu0 %v3617
    %3619 = vmatprep.subr.mxu0 0.0
    %v3620 = vand.u32 %v3454, 4294901760
    %v3621 = vsub.f32 %v3454, %v3620
    %v3622 = vand.u32 %v3621, 4294901760
    %v3623 = vsub.f32 %v3621, %v3622
    %v3624 = vand.u32 %v3623, 4294901760
    %3625 = vmatpush1.msra.mxu0 %v3624
    %3626 = vmatprep.subr.mxu0 0.0
    %v3627 = vand.u32 %v3460, 4294901760
    %v3628 = vsub.f32 %v3460, %v3627
    %v3629 = vand.u32 %v3628, 4294901760
    %v3630 = vsub.f32 %v3628, %v3629
    %v3631 = vand.u32 %v3630, 4294901760
    %3632 = vmatpush1.msra.mxu0 %v3631
    %3633 = vmatprep.subr.mxu0 0.0
    %v3634 = vand.u32 %v3466, 4294901760
    %v3635 = vsub.f32 %v3466, %v3634
    %v3636 = vand.u32 %v3635, 4294901760
    %v3637 = vsub.f32 %v3635, %v3636
    %v3638 = vand.u32 %v3637, 4294901760
    %3639 = vmatpush1.msra.mxu0 %v3638
    %3640 = vmatprep.subr.mxu0 0.0
    %v3641 = vand.u32 %v3472, 4294901760
    %v3642 = vsub.f32 %v3472, %v3641
    %v3643 = vand.u32 %v3642, 4294901760
    %v3644 = vsub.f32 %v3642, %v3643
    %v3645 = vand.u32 %v3644, 4294901760
    %3646 = vmatpush1.msra.mxu0 %v3645
    %3647 = vmatprep.subr.mxu0 0.0
    %v3648 = vand.u32 %v3478, 4294901760
    %v3649 = vsub.f32 %v3478, %v3648
    %v3650 = vand.u32 %v3649, 4294901760
    %v3651 = vsub.f32 %v3649, %v3650
    %v3652 = vand.u32 %v3651, 4294901760
    %3653 = vmatpush1.msra.mxu0 %v3652
    %3654 = vmatprep.subr.mxu0 0.0
    %v3655 = vand.u32 %v3484, 4294901760
    %v3656 = vsub.f32 %v3484, %v3655
    %v3657 = vand.u32 %v3656, 4294901760
    %v3658 = vsub.f32 %v3656, %v3657
    %v3659 = vand.u32 %v3658, 4294901760
    %3660 = vmatpush1.msra.mxu0 %v3659
    %3661 = vmatprep.subr.mxu0 0.0
    %3662 = vmatpush1.msra.mxu0 0.0
    %3663 = vmatprep.subr.mxu0 0.0
    %3664 = vmatpush1.msra.mxu0 0.0
    %3665 = vmatprep.subr.mxu0 0.0
    %3666 = vmatpush1.msra.mxu0 0.0
    %3667 = vmatprep.subr.mxu0 0.0
    %3668 = vmatpush1.msra.mxu0 0.0
    %3669 = vmatprep.subr.mxu0 0.0
    %3670 = vmatpush1.msra.mxu0 0.0
    %3671 = vmatprep.subr.mxu0 0.0
    %3672 = vmatpush1.msra.mxu0 0.0
    %3673 = vmatprep.subr.mxu0 0.0
    %3674 = vmatpush1.msra.mxu0 0.0
    %3675 = vmatprep.subr.mxu0 0.0
    %3676 = vmatpush1.msra.mxu0 0.0
    %3677 = vmatprep.subr.mxu0 0.0
    %3678 = vmatpush1.msra.mxu0 0.0
    %3679 = vmatprep.subr.mxu0 0.0
    %3680 = vmatpush1.msra.mxu0 0.0
    %3681 = vmatprep.subr.mxu0 0.0
    %3682 = vmatpush1.msra.mxu0 0.0
    %3683 = vmatprep.subr.mxu0 0.0
    %3684 = vmatpush1.msra.mxu0 0.0
    %3685 = vmatprep.subr.mxu0 0.0
    %3686 = vmatpush1.msra.mxu0 0.0
    %3687 = vmatprep.subr.mxu0 0.0
    %3688 = vmatpush1.msra.mxu0 0.0
    %3689 = vmatprep.subr.mxu0 0.0
    %3690 = vmatpush1.msra.mxu0 0.0
    %3691 = vmatprep.subr.mxu0 0.0
    %3692 = vmatpush1.msra.mxu0 0.0
    %3693 = vmatprep.subr.mxu0 0.0
    %3694 = vmatpush1.msra.mxu0 0.0
    %3695 = vmatprep.subr.mxu0 0.0
    %3696 = vmatpush1.msra.mxu0 0.0
    %3697 = vmatprep.subr.mxu0 0.0
    %3698 = vmatpush1.msra.mxu0 0.0
    %3699 = vmatprep.subr.mxu0 0.0
    %3700 = vmatpush1.msra.mxu0 0.0
    %3701 = vmatprep.subr.mxu0 0.0
    %3702 = vmatpush1.msra.mxu0 0.0
    %3703 = vmatprep.subr.mxu0 0.0
    %3704 = vmatpush1.msra.mxu0 0.0
    %3705 = vmatprep.subr.mxu0 0.0
    %3706 = vmatpush1.msra.mxu0 0.0
    %3707 = vmatprep.subr.mxu0 0.0
    %3708 = vmatpush1.msra.mxu0 0.0
    %3709 = vmatprep.mubr.f32.mxu0 0.0
    %v3710 = vand.u32 %v3507, 4294901760
    %3711 = vmatmul.mubr.f32.gmra.mrb[0].mxu0 %v3710
    %v3712 = vpop.f32.mrb[0].mxu0
    %v3713 = vadd.f32 %v3592, %v3712
    %v3714 = vpop.f32.mrb[0].mxu0
    %3715 = vmatprep.mubr.f32.mxu0 0.0
    %v3716 = vand.u32 %v3510, 4294901760
    %3717 = vmatmul.mubr.f32.gmra.mrb[0].mxu0 %v3716
    %v3718 = vpop.f32.mrb[0].mxu0
    %v3719 = vadd.f32 %v3602, %v3718
    %v3720 = vpop.f32.mrb[0].mxu0
    %3721 = vdwg.mxu0
    %3722 = vmatprep.subr.mxu0 0.0
    %v3723 = vand.u32 %v3442, 4294901760
    %v3724 = vsub.f32 %v3442, %v3723
    %3725 = vmatpush1.msra.mxu0 %v3724
    %3726 = vmatprep.subr.mxu0 0.0
    %v3727 = vand.u32 %v3448, 4294901760
    %v3728 = vsub.f32 %v3448, %v3727
    %3729 = vmatpush1.msra.mxu0 %v3728
    %3730 = vmatprep.subr.mxu0 0.0
    %v3731 = vand.u32 %v3454, 4294901760
    %v3732 = vsub.f32 %v3454, %v3731
    %3733 = vmatpush1.msra.mxu0 %v3732
    %3734 = vmatprep.subr.mxu0 0.0
    %v3735 = vand.u32 %v3460, 4294901760
    %v3736 = vsub.f32 %v3460, %v3735
    %3737 = vmatpush1.msra.mxu0 %v3736
    %3738 = vmatprep.subr.mxu0 0.0
    %v3739 = vand.u32 %v3466, 4294901760
    %v3740 = vsub.f32 %v3466, %v3739
    %3741 = vmatpush1.msra.mxu0 %v3740
    %3742 = vmatprep.subr.mxu0 0.0
    %v3743 = vand.u32 %v3472, 4294901760
    %v3744 = vsub.f32 %v3472, %v3743
    %3745 = vmatpush1.msra.mxu0 %v3744
    %3746 = vmatprep.subr.mxu0 0.0
    %v3747 = vand.u32 %v3478, 4294901760
    %v3748 = vsub.f32 %v3478, %v3747
    %3749 = vmatpush1.msra.mxu0 %v3748
    %3750 = vmatprep.subr.mxu0 0.0
    %v3751 = vand.u32 %v3484, 4294901760
    %v3752 = vsub.f32 %v3484, %v3751
    %3753 = vmatpush1.msra.mxu0 %v3752
    %3754 = vmatprep.subr.mxu0 0.0
    %3755 = vmatpush1.msra.mxu0 0.0
    %3756 = vmatprep.subr.mxu0 0.0
    %3757 = vmatpush1.msra.mxu0 0.0
    %3758 = vmatprep.subr.mxu0 0.0
    %3759 = vmatpush1.msra.mxu0 0.0
    %3760 = vmatprep.subr.mxu0 0.0
    %3761 = vmatpush1.msra.mxu0 0.0
    %3762 = vmatprep.subr.mxu0 0.0
    %3763 = vmatpush1.msra.mxu0 0.0
    %3764 = vmatprep.subr.mxu0 0.0
    %3765 = vmatpush1.msra.mxu0 0.0
    %3766 = vmatprep.subr.mxu0 0.0
    %3767 = vmatpush1.msra.mxu0 0.0
    %3768 = vmatprep.subr.mxu0 0.0
    %3769 = vmatpush1.msra.mxu0 0.0
    %3770 = vmatprep.subr.mxu0 0.0
    %3771 = vmatpush1.msra.mxu0 0.0
    %3772 = vmatprep.subr.mxu0 0.0
    %3773 = vmatpush1.msra.mxu0 0.0
    %3774 = vmatprep.subr.mxu0 0.0
    %3775 = vmatpush1.msra.mxu0 0.0
    %3776 = vmatprep.subr.mxu0 0.0
    %3777 = vmatpush1.msra.mxu0 0.0
    %3778 = vmatprep.subr.mxu0 0.0
    %3779 = vmatpush1.msra.mxu0 0.0
    %3780 = vmatprep.subr.mxu0 0.0
    %3781 = vmatpush1.msra.mxu0 0.0
    %3782 = vmatprep.subr.mxu0 0.0
    %3783 = vmatpush1.msra.mxu0 0.0
    %3784 = vmatprep.subr.mxu0 0.0
    %3785 = vmatpush1.msra.mxu0 0.0
    %3786 = vmatprep.subr.mxu0 0.0
    %3787 = vmatpush1.msra.mxu0 0.0
    %3788 = vmatprep.subr.mxu0 0.0
    %3789 = vmatpush1.msra.mxu0 0.0
    %3790 = vmatprep.subr.mxu0 0.0
    %3791 = vmatpush1.msra.mxu0 0.0
    %3792 = vmatprep.subr.mxu0 0.0
    %3793 = vmatpush1.msra.mxu0 0.0
    %3794 = vmatprep.subr.mxu0 0.0
    %3795 = vmatpush1.msra.mxu0 0.0
    %3796 = vmatprep.subr.mxu0 0.0
    %3797 = vmatpush1.msra.mxu0 0.0
    %3798 = vmatprep.subr.mxu0 0.0
    %3799 = vmatpush1.msra.mxu0 0.0
    %3800 = vmatprep.subr.mxu0 0.0
    %3801 = vmatpush1.msra.mxu0 0.0
    %3802 = vmatprep.mubr.f32.mxu0 0.0
    %v3803 = vand.u32 %v3507, 4294901760
    %v3804 = vsub.f32 %v3507, %v3803
    %3805 = vmatmul.mubr.f32.gmra.mrb[0].mxu0 %v3804
    %v3806 = vpop.f32.mrb[0].mxu0
    %v3807 = vadd.f32 %v3713, %v3806
    %v3808 = vpop.f32.mrb[0].mxu0
    %3809 = vmatprep.mubr.f32.mxu0 0.0
    %v3810 = vand.u32 %v3510, 4294901760
    %v3811 = vsub.f32 %v3510, %v3810
    %3812 = vmatmul.mubr.f32.gmra.mrb[0].mxu0 %v3811
    %v3813 = vpop.f32.mrb[0].mxu0
    %v3814 = vadd.f32 %v3719, %v3813
    %v3815 = vpop.f32.mrb[0].mxu0
    %3816 = vdwg.mxu0
    %3817 = vmatprep.subr.mxu0 0.0
    %v3818 = vand.u32 %v3442, 4294901760
    %3819 = vmatpush1.msra.mxu0 %v3818
    %3820 = vmatprep.subr.mxu0 0.0
    %v3821 = vand.u32 %v3448, 4294901760
    %3822 = vmatpush1.msra.mxu0 %v3821
    %3823 = vmatprep.subr.mxu0 0.0
    %v3824 = vand.u32 %v3454, 4294901760
    %3825 = vmatpush1.msra.mxu0 %v3824
    %3826 = vmatprep.subr.mxu0 0.0
    %v3827 = vand.u32 %v3460, 4294901760
    %3828 = vmatpush1.msra.mxu0 %v3827
    %3829 = vmatprep.subr.mxu0 0.0
    %v3830 = vand.u32 %v3466, 4294901760
    %3831 = vmatpush1.msra.mxu0 %v3830
    %3832 = vmatprep.subr.mxu0 0.0
    %v3833 = vand.u32 %v3472, 4294901760
    %3834 = vmatpush1.msra.mxu0 %v3833
    %3835 = vmatprep.subr.mxu0 0.0
    %v3836 = vand.u32 %v3478, 4294901760
    %3837 = vmatpush1.msra.mxu0 %v3836
    %3838 = vmatprep.subr.mxu0 0.0
    %v3839 = vand.u32 %v3484, 4294901760
    %3840 = vmatpush1.msra.mxu0 %v3839
    %3841 = vmatprep.subr.mxu0 0.0
    %3842 = vmatpush1.msra.mxu0 0.0
    %3843 = vmatprep.subr.mxu0 0.0
    %3844 = vmatpush1.msra.mxu0 0.0
    %3845 = vmatprep.subr.mxu0 0.0
    %3846 = vmatpush1.msra.mxu0 0.0
    %3847 = vmatprep.subr.mxu0 0.0
    %3848 = vmatpush1.msra.mxu0 0.0
    %3849 = vmatprep.subr.mxu0 0.0
    %3850 = vmatpush1.msra.mxu0 0.0
    %3851 = vmatprep.subr.mxu0 0.0
    %3852 = vmatpush1.msra.mxu0 0.0
    %3853 = vmatprep.subr.mxu0 0.0
    %3854 = vmatpush1.msra.mxu0 0.0
    %3855 = vmatprep.subr.mxu0 0.0
    %3856 = vmatpush1.msra.mxu0 0.0
    %3857 = vmatprep.subr.mxu0 0.0
    %3858 = vmatpush1.msra.mxu0 0.0
    %3859 = vmatprep.subr.mxu0 0.0
    %3860 = vmatpush1.msra.mxu0 0.0
    %3861 = vmatprep.subr.mxu0 0.0
    %3862 = vmatpush1.msra.mxu0 0.0
    %3863 = vmatprep.subr.mxu0 0.0
    %3864 = vmatpush1.msra.mxu0 0.0
    %3865 = vmatprep.subr.mxu0 0.0
    %3866 = vmatpush1.msra.mxu0 0.0
    %3867 = vmatprep.subr.mxu0 0.0
    %3868 = vmatpush1.msra.mxu0 0.0
    %3869 = vmatprep.subr.mxu0 0.0
    %3870 = vmatpush1.msra.mxu0 0.0
    %3871 = vmatprep.subr.mxu0 0.0
    %3872 = vmatpush1.msra.mxu0 0.0
    %3873 = vmatprep.subr.mxu0 0.0
    %3874 = vmatpush1.msra.mxu0 0.0
    %3875 = vmatprep.subr.mxu0 0.0
    %3876 = vmatpush1.msra.mxu0 0.0
    %3877 = vmatprep.subr.mxu0 0.0
    %3878 = vmatpush1.msra.mxu0 0.0
    %3879 = vmatprep.subr.mxu0 0.0
    %3880 = vmatpush1.msra.mxu0 0.0
    %3881 = vmatprep.subr.mxu0 0.0
    %3882 = vmatpush1.msra.mxu0 0.0
    %3883 = vmatprep.subr.mxu0 0.0
    %3884 = vmatpush1.msra.mxu0 0.0
    %3885 = vmatprep.subr.mxu0 0.0
    %3886 = vmatpush1.msra.mxu0 0.0
    %3887 = vmatprep.subr.mxu0 0.0
    %3888 = vmatpush1.msra.mxu0 0.0
    %3889 = vmatprep.mubr.f32.mxu0 0.0
    %v3890 = vand.u32 %v3507, 4294901760
    %v3891 = vsub.f32 %v3507, %v3890
    %v3892 = vand.u32 %v3891, 4294901760
    %3893 = vmatmul.mubr.f32.gmra.mrb[0].mxu0 %v3892
    %v3894 = vpop.f32.mrb[0].mxu0
    %v3895 = vadd.f32 %v3807, %v3894
    %v3896 = vpop.f32.mrb[0].mxu0
    %3897 = vmatprep.mubr.f32.mxu0 0.0
    %v3898 = vand.u32 %v3510, 4294901760
    %v3899 = vsub.f32 %v3510, %v3898
    %v3900 = vand.u32 %v3899, 4294901760
    %3901 = vmatmul.mubr.f32.gmra.mrb[0].mxu0 %v3900
    %v3902 = vpop.f32.mrb[0].mxu0
    %v3903 = vadd.f32 %v3814, %v3902
    %v3904 = vpop.f32.mrb[0].mxu0
    %3905 = vdwg.mxu0
    %3906 = vmatprep.subr.mxu0 0.0
    %v3907 = vand.u32 %v3442, 4294901760
    %v3908 = vsub.f32 %v3442, %v3907
    %v3909 = vand.u32 %v3908, 4294901760
    %3910 = vmatpush1.msra.mxu0 %v3909
    %3911 = vmatprep.subr.mxu0 0.0
    %v3912 = vand.u32 %v3448, 4294901760
    %v3913 = vsub.f32 %v3448, %v3912
    %v3914 = vand.u32 %v3913, 4294901760
    %3915 = vmatpush1.msra.mxu0 %v3914
    %3916 = vmatprep.subr.mxu0 0.0
    %v3917 = vand.u32 %v3454, 4294901760
    %v3918 = vsub.f32 %v3454, %v3917
    %v3919 = vand.u32 %v3918, 4294901760
    %3920 = vmatpush1.msra.mxu0 %v3919
    %3921 = vmatprep.subr.mxu0 0.0
    %v3922 = vand.u32 %v3460, 4294901760
    %v3923 = vsub.f32 %v3460, %v3922
    %v3924 = vand.u32 %v3923, 4294901760
    %3925 = vmatpush1.msra.mxu0 %v3924
    %3926 = vmatprep.subr.mxu0 0.0
    %v3927 = vand.u32 %v3466, 4294901760
    %v3928 = vsub.f32 %v3466, %v3927
    %v3929 = vand.u32 %v3928, 4294901760
    %3930 = vmatpush1.msra.mxu0 %v3929
    %3931 = vmatprep.subr.mxu0 0.0
    %v3932 = vand.u32 %v3472, 4294901760
    %v3933 = vsub.f32 %v3472, %v3932
    %v3934 = vand.u32 %v3933, 4294901760
    %3935 = vmatpush1.msra.mxu0 %v3934
    %3936 = vmatprep.subr.mxu0 0.0
    %v3937 = vand.u32 %v3478, 4294901760
    %v3938 = vsub.f32 %v3478, %v3937
    %v3939 = vand.u32 %v3938, 4294901760
    %3940 = vmatpush1.msra.mxu0 %v3939
    %3941 = vmatprep.subr.mxu0 0.0
    %v3942 = vand.u32 %v3484, 4294901760
    %v3943 = vsub.f32 %v3484, %v3942
    %v3944 = vand.u32 %v3943, 4294901760
    %3945 = vmatpush1.msra.mxu0 %v3944
    %3946 = vmatprep.subr.mxu0 0.0
    %3947 = vmatpush1.msra.mxu0 0.0
    %3948 = vmatprep.subr.mxu0 0.0
    %3949 = vmatpush1.msra.mxu0 0.0
    %3950 = vmatprep.subr.mxu0 0.0
    %3951 = vmatpush1.msra.mxu0 0.0
    %3952 = vmatprep.subr.mxu0 0.0
    %3953 = vmatpush1.msra.mxu0 0.0
    %3954 = vmatprep.subr.mxu0 0.0
    %3955 = vmatpush1.msra.mxu0 0.0
    %3956 = vmatprep.subr.mxu0 0.0
    %3957 = vmatpush1.msra.mxu0 0.0
    %3958 = vmatprep.subr.mxu0 0.0
    %3959 = vmatpush1.msra.mxu0 0.0
    %3960 = vmatprep.subr.mxu0 0.0
    %3961 = vmatpush1.msra.mxu0 0.0
    %3962 = vmatprep.subr.mxu0 0.0
    %3963 = vmatpush1.msra.mxu0 0.0
    %3964 = vmatprep.subr.mxu0 0.0
    %3965 = vmatpush1.msra.mxu0 0.0
    %3966 = vmatprep.subr.mxu0 0.0
    %3967 = vmatpush1.msra.mxu0 0.0
    %3968 = vmatprep.subr.mxu0 0.0
    %3969 = vmatpush1.msra.mxu0 0.0
    %3970 = vmatprep.subr.mxu0 0.0
    %3971 = vmatpush1.msra.mxu0 0.0
    %3972 = vmatprep.subr.mxu0 0.0
    %3973 = vmatpush1.msra.mxu0 0.0
    %3974 = vmatprep.subr.mxu0 0.0
    %3975 = vmatpush1.msra.mxu0 0.0
    %3976 = vmatprep.subr.mxu0 0.0
    %3977 = vmatpush1.msra.mxu0 0.0
    %3978 = vmatprep.subr.mxu0 0.0
    %3979 = vmatpush1.msra.mxu0 0.0
    %3980 = vmatprep.subr.mxu0 0.0
    %3981 = vmatpush1.msra.mxu0 0.0
    %3982 = vmatprep.subr.mxu0 0.0
    %3983 = vmatpush1.msra.mxu0 0.0
    %3984 = vmatprep.subr.mxu0 0.0
    %3985 = vmatpush1.msra.mxu0 0.0
    %3986 = vmatprep.subr.mxu0 0.0
    %3987 = vmatpush1.msra.mxu0 0.0
    %3988 = vmatprep.subr.mxu0 0.0
    %3989 = vmatpush1.msra.mxu0 0.0
    %3990 = vmatprep.subr.mxu0 0.0
    %3991 = vmatpush1.msra.mxu0 0.0
    %3992 = vmatprep.subr.mxu0 0.0
    %3993 = vmatpush1.msra.mxu0 0.0
    %3994 = vmatprep.mubr.f32.mxu0 0.0
    %v3995 = vand.u32 %v3507, 4294901760
    %3996 = vmatmul.mubr.f32.gmra.mrb[0].mxu0 %v3995
    %v3997 = vpop.f32.mrb[0].mxu0
    %v3998 = vadd.f32 %v3895, %v3997
    %v3999 = vpop.f32.mrb[0].mxu0
    %4000 = vmatprep.mubr.f32.mxu0 0.0
    %v4001 = vand.u32 %v3510, 4294901760
    %4002 = vmatmul.mubr.f32.gmra.mrb[0].mxu0 %v4001
    %v4003 = vpop.f32.mrb[0].mxu0
    %v4004 = vadd.f32 %v3903, %v4003
    %v4005 = vpop.f32.mrb[0].mxu0
    %4006 = vdwg.mxu0
    %4007 = vmatprep.subr.mxu0 0.0
    %v4008 = vand.u32 %v3442, 4294901760
    %4009 = vmatpush1.msra.mxu0 %v4008
    %4010 = vmatprep.subr.mxu0 0.0
    %v4011 = vand.u32 %v3448, 4294901760
    %4012 = vmatpush1.msra.mxu0 %v4011
    %4013 = vmatprep.subr.mxu0 0.0
    %v4014 = vand.u32 %v3454, 4294901760
    %4015 = vmatpush1.msra.mxu0 %v4014
    %4016 = vmatprep.subr.mxu0 0.0
    %v4017 = vand.u32 %v3460, 4294901760
    %4018 = vmatpush1.msra.mxu0 %v4017
    %4019 = vmatprep.subr.mxu0 0.0
    %v4020 = vand.u32 %v3466, 4294901760
    %4021 = vmatpush1.msra.mxu0 %v4020
    %4022 = vmatprep.subr.mxu0 0.0
    %v4023 = vand.u32 %v3472, 4294901760
    %4024 = vmatpush1.msra.mxu0 %v4023
    %4025 = vmatprep.subr.mxu0 0.0
    %v4026 = vand.u32 %v3478, 4294901760
    %4027 = vmatpush1.msra.mxu0 %v4026
    %4028 = vmatprep.subr.mxu0 0.0
    %v4029 = vand.u32 %v3484, 4294901760
    %4030 = vmatpush1.msra.mxu0 %v4029
    %4031 = vmatprep.subr.mxu0 0.0
    %4032 = vmatpush1.msra.mxu0 0.0
    %4033 = vmatprep.subr.mxu0 0.0
    %4034 = vmatpush1.msra.mxu0 0.0
    %4035 = vmatprep.subr.mxu0 0.0
    %4036 = vmatpush1.msra.mxu0 0.0
    %4037 = vmatprep.subr.mxu0 0.0
    %4038 = vmatpush1.msra.mxu0 0.0
    %4039 = vmatprep.subr.mxu0 0.0
    %4040 = vmatpush1.msra.mxu0 0.0
    %4041 = vmatprep.subr.mxu0 0.0
    %4042 = vmatpush1.msra.mxu0 0.0
    %4043 = vmatprep.subr.mxu0 0.0
    %4044 = vmatpush1.msra.mxu0 0.0
    %4045 = vmatprep.subr.mxu0 0.0
    %4046 = vmatpush1.msra.mxu0 0.0
    %4047 = vmatprep.subr.mxu0 0.0
    %4048 = vmatpush1.msra.mxu0 0.0
    %4049 = vmatprep.subr.mxu0 0.0
    %4050 = vmatpush1.msra.mxu0 0.0
    %4051 = vmatprep.subr.mxu0 0.0
    %4052 = vmatpush1.msra.mxu0 0.0
    %4053 = vmatprep.subr.mxu0 0.0
    %4054 = vmatpush1.msra.mxu0 0.0
    %4055 = vmatprep.subr.mxu0 0.0
    %4056 = vmatpush1.msra.mxu0 0.0
    %4057 = vmatprep.subr.mxu0 0.0
    %4058 = vmatpush1.msra.mxu0 0.0
    %4059 = vmatprep.subr.mxu0 0.0
    %4060 = vmatpush1.msra.mxu0 0.0
    %4061 = vmatprep.subr.mxu0 0.0
    %4062 = vmatpush1.msra.mxu0 0.0
    %4063 = vmatprep.subr.mxu0 0.0
    %4064 = vmatpush1.msra.mxu0 0.0
    %4065 = vmatprep.subr.mxu0 0.0
    %4066 = vmatpush1.msra.mxu0 0.0
    %4067 = vmatprep.subr.mxu0 0.0
    %4068 = vmatpush1.msra.mxu0 0.0
    %4069 = vmatprep.subr.mxu0 0.0
    %4070 = vmatpush1.msra.mxu0 0.0
    %4071 = vmatprep.subr.mxu0 0.0
    %4072 = vmatpush1.msra.mxu0 0.0
    %4073 = vmatprep.subr.mxu0 0.0
    %4074 = vmatpush1.msra.mxu0 0.0
    %4075 = vmatprep.subr.mxu0 0.0
    %4076 = vmatpush1.msra.mxu0 0.0
    %4077 = vmatprep.subr.mxu0 0.0
    %4078 = vmatpush1.msra.mxu0 0.0
    %4079 = vmatprep.mubr.f32.mxu0 0.0
    %v4080 = vand.u32 %v3507, 4294901760
    %4081 = vmatmul.mubr.f32.gmra.mrb[0].mxu0 %v4080
    %v4082 = vpop.f32.mrb[0].mxu0
    %v4083 = vadd.f32 %v3998, %v4082
    %v4084 = vpop.f32.mrb[0].mxu0
    %4085 = vmatprep.mubr.f32.mxu0 0.0
    %v4086 = vand.u32 %v3510, 4294901760
    %4087 = vmatmul.mubr.f32.gmra.mrb[0].mxu0 %v4086
    %v4088 = vpop.f32.mrb[0].mxu0
    %v4089 = vadd.f32 %v4004, %v4088
    %v4090 = vpop.f32.mrb[0].mxu0
    %4091 = vdwg.mxu0
    %v4092 = vmul.f32 %v3442, %v3442
    %v4093 = vmul.f32 %v3448, %v3448
    %v4094 = vmul.f32 %v3454, %v3454
    %v4095 = vmul.f32 %v3460, %v3460
    %v4096 = vmul.f32 %v3466, %v3466
    %v4097 = vmul.f32 %v3472, %v3472
    %v4098 = vmul.f32 %v3478, %v3478
    %v4099 = vmul.f32 %v3484, %v3484
    %4100 = vmatprep.subr.mxu0 0.0
    %v4101 = vand.u32 %v4092, 4294901760
    %4102 = vmatpush1.msra.mxu0 %v4101
    %4103 = vmatprep.subr.mxu0 0.0
    %v4104 = vand.u32 %v4093, 4294901760
    %4105 = vmatpush1.msra.mxu0 %v4104
    %4106 = vmatprep.subr.mxu0 0.0
    %v4107 = vand.u32 %v4094, 4294901760
    %4108 = vmatpush1.msra.mxu0 %v4107
    %4109 = vmatprep.subr.mxu0 0.0
    %v4110 = vand.u32 %v4095, 4294901760
    %4111 = vmatpush1.msra.mxu0 %v4110
    %4112 = vmatprep.subr.mxu0 0.0
    %v4113 = vand.u32 %v4096, 4294901760
    %4114 = vmatpush1.msra.mxu0 %v4113
    %4115 = vmatprep.subr.mxu0 0.0
    %v4116 = vand.u32 %v4097, 4294901760
    %4117 = vmatpush1.msra.mxu0 %v4116
    %4118 = vmatprep.subr.mxu0 0.0
    %v4119 = vand.u32 %v4098, 4294901760
    %4120 = vmatpush1.msra.mxu0 %v4119
    %4121 = vmatprep.subr.mxu0 0.0
    %v4122 = vand.u32 %v4099, 4294901760
    %4123 = vmatpush1.msra.mxu0 %v4122
    %4124 = vmatprep.subr.mxu0 0.0
    %4125 = vmatpush1.msra.mxu0 0.0
    %4126 = vmatprep.subr.mxu0 0.0
    %4127 = vmatpush1.msra.mxu0 0.0
    %4128 = vmatprep.subr.mxu0 0.0
    %4129 = vmatpush1.msra.mxu0 0.0
    %4130 = vmatprep.subr.mxu0 0.0
    %4131 = vmatpush1.msra.mxu0 0.0
    %4132 = vmatprep.subr.mxu0 0.0
    %4133 = vmatpush1.msra.mxu0 0.0
    %4134 = vmatprep.subr.mxu0 0.0
    %4135 = vmatpush1.msra.mxu0 0.0
    %4136 = vmatprep.subr.mxu0 0.0
    %4137 = vmatpush1.msra.mxu0 0.0
    %4138 = vmatprep.subr.mxu0 0.0
    %4139 = vmatpush1.msra.mxu0 0.0
    %4140 = vmatprep.subr.mxu0 0.0
    %4141 = vmatpush1.msra.mxu0 0.0
    %4142 = vmatprep.subr.mxu0 0.0
    %4143 = vmatpush1.msra.mxu0 0.0
    %4144 = vmatprep.subr.mxu0 0.0
    %4145 = vmatpush1.msra.mxu0 0.0
    %4146 = vmatprep.subr.mxu0 0.0
    %4147 = vmatpush1.msra.mxu0 0.0
    %4148 = vmatprep.subr.mxu0 0.0
    %4149 = vmatpush1.msra.mxu0 0.0
    %4150 = vmatprep.subr.mxu0 0.0
    %4151 = vmatpush1.msra.mxu0 0.0
    %4152 = vmatprep.subr.mxu0 0.0
    %4153 = vmatpush1.msra.mxu0 0.0
    %4154 = vmatprep.subr.mxu0 0.0
    %4155 = vmatpush1.msra.mxu0 0.0
    %4156 = vmatprep.subr.mxu0 0.0
    %4157 = vmatpush1.msra.mxu0 0.0
    %4158 = vmatprep.subr.mxu0 0.0
    %4159 = vmatpush1.msra.mxu0 0.0
    %4160 = vmatprep.subr.mxu0 0.0
    %4161 = vmatpush1.msra.mxu0 0.0
    %4162 = vmatprep.subr.mxu0 0.0
    %4163 = vmatpush1.msra.mxu0 0.0
    %4164 = vmatprep.subr.mxu0 0.0
    %4165 = vmatpush1.msra.mxu0 0.0
    %4166 = vmatprep.subr.mxu0 0.0
    %4167 = vmatpush1.msra.mxu0 0.0
    %4168 = vmatprep.subr.mxu0 0.0
    %4169 = vmatpush1.msra.mxu0 0.0
    %4170 = vmatprep.subr.mxu0 0.0
    %4171 = vmatpush1.msra.mxu0 0.0
    %4172 = vmatprep.mubr.f32.mxu0 0.0
    %v4173 = vand.u32 %v3507, 4294901760
    %v4174 = vsub.f32 %v3507, %v4173
    %v4175 = vand.u32 %v4174, 4294901760
    %v4176 = vsub.f32 %v4174, %v4175
    %v4177 = vand.u32 %v4176, 4294901760
    %4178 = vmatmul.mubr.f32.gmra.mrb[0].mxu0 %v4177
    %v4179 = vpop.f32.mrb[0].mxu0
    %v4180 = vadd.f32 0.0, %v4179
    %v4181 = vpop.f32.mrb[0].mxu0
    %4182 = vmatprep.mubr.f32.mxu0 0.0
    %v4183 = vand.u32 %v3510, 4294901760
    %v4184 = vsub.f32 %v3510, %v4183
    %v4185 = vand.u32 %v4184, 4294901760
    %v4186 = vsub.f32 %v4184, %v4185
    %v4187 = vand.u32 %v4186, 4294901760
    %4188 = vmatmul.mubr.f32.gmra.mrb[0].mxu0 %v4187
    %v4189 = vpop.f32.mrb[0].mxu0
    %v4190 = vadd.f32 0.0, %v4189
    %v4191 = vpop.f32.mrb[0].mxu0
    %4192 = vdwg.mxu0
    %4193 = vmatprep.subr.mxu0 0.0
    %v4194 = vand.u32 %v4092, 4294901760
    %v4195 = vsub.f32 %v4092, %v4194
    %v4196 = vand.u32 %v4195, 4294901760
    %v4197 = vsub.f32 %v4195, %v4196
    %v4198 = vand.u32 %v4197, 4294901760
    %4199 = vmatpush1.msra.mxu0 %v4198
    %4200 = vmatprep.subr.mxu0 0.0
    %v4201 = vand.u32 %v4093, 4294901760
    %v4202 = vsub.f32 %v4093, %v4201
    %v4203 = vand.u32 %v4202, 4294901760
    %v4204 = vsub.f32 %v4202, %v4203
    %v4205 = vand.u32 %v4204, 4294901760
    %4206 = vmatpush1.msra.mxu0 %v4205
    %4207 = vmatprep.subr.mxu0 0.0
    %v4208 = vand.u32 %v4094, 4294901760
    %v4209 = vsub.f32 %v4094, %v4208
    %v4210 = vand.u32 %v4209, 4294901760
    %v4211 = vsub.f32 %v4209, %v4210
    %v4212 = vand.u32 %v4211, 4294901760
    %4213 = vmatpush1.msra.mxu0 %v4212
    %4214 = vmatprep.subr.mxu0 0.0
    %v4215 = vand.u32 %v4095, 4294901760
    %v4216 = vsub.f32 %v4095, %v4215
    %v4217 = vand.u32 %v4216, 4294901760
    %v4218 = vsub.f32 %v4216, %v4217
    %v4219 = vand.u32 %v4218, 4294901760
    %4220 = vmatpush1.msra.mxu0 %v4219
    %4221 = vmatprep.subr.mxu0 0.0
    %v4222 = vand.u32 %v4096, 4294901760
    %v4223 = vsub.f32 %v4096, %v4222
    %v4224 = vand.u32 %v4223, 4294901760
    %v4225 = vsub.f32 %v4223, %v4224
    %v4226 = vand.u32 %v4225, 4294901760
    %4227 = vmatpush1.msra.mxu0 %v4226
    %4228 = vmatprep.subr.mxu0 0.0
    %v4229 = vand.u32 %v4097, 4294901760
    %v4230 = vsub.f32 %v4097, %v4229
    %v4231 = vand.u32 %v4230, 4294901760
    %v4232 = vsub.f32 %v4230, %v4231
    %v4233 = vand.u32 %v4232, 4294901760
    %4234 = vmatpush1.msra.mxu0 %v4233
    %4235 = vmatprep.subr.mxu0 0.0
    %v4236 = vand.u32 %v4098, 4294901760
    %v4237 = vsub.f32 %v4098, %v4236
    %v4238 = vand.u32 %v4237, 4294901760
    %v4239 = vsub.f32 %v4237, %v4238
    %v4240 = vand.u32 %v4239, 4294901760
    %4241 = vmatpush1.msra.mxu0 %v4240
    %4242 = vmatprep.subr.mxu0 0.0
    %v4243 = vand.u32 %v4099, 4294901760
    %v4244 = vsub.f32 %v4099, %v4243
    %v4245 = vand.u32 %v4244, 4294901760
    %v4246 = vsub.f32 %v4244, %v4245
    %v4247 = vand.u32 %v4246, 4294901760
    %4248 = vmatpush1.msra.mxu0 %v4247
    %4249 = vmatprep.subr.mxu0 0.0
    %4250 = vmatpush1.msra.mxu0 0.0
    %4251 = vmatprep.subr.mxu0 0.0
    %4252 = vmatpush1.msra.mxu0 0.0
    %4253 = vmatprep.subr.mxu0 0.0
    %4254 = vmatpush1.msra.mxu0 0.0
    %4255 = vmatprep.subr.mxu0 0.0
    %4256 = vmatpush1.msra.mxu0 0.0
    %4257 = vmatprep.subr.mxu0 0.0
    %4258 = vmatpush1.msra.mxu0 0.0
    %4259 = vmatprep.subr.mxu0 0.0
    %4260 = vmatpush1.msra.mxu0 0.0
    %4261 = vmatprep.subr.mxu0 0.0
    %4262 = vmatpush1.msra.mxu0 0.0
    %4263 = vmatprep.subr.mxu0 0.0
    %4264 = vmatpush1.msra.mxu0 0.0
    %4265 = vmatprep.subr.mxu0 0.0
    %4266 = vmatpush1.msra.mxu0 0.0
    %4267 = vmatprep.subr.mxu0 0.0
    %4268 = vmatpush1.msra.mxu0 0.0
    %4269 = vmatprep.subr.mxu0 0.0
    %4270 = vmatpush1.msra.mxu0 0.0
    %4271 = vmatprep.subr.mxu0 0.0
    %4272 = vmatpush1.msra.mxu0 0.0
    %4273 = vmatprep.subr.mxu0 0.0
    %4274 = vmatpush1.msra.mxu0 0.0
    %4275 = vmatprep.subr.mxu0 0.0
    %4276 = vmatpush1.msra.mxu0 0.0
    %4277 = vmatprep.subr.mxu0 0.0
    %4278 = vmatpush1.msra.mxu0 0.0
    %4279 = vmatprep.subr.mxu0 0.0
    %4280 = vmatpush1.msra.mxu0 0.0
    %4281 = vmatprep.subr.mxu0 0.0
    %4282 = vmatpush1.msra.mxu0 0.0
    %4283 = vmatprep.subr.mxu0 0.0
    %4284 = vmatpush1.msra.mxu0 0.0
    %4285 = vmatprep.subr.mxu0 0.0
    %4286 = vmatpush1.msra.mxu0 0.0
    %4287 = vmatprep.subr.mxu0 0.0
    %4288 = vmatpush1.msra.mxu0 0.0
    %4289 = vmatprep.subr.mxu0 0.0
    %4290 = vmatpush1.msra.mxu0 0.0
    %4291 = vmatprep.subr.mxu0 0.0
    %4292 = vmatpush1.msra.mxu0 0.0
    %4293 = vmatprep.subr.mxu0 0.0
    %4294 = vmatpush1.msra.mxu0 0.0
    %4295 = vmatprep.subr.mxu0 0.0
    %4296 = vmatpush1.msra.mxu0 0.0
    %4297 = vmatprep.mubr.f32.mxu0 0.0
    %v4298 = vand.u32 %v3507, 4294901760
    %4299 = vmatmul.mubr.f32.gmra.mrb[0].mxu0 %v4298
    %v4300 = vpop.f32.mrb[0].mxu0
    %v4301 = vadd.f32 %v4180, %v4300
    %v4302 = vpop.f32.mrb[0].mxu0
    %4303 = vmatprep.mubr.f32.mxu0 0.0
    %v4304 = vand.u32 %v3510, 4294901760
    %4305 = vmatmul.mubr.f32.gmra.mrb[0].mxu0 %v4304
    %v4306 = vpop.f32.mrb[0].mxu0
    %v4307 = vadd.f32 %v4190, %v4306
    %v4308 = vpop.f32.mrb[0].mxu0
    %4309 = vdwg.mxu0
    %4310 = vmatprep.subr.mxu0 0.0
    %v4311 = vand.u32 %v4092, 4294901760
    %v4312 = vsub.f32 %v4092, %v4311
    %4313 = vmatpush1.msra.mxu0 %v4312
    %4314 = vmatprep.subr.mxu0 0.0
    %v4315 = vand.u32 %v4093, 4294901760
    %v4316 = vsub.f32 %v4093, %v4315
    %4317 = vmatpush1.msra.mxu0 %v4316
    %4318 = vmatprep.subr.mxu0 0.0
    %v4319 = vand.u32 %v4094, 4294901760
    %v4320 = vsub.f32 %v4094, %v4319
    %4321 = vmatpush1.msra.mxu0 %v4320
    %4322 = vmatprep.subr.mxu0 0.0
    %v4323 = vand.u32 %v4095, 4294901760
    %v4324 = vsub.f32 %v4095, %v4323
    %4325 = vmatpush1.msra.mxu0 %v4324
    %4326 = vmatprep.subr.mxu0 0.0
    %v4327 = vand.u32 %v4096, 4294901760
    %v4328 = vsub.f32 %v4096, %v4327
    %4329 = vmatpush1.msra.mxu0 %v4328
    %4330 = vmatprep.subr.mxu0 0.0
    %v4331 = vand.u32 %v4097, 4294901760
    %v4332 = vsub.f32 %v4097, %v4331
    %4333 = vmatpush1.msra.mxu0 %v4332
    %4334 = vmatprep.subr.mxu0 0.0
    %v4335 = vand.u32 %v4098, 4294901760
    %v4336 = vsub.f32 %v4098, %v4335
    %4337 = vmatpush1.msra.mxu0 %v4336
    %4338 = vmatprep.subr.mxu0 0.0
    %v4339 = vand.u32 %v4099, 4294901760
    %v4340 = vsub.f32 %v4099, %v4339
    %4341 = vmatpush1.msra.mxu0 %v4340
    %4342 = vmatprep.subr.mxu0 0.0
    %4343 = vmatpush1.msra.mxu0 0.0
    %4344 = vmatprep.subr.mxu0 0.0
    %4345 = vmatpush1.msra.mxu0 0.0
    %4346 = vmatprep.subr.mxu0 0.0
    %4347 = vmatpush1.msra.mxu0 0.0
    %4348 = vmatprep.subr.mxu0 0.0
    %4349 = vmatpush1.msra.mxu0 0.0
    %4350 = vmatprep.subr.mxu0 0.0
    %4351 = vmatpush1.msra.mxu0 0.0
    %4352 = vmatprep.subr.mxu0 0.0
    %4353 = vmatpush1.msra.mxu0 0.0
    %4354 = vmatprep.subr.mxu0 0.0
    %4355 = vmatpush1.msra.mxu0 0.0
    %4356 = vmatprep.subr.mxu0 0.0
    %4357 = vmatpush1.msra.mxu0 0.0
    %4358 = vmatprep.subr.mxu0 0.0
    %4359 = vmatpush1.msra.mxu0 0.0
    %4360 = vmatprep.subr.mxu0 0.0
    %4361 = vmatpush1.msra.mxu0 0.0
    %4362 = vmatprep.subr.mxu0 0.0
    %4363 = vmatpush1.msra.mxu0 0.0
    %4364 = vmatprep.subr.mxu0 0.0
    %4365 = vmatpush1.msra.mxu0 0.0
    %4366 = vmatprep.subr.mxu0 0.0
    %4367 = vmatpush1.msra.mxu0 0.0
    %4368 = vmatprep.subr.mxu0 0.0
    %4369 = vmatpush1.msra.mxu0 0.0
    %4370 = vmatprep.subr.mxu0 0.0
    %4371 = vmatpush1.msra.mxu0 0.0
    %4372 = vmatprep.subr.mxu0 0.0
    %4373 = vmatpush1.msra.mxu0 0.0
    %4374 = vmatprep.subr.mxu0 0.0
    %4375 = vmatpush1.msra.mxu0 0.0
    %4376 = vmatprep.subr.mxu0 0.0
    %4377 = vmatpush1.msra.mxu0 0.0
    %4378 = vmatprep.subr.mxu0 0.0
    %4379 = vmatpush1.msra.mxu0 0.0
    %4380 = vmatprep.subr.mxu0 0.0
    %4381 = vmatpush1.msra.mxu0 0.0
    %4382 = vmatprep.subr.mxu0 0.0
    %4383 = vmatpush1.msra.mxu0 0.0
    %4384 = vmatprep.subr.mxu0 0.0
    %4385 = vmatpush1.msra.mxu0 0.0
    %4386 = vmatprep.subr.mxu0 0.0
    %4387 = vmatpush1.msra.mxu0 0.0
    %4388 = vmatprep.subr.mxu0 0.0
    %4389 = vmatpush1.msra.mxu0 0.0
    %4390 = vmatprep.mubr.f32.mxu0 0.0
    %v4391 = vand.u32 %v3507, 4294901760
    %v4392 = vsub.f32 %v3507, %v4391
    %4393 = vmatmul.mubr.f32.gmra.mrb[0].mxu0 %v4392
    %v4394 = vpop.f32.mrb[0].mxu0
    %v4395 = vadd.f32 %v4301, %v4394
    %v4396 = vpop.f32.mrb[0].mxu0
    %4397 = vmatprep.mubr.f32.mxu0 0.0
    %v4398 = vand.u32 %v3510, 4294901760
    %v4399 = vsub.f32 %v3510, %v4398
    %4400 = vmatmul.mubr.f32.gmra.mrb[0].mxu0 %v4399
    %v4401 = vpop.f32.mrb[0].mxu0
    %v4402 = vadd.f32 %v4307, %v4401
    %v4403 = vpop.f32.mrb[0].mxu0
    %4404 = vdwg.mxu0
    %4405 = vmatprep.subr.mxu0 0.0
    %v4406 = vand.u32 %v4092, 4294901760
    %4407 = vmatpush1.msra.mxu0 %v4406
    %4408 = vmatprep.subr.mxu0 0.0
    %v4409 = vand.u32 %v4093, 4294901760
    %4410 = vmatpush1.msra.mxu0 %v4409
    %4411 = vmatprep.subr.mxu0 0.0
    %v4412 = vand.u32 %v4094, 4294901760
    %4413 = vmatpush1.msra.mxu0 %v4412
    %4414 = vmatprep.subr.mxu0 0.0
    %v4415 = vand.u32 %v4095, 4294901760
    %4416 = vmatpush1.msra.mxu0 %v4415
    %4417 = vmatprep.subr.mxu0 0.0
    %v4418 = vand.u32 %v4096, 4294901760
    %4419 = vmatpush1.msra.mxu0 %v4418
    %4420 = vmatprep.subr.mxu0 0.0
    %v4421 = vand.u32 %v4097, 4294901760
    %4422 = vmatpush1.msra.mxu0 %v4421
    %4423 = vmatprep.subr.mxu0 0.0
    %v4424 = vand.u32 %v4098, 4294901760
    %4425 = vmatpush1.msra.mxu0 %v4424
    %4426 = vmatprep.subr.mxu0 0.0
    %v4427 = vand.u32 %v4099, 4294901760
    %4428 = vmatpush1.msra.mxu0 %v4427
    %4429 = vmatprep.subr.mxu0 0.0
    %4430 = vmatpush1.msra.mxu0 0.0
    %4431 = vmatprep.subr.mxu0 0.0
    %4432 = vmatpush1.msra.mxu0 0.0
    %4433 = vmatprep.subr.mxu0 0.0
    %4434 = vmatpush1.msra.mxu0 0.0
    %4435 = vmatprep.subr.mxu0 0.0
    %4436 = vmatpush1.msra.mxu0 0.0
    %4437 = vmatprep.subr.mxu0 0.0
    %4438 = vmatpush1.msra.mxu0 0.0
    %4439 = vmatprep.subr.mxu0 0.0
    %4440 = vmatpush1.msra.mxu0 0.0
    %4441 = vmatprep.subr.mxu0 0.0
    %4442 = vmatpush1.msra.mxu0 0.0
    %4443 = vmatprep.subr.mxu0 0.0
    %4444 = vmatpush1.msra.mxu0 0.0
    %4445 = vmatprep.subr.mxu0 0.0
    %4446 = vmatpush1.msra.mxu0 0.0
    %4447 = vmatprep.subr.mxu0 0.0
    %4448 = vmatpush1.msra.mxu0 0.0
    %4449 = vmatprep.subr.mxu0 0.0
    %4450 = vmatpush1.msra.mxu0 0.0
    %4451 = vmatprep.subr.mxu0 0.0
    %4452 = vmatpush1.msra.mxu0 0.0
    %4453 = vmatprep.subr.mxu0 0.0
    %4454 = vmatpush1.msra.mxu0 0.0
    %4455 = vmatprep.subr.mxu0 0.0
    %4456 = vmatpush1.msra.mxu0 0.0
    %4457 = vmatprep.subr.mxu0 0.0
    %4458 = vmatpush1.msra.mxu0 0.0
    %4459 = vmatprep.subr.mxu0 0.0
    %4460 = vmatpush1.msra.mxu0 0.0
    %4461 = vmatprep.subr.mxu0 0.0
    %4462 = vmatpush1.msra.mxu0 0.0
    %4463 = vmatprep.subr.mxu0 0.0
    %4464 = vmatpush1.msra.mxu0 0.0
    %4465 = vmatprep.subr.mxu0 0.0
    %4466 = vmatpush1.msra.mxu0 0.0
    %4467 = vmatprep.subr.mxu0 0.0
    %4468 = vmatpush1.msra.mxu0 0.0
    %4469 = vmatprep.subr.mxu0 0.0
    %4470 = vmatpush1.msra.mxu0 0.0
    %4471 = vmatprep.subr.mxu0 0.0
    %4472 = vmatpush1.msra.mxu0 0.0
    %4473 = vmatprep.subr.mxu0 0.0
    %4474 = vmatpush1.msra.mxu0 0.0
    %4475 = vmatprep.subr.mxu0 0.0
    %4476 = vmatpush1.msra.mxu0 0.0
    %4477 = vmatprep.mubr.f32.mxu0 0.0
    %v4478 = vand.u32 %v3507, 4294901760
    %v4479 = vsub.f32 %v3507, %v4478
    %v4480 = vand.u32 %v4479, 4294901760
    %4481 = vmatmul.mubr.f32.gmra.mrb[0].mxu0 %v4480
    %v4482 = vpop.f32.mrb[0].mxu0
    %v4483 = vadd.f32 %v4395, %v4482
    %v4484 = vpop.f32.mrb[0].mxu0
    %4485 = vmatprep.mubr.f32.mxu0 0.0
    %v4486 = vand.u32 %v3510, 4294901760
    %v4487 = vsub.f32 %v3510, %v4486
    %v4488 = vand.u32 %v4487, 4294901760
    %4489 = vmatmul.mubr.f32.gmra.mrb[0].mxu0 %v4488
    %v4490 = vpop.f32.mrb[0].mxu0
    %v4491 = vadd.f32 %v4402, %v4490
    %v4492 = vpop.f32.mrb[0].mxu0
    %4493 = vdwg.mxu0
    %4494 = vmatprep.subr.mxu0 0.0
    %v4495 = vand.u32 %v4092, 4294901760
    %v4496 = vsub.f32 %v4092, %v4495
    %v4497 = vand.u32 %v4496, 4294901760
    %4498 = vmatpush1.msra.mxu0 %v4497
    %4499 = vmatprep.subr.mxu0 0.0
    %v4500 = vand.u32 %v4093, 4294901760
    %v4501 = vsub.f32 %v4093, %v4500
    %v4502 = vand.u32 %v4501, 4294901760
    %4503 = vmatpush1.msra.mxu0 %v4502
    %4504 = vmatprep.subr.mxu0 0.0
    %v4505 = vand.u32 %v4094, 4294901760
    %v4506 = vsub.f32 %v4094, %v4505
    %v4507 = vand.u32 %v4506, 4294901760
    %4508 = vmatpush1.msra.mxu0 %v4507
    %4509 = vmatprep.subr.mxu0 0.0
    %v4510 = vand.u32 %v4095, 4294901760
    %v4511 = vsub.f32 %v4095, %v4510
    %v4512 = vand.u32 %v4511, 4294901760
    %4513 = vmatpush1.msra.mxu0 %v4512
    %4514 = vmatprep.subr.mxu0 0.0
    %v4515 = vand.u32 %v4096, 4294901760
    %v4516 = vsub.f32 %v4096, %v4515
    %v4517 = vand.u32 %v4516, 4294901760
    %4518 = vmatpush1.msra.mxu0 %v4517
    %4519 = vmatprep.subr.mxu0 0.0
    %v4520 = vand.u32 %v4097, 4294901760
    %v4521 = vsub.f32 %v4097, %v4520
    %v4522 = vand.u32 %v4521, 4294901760
    %4523 = vmatpush1.msra.mxu0 %v4522
    %4524 = vmatprep.subr.mxu0 0.0
    %v4525 = vand.u32 %v4098, 4294901760
    %v4526 = vsub.f32 %v4098, %v4525
    %v4527 = vand.u32 %v4526, 4294901760
    %4528 = vmatpush1.msra.mxu0 %v4527
    %4529 = vmatprep.subr.mxu0 0.0
    %v4530 = vand.u32 %v4099, 4294901760
    %v4531 = vsub.f32 %v4099, %v4530
    %v4532 = vand.u32 %v4531, 4294901760
    %4533 = vmatpush1.msra.mxu0 %v4532
    %4534 = vmatprep.subr.mxu0 0.0
    %4535 = vmatpush1.msra.mxu0 0.0
    %4536 = vmatprep.subr.mxu0 0.0
    %4537 = vmatpush1.msra.mxu0 0.0
    %4538 = vmatprep.subr.mxu0 0.0
    %4539 = vmatpush1.msra.mxu0 0.0
    %4540 = vmatprep.subr.mxu0 0.0
    %4541 = vmatpush1.msra.mxu0 0.0
    %4542 = vmatprep.subr.mxu0 0.0
    %4543 = vmatpush1.msra.mxu0 0.0
    %4544 = vmatprep.subr.mxu0 0.0
    %4545 = vmatpush1.msra.mxu0 0.0
    %4546 = vmatprep.subr.mxu0 0.0
    %4547 = vmatpush1.msra.mxu0 0.0
    %4548 = vmatprep.subr.mxu0 0.0
    %4549 = vmatpush1.msra.mxu0 0.0
    %4550 = vmatprep.subr.mxu0 0.0
    %4551 = vmatpush1.msra.mxu0 0.0
    %4552 = vmatprep.subr.mxu0 0.0
    %4553 = vmatpush1.msra.mxu0 0.0
    %4554 = vmatprep.subr.mxu0 0.0
    %4555 = vmatpush1.msra.mxu0 0.0
    %4556 = vmatprep.subr.mxu0 0.0
    %4557 = vmatpush1.msra.mxu0 0.0
    %4558 = vmatprep.subr.mxu0 0.0
    %4559 = vmatpush1.msra.mxu0 0.0
    %4560 = vmatprep.subr.mxu0 0.0
    %4561 = vmatpush1.msra.mxu0 0.0
    %4562 = vmatprep.subr.mxu0 0.0
    %4563 = vmatpush1.msra.mxu0 0.0
    %4564 = vmatprep.subr.mxu0 0.0
    %4565 = vmatpush1.msra.mxu0 0.0
    %4566 = vmatprep.subr.mxu0 0.0
    %4567 = vmatpush1.msra.mxu0 0.0
    %4568 = vmatprep.subr.mxu0 0.0
    %4569 = vmatpush1.msra.mxu0 0.0
    %4570 = vmatprep.subr.mxu0 0.0
    %4571 = vmatpush1.msra.mxu0 0.0
    %4572 = vmatprep.subr.mxu0 0.0
    %4573 = vmatpush1.msra.mxu0 0.0
    %4574 = vmatprep.subr.mxu0 0.0
    %4575 = vmatpush1.msra.mxu0 0.0
    %4576 = vmatprep.subr.mxu0 0.0
    %4577 = vmatpush1.msra.mxu0 0.0
    %4578 = vmatprep.subr.mxu0 0.0
    %4579 = vmatpush1.msra.mxu0 0.0
    %4580 = vmatprep.subr.mxu0 0.0
    %4581 = vmatpush1.msra.mxu0 0.0
    %4582 = vmatprep.mubr.f32.mxu0 0.0
    %v4583 = vand.u32 %v3507, 4294901760
    %4584 = vmatmul.mubr.f32.gmra.mrb[0].mxu0 %v4583
    %v4585 = vpop.f32.mrb[0].mxu0
    %v4586 = vadd.f32 %v4483, %v4585
    %v4587 = vpop.f32.mrb[0].mxu0
    %4588 = vmatprep.mubr.f32.mxu0 0.0
    %v4589 = vand.u32 %v3510, 4294901760
    %4590 = vmatmul.mubr.f32.gmra.mrb[0].mxu0 %v4589
    %v4591 = vpop.f32.mrb[0].mxu0
    %v4592 = vadd.f32 %v4491, %v4591
    %v4593 = vpop.f32.mrb[0].mxu0
    %4594 = vdwg.mxu0
    %4595 = vmatprep.subr.mxu0 0.0
    %v4596 = vand.u32 %v4092, 4294901760
    %4597 = vmatpush1.msra.mxu0 %v4596
    %4598 = vmatprep.subr.mxu0 0.0
    %v4599 = vand.u32 %v4093, 4294901760
    %4600 = vmatpush1.msra.mxu0 %v4599
    %4601 = vmatprep.subr.mxu0 0.0
    %v4602 = vand.u32 %v4094, 4294901760
    %4603 = vmatpush1.msra.mxu0 %v4602
    %4604 = vmatprep.subr.mxu0 0.0
    %v4605 = vand.u32 %v4095, 4294901760
    %4606 = vmatpush1.msra.mxu0 %v4605
    %4607 = vmatprep.subr.mxu0 0.0
    %v4608 = vand.u32 %v4096, 4294901760
    %4609 = vmatpush1.msra.mxu0 %v4608
    %4610 = vmatprep.subr.mxu0 0.0
    %v4611 = vand.u32 %v4097, 4294901760
    %4612 = vmatpush1.msra.mxu0 %v4611
    %4613 = vmatprep.subr.mxu0 0.0
    %v4614 = vand.u32 %v4098, 4294901760
    %4615 = vmatpush1.msra.mxu0 %v4614
    %4616 = vmatprep.subr.mxu0 0.0
    %v4617 = vand.u32 %v4099, 4294901760
    %4618 = vmatpush1.msra.mxu0 %v4617
    %4619 = vmatprep.subr.mxu0 0.0
    %4620 = vmatpush1.msra.mxu0 0.0
    %4621 = vmatprep.subr.mxu0 0.0
    %4622 = vmatpush1.msra.mxu0 0.0
    %4623 = vmatprep.subr.mxu0 0.0
    %4624 = vmatpush1.msra.mxu0 0.0
    %4625 = vmatprep.subr.mxu0 0.0
    %4626 = vmatpush1.msra.mxu0 0.0
    %4627 = vmatprep.subr.mxu0 0.0
    %4628 = vmatpush1.msra.mxu0 0.0
    %4629 = vmatprep.subr.mxu0 0.0
    %4630 = vmatpush1.msra.mxu0 0.0
    %4631 = vmatprep.subr.mxu0 0.0
    %4632 = vmatpush1.msra.mxu0 0.0
    %4633 = vmatprep.subr.mxu0 0.0
    %4634 = vmatpush1.msra.mxu0 0.0
    %4635 = vmatprep.subr.mxu0 0.0
    %4636 = vmatpush1.msra.mxu0 0.0
    %4637 = vmatprep.subr.mxu0 0.0
    %4638 = vmatpush1.msra.mxu0 0.0
    %4639 = vmatprep.subr.mxu0 0.0
    %4640 = vmatpush1.msra.mxu0 0.0
    %4641 = vmatprep.subr.mxu0 0.0
    %4642 = vmatpush1.msra.mxu0 0.0
    %4643 = vmatprep.subr.mxu0 0.0
    %4644 = vmatpush1.msra.mxu0 0.0
    %4645 = vmatprep.subr.mxu0 0.0
    %4646 = vmatpush1.msra.mxu0 0.0
    %4647 = vmatprep.subr.mxu0 0.0
    %4648 = vmatpush1.msra.mxu0 0.0
    %4649 = vmatprep.subr.mxu0 0.0
    %4650 = vmatpush1.msra.mxu0 0.0
    %4651 = vmatprep.subr.mxu0 0.0
    %4652 = vmatpush1.msra.mxu0 0.0
    %4653 = vmatprep.subr.mxu0 0.0
    %4654 = vmatpush1.msra.mxu0 0.0
    %4655 = vmatprep.subr.mxu0 0.0
    %4656 = vmatpush1.msra.mxu0 0.0
    %4657 = vmatprep.subr.mxu0 0.0
    %4658 = vmatpush1.msra.mxu0 0.0
    %4659 = vmatprep.subr.mxu0 0.0
    %4660 = vmatpush1.msra.mxu0 0.0
    %4661 = vmatprep.subr.mxu0 0.0
    %4662 = vmatpush1.msra.mxu0 0.0
    %4663 = vmatprep.subr.mxu0 0.0
    %4664 = vmatpush1.msra.mxu0 0.0
    %4665 = vmatprep.subr.mxu0 0.0
    %4666 = vmatpush1.msra.mxu0 0.0
    %4667 = vmatprep.mubr.f32.mxu0 0.0
    %v4668 = vand.u32 %v3507, 4294901760
    %4669 = vmatmul.mubr.f32.gmra.mrb[0].mxu0 %v4668
    %v4670 = vpop.f32.mrb[0].mxu0
    %v4671 = vadd.f32 %v4586, %v4670
    %v4672 = vpop.f32.mrb[0].mxu0
    %4673 = vmatprep.mubr.f32.mxu0 0.0
    %v4674 = vand.u32 %v3510, 4294901760
    %4675 = vmatmul.mubr.f32.gmra.mrb[0].mxu0 %v4674
    %v4676 = vpop.f32.mrb[0].mxu0
    %v4677 = vadd.f32 %v4592, %v4676
    %v4678 = vpop.f32.mrb[0].mxu0
    %4679 = vdwg.mxu0
    %v4680 = vmul.f32 %v4083, 0.25
    %v4681 = vmul.f32 %v4089, 0.25
    %v4682 = vmul.f32 %v4671, 0.25
    %v4683 = vmul.f32 %v4677, 0.25
    %v4684 = vmul.f32 %v4680, %v4680
    %v4685 = vmul.f32 %v4681, %v4681
    %v4686 = vsub.f32 %v4682, %v4684
    %v4687 = vsub.f32 %v4683, %v4685
    %v4688 = vmax.f32 %v4686, 0.0
    %v4689 = vmax.f32 %v4687, 0.0
    %v4690 = vadd.f32 %v4688, 1e-05
    %v4691 = vadd.f32 %v4689, 1e-05
    %v4692 = vrsqrt.pop %v4690
    %v4693 = vrsqrt.pop %v4691
    %v4694 = vsub.f32 0.0, %v4680
    %v4695 = vsub.f32 0.0, %v4681
    %v4696 = vmul.f32 %v4694, %v4692
    %v4697 = vmul.f32 %v4695, %v4693
    %v4699 = vsel %vm704, %v3489, 0
    %v4702 = vsel %vm704, %v3490, 0
    %v4705 = vsel %vm704, %v3491, 0
    %v4708 = vsel %vm704, %v3492, 0
    %v4711 = vsel %vm704, %v3493, 0
    %v4714 = vsel %vm704, %v3494, 0
    %v4717 = vsel %vm704, %v3495, 0
    %v4720 = vsel %vm704, %v3496, 0
    %4722 = vmatprep.subr.mxu0 0.0
    %v4723 = vand.u32 %v4692, 4294901760
    %4724 = vmatpush1.msra.mxu0 %v4723
    %4725 = vmatprep.subr.mxu0 0.0
    %v4726 = vand.u32 %v4693, 4294901760
    %4727 = vmatpush1.msra.mxu0 %v4726
    %4728 = vmatprep.subr.mxu0 0.0
    %4729 = vmatpush1.msra.mxu0 0.0
    %4730 = vmatprep.subr.mxu0 0.0
    %4731 = vmatpush1.msra.mxu0 0.0
    %4732 = vmatprep.subr.mxu0 0.0
    %4733 = vmatpush1.msra.mxu0 0.0
    %4734 = vmatprep.subr.mxu0 0.0
    %4735 = vmatpush1.msra.mxu0 0.0
    %4736 = vmatprep.subr.mxu0 0.0
    %4737 = vmatpush1.msra.mxu0 0.0
    %4738 = vmatprep.subr.mxu0 0.0
    %4739 = vmatpush1.msra.mxu0 0.0
    %4740 = vmatprep.subr.mxu0 0.0
    %4741 = vmatpush1.msra.mxu0 0.0
    %4742 = vmatprep.subr.mxu0 0.0
    %4743 = vmatpush1.msra.mxu0 0.0
    %4744 = vmatprep.subr.mxu0 0.0
    %4745 = vmatpush1.msra.mxu0 0.0
    %4746 = vmatprep.subr.mxu0 0.0
    %4747 = vmatpush1.msra.mxu0 0.0
    %4748 = vmatprep.subr.mxu0 0.0
    %4749 = vmatpush1.msra.mxu0 0.0
    %4750 = vmatprep.subr.mxu0 0.0
    %4751 = vmatpush1.msra.mxu0 0.0
    %4752 = vmatprep.subr.mxu0 0.0
    %4753 = vmatpush1.msra.mxu0 0.0
    %4754 = vmatprep.subr.mxu0 0.0
    %4755 = vmatpush1.msra.mxu0 0.0
    %4756 = vmatprep.subr.mxu0 0.0
    %4757 = vmatpush1.msra.mxu0 0.0
    %4758 = vmatprep.subr.mxu0 0.0
    %4759 = vmatpush1.msra.mxu0 0.0
    %4760 = vmatprep.subr.mxu0 0.0
    %4761 = vmatpush1.msra.mxu0 0.0
    %4762 = vmatprep.subr.mxu0 0.0
    %4763 = vmatpush1.msra.mxu0 0.0
    %4764 = vmatprep.subr.mxu0 0.0
    %4765 = vmatpush1.msra.mxu0 0.0
    %4766 = vmatprep.subr.mxu0 0.0
    %4767 = vmatpush1.msra.mxu0 0.0
    %4768 = vmatprep.subr.mxu0 0.0
    %4769 = vmatpush1.msra.mxu0 0.0
    %4770 = vmatprep.subr.mxu0 0.0
    %4771 = vmatpush1.msra.mxu0 0.0
    %4772 = vmatprep.subr.mxu0 0.0
    %4773 = vmatpush1.msra.mxu0 0.0
    %4774 = vmatprep.subr.mxu0 0.0
    %4775 = vmatpush1.msra.mxu0 0.0
    %4776 = vmatprep.subr.mxu0 0.0
    %4777 = vmatpush1.msra.mxu0 0.0
    %4778 = vmatprep.subr.mxu0 0.0
    %4779 = vmatpush1.msra.mxu0 0.0
    %4780 = vmatprep.subr.mxu0 0.0
    %4781 = vmatpush1.msra.mxu0 0.0
    %4782 = vmatprep.subr.mxu0 0.0
    %4783 = vmatpush1.msra.mxu0 0.0
    %4784 = vmatprep.subr.mxu0 0.0
    %4785 = vmatpush1.msra.mxu0 0.0
    %4786 = vmatprep.subr.mxu0 0.0
    %4787 = vmatpush1.msra.mxu0 0.0
    %4788 = vmatprep.mubr.f32.mxu0 0.0
    %v4789 = vand.u32 %v4699, 4294901760
    %v4790 = vsub.f32 %v4699, %v4789
    %v4791 = vand.u32 %v4790, 4294901760
    %v4792 = vsub.f32 %v4790, %v4791
    %v4793 = vand.u32 %v4792, 4294901760
    %4794 = vmatmul.mubr.f32.gmra.mrb[0].mxu0 %v4793
    %v4795 = vpop.f32.mrb[0].mxu0
    %v4796 = vadd.f32 0.0, %v4795
    %v4797 = vpop.f32.mrb[0].mxu0
    %4798 = vmatprep.mubr.f32.mxu0 0.0
    %v4799 = vand.u32 %v4702, 4294901760
    %v4800 = vsub.f32 %v4702, %v4799
    %v4801 = vand.u32 %v4800, 4294901760
    %v4802 = vsub.f32 %v4800, %v4801
    %v4803 = vand.u32 %v4802, 4294901760
    %4804 = vmatmul.mubr.f32.gmra.mrb[0].mxu0 %v4803
    %v4805 = vpop.f32.mrb[0].mxu0
    %v4806 = vadd.f32 0.0, %v4805
    %v4807 = vpop.f32.mrb[0].mxu0
    %4808 = vmatprep.mubr.f32.mxu0 0.0
    %v4809 = vand.u32 %v4705, 4294901760
    %v4810 = vsub.f32 %v4705, %v4809
    %v4811 = vand.u32 %v4810, 4294901760
    %v4812 = vsub.f32 %v4810, %v4811
    %v4813 = vand.u32 %v4812, 4294901760
    %4814 = vmatmul.mubr.f32.gmra.mrb[0].mxu0 %v4813
    %v4815 = vpop.f32.mrb[0].mxu0
    %v4816 = vadd.f32 0.0, %v4815
    %v4817 = vpop.f32.mrb[0].mxu0
    %4818 = vmatprep.mubr.f32.mxu0 0.0
    %v4819 = vand.u32 %v4708, 4294901760
    %v4820 = vsub.f32 %v4708, %v4819
    %v4821 = vand.u32 %v4820, 4294901760
    %v4822 = vsub.f32 %v4820, %v4821
    %v4823 = vand.u32 %v4822, 4294901760
    %4824 = vmatmul.mubr.f32.gmra.mrb[0].mxu0 %v4823
    %v4825 = vpop.f32.mrb[0].mxu0
    %v4826 = vadd.f32 0.0, %v4825
    %v4827 = vpop.f32.mrb[0].mxu0
    %4828 = vmatprep.mubr.f32.mxu0 0.0
    %v4829 = vand.u32 %v4711, 4294901760
    %v4830 = vsub.f32 %v4711, %v4829
    %v4831 = vand.u32 %v4830, 4294901760
    %v4832 = vsub.f32 %v4830, %v4831
    %v4833 = vand.u32 %v4832, 4294901760
    %4834 = vmatmul.mubr.f32.gmra.mrb[0].mxu0 %v4833
    %v4835 = vpop.f32.mrb[0].mxu0
    %v4836 = vadd.f32 0.0, %v4835
    %v4837 = vpop.f32.mrb[0].mxu0
    %4838 = vmatprep.mubr.f32.mxu0 0.0
    %v4839 = vand.u32 %v4714, 4294901760
    %v4840 = vsub.f32 %v4714, %v4839
    %v4841 = vand.u32 %v4840, 4294901760
    %v4842 = vsub.f32 %v4840, %v4841
    %v4843 = vand.u32 %v4842, 4294901760
    %4844 = vmatmul.mubr.f32.gmra.mrb[0].mxu0 %v4843
    %v4845 = vpop.f32.mrb[0].mxu0
    %v4846 = vadd.f32 0.0, %v4845
    %v4847 = vpop.f32.mrb[0].mxu0
    %4848 = vmatprep.mubr.f32.mxu0 0.0
    %v4849 = vand.u32 %v4717, 4294901760
    %v4850 = vsub.f32 %v4717, %v4849
    %v4851 = vand.u32 %v4850, 4294901760
    %v4852 = vsub.f32 %v4850, %v4851
    %v4853 = vand.u32 %v4852, 4294901760
    %4854 = vmatmul.mubr.f32.gmra.mrb[0].mxu0 %v4853
    %v4855 = vpop.f32.mrb[0].mxu0
    %v4856 = vadd.f32 0.0, %v4855
    %v4857 = vpop.f32.mrb[0].mxu0
    %4858 = vmatprep.mubr.f32.mxu0 0.0
    %v4859 = vand.u32 %v4720, 4294901760
    %v4860 = vsub.f32 %v4720, %v4859
    %v4861 = vand.u32 %v4860, 4294901760
    %v4862 = vsub.f32 %v4860, %v4861
    %v4863 = vand.u32 %v4862, 4294901760
    %4864 = vmatmul.mubr.f32.gmra.mrb[0].mxu0 %v4863
    %v4865 = vpop.f32.mrb[0].mxu0
    %v4866 = vadd.f32 0.0, %v4865
    %v4867 = vpop.f32.mrb[0].mxu0
    %4868 = vdwg.mxu0
    %4869 = vmatprep.subr.mxu0 0.0
    %v4870 = vand.u32 %v4692, 4294901760
    %v4871 = vsub.f32 %v4692, %v4870
    %v4872 = vand.u32 %v4871, 4294901760
    %v4873 = vsub.f32 %v4871, %v4872
    %v4874 = vand.u32 %v4873, 4294901760
    %4875 = vmatpush1.msra.mxu0 %v4874
    %4876 = vmatprep.subr.mxu0 0.0
    %v4877 = vand.u32 %v4693, 4294901760
    %v4878 = vsub.f32 %v4693, %v4877
    %v4879 = vand.u32 %v4878, 4294901760
    %v4880 = vsub.f32 %v4878, %v4879
    %v4881 = vand.u32 %v4880, 4294901760
    %4882 = vmatpush1.msra.mxu0 %v4881
    %4883 = vmatprep.subr.mxu0 0.0
    %4884 = vmatpush1.msra.mxu0 0.0
    %4885 = vmatprep.subr.mxu0 0.0
    %4886 = vmatpush1.msra.mxu0 0.0
    %4887 = vmatprep.subr.mxu0 0.0
    %4888 = vmatpush1.msra.mxu0 0.0
    %4889 = vmatprep.subr.mxu0 0.0
    %4890 = vmatpush1.msra.mxu0 0.0
    %4891 = vmatprep.subr.mxu0 0.0
    %4892 = vmatpush1.msra.mxu0 0.0
    %4893 = vmatprep.subr.mxu0 0.0
    %4894 = vmatpush1.msra.mxu0 0.0
    %4895 = vmatprep.subr.mxu0 0.0
    %4896 = vmatpush1.msra.mxu0 0.0
    %4897 = vmatprep.subr.mxu0 0.0
    %4898 = vmatpush1.msra.mxu0 0.0
    %4899 = vmatprep.subr.mxu0 0.0
    %4900 = vmatpush1.msra.mxu0 0.0
    %4901 = vmatprep.subr.mxu0 0.0
    %4902 = vmatpush1.msra.mxu0 0.0
    %4903 = vmatprep.subr.mxu0 0.0
    %4904 = vmatpush1.msra.mxu0 0.0
    %4905 = vmatprep.subr.mxu0 0.0
    %4906 = vmatpush1.msra.mxu0 0.0
    %4907 = vmatprep.subr.mxu0 0.0
    %4908 = vmatpush1.msra.mxu0 0.0
    %4909 = vmatprep.subr.mxu0 0.0
    %4910 = vmatpush1.msra.mxu0 0.0
    %4911 = vmatprep.subr.mxu0 0.0
    %4912 = vmatpush1.msra.mxu0 0.0
    %4913 = vmatprep.subr.mxu0 0.0
    %4914 = vmatpush1.msra.mxu0 0.0
    %4915 = vmatprep.subr.mxu0 0.0
    %4916 = vmatpush1.msra.mxu0 0.0
    %4917 = vmatprep.subr.mxu0 0.0
    %4918 = vmatpush1.msra.mxu0 0.0
    %4919 = vmatprep.subr.mxu0 0.0
    %4920 = vmatpush1.msra.mxu0 0.0
    %4921 = vmatprep.subr.mxu0 0.0
    %4922 = vmatpush1.msra.mxu0 0.0
    %4923 = vmatprep.subr.mxu0 0.0
    %4924 = vmatpush1.msra.mxu0 0.0
    %4925 = vmatprep.subr.mxu0 0.0
    %4926 = vmatpush1.msra.mxu0 0.0
    %4927 = vmatprep.subr.mxu0 0.0
    %4928 = vmatpush1.msra.mxu0 0.0
    %4929 = vmatprep.subr.mxu0 0.0
    %4930 = vmatpush1.msra.mxu0 0.0
    %4931 = vmatprep.subr.mxu0 0.0
    %4932 = vmatpush1.msra.mxu0 0.0
    %4933 = vmatprep.subr.mxu0 0.0
    %4934 = vmatpush1.msra.mxu0 0.0
    %4935 = vmatprep.subr.mxu0 0.0
    %4936 = vmatpush1.msra.mxu0 0.0
    %4937 = vmatprep.subr.mxu0 0.0
    %4938 = vmatpush1.msra.mxu0 0.0
    %4939 = vmatprep.subr.mxu0 0.0
    %4940 = vmatpush1.msra.mxu0 0.0
    %4941 = vmatprep.subr.mxu0 0.0
    %4942 = vmatpush1.msra.mxu0 0.0
    %4943 = vmatprep.mubr.f32.mxu0 0.0
    %v4944 = vand.u32 %v4699, 4294901760
    %4945 = vmatmul.mubr.f32.gmra.mrb[0].mxu0 %v4944
    %v4946 = vpop.f32.mrb[0].mxu0
    %v4947 = vadd.f32 %v4796, %v4946
    %v4948 = vpop.f32.mrb[0].mxu0
    %4949 = vmatprep.mubr.f32.mxu0 0.0
    %v4950 = vand.u32 %v4702, 4294901760
    %4951 = vmatmul.mubr.f32.gmra.mrb[0].mxu0 %v4950
    %v4952 = vpop.f32.mrb[0].mxu0
    %v4953 = vadd.f32 %v4806, %v4952
    %v4954 = vpop.f32.mrb[0].mxu0
    %4955 = vmatprep.mubr.f32.mxu0 0.0
    %v4956 = vand.u32 %v4705, 4294901760
    %4957 = vmatmul.mubr.f32.gmra.mrb[0].mxu0 %v4956
    %v4958 = vpop.f32.mrb[0].mxu0
    %v4959 = vadd.f32 %v4816, %v4958
    %v4960 = vpop.f32.mrb[0].mxu0
    %4961 = vmatprep.mubr.f32.mxu0 0.0
    %v4962 = vand.u32 %v4708, 4294901760
    %4963 = vmatmul.mubr.f32.gmra.mrb[0].mxu0 %v4962
    %v4964 = vpop.f32.mrb[0].mxu0
    %v4965 = vadd.f32 %v4826, %v4964
    %v4966 = vpop.f32.mrb[0].mxu0
    %4967 = vmatprep.mubr.f32.mxu0 0.0
    %v4968 = vand.u32 %v4711, 4294901760
    %4969 = vmatmul.mubr.f32.gmra.mrb[0].mxu0 %v4968
    %v4970 = vpop.f32.mrb[0].mxu0
    %v4971 = vadd.f32 %v4836, %v4970
    %v4972 = vpop.f32.mrb[0].mxu0
    %4973 = vmatprep.mubr.f32.mxu0 0.0
    %v4974 = vand.u32 %v4714, 4294901760
    %4975 = vmatmul.mubr.f32.gmra.mrb[0].mxu0 %v4974
    %v4976 = vpop.f32.mrb[0].mxu0
    %v4977 = vadd.f32 %v4846, %v4976
    %v4978 = vpop.f32.mrb[0].mxu0
    %4979 = vmatprep.mubr.f32.mxu0 0.0
    %v4980 = vand.u32 %v4717, 4294901760
    %4981 = vmatmul.mubr.f32.gmra.mrb[0].mxu0 %v4980
    %v4982 = vpop.f32.mrb[0].mxu0
    %v4983 = vadd.f32 %v4856, %v4982
    %v4984 = vpop.f32.mrb[0].mxu0
    %4985 = vmatprep.mubr.f32.mxu0 0.0
    %v4986 = vand.u32 %v4720, 4294901760
    %4987 = vmatmul.mubr.f32.gmra.mrb[0].mxu0 %v4986
    %v4988 = vpop.f32.mrb[0].mxu0
    %v4989 = vadd.f32 %v4866, %v4988
    %v4990 = vpop.f32.mrb[0].mxu0
    %4991 = vdwg.mxu0
    %4992 = vmatprep.subr.mxu0 0.0
    %v4993 = vand.u32 %v4692, 4294901760
    %v4994 = vsub.f32 %v4692, %v4993
    %4995 = vmatpush1.msra.mxu0 %v4994
    %4996 = vmatprep.subr.mxu0 0.0
    %v4997 = vand.u32 %v4693, 4294901760
    %v4998 = vsub.f32 %v4693, %v4997
    %4999 = vmatpush1.msra.mxu0 %v4998
    %5000 = vmatprep.subr.mxu0 0.0
    %5001 = vmatpush1.msra.mxu0 0.0
    %5002 = vmatprep.subr.mxu0 0.0
    %5003 = vmatpush1.msra.mxu0 0.0
    %5004 = vmatprep.subr.mxu0 0.0
    %5005 = vmatpush1.msra.mxu0 0.0
    %5006 = vmatprep.subr.mxu0 0.0
    %5007 = vmatpush1.msra.mxu0 0.0
    %5008 = vmatprep.subr.mxu0 0.0
    %5009 = vmatpush1.msra.mxu0 0.0
    %5010 = vmatprep.subr.mxu0 0.0
    %5011 = vmatpush1.msra.mxu0 0.0
    %5012 = vmatprep.subr.mxu0 0.0
    %5013 = vmatpush1.msra.mxu0 0.0
    %5014 = vmatprep.subr.mxu0 0.0
    %5015 = vmatpush1.msra.mxu0 0.0
    %5016 = vmatprep.subr.mxu0 0.0
    %5017 = vmatpush1.msra.mxu0 0.0
    %5018 = vmatprep.subr.mxu0 0.0
    %5019 = vmatpush1.msra.mxu0 0.0
    %5020 = vmatprep.subr.mxu0 0.0
    %5021 = vmatpush1.msra.mxu0 0.0
    %5022 = vmatprep.subr.mxu0 0.0
    %5023 = vmatpush1.msra.mxu0 0.0
    %5024 = vmatprep.subr.mxu0 0.0
    %5025 = vmatpush1.msra.mxu0 0.0
    %5026 = vmatprep.subr.mxu0 0.0
    %5027 = vmatpush1.msra.mxu0 0.0
    %5028 = vmatprep.subr.mxu0 0.0
    %5029 = vmatpush1.msra.mxu0 0.0
    %5030 = vmatprep.subr.mxu0 0.0
    %5031 = vmatpush1.msra.mxu0 0.0
    %5032 = vmatprep.subr.mxu0 0.0
    %5033 = vmatpush1.msra.mxu0 0.0
    %5034 = vmatprep.subr.mxu0 0.0
    %5035 = vmatpush1.msra.mxu0 0.0
    %5036 = vmatprep.subr.mxu0 0.0
    %5037 = vmatpush1.msra.mxu0 0.0
    %5038 = vmatprep.subr.mxu0 0.0
    %5039 = vmatpush1.msra.mxu0 0.0
    %5040 = vmatprep.subr.mxu0 0.0
    %5041 = vmatpush1.msra.mxu0 0.0
    %5042 = vmatprep.subr.mxu0 0.0
    %5043 = vmatpush1.msra.mxu0 0.0
    %5044 = vmatprep.subr.mxu0 0.0
    %5045 = vmatpush1.msra.mxu0 0.0
    %5046 = vmatprep.subr.mxu0 0.0
    %5047 = vmatpush1.msra.mxu0 0.0
    %5048 = vmatprep.subr.mxu0 0.0
    %5049 = vmatpush1.msra.mxu0 0.0
    %5050 = vmatprep.subr.mxu0 0.0
    %5051 = vmatpush1.msra.mxu0 0.0
    %5052 = vmatprep.subr.mxu0 0.0
    %5053 = vmatpush1.msra.mxu0 0.0
    %5054 = vmatprep.subr.mxu0 0.0
    %5055 = vmatpush1.msra.mxu0 0.0
    %5056 = vmatprep.subr.mxu0 0.0
    %5057 = vmatpush1.msra.mxu0 0.0
    %5058 = vmatprep.subr.mxu0 0.0
    %5059 = vmatpush1.msra.mxu0 0.0
    %5060 = vmatprep.mubr.f32.mxu0 0.0
    %v5061 = vand.u32 %v4699, 4294901760
    %v5062 = vsub.f32 %v4699, %v5061
    %5063 = vmatmul.mubr.f32.gmra.mrb[0].mxu0 %v5062
    %v5064 = vpop.f32.mrb[0].mxu0
    %v5065 = vadd.f32 %v4947, %v5064
    %v5066 = vpop.f32.mrb[0].mxu0
    %5067 = vmatprep.mubr.f32.mxu0 0.0
    %v5068 = vand.u32 %v4702, 4294901760
    %v5069 = vsub.f32 %v4702, %v5068
    %5070 = vmatmul.mubr.f32.gmra.mrb[0].mxu0 %v5069
    %v5071 = vpop.f32.mrb[0].mxu0
    %v5072 = vadd.f32 %v4953, %v5071
    %v5073 = vpop.f32.mrb[0].mxu0
    %5074 = vmatprep.mubr.f32.mxu0 0.0
    %v5075 = vand.u32 %v4705, 4294901760
    %v5076 = vsub.f32 %v4705, %v5075
    %5077 = vmatmul.mubr.f32.gmra.mrb[0].mxu0 %v5076
    %v5078 = vpop.f32.mrb[0].mxu0
    %v5079 = vadd.f32 %v4959, %v5078
    %v5080 = vpop.f32.mrb[0].mxu0
    %5081 = vmatprep.mubr.f32.mxu0 0.0
    %v5082 = vand.u32 %v4708, 4294901760
    %v5083 = vsub.f32 %v4708, %v5082
    %5084 = vmatmul.mubr.f32.gmra.mrb[0].mxu0 %v5083
    %v5085 = vpop.f32.mrb[0].mxu0
    %v5086 = vadd.f32 %v4965, %v5085
    %v5087 = vpop.f32.mrb[0].mxu0
    %5088 = vmatprep.mubr.f32.mxu0 0.0
    %v5089 = vand.u32 %v4711, 4294901760
    %v5090 = vsub.f32 %v4711, %v5089
    %5091 = vmatmul.mubr.f32.gmra.mrb[0].mxu0 %v5090
    %v5092 = vpop.f32.mrb[0].mxu0
    %v5093 = vadd.f32 %v4971, %v5092
    %v5094 = vpop.f32.mrb[0].mxu0
    %5095 = vmatprep.mubr.f32.mxu0 0.0
    %v5096 = vand.u32 %v4714, 4294901760
    %v5097 = vsub.f32 %v4714, %v5096
    %5098 = vmatmul.mubr.f32.gmra.mrb[0].mxu0 %v5097
    %v5099 = vpop.f32.mrb[0].mxu0
    %v5100 = vadd.f32 %v4977, %v5099
    %v5101 = vpop.f32.mrb[0].mxu0
    %5102 = vmatprep.mubr.f32.mxu0 0.0
    %v5103 = vand.u32 %v4717, 4294901760
    %v5104 = vsub.f32 %v4717, %v5103
    %5105 = vmatmul.mubr.f32.gmra.mrb[0].mxu0 %v5104
    %v5106 = vpop.f32.mrb[0].mxu0
    %v5107 = vadd.f32 %v4983, %v5106
    %v5108 = vpop.f32.mrb[0].mxu0
    %5109 = vmatprep.mubr.f32.mxu0 0.0
    %v5110 = vand.u32 %v4720, 4294901760
    %v5111 = vsub.f32 %v4720, %v5110
    %5112 = vmatmul.mubr.f32.gmra.mrb[0].mxu0 %v5111
    %v5113 = vpop.f32.mrb[0].mxu0
    %v5114 = vadd.f32 %v4989, %v5113
    %v5115 = vpop.f32.mrb[0].mxu0
    %5116 = vdwg.mxu0
    %5117 = vmatprep.subr.mxu0 0.0
    %v5118 = vand.u32 %v4692, 4294901760
    %5119 = vmatpush1.msra.mxu0 %v5118
    %5120 = vmatprep.subr.mxu0 0.0
    %v5121 = vand.u32 %v4693, 4294901760
    %5122 = vmatpush1.msra.mxu0 %v5121
    %5123 = vmatprep.subr.mxu0 0.0
    %5124 = vmatpush1.msra.mxu0 0.0
    %5125 = vmatprep.subr.mxu0 0.0
    %5126 = vmatpush1.msra.mxu0 0.0
    %5127 = vmatprep.subr.mxu0 0.0
    %5128 = vmatpush1.msra.mxu0 0.0
    %5129 = vmatprep.subr.mxu0 0.0
    %5130 = vmatpush1.msra.mxu0 0.0
    %5131 = vmatprep.subr.mxu0 0.0
    %5132 = vmatpush1.msra.mxu0 0.0
    %5133 = vmatprep.subr.mxu0 0.0
    %5134 = vmatpush1.msra.mxu0 0.0
    %5135 = vmatprep.subr.mxu0 0.0
    %5136 = vmatpush1.msra.mxu0 0.0
    %5137 = vmatprep.subr.mxu0 0.0
    %5138 = vmatpush1.msra.mxu0 0.0
    %5139 = vmatprep.subr.mxu0 0.0
    %5140 = vmatpush1.msra.mxu0 0.0
    %5141 = vmatprep.subr.mxu0 0.0
    %5142 = vmatpush1.msra.mxu0 0.0
    %5143 = vmatprep.subr.mxu0 0.0
    %5144 = vmatpush1.msra.mxu0 0.0
    %5145 = vmatprep.subr.mxu0 0.0
    %5146 = vmatpush1.msra.mxu0 0.0
    %5147 = vmatprep.subr.mxu0 0.0
    %5148 = vmatpush1.msra.mxu0 0.0
    %5149 = vmatprep.subr.mxu0 0.0
    %5150 = vmatpush1.msra.mxu0 0.0
    %5151 = vmatprep.subr.mxu0 0.0
    %5152 = vmatpush1.msra.mxu0 0.0
    %5153 = vmatprep.subr.mxu0 0.0
    %5154 = vmatpush1.msra.mxu0 0.0
    %5155 = vmatprep.subr.mxu0 0.0
    %5156 = vmatpush1.msra.mxu0 0.0
    %5157 = vmatprep.subr.mxu0 0.0
    %5158 = vmatpush1.msra.mxu0 0.0
    %5159 = vmatprep.subr.mxu0 0.0
    %5160 = vmatpush1.msra.mxu0 0.0
    %5161 = vmatprep.subr.mxu0 0.0
    %5162 = vmatpush1.msra.mxu0 0.0
    %5163 = vmatprep.subr.mxu0 0.0
    %5164 = vmatpush1.msra.mxu0 0.0
    %5165 = vmatprep.subr.mxu0 0.0
    %5166 = vmatpush1.msra.mxu0 0.0
    %5167 = vmatprep.subr.mxu0 0.0
    %5168 = vmatpush1.msra.mxu0 0.0
    %5169 = vmatprep.subr.mxu0 0.0
    %5170 = vmatpush1.msra.mxu0 0.0
    %5171 = vmatprep.subr.mxu0 0.0
    %5172 = vmatpush1.msra.mxu0 0.0
    %5173 = vmatprep.subr.mxu0 0.0
    %5174 = vmatpush1.msra.mxu0 0.0
    %5175 = vmatprep.subr.mxu0 0.0
    %5176 = vmatpush1.msra.mxu0 0.0
    %5177 = vmatprep.subr.mxu0 0.0
    %5178 = vmatpush1.msra.mxu0 0.0
    %5179 = vmatprep.subr.mxu0 0.0
    %5180 = vmatpush1.msra.mxu0 0.0
    %5181 = vmatprep.subr.mxu0 0.0
    %5182 = vmatpush1.msra.mxu0 0.0
    %5183 = vmatprep.mubr.f32.mxu0 0.0
    %v5184 = vand.u32 %v4699, 4294901760
    %v5185 = vsub.f32 %v4699, %v5184
    %v5186 = vand.u32 %v5185, 4294901760
    %5187 = vmatmul.mubr.f32.gmra.mrb[0].mxu0 %v5186
    %v5188 = vpop.f32.mrb[0].mxu0
    %v5189 = vadd.f32 %v5065, %v5188
    %v5190 = vpop.f32.mrb[0].mxu0
    %5191 = vmatprep.mubr.f32.mxu0 0.0
    %v5192 = vand.u32 %v4702, 4294901760
    %v5193 = vsub.f32 %v4702, %v5192
    %v5194 = vand.u32 %v5193, 4294901760
    %5195 = vmatmul.mubr.f32.gmra.mrb[0].mxu0 %v5194
    %v5196 = vpop.f32.mrb[0].mxu0
    %v5197 = vadd.f32 %v5072, %v5196
    %v5198 = vpop.f32.mrb[0].mxu0
    %5199 = vmatprep.mubr.f32.mxu0 0.0
    %v5200 = vand.u32 %v4705, 4294901760
    %v5201 = vsub.f32 %v4705, %v5200
    %v5202 = vand.u32 %v5201, 4294901760
    %5203 = vmatmul.mubr.f32.gmra.mrb[0].mxu0 %v5202
    %v5204 = vpop.f32.mrb[0].mxu0
    %v5205 = vadd.f32 %v5079, %v5204
    %v5206 = vpop.f32.mrb[0].mxu0
    %5207 = vmatprep.mubr.f32.mxu0 0.0
    %v5208 = vand.u32 %v4708, 4294901760
    %v5209 = vsub.f32 %v4708, %v5208
    %v5210 = vand.u32 %v5209, 4294901760
    %5211 = vmatmul.mubr.f32.gmra.mrb[0].mxu0 %v5210
    %v5212 = vpop.f32.mrb[0].mxu0
    %v5213 = vadd.f32 %v5086, %v5212
    %v5214 = vpop.f32.mrb[0].mxu0
    %5215 = vmatprep.mubr.f32.mxu0 0.0
    %v5216 = vand.u32 %v4711, 4294901760
    %v5217 = vsub.f32 %v4711, %v5216
    %v5218 = vand.u32 %v5217, 4294901760
    %5219 = vmatmul.mubr.f32.gmra.mrb[0].mxu0 %v5218
    %v5220 = vpop.f32.mrb[0].mxu0
    %v5221 = vadd.f32 %v5093, %v5220
    %v5222 = vpop.f32.mrb[0].mxu0
    %5223 = vmatprep.mubr.f32.mxu0 0.0
    %v5224 = vand.u32 %v4714, 4294901760
    %v5225 = vsub.f32 %v4714, %v5224
    %v5226 = vand.u32 %v5225, 4294901760
    %5227 = vmatmul.mubr.f32.gmra.mrb[0].mxu0 %v5226
    %v5228 = vpop.f32.mrb[0].mxu0
    %v5229 = vadd.f32 %v5100, %v5228
    %v5230 = vpop.f32.mrb[0].mxu0
    %5231 = vmatprep.mubr.f32.mxu0 0.0
    %v5232 = vand.u32 %v4717, 4294901760
    %v5233 = vsub.f32 %v4717, %v5232
    %v5234 = vand.u32 %v5233, 4294901760
    %5235 = vmatmul.mubr.f32.gmra.mrb[0].mxu0 %v5234
    %v5236 = vpop.f32.mrb[0].mxu0
    %v5237 = vadd.f32 %v5107, %v5236
    %v5238 = vpop.f32.mrb[0].mxu0
    %5239 = vmatprep.mubr.f32.mxu0 0.0
    %v5240 = vand.u32 %v4720, 4294901760
    %v5241 = vsub.f32 %v4720, %v5240
    %v5242 = vand.u32 %v5241, 4294901760
    %5243 = vmatmul.mubr.f32.gmra.mrb[0].mxu0 %v5242
    %v5244 = vpop.f32.mrb[0].mxu0
    %v5245 = vadd.f32 %v5114, %v5244
    %v5246 = vpop.f32.mrb[0].mxu0
    %5247 = vdwg.mxu0
    %5248 = vmatprep.subr.mxu0 0.0
    %v5249 = vand.u32 %v4692, 4294901760
    %v5250 = vsub.f32 %v4692, %v5249
    %v5251 = vand.u32 %v5250, 4294901760
    %5252 = vmatpush1.msra.mxu0 %v5251
    %5253 = vmatprep.subr.mxu0 0.0
    %v5254 = vand.u32 %v4693, 4294901760
    %v5255 = vsub.f32 %v4693, %v5254
    %v5256 = vand.u32 %v5255, 4294901760
    %5257 = vmatpush1.msra.mxu0 %v5256
    %5258 = vmatprep.subr.mxu0 0.0
    %5259 = vmatpush1.msra.mxu0 0.0
    %5260 = vmatprep.subr.mxu0 0.0
    %5261 = vmatpush1.msra.mxu0 0.0
    %5262 = vmatprep.subr.mxu0 0.0
    %5263 = vmatpush1.msra.mxu0 0.0
    %5264 = vmatprep.subr.mxu0 0.0
    %5265 = vmatpush1.msra.mxu0 0.0
    %5266 = vmatprep.subr.mxu0 0.0
    %5267 = vmatpush1.msra.mxu0 0.0
    %5268 = vmatprep.subr.mxu0 0.0
    %5269 = vmatpush1.msra.mxu0 0.0
    %5270 = vmatprep.subr.mxu0 0.0
    %5271 = vmatpush1.msra.mxu0 0.0
    %5272 = vmatprep.subr.mxu0 0.0
    %5273 = vmatpush1.msra.mxu0 0.0
    %5274 = vmatprep.subr.mxu0 0.0
    %5275 = vmatpush1.msra.mxu0 0.0
    %5276 = vmatprep.subr.mxu0 0.0
    %5277 = vmatpush1.msra.mxu0 0.0
    %5278 = vmatprep.subr.mxu0 0.0
    %5279 = vmatpush1.msra.mxu0 0.0
    %5280 = vmatprep.subr.mxu0 0.0
    %5281 = vmatpush1.msra.mxu0 0.0
    %5282 = vmatprep.subr.mxu0 0.0
    %5283 = vmatpush1.msra.mxu0 0.0
    %5284 = vmatprep.subr.mxu0 0.0
    %5285 = vmatpush1.msra.mxu0 0.0
    %5286 = vmatprep.subr.mxu0 0.0
    %5287 = vmatpush1.msra.mxu0 0.0
    %5288 = vmatprep.subr.mxu0 0.0
    %5289 = vmatpush1.msra.mxu0 0.0
    %5290 = vmatprep.subr.mxu0 0.0
    %5291 = vmatpush1.msra.mxu0 0.0
    %5292 = vmatprep.subr.mxu0 0.0
    %5293 = vmatpush1.msra.mxu0 0.0
    %5294 = vmatprep.subr.mxu0 0.0
    %5295 = vmatpush1.msra.mxu0 0.0
    %5296 = vmatprep.subr.mxu0 0.0
    %5297 = vmatpush1.msra.mxu0 0.0
    %5298 = vmatprep.subr.mxu0 0.0
    %5299 = vmatpush1.msra.mxu0 0.0
    %5300 = vmatprep.subr.mxu0 0.0
    %5301 = vmatpush1.msra.mxu0 0.0
    %5302 = vmatprep.subr.mxu0 0.0
    %5303 = vmatpush1.msra.mxu0 0.0
    %5304 = vmatprep.subr.mxu0 0.0
    %5305 = vmatpush1.msra.mxu0 0.0
    %5306 = vmatprep.subr.mxu0 0.0
    %5307 = vmatpush1.msra.mxu0 0.0
    %5308 = vmatprep.subr.mxu0 0.0
    %5309 = vmatpush1.msra.mxu0 0.0
    %5310 = vmatprep.subr.mxu0 0.0
    %5311 = vmatpush1.msra.mxu0 0.0
    %5312 = vmatprep.subr.mxu0 0.0
    %5313 = vmatpush1.msra.mxu0 0.0
    %5314 = vmatprep.subr.mxu0 0.0
    %5315 = vmatpush1.msra.mxu0 0.0
    %5316 = vmatprep.subr.mxu0 0.0
    %5317 = vmatpush1.msra.mxu0 0.0
    %5318 = vmatprep.mubr.f32.mxu0 0.0
    %v5319 = vand.u32 %v4699, 4294901760
    %5320 = vmatmul.mubr.f32.gmra.mrb[0].mxu0 %v5319
    %v5321 = vpop.f32.mrb[0].mxu0
    %v5322 = vadd.f32 %v5189, %v5321
    %v5323 = vpop.f32.mrb[0].mxu0
    %5324 = vmatprep.mubr.f32.mxu0 0.0
    %v5325 = vand.u32 %v4702, 4294901760
    %5326 = vmatmul.mubr.f32.gmra.mrb[0].mxu0 %v5325
    %v5327 = vpop.f32.mrb[0].mxu0
    %v5328 = vadd.f32 %v5197, %v5327
    %v5329 = vpop.f32.mrb[0].mxu0
    %5330 = vmatprep.mubr.f32.mxu0 0.0
    %v5331 = vand.u32 %v4705, 4294901760
    %5332 = vmatmul.mubr.f32.gmra.mrb[0].mxu0 %v5331
    %v5333 = vpop.f32.mrb[0].mxu0
    %v5334 = vadd.f32 %v5205, %v5333
    %v5335 = vpop.f32.mrb[0].mxu0
    %5336 = vmatprep.mubr.f32.mxu0 0.0
    %v5337 = vand.u32 %v4708, 4294901760
    %5338 = vmatmul.mubr.f32.gmra.mrb[0].mxu0 %v5337
    %v5339 = vpop.f32.mrb[0].mxu0
    %v5340 = vadd.f32 %v5213, %v5339
    %v5341 = vpop.f32.mrb[0].mxu0
    %5342 = vmatprep.mubr.f32.mxu0 0.0
    %v5343 = vand.u32 %v4711, 4294901760
    %5344 = vmatmul.mubr.f32.gmra.mrb[0].mxu0 %v5343
    %v5345 = vpop.f32.mrb[0].mxu0
    %v5346 = vadd.f32 %v5221, %v5345
    %v5347 = vpop.f32.mrb[0].mxu0
    %5348 = vmatprep.mubr.f32.mxu0 0.0
    %v5349 = vand.u32 %v4714, 4294901760
    %5350 = vmatmul.mubr.f32.gmra.mrb[0].mxu0 %v5349
    %v5351 = vpop.f32.mrb[0].mxu0
    %v5352 = vadd.f32 %v5229, %v5351
    %v5353 = vpop.f32.mrb[0].mxu0
    %5354 = vmatprep.mubr.f32.mxu0 0.0
    %v5355 = vand.u32 %v4717, 4294901760
    %5356 = vmatmul.mubr.f32.gmra.mrb[0].mxu0 %v5355
    %v5357 = vpop.f32.mrb[0].mxu0
    %v5358 = vadd.f32 %v5237, %v5357
    %v5359 = vpop.f32.mrb[0].mxu0
    %5360 = vmatprep.mubr.f32.mxu0 0.0
    %v5361 = vand.u32 %v4720, 4294901760
    %5362 = vmatmul.mubr.f32.gmra.mrb[0].mxu0 %v5361
    %v5363 = vpop.f32.mrb[0].mxu0
    %v5364 = vadd.f32 %v5245, %v5363
    %v5365 = vpop.f32.mrb[0].mxu0
    %5366 = vdwg.mxu0
    %5367 = vmatprep.subr.mxu0 0.0
    %v5368 = vand.u32 %v4692, 4294901760
    %5369 = vmatpush1.msra.mxu0 %v5368
    %5370 = vmatprep.subr.mxu0 0.0
    %v5371 = vand.u32 %v4693, 4294901760
    %5372 = vmatpush1.msra.mxu0 %v5371
    %5373 = vmatprep.subr.mxu0 0.0
    %5374 = vmatpush1.msra.mxu0 0.0
    %5375 = vmatprep.subr.mxu0 0.0
    %5376 = vmatpush1.msra.mxu0 0.0
    %5377 = vmatprep.subr.mxu0 0.0
    %5378 = vmatpush1.msra.mxu0 0.0
    %5379 = vmatprep.subr.mxu0 0.0
    %5380 = vmatpush1.msra.mxu0 0.0
    %5381 = vmatprep.subr.mxu0 0.0
    %5382 = vmatpush1.msra.mxu0 0.0
    %5383 = vmatprep.subr.mxu0 0.0
    %5384 = vmatpush1.msra.mxu0 0.0
    %5385 = vmatprep.subr.mxu0 0.0
    %5386 = vmatpush1.msra.mxu0 0.0
    %5387 = vmatprep.subr.mxu0 0.0
    %5388 = vmatpush1.msra.mxu0 0.0
    %5389 = vmatprep.subr.mxu0 0.0
    %5390 = vmatpush1.msra.mxu0 0.0
    %5391 = vmatprep.subr.mxu0 0.0
    %5392 = vmatpush1.msra.mxu0 0.0
    %5393 = vmatprep.subr.mxu0 0.0
    %5394 = vmatpush1.msra.mxu0 0.0
    %5395 = vmatprep.subr.mxu0 0.0
    %5396 = vmatpush1.msra.mxu0 0.0
    %5397 = vmatprep.subr.mxu0 0.0
    %5398 = vmatpush1.msra.mxu0 0.0
    %5399 = vmatprep.subr.mxu0 0.0
    %5400 = vmatpush1.msra.mxu0 0.0
    %5401 = vmatprep.subr.mxu0 0.0
    %5402 = vmatpush1.msra.mxu0 0.0
    %5403 = vmatprep.subr.mxu0 0.0
    %5404 = vmatpush1.msra.mxu0 0.0
    %5405 = vmatprep.subr.mxu0 0.0
    %5406 = vmatpush1.msra.mxu0 0.0
    %5407 = vmatprep.subr.mxu0 0.0
    %5408 = vmatpush1.msra.mxu0 0.0
    %5409 = vmatprep.subr.mxu0 0.0
    %5410 = vmatpush1.msra.mxu0 0.0
    %5411 = vmatprep.subr.mxu0 0.0
    %5412 = vmatpush1.msra.mxu0 0.0
    %5413 = vmatprep.subr.mxu0 0.0
    %5414 = vmatpush1.msra.mxu0 0.0
    %5415 = vmatprep.subr.mxu0 0.0
    %5416 = vmatpush1.msra.mxu0 0.0
    %5417 = vmatprep.subr.mxu0 0.0
    %5418 = vmatpush1.msra.mxu0 0.0
    %5419 = vmatprep.subr.mxu0 0.0
    %5420 = vmatpush1.msra.mxu0 0.0
    %5421 = vmatprep.subr.mxu0 0.0
    %5422 = vmatpush1.msra.mxu0 0.0
    %5423 = vmatprep.subr.mxu0 0.0
    %5424 = vmatpush1.msra.mxu0 0.0
    %5425 = vmatprep.subr.mxu0 0.0
    %5426 = vmatpush1.msra.mxu0 0.0
    %5427 = vmatprep.subr.mxu0 0.0
    %5428 = vmatpush1.msra.mxu0 0.0
    %5429 = vmatprep.subr.mxu0 0.0
    %5430 = vmatpush1.msra.mxu0 0.0
    %5431 = vmatprep.subr.mxu0 0.0
    %5432 = vmatpush1.msra.mxu0 0.0
    %5433 = vmatprep.mubr.f32.mxu0 0.0
    %v5434 = vand.u32 %v4699, 4294901760
    %5435 = vmatmul.mubr.f32.gmra.mrb[0].mxu0 %v5434
    %v5436 = vpop.f32.mrb[0].mxu0
    %v5437 = vadd.f32 %v5322, %v5436
    %v5438 = vpop.f32.mrb[0].mxu0
    %5439 = vmatprep.mubr.f32.mxu0 0.0
    %v5440 = vand.u32 %v4702, 4294901760
    %5441 = vmatmul.mubr.f32.gmra.mrb[0].mxu0 %v5440
    %v5442 = vpop.f32.mrb[0].mxu0
    %v5443 = vadd.f32 %v5328, %v5442
    %v5444 = vpop.f32.mrb[0].mxu0
    %5445 = vmatprep.mubr.f32.mxu0 0.0
    %v5446 = vand.u32 %v4705, 4294901760
    %5447 = vmatmul.mubr.f32.gmra.mrb[0].mxu0 %v5446
    %v5448 = vpop.f32.mrb[0].mxu0
    %v5449 = vadd.f32 %v5334, %v5448
    %v5450 = vpop.f32.mrb[0].mxu0
    %5451 = vmatprep.mubr.f32.mxu0 0.0
    %v5452 = vand.u32 %v4708, 4294901760
    %5453 = vmatmul.mubr.f32.gmra.mrb[0].mxu0 %v5452
    %v5454 = vpop.f32.mrb[0].mxu0
    %v5455 = vadd.f32 %v5340, %v5454
    %v5456 = vpop.f32.mrb[0].mxu0
    %5457 = vmatprep.mubr.f32.mxu0 0.0
    %v5458 = vand.u32 %v4711, 4294901760
    %5459 = vmatmul.mubr.f32.gmra.mrb[0].mxu0 %v5458
    %v5460 = vpop.f32.mrb[0].mxu0
    %v5461 = vadd.f32 %v5346, %v5460
    %v5462 = vpop.f32.mrb[0].mxu0
    %5463 = vmatprep.mubr.f32.mxu0 0.0
    %v5464 = vand.u32 %v4714, 4294901760
    %5465 = vmatmul.mubr.f32.gmra.mrb[0].mxu0 %v5464
    %v5466 = vpop.f32.mrb[0].mxu0
    %v5467 = vadd.f32 %v5352, %v5466
    %v5468 = vpop.f32.mrb[0].mxu0
    %5469 = vmatprep.mubr.f32.mxu0 0.0
    %v5470 = vand.u32 %v4717, 4294901760
    %5471 = vmatmul.mubr.f32.gmra.mrb[0].mxu0 %v5470
    %v5472 = vpop.f32.mrb[0].mxu0
    %v5473 = vadd.f32 %v5358, %v5472
    %v5474 = vpop.f32.mrb[0].mxu0
    %5475 = vmatprep.mubr.f32.mxu0 0.0
    %v5476 = vand.u32 %v4720, 4294901760
    %5477 = vmatmul.mubr.f32.gmra.mrb[0].mxu0 %v5476
    %v5478 = vpop.f32.mrb[0].mxu0
    %v5479 = vadd.f32 %v5364, %v5478
    %v5480 = vpop.f32.mrb[0].mxu0
    %5481 = vdwg.mxu0
    %v5482 = vmul.f32 %v3442, %v5437
    %v5483 = vmul.f32 %v3448, %v5443
    %v5484 = vmul.f32 %v3454, %v5449
    %v5485 = vmul.f32 %v3460, %v5455
    %v5486 = vmul.f32 %v3466, %v5461
    %v5487 = vmul.f32 %v3472, %v5467
    %v5488 = vmul.f32 %v3478, %v5473
    %v5489 = vmul.f32 %v3484, %v5479
    %5491 = vset.pattern.permute.xlu0 0
    %5492 = vperm.xlu0 %5491, %v3497
    %v5493 = vpop.permute.xlu0 %5492
    %5496 = vset.pattern.permute.xlu0 0
    %5497 = vperm.xlu0 %5496, %v3498
    %v5498 = vpop.permute.xlu0 %5497
    %5501 = vset.pattern.permute.xlu0 0
    %5502 = vperm.xlu0 %5501, %v3499
    %v5503 = vpop.permute.xlu0 %5502
    %5506 = vset.pattern.permute.xlu0 0
    %5507 = vperm.xlu0 %5506, %v3500
    %v5508 = vpop.permute.xlu0 %5507
    %5511 = vset.pattern.permute.xlu0 0
    %5512 = vperm.xlu0 %5511, %v3501
    %v5513 = vpop.permute.xlu0 %5512
    %5516 = vset.pattern.permute.xlu0 0
    %5517 = vperm.xlu0 %5516, %v3502
    %v5518 = vpop.permute.xlu0 %5517
    %5521 = vset.pattern.permute.xlu0 0
    %5522 = vperm.xlu0 %5521, %v3503
    %v5523 = vpop.permute.xlu0 %5522
    %5526 = vset.pattern.permute.xlu0 0
    %5527 = vperm.xlu0 %5526, %v3504
    %v5528 = vpop.permute.xlu0 %5527
    %5530 = vmatprep.subr.mxu0 0.0
    %v5531 = vand.u32 %v4696, 4294901760
    %5532 = vmatpush1.msra.mxu0 %v5531
    %5533 = vmatprep.subr.mxu0 0.0
    %v5534 = vand.u32 %v4697, 4294901760
    %5535 = vmatpush1.msra.mxu0 %v5534
    %5536 = vmatprep.subr.mxu0 0.0
    %5537 = vmatpush1.msra.mxu0 0.0
    %5538 = vmatprep.subr.mxu0 0.0
    %5539 = vmatpush1.msra.mxu0 0.0
    %5540 = vmatprep.subr.mxu0 0.0
    %5541 = vmatpush1.msra.mxu0 0.0
    %5542 = vmatprep.subr.mxu0 0.0
    %5543 = vmatpush1.msra.mxu0 0.0
    %5544 = vmatprep.subr.mxu0 0.0
    %5545 = vmatpush1.msra.mxu0 0.0
    %5546 = vmatprep.subr.mxu0 0.0
    %5547 = vmatpush1.msra.mxu0 0.0
    %5548 = vmatprep.subr.mxu0 0.0
    %5549 = vmatpush1.msra.mxu0 0.0
    %5550 = vmatprep.subr.mxu0 0.0
    %5551 = vmatpush1.msra.mxu0 0.0
    %5552 = vmatprep.subr.mxu0 0.0
    %5553 = vmatpush1.msra.mxu0 0.0
    %5554 = vmatprep.subr.mxu0 0.0
    %5555 = vmatpush1.msra.mxu0 0.0
    %5556 = vmatprep.subr.mxu0 0.0
    %5557 = vmatpush1.msra.mxu0 0.0
    %5558 = vmatprep.subr.mxu0 0.0
    %5559 = vmatpush1.msra.mxu0 0.0
    %5560 = vmatprep.subr.mxu0 0.0
    %5561 = vmatpush1.msra.mxu0 0.0
    %5562 = vmatprep.subr.mxu0 0.0
    %5563 = vmatpush1.msra.mxu0 0.0
    %5564 = vmatprep.subr.mxu0 0.0
    %5565 = vmatpush1.msra.mxu0 0.0
    %5566 = vmatprep.subr.mxu0 0.0
    %5567 = vmatpush1.msra.mxu0 0.0
    %5568 = vmatprep.subr.mxu0 0.0
    %5569 = vmatpush1.msra.mxu0 0.0
    %5570 = vmatprep.subr.mxu0 0.0
    %5571 = vmatpush1.msra.mxu0 0.0
    %5572 = vmatprep.subr.mxu0 0.0
    %5573 = vmatpush1.msra.mxu0 0.0
    %5574 = vmatprep.subr.mxu0 0.0
    %5575 = vmatpush1.msra.mxu0 0.0
    %5576 = vmatprep.subr.mxu0 0.0
    %5577 = vmatpush1.msra.mxu0 0.0
    %5578 = vmatprep.subr.mxu0 0.0
    %5579 = vmatpush1.msra.mxu0 0.0
    %5580 = vmatprep.subr.mxu0 0.0
    %5581 = vmatpush1.msra.mxu0 0.0
    %5582 = vmatprep.subr.mxu0 0.0
    %5583 = vmatpush1.msra.mxu0 0.0
    %5584 = vmatprep.subr.mxu0 0.0
    %5585 = vmatpush1.msra.mxu0 0.0
    %5586 = vmatprep.subr.mxu0 0.0
    %5587 = vmatpush1.msra.mxu0 0.0
    %5588 = vmatprep.subr.mxu0 0.0
    %5589 = vmatpush1.msra.mxu0 0.0
    %5590 = vmatprep.subr.mxu0 0.0
    %5591 = vmatpush1.msra.mxu0 0.0
    %5592 = vmatprep.subr.mxu0 0.0
    %5593 = vmatpush1.msra.mxu0 0.0
    %5594 = vmatprep.subr.mxu0 0.0
    %5595 = vmatpush1.msra.mxu0 0.0
    %5596 = vmatprep.mubr.f32.mxu0 0.0
    %v5597 = vand.u32 %v4699, 4294901760
    %v5598 = vsub.f32 %v4699, %v5597
    %v5599 = vand.u32 %v5598, 4294901760
    %v5600 = vsub.f32 %v5598, %v5599
    %v5601 = vand.u32 %v5600, 4294901760
    %5602 = vmatmul.mubr.f32.gmra.mrb[0].mxu0 %v5601
    %v5603 = vpop.f32.mrb[0].mxu0
    %v5604 = vadd.f32 %v5493, %v5603
    %v5605 = vpop.f32.mrb[0].mxu0
    %5606 = vmatprep.mubr.f32.mxu0 0.0
    %v5607 = vand.u32 %v4702, 4294901760
    %v5608 = vsub.f32 %v4702, %v5607
    %v5609 = vand.u32 %v5608, 4294901760
    %v5610 = vsub.f32 %v5608, %v5609
    %v5611 = vand.u32 %v5610, 4294901760
    %5612 = vmatmul.mubr.f32.gmra.mrb[0].mxu0 %v5611
    %v5613 = vpop.f32.mrb[0].mxu0
    %v5614 = vadd.f32 %v5498, %v5613
    %v5615 = vpop.f32.mrb[0].mxu0
    %5616 = vmatprep.mubr.f32.mxu0 0.0
    %v5617 = vand.u32 %v4705, 4294901760
    %v5618 = vsub.f32 %v4705, %v5617
    %v5619 = vand.u32 %v5618, 4294901760
    %v5620 = vsub.f32 %v5618, %v5619
    %v5621 = vand.u32 %v5620, 4294901760
    %5622 = vmatmul.mubr.f32.gmra.mrb[0].mxu0 %v5621
    %v5623 = vpop.f32.mrb[0].mxu0
    %v5624 = vadd.f32 %v5503, %v5623
    %v5625 = vpop.f32.mrb[0].mxu0
    %5626 = vmatprep.mubr.f32.mxu0 0.0
    %v5627 = vand.u32 %v4708, 4294901760
    %v5628 = vsub.f32 %v4708, %v5627
    %v5629 = vand.u32 %v5628, 4294901760
    %v5630 = vsub.f32 %v5628, %v5629
    %v5631 = vand.u32 %v5630, 4294901760
    %5632 = vmatmul.mubr.f32.gmra.mrb[0].mxu0 %v5631
    %v5633 = vpop.f32.mrb[0].mxu0
    %v5634 = vadd.f32 %v5508, %v5633
    %v5635 = vpop.f32.mrb[0].mxu0
    %5636 = vmatprep.mubr.f32.mxu0 0.0
    %v5637 = vand.u32 %v4711, 4294901760
    %v5638 = vsub.f32 %v4711, %v5637
    %v5639 = vand.u32 %v5638, 4294901760
    %v5640 = vsub.f32 %v5638, %v5639
    %v5641 = vand.u32 %v5640, 4294901760
    %5642 = vmatmul.mubr.f32.gmra.mrb[0].mxu0 %v5641
    %v5643 = vpop.f32.mrb[0].mxu0
    %v5644 = vadd.f32 %v5513, %v5643
    %v5645 = vpop.f32.mrb[0].mxu0
    %5646 = vmatprep.mubr.f32.mxu0 0.0
    %v5647 = vand.u32 %v4714, 4294901760
    %v5648 = vsub.f32 %v4714, %v5647
    %v5649 = vand.u32 %v5648, 4294901760
    %v5650 = vsub.f32 %v5648, %v5649
    %v5651 = vand.u32 %v5650, 4294901760
    %5652 = vmatmul.mubr.f32.gmra.mrb[0].mxu0 %v5651
    %v5653 = vpop.f32.mrb[0].mxu0
    %v5654 = vadd.f32 %v5518, %v5653
    %v5655 = vpop.f32.mrb[0].mxu0
    %5656 = vmatprep.mubr.f32.mxu0 0.0
    %v5657 = vand.u32 %v4717, 4294901760
    %v5658 = vsub.f32 %v4717, %v5657
    %v5659 = vand.u32 %v5658, 4294901760
    %v5660 = vsub.f32 %v5658, %v5659
    %v5661 = vand.u32 %v5660, 4294901760
    %5662 = vmatmul.mubr.f32.gmra.mrb[0].mxu0 %v5661
    %v5663 = vpop.f32.mrb[0].mxu0
    %v5664 = vadd.f32 %v5523, %v5663
    %v5665 = vpop.f32.mrb[0].mxu0
    %5666 = vmatprep.mubr.f32.mxu0 0.0
    %v5667 = vand.u32 %v4720, 4294901760
    %v5668 = vsub.f32 %v4720, %v5667
    %v5669 = vand.u32 %v5668, 4294901760
    %v5670 = vsub.f32 %v5668, %v5669
    %v5671 = vand.u32 %v5670, 4294901760
    %5672 = vmatmul.mubr.f32.gmra.mrb[0].mxu0 %v5671
    %v5673 = vpop.f32.mrb[0].mxu0
    %v5674 = vadd.f32 %v5528, %v5673
    %v5675 = vpop.f32.mrb[0].mxu0
    %5676 = vdwg.mxu0
    %5677 = vmatprep.subr.mxu0 0.0
    %v5678 = vand.u32 %v4696, 4294901760
    %v5679 = vsub.f32 %v4696, %v5678
    %v5680 = vand.u32 %v5679, 4294901760
    %v5681 = vsub.f32 %v5679, %v5680
    %v5682 = vand.u32 %v5681, 4294901760
    %5683 = vmatpush1.msra.mxu0 %v5682
    %5684 = vmatprep.subr.mxu0 0.0
    %v5685 = vand.u32 %v4697, 4294901760
    %v5686 = vsub.f32 %v4697, %v5685
    %v5687 = vand.u32 %v5686, 4294901760
    %v5688 = vsub.f32 %v5686, %v5687
    %v5689 = vand.u32 %v5688, 4294901760
    %5690 = vmatpush1.msra.mxu0 %v5689
    %5691 = vmatprep.subr.mxu0 0.0
    %5692 = vmatpush1.msra.mxu0 0.0
    %5693 = vmatprep.subr.mxu0 0.0
    %5694 = vmatpush1.msra.mxu0 0.0
    %5695 = vmatprep.subr.mxu0 0.0
    %5696 = vmatpush1.msra.mxu0 0.0
    %5697 = vmatprep.subr.mxu0 0.0
    %5698 = vmatpush1.msra.mxu0 0.0
    %5699 = vmatprep.subr.mxu0 0.0
    %5700 = vmatpush1.msra.mxu0 0.0
    %5701 = vmatprep.subr.mxu0 0.0
    %5702 = vmatpush1.msra.mxu0 0.0
    %5703 = vmatprep.subr.mxu0 0.0
    %5704 = vmatpush1.msra.mxu0 0.0
    %5705 = vmatprep.subr.mxu0 0.0
    %5706 = vmatpush1.msra.mxu0 0.0
    %5707 = vmatprep.subr.mxu0 0.0
    %5708 = vmatpush1.msra.mxu0 0.0
    %5709 = vmatprep.subr.mxu0 0.0
    %5710 = vmatpush1.msra.mxu0 0.0
    %5711 = vmatprep.subr.mxu0 0.0
    %5712 = vmatpush1.msra.mxu0 0.0
    %5713 = vmatprep.subr.mxu0 0.0
    %5714 = vmatpush1.msra.mxu0 0.0
    %5715 = vmatprep.subr.mxu0 0.0
    %5716 = vmatpush1.msra.mxu0 0.0
    %5717 = vmatprep.subr.mxu0 0.0
    %5718 = vmatpush1.msra.mxu0 0.0
    %5719 = vmatprep.subr.mxu0 0.0
    %5720 = vmatpush1.msra.mxu0 0.0
    %5721 = vmatprep.subr.mxu0 0.0
    %5722 = vmatpush1.msra.mxu0 0.0
    %5723 = vmatprep.subr.mxu0 0.0
    %5724 = vmatpush1.msra.mxu0 0.0
    %5725 = vmatprep.subr.mxu0 0.0
    %5726 = vmatpush1.msra.mxu0 0.0
    %5727 = vmatprep.subr.mxu0 0.0
    %5728 = vmatpush1.msra.mxu0 0.0
    %5729 = vmatprep.subr.mxu0 0.0
    %5730 = vmatpush1.msra.mxu0 0.0
    %5731 = vmatprep.subr.mxu0 0.0
    %5732 = vmatpush1.msra.mxu0 0.0
    %5733 = vmatprep.subr.mxu0 0.0
    %5734 = vmatpush1.msra.mxu0 0.0
    %5735 = vmatprep.subr.mxu0 0.0
    %5736 = vmatpush1.msra.mxu0 0.0
    %5737 = vmatprep.subr.mxu0 0.0
    %5738 = vmatpush1.msra.mxu0 0.0
    %5739 = vmatprep.subr.mxu0 0.0
    %5740 = vmatpush1.msra.mxu0 0.0
    %5741 = vmatprep.subr.mxu0 0.0
    %5742 = vmatpush1.msra.mxu0 0.0
    %5743 = vmatprep.subr.mxu0 0.0
    %5744 = vmatpush1.msra.mxu0 0.0
    %5745 = vmatprep.subr.mxu0 0.0
    %5746 = vmatpush1.msra.mxu0 0.0
    %5747 = vmatprep.subr.mxu0 0.0
    %5748 = vmatpush1.msra.mxu0 0.0
    %5749 = vmatprep.subr.mxu0 0.0
    %5750 = vmatpush1.msra.mxu0 0.0
    %5751 = vmatprep.mubr.f32.mxu0 0.0
    %v5752 = vand.u32 %v4699, 4294901760
    %5753 = vmatmul.mubr.f32.gmra.mrb[0].mxu0 %v5752
    %v5754 = vpop.f32.mrb[0].mxu0
    %v5755 = vadd.f32 %v5604, %v5754
    %v5756 = vpop.f32.mrb[0].mxu0
    %5757 = vmatprep.mubr.f32.mxu0 0.0
    %v5758 = vand.u32 %v4702, 4294901760
    %5759 = vmatmul.mubr.f32.gmra.mrb[0].mxu0 %v5758
    %v5760 = vpop.f32.mrb[0].mxu0
    %v5761 = vadd.f32 %v5614, %v5760
    %v5762 = vpop.f32.mrb[0].mxu0
    %5763 = vmatprep.mubr.f32.mxu0 0.0
    %v5764 = vand.u32 %v4705, 4294901760
    %5765 = vmatmul.mubr.f32.gmra.mrb[0].mxu0 %v5764
    %v5766 = vpop.f32.mrb[0].mxu0
    %v5767 = vadd.f32 %v5624, %v5766
    %v5768 = vpop.f32.mrb[0].mxu0
    %5769 = vmatprep.mubr.f32.mxu0 0.0
    %v5770 = vand.u32 %v4708, 4294901760
    %5771 = vmatmul.mubr.f32.gmra.mrb[0].mxu0 %v5770
    %v5772 = vpop.f32.mrb[0].mxu0
    %v5773 = vadd.f32 %v5634, %v5772
    %v5774 = vpop.f32.mrb[0].mxu0
    %5775 = vmatprep.mubr.f32.mxu0 0.0
    %v5776 = vand.u32 %v4711, 4294901760
    %5777 = vmatmul.mubr.f32.gmra.mrb[0].mxu0 %v5776
    %v5778 = vpop.f32.mrb[0].mxu0
    %v5779 = vadd.f32 %v5644, %v5778
    %v5780 = vpop.f32.mrb[0].mxu0
    %5781 = vmatprep.mubr.f32.mxu0 0.0
    %v5782 = vand.u32 %v4714, 4294901760
    %5783 = vmatmul.mubr.f32.gmra.mrb[0].mxu0 %v5782
    %v5784 = vpop.f32.mrb[0].mxu0
    %v5785 = vadd.f32 %v5654, %v5784
    %v5786 = vpop.f32.mrb[0].mxu0
    %5787 = vmatprep.mubr.f32.mxu0 0.0
    %v5788 = vand.u32 %v4717, 4294901760
    %5789 = vmatmul.mubr.f32.gmra.mrb[0].mxu0 %v5788
    %v5790 = vpop.f32.mrb[0].mxu0
    %v5791 = vadd.f32 %v5664, %v5790
    %v5792 = vpop.f32.mrb[0].mxu0
    %5793 = vmatprep.mubr.f32.mxu0 0.0
    %v5794 = vand.u32 %v4720, 4294901760
    %5795 = vmatmul.mubr.f32.gmra.mrb[0].mxu0 %v5794
    %v5796 = vpop.f32.mrb[0].mxu0
    %v5797 = vadd.f32 %v5674, %v5796
    %v5798 = vpop.f32.mrb[0].mxu0
    %5799 = vdwg.mxu0
    %5800 = vmatprep.subr.mxu0 0.0
    %v5801 = vand.u32 %v4696, 4294901760
    %v5802 = vsub.f32 %v4696, %v5801
    %5803 = vmatpush1.msra.mxu0 %v5802
    %5804 = vmatprep.subr.mxu0 0.0
    %v5805 = vand.u32 %v4697, 4294901760
    %v5806 = vsub.f32 %v4697, %v5805
    %5807 = vmatpush1.msra.mxu0 %v5806
    %5808 = vmatprep.subr.mxu0 0.0
    %5809 = vmatpush1.msra.mxu0 0.0
    %5810 = vmatprep.subr.mxu0 0.0
    %5811 = vmatpush1.msra.mxu0 0.0
    %5812 = vmatprep.subr.mxu0 0.0
    %5813 = vmatpush1.msra.mxu0 0.0
    %5814 = vmatprep.subr.mxu0 0.0
    %5815 = vmatpush1.msra.mxu0 0.0
    %5816 = vmatprep.subr.mxu0 0.0
    %5817 = vmatpush1.msra.mxu0 0.0
    %5818 = vmatprep.subr.mxu0 0.0
    %5819 = vmatpush1.msra.mxu0 0.0
    %5820 = vmatprep.subr.mxu0 0.0
    %5821 = vmatpush1.msra.mxu0 0.0
    %5822 = vmatprep.subr.mxu0 0.0
    %5823 = vmatpush1.msra.mxu0 0.0
    %5824 = vmatprep.subr.mxu0 0.0
    %5825 = vmatpush1.msra.mxu0 0.0
    %5826 = vmatprep.subr.mxu0 0.0
    %5827 = vmatpush1.msra.mxu0 0.0
    %5828 = vmatprep.subr.mxu0 0.0
    %5829 = vmatpush1.msra.mxu0 0.0
    %5830 = vmatprep.subr.mxu0 0.0
    %5831 = vmatpush1.msra.mxu0 0.0
    %5832 = vmatprep.subr.mxu0 0.0
    %5833 = vmatpush1.msra.mxu0 0.0
    %5834 = vmatprep.subr.mxu0 0.0
    %5835 = vmatpush1.msra.mxu0 0.0
    %5836 = vmatprep.subr.mxu0 0.0
    %5837 = vmatpush1.msra.mxu0 0.0
    %5838 = vmatprep.subr.mxu0 0.0
    %5839 = vmatpush1.msra.mxu0 0.0
    %5840 = vmatprep.subr.mxu0 0.0
    %5841 = vmatpush1.msra.mxu0 0.0
    %5842 = vmatprep.subr.mxu0 0.0
    %5843 = vmatpush1.msra.mxu0 0.0
    %5844 = vmatprep.subr.mxu0 0.0
    %5845 = vmatpush1.msra.mxu0 0.0
    %5846 = vmatprep.subr.mxu0 0.0
    %5847 = vmatpush1.msra.mxu0 0.0
    %5848 = vmatprep.subr.mxu0 0.0
    %5849 = vmatpush1.msra.mxu0 0.0
    %5850 = vmatprep.subr.mxu0 0.0
    %5851 = vmatpush1.msra.mxu0 0.0
    %5852 = vmatprep.subr.mxu0 0.0
    %5853 = vmatpush1.msra.mxu0 0.0
    %5854 = vmatprep.subr.mxu0 0.0
    %5855 = vmatpush1.msra.mxu0 0.0
    %5856 = vmatprep.subr.mxu0 0.0
    %5857 = vmatpush1.msra.mxu0 0.0
    %5858 = vmatprep.subr.mxu0 0.0
    %5859 = vmatpush1.msra.mxu0 0.0
    %5860 = vmatprep.subr.mxu0 0.0
    %5861 = vmatpush1.msra.mxu0 0.0
    %5862 = vmatprep.subr.mxu0 0.0
    %5863 = vmatpush1.msra.mxu0 0.0
    %5864 = vmatprep.subr.mxu0 0.0
    %5865 = vmatpush1.msra.mxu0 0.0
    %5866 = vmatprep.subr.mxu0 0.0
    %5867 = vmatpush1.msra.mxu0 0.0
    %5868 = vmatprep.mubr.f32.mxu0 0.0
    %v5869 = vand.u32 %v4699, 4294901760
    %v5870 = vsub.f32 %v4699, %v5869
    %5871 = vmatmul.mubr.f32.gmra.mrb[0].mxu0 %v5870
    %v5872 = vpop.f32.mrb[0].mxu0
    %v5873 = vadd.f32 %v5755, %v5872
    %v5874 = vpop.f32.mrb[0].mxu0
    %5875 = vmatprep.mubr.f32.mxu0 0.0
    %v5876 = vand.u32 %v4702, 4294901760
    %v5877 = vsub.f32 %v4702, %v5876
    %5878 = vmatmul.mubr.f32.gmra.mrb[0].mxu0 %v5877
    %v5879 = vpop.f32.mrb[0].mxu0
    %v5880 = vadd.f32 %v5761, %v5879
    %v5881 = vpop.f32.mrb[0].mxu0
    %5882 = vmatprep.mubr.f32.mxu0 0.0
    %v5883 = vand.u32 %v4705, 4294901760
    %v5884 = vsub.f32 %v4705, %v5883
    %5885 = vmatmul.mubr.f32.gmra.mrb[0].mxu0 %v5884
    %v5886 = vpop.f32.mrb[0].mxu0
    %v5887 = vadd.f32 %v5767, %v5886
    %v5888 = vpop.f32.mrb[0].mxu0
    %5889 = vmatprep.mubr.f32.mxu0 0.0
    %v5890 = vand.u32 %v4708, 4294901760
    %v5891 = vsub.f32 %v4708, %v5890
    %5892 = vmatmul.mubr.f32.gmra.mrb[0].mxu0 %v5891
    %v5893 = vpop.f32.mrb[0].mxu0
    %v5894 = vadd.f32 %v5773, %v5893
    %v5895 = vpop.f32.mrb[0].mxu0
    %5896 = vmatprep.mubr.f32.mxu0 0.0
    %v5897 = vand.u32 %v4711, 4294901760
    %v5898 = vsub.f32 %v4711, %v5897
    %5899 = vmatmul.mubr.f32.gmra.mrb[0].mxu0 %v5898
    %v5900 = vpop.f32.mrb[0].mxu0
    %v5901 = vadd.f32 %v5779, %v5900
    %v5902 = vpop.f32.mrb[0].mxu0
    %5903 = vmatprep.mubr.f32.mxu0 0.0
    %v5904 = vand.u32 %v4714, 4294901760
    %v5905 = vsub.f32 %v4714, %v5904
    %5906 = vmatmul.mubr.f32.gmra.mrb[0].mxu0 %v5905
    %v5907 = vpop.f32.mrb[0].mxu0
    %v5908 = vadd.f32 %v5785, %v5907
    %v5909 = vpop.f32.mrb[0].mxu0
    %5910 = vmatprep.mubr.f32.mxu0 0.0
    %v5911 = vand.u32 %v4717, 4294901760
    %v5912 = vsub.f32 %v4717, %v5911
    %5913 = vmatmul.mubr.f32.gmra.mrb[0].mxu0 %v5912
    %v5914 = vpop.f32.mrb[0].mxu0
    %v5915 = vadd.f32 %v5791, %v5914
    %v5916 = vpop.f32.mrb[0].mxu0
    %5917 = vmatprep.mubr.f32.mxu0 0.0
    %v5918 = vand.u32 %v4720, 4294901760
    %v5919 = vsub.f32 %v4720, %v5918
    %5920 = vmatmul.mubr.f32.gmra.mrb[0].mxu0 %v5919
    %v5921 = vpop.f32.mrb[0].mxu0
    %v5922 = vadd.f32 %v5797, %v5921
    %v5923 = vpop.f32.mrb[0].mxu0
    %5924 = vdwg.mxu0
    %5925 = vmatprep.subr.mxu0 0.0
    %v5926 = vand.u32 %v4696, 4294901760
    %5927 = vmatpush1.msra.mxu0 %v5926
    %5928 = vmatprep.subr.mxu0 0.0
    %v5929 = vand.u32 %v4697, 4294901760
    %5930 = vmatpush1.msra.mxu0 %v5929
    %5931 = vmatprep.subr.mxu0 0.0
    %5932 = vmatpush1.msra.mxu0 0.0
    %5933 = vmatprep.subr.mxu0 0.0
    %5934 = vmatpush1.msra.mxu0 0.0
    %5935 = vmatprep.subr.mxu0 0.0
    %5936 = vmatpush1.msra.mxu0 0.0
    %5937 = vmatprep.subr.mxu0 0.0
    %5938 = vmatpush1.msra.mxu0 0.0
    %5939 = vmatprep.subr.mxu0 0.0
    %5940 = vmatpush1.msra.mxu0 0.0
    %5941 = vmatprep.subr.mxu0 0.0
    %5942 = vmatpush1.msra.mxu0 0.0
    %5943 = vmatprep.subr.mxu0 0.0
    %5944 = vmatpush1.msra.mxu0 0.0
    %5945 = vmatprep.subr.mxu0 0.0
    %5946 = vmatpush1.msra.mxu0 0.0
    %5947 = vmatprep.subr.mxu0 0.0
    %5948 = vmatpush1.msra.mxu0 0.0
    %5949 = vmatprep.subr.mxu0 0.0
    %5950 = vmatpush1.msra.mxu0 0.0
    %5951 = vmatprep.subr.mxu0 0.0
    %5952 = vmatpush1.msra.mxu0 0.0
    %5953 = vmatprep.subr.mxu0 0.0
    %5954 = vmatpush1.msra.mxu0 0.0
    %5955 = vmatprep.subr.mxu0 0.0
    %5956 = vmatpush1.msra.mxu0 0.0
    %5957 = vmatprep.subr.mxu0 0.0
    %5958 = vmatpush1.msra.mxu0 0.0
    %5959 = vmatprep.subr.mxu0 0.0
    %5960 = vmatpush1.msra.mxu0 0.0
    %5961 = vmatprep.subr.mxu0 0.0
    %5962 = vmatpush1.msra.mxu0 0.0
    %5963 = vmatprep.subr.mxu0 0.0
    %5964 = vmatpush1.msra.mxu0 0.0
    %5965 = vmatprep.subr.mxu0 0.0
    %5966 = vmatpush1.msra.mxu0 0.0
    %5967 = vmatprep.subr.mxu0 0.0
    %5968 = vmatpush1.msra.mxu0 0.0
    %5969 = vmatprep.subr.mxu0 0.0
    %5970 = vmatpush1.msra.mxu0 0.0
    %5971 = vmatprep.subr.mxu0 0.0
    %5972 = vmatpush1.msra.mxu0 0.0
    %5973 = vmatprep.subr.mxu0 0.0
    %5974 = vmatpush1.msra.mxu0 0.0
    %5975 = vmatprep.subr.mxu0 0.0
    %5976 = vmatpush1.msra.mxu0 0.0
    %5977 = vmatprep.subr.mxu0 0.0
    %5978 = vmatpush1.msra.mxu0 0.0
    %5979 = vmatprep.subr.mxu0 0.0
    %5980 = vmatpush1.msra.mxu0 0.0
    %5981 = vmatprep.subr.mxu0 0.0
    %5982 = vmatpush1.msra.mxu0 0.0
    %5983 = vmatprep.subr.mxu0 0.0
    %5984 = vmatpush1.msra.mxu0 0.0
    %5985 = vmatprep.subr.mxu0 0.0
    %5986 = vmatpush1.msra.mxu0 0.0
    %5987 = vmatprep.subr.mxu0 0.0
    %5988 = vmatpush1.msra.mxu0 0.0
    %5989 = vmatprep.subr.mxu0 0.0
    %5990 = vmatpush1.msra.mxu0 0.0
    %5991 = vmatprep.mubr.f32.mxu0 0.0
    %v5992 = vand.u32 %v4699, 4294901760
    %v5993 = vsub.f32 %v4699, %v5992
    %v5994 = vand.u32 %v5993, 4294901760
    %5995 = vmatmul.mubr.f32.gmra.mrb[0].mxu0 %v5994
    %v5996 = vpop.f32.mrb[0].mxu0
    %v5997 = vadd.f32 %v5873, %v5996
    %v5998 = vpop.f32.mrb[0].mxu0
    %5999 = vmatprep.mubr.f32.mxu0 0.0
    %v6000 = vand.u32 %v4702, 4294901760
    %v6001 = vsub.f32 %v4702, %v6000
    %v6002 = vand.u32 %v6001, 4294901760
    %6003 = vmatmul.mubr.f32.gmra.mrb[0].mxu0 %v6002
    %v6004 = vpop.f32.mrb[0].mxu0
    %v6005 = vadd.f32 %v5880, %v6004
    %v6006 = vpop.f32.mrb[0].mxu0
    %6007 = vmatprep.mubr.f32.mxu0 0.0
    %v6008 = vand.u32 %v4705, 4294901760
    %v6009 = vsub.f32 %v4705, %v6008
    %v6010 = vand.u32 %v6009, 4294901760
    %6011 = vmatmul.mubr.f32.gmra.mrb[0].mxu0 %v6010
    %v6012 = vpop.f32.mrb[0].mxu0
    %v6013 = vadd.f32 %v5887, %v6012
    %v6014 = vpop.f32.mrb[0].mxu0
    %6015 = vmatprep.mubr.f32.mxu0 0.0
    %v6016 = vand.u32 %v4708, 4294901760
    %v6017 = vsub.f32 %v4708, %v6016
    %v6018 = vand.u32 %v6017, 4294901760
    %6019 = vmatmul.mubr.f32.gmra.mrb[0].mxu0 %v6018
    %v6020 = vpop.f32.mrb[0].mxu0
    %v6021 = vadd.f32 %v5894, %v6020
    %v6022 = vpop.f32.mrb[0].mxu0
    %6023 = vmatprep.mubr.f32.mxu0 0.0
    %v6024 = vand.u32 %v4711, 4294901760
    %v6025 = vsub.f32 %v4711, %v6024
    %v6026 = vand.u32 %v6025, 4294901760
    %6027 = vmatmul.mubr.f32.gmra.mrb[0].mxu0 %v6026
    %v6028 = vpop.f32.mrb[0].mxu0
    %v6029 = vadd.f32 %v5901, %v6028
    %v6030 = vpop.f32.mrb[0].mxu0
    %6031 = vmatprep.mubr.f32.mxu0 0.0
    %v6032 = vand.u32 %v4714, 4294901760
    %v6033 = vsub.f32 %v4714, %v6032
    %v6034 = vand.u32 %v6033, 4294901760
    %6035 = vmatmul.mubr.f32.gmra.mrb[0].mxu0 %v6034
    %v6036 = vpop.f32.mrb[0].mxu0
    %v6037 = vadd.f32 %v5908, %v6036
    %v6038 = vpop.f32.mrb[0].mxu0
    %6039 = vmatprep.mubr.f32.mxu0 0.0
    %v6040 = vand.u32 %v4717, 4294901760
    %v6041 = vsub.f32 %v4717, %v6040
    %v6042 = vand.u32 %v6041, 4294901760
    %6043 = vmatmul.mubr.f32.gmra.mrb[0].mxu0 %v6042
    %v6044 = vpop.f32.mrb[0].mxu0
    %v6045 = vadd.f32 %v5915, %v6044
    %v6046 = vpop.f32.mrb[0].mxu0
    %6047 = vmatprep.mubr.f32.mxu0 0.0
    %v6048 = vand.u32 %v4720, 4294901760
    %v6049 = vsub.f32 %v4720, %v6048
    %v6050 = vand.u32 %v6049, 4294901760
    %6051 = vmatmul.mubr.f32.gmra.mrb[0].mxu0 %v6050
    %v6052 = vpop.f32.mrb[0].mxu0
    %v6053 = vadd.f32 %v5922, %v6052
    %v6054 = vpop.f32.mrb[0].mxu0
    %6055 = vdwg.mxu0
    %6056 = vmatprep.subr.mxu0 0.0
    %v6057 = vand.u32 %v4696, 4294901760
    %v6058 = vsub.f32 %v4696, %v6057
    %v6059 = vand.u32 %v6058, 4294901760
    %6060 = vmatpush1.msra.mxu0 %v6059
    %6061 = vmatprep.subr.mxu0 0.0
    %v6062 = vand.u32 %v4697, 4294901760
    %v6063 = vsub.f32 %v4697, %v6062
    %v6064 = vand.u32 %v6063, 4294901760
    %6065 = vmatpush1.msra.mxu0 %v6064
    %6066 = vmatprep.subr.mxu0 0.0
    %6067 = vmatpush1.msra.mxu0 0.0
    %6068 = vmatprep.subr.mxu0 0.0
    %6069 = vmatpush1.msra.mxu0 0.0
    %6070 = vmatprep.subr.mxu0 0.0
    %6071 = vmatpush1.msra.mxu0 0.0
    %6072 = vmatprep.subr.mxu0 0.0
    %6073 = vmatpush1.msra.mxu0 0.0
    %6074 = vmatprep.subr.mxu0 0.0
    %6075 = vmatpush1.msra.mxu0 0.0
    %6076 = vmatprep.subr.mxu0 0.0
    %6077 = vmatpush1.msra.mxu0 0.0
    %6078 = vmatprep.subr.mxu0 0.0
    %6079 = vmatpush1.msra.mxu0 0.0
    %6080 = vmatprep.subr.mxu0 0.0
    %6081 = vmatpush1.msra.mxu0 0.0
    %6082 = vmatprep.subr.mxu0 0.0
    %6083 = vmatpush1.msra.mxu0 0.0
    %6084 = vmatprep.subr.mxu0 0.0
    %6085 = vmatpush1.msra.mxu0 0.0
    %6086 = vmatprep.subr.mxu0 0.0
    %6087 = vmatpush1.msra.mxu0 0.0
    %6088 = vmatprep.subr.mxu0 0.0
    %6089 = vmatpush1.msra.mxu0 0.0
    %6090 = vmatprep.subr.mxu0 0.0
    %6091 = vmatpush1.msra.mxu0 0.0
    %6092 = vmatprep.subr.mxu0 0.0
    %6093 = vmatpush1.msra.mxu0 0.0
    %6094 = vmatprep.subr.mxu0 0.0
    %6095 = vmatpush1.msra.mxu0 0.0
    %6096 = vmatprep.subr.mxu0 0.0
    %6097 = vmatpush1.msra.mxu0 0.0
    %6098 = vmatprep.subr.mxu0 0.0
    %6099 = vmatpush1.msra.mxu0 0.0
    %6100 = vmatprep.subr.mxu0 0.0
    %6101 = vmatpush1.msra.mxu0 0.0
    %6102 = vmatprep.subr.mxu0 0.0
    %6103 = vmatpush1.msra.mxu0 0.0
    %6104 = vmatprep.subr.mxu0 0.0
    %6105 = vmatpush1.msra.mxu0 0.0
    %6106 = vmatprep.subr.mxu0 0.0
    %6107 = vmatpush1.msra.mxu0 0.0
    %6108 = vmatprep.subr.mxu0 0.0
    %6109 = vmatpush1.msra.mxu0 0.0
    %6110 = vmatprep.subr.mxu0 0.0
    %6111 = vmatpush1.msra.mxu0 0.0
    %6112 = vmatprep.subr.mxu0 0.0
    %6113 = vmatpush1.msra.mxu0 0.0
    %6114 = vmatprep.subr.mxu0 0.0
    %6115 = vmatpush1.msra.mxu0 0.0
    %6116 = vmatprep.subr.mxu0 0.0
    %6117 = vmatpush1.msra.mxu0 0.0
    %6118 = vmatprep.subr.mxu0 0.0
    %6119 = vmatpush1.msra.mxu0 0.0
    %6120 = vmatprep.subr.mxu0 0.0
    %6121 = vmatpush1.msra.mxu0 0.0
    %6122 = vmatprep.subr.mxu0 0.0
    %6123 = vmatpush1.msra.mxu0 0.0
    %6124 = vmatprep.subr.mxu0 0.0
    %6125 = vmatpush1.msra.mxu0 0.0
    %6126 = vmatprep.mubr.f32.mxu0 0.0
    %v6127 = vand.u32 %v4699, 4294901760
    %6128 = vmatmul.mubr.f32.gmra.mrb[0].mxu0 %v6127
    %v6129 = vpop.f32.mrb[0].mxu0
    %v6130 = vadd.f32 %v5997, %v6129
    %v6131 = vpop.f32.mrb[0].mxu0
    %6132 = vmatprep.mubr.f32.mxu0 0.0
    %v6133 = vand.u32 %v4702, 4294901760
    %6134 = vmatmul.mubr.f32.gmra.mrb[0].mxu0 %v6133
    %v6135 = vpop.f32.mrb[0].mxu0
    %v6136 = vadd.f32 %v6005, %v6135
    %v6137 = vpop.f32.mrb[0].mxu0
    %6138 = vmatprep.mubr.f32.mxu0 0.0
    %v6139 = vand.u32 %v4705, 4294901760
    %6140 = vmatmul.mubr.f32.gmra.mrb[0].mxu0 %v6139
    %v6141 = vpop.f32.mrb[0].mxu0
    %v6142 = vadd.f32 %v6013, %v6141
    %v6143 = vpop.f32.mrb[0].mxu0
    %6144 = vmatprep.mubr.f32.mxu0 0.0
    %v6145 = vand.u32 %v4708, 4294901760
    %6146 = vmatmul.mubr.f32.gmra.mrb[0].mxu0 %v6145
    %v6147 = vpop.f32.mrb[0].mxu0
    %v6148 = vadd.f32 %v6021, %v6147
    %v6149 = vpop.f32.mrb[0].mxu0
    %6150 = vmatprep.mubr.f32.mxu0 0.0
    %v6151 = vand.u32 %v4711, 4294901760
    %6152 = vmatmul.mubr.f32.gmra.mrb[0].mxu0 %v6151
    %v6153 = vpop.f32.mrb[0].mxu0
    %v6154 = vadd.f32 %v6029, %v6153
    %v6155 = vpop.f32.mrb[0].mxu0
    %6156 = vmatprep.mubr.f32.mxu0 0.0
    %v6157 = vand.u32 %v4714, 4294901760
    %6158 = vmatmul.mubr.f32.gmra.mrb[0].mxu0 %v6157
    %v6159 = vpop.f32.mrb[0].mxu0
    %v6160 = vadd.f32 %v6037, %v6159
    %v6161 = vpop.f32.mrb[0].mxu0
    %6162 = vmatprep.mubr.f32.mxu0 0.0
    %v6163 = vand.u32 %v4717, 4294901760
    %6164 = vmatmul.mubr.f32.gmra.mrb[0].mxu0 %v6163
    %v6165 = vpop.f32.mrb[0].mxu0
    %v6166 = vadd.f32 %v6045, %v6165
    %v6167 = vpop.f32.mrb[0].mxu0
    %6168 = vmatprep.mubr.f32.mxu0 0.0
    %v6169 = vand.u32 %v4720, 4294901760
    %6170 = vmatmul.mubr.f32.gmra.mrb[0].mxu0 %v6169
    %v6171 = vpop.f32.mrb[0].mxu0
    %v6172 = vadd.f32 %v6053, %v6171
    %v6173 = vpop.f32.mrb[0].mxu0
    %6174 = vdwg.mxu0
    %6175 = vmatprep.subr.mxu0 0.0
    %v6176 = vand.u32 %v4696, 4294901760
    %6177 = vmatpush1.msra.mxu0 %v6176
    %6178 = vmatprep.subr.mxu0 0.0
    %v6179 = vand.u32 %v4697, 4294901760
    %6180 = vmatpush1.msra.mxu0 %v6179
    %6181 = vmatprep.subr.mxu0 0.0
    %6182 = vmatpush1.msra.mxu0 0.0
    %6183 = vmatprep.subr.mxu0 0.0
    %6184 = vmatpush1.msra.mxu0 0.0
    %6185 = vmatprep.subr.mxu0 0.0
    %6186 = vmatpush1.msra.mxu0 0.0
    %6187 = vmatprep.subr.mxu0 0.0
    %6188 = vmatpush1.msra.mxu0 0.0
    %6189 = vmatprep.subr.mxu0 0.0
    %6190 = vmatpush1.msra.mxu0 0.0
    %6191 = vmatprep.subr.mxu0 0.0
    %6192 = vmatpush1.msra.mxu0 0.0
    %6193 = vmatprep.subr.mxu0 0.0
    %6194 = vmatpush1.msra.mxu0 0.0
    %6195 = vmatprep.subr.mxu0 0.0
    %6196 = vmatpush1.msra.mxu0 0.0
    %6197 = vmatprep.subr.mxu0 0.0
    %6198 = vmatpush1.msra.mxu0 0.0
    %6199 = vmatprep.subr.mxu0 0.0
    %6200 = vmatpush1.msra.mxu0 0.0
    %6201 = vmatprep.subr.mxu0 0.0
    %6202 = vmatpush1.msra.mxu0 0.0
    %6203 = vmatprep.subr.mxu0 0.0
    %6204 = vmatpush1.msra.mxu0 0.0
    %6205 = vmatprep.subr.mxu0 0.0
    %6206 = vmatpush1.msra.mxu0 0.0
    %6207 = vmatprep.subr.mxu0 0.0
    %6208 = vmatpush1.msra.mxu0 0.0
    %6209 = vmatprep.subr.mxu0 0.0
    %6210 = vmatpush1.msra.mxu0 0.0
    %6211 = vmatprep.subr.mxu0 0.0
    %6212 = vmatpush1.msra.mxu0 0.0
    %6213 = vmatprep.subr.mxu0 0.0
    %6214 = vmatpush1.msra.mxu0 0.0
    %6215 = vmatprep.subr.mxu0 0.0
    %6216 = vmatpush1.msra.mxu0 0.0
    %6217 = vmatprep.subr.mxu0 0.0
    %6218 = vmatpush1.msra.mxu0 0.0
    %6219 = vmatprep.subr.mxu0 0.0
    %6220 = vmatpush1.msra.mxu0 0.0
    %6221 = vmatprep.subr.mxu0 0.0
    %6222 = vmatpush1.msra.mxu0 0.0
    %6223 = vmatprep.subr.mxu0 0.0
    %6224 = vmatpush1.msra.mxu0 0.0
    %6225 = vmatprep.subr.mxu0 0.0
    %6226 = vmatpush1.msra.mxu0 0.0
    %6227 = vmatprep.subr.mxu0 0.0
    %6228 = vmatpush1.msra.mxu0 0.0
    %6229 = vmatprep.subr.mxu0 0.0
    %6230 = vmatpush1.msra.mxu0 0.0
    %6231 = vmatprep.subr.mxu0 0.0
    %6232 = vmatpush1.msra.mxu0 0.0
    %6233 = vmatprep.subr.mxu0 0.0
    %6234 = vmatpush1.msra.mxu0 0.0
    %6235 = vmatprep.subr.mxu0 0.0
    %6236 = vmatpush1.msra.mxu0 0.0
    %6237 = vmatprep.subr.mxu0 0.0
    %6238 = vmatpush1.msra.mxu0 0.0
    %6239 = vmatprep.subr.mxu0 0.0
    %6240 = vmatpush1.msra.mxu0 0.0
    %6241 = vmatprep.mubr.f32.mxu0 0.0
    %v6242 = vand.u32 %v4699, 4294901760
    %6243 = vmatmul.mubr.f32.gmra.mrb[0].mxu0 %v6242
    %v6244 = vpop.f32.mrb[0].mxu0
    %v6245 = vadd.f32 %v6130, %v6244
    %v6246 = vpop.f32.mrb[0].mxu0
    %6247 = vmatprep.mubr.f32.mxu0 0.0
    %v6248 = vand.u32 %v4702, 4294901760
    %6249 = vmatmul.mubr.f32.gmra.mrb[0].mxu0 %v6248
    %v6250 = vpop.f32.mrb[0].mxu0
    %v6251 = vadd.f32 %v6136, %v6250
    %v6252 = vpop.f32.mrb[0].mxu0
    %6253 = vmatprep.mubr.f32.mxu0 0.0
    %v6254 = vand.u32 %v4705, 4294901760
    %6255 = vmatmul.mubr.f32.gmra.mrb[0].mxu0 %v6254
    %v6256 = vpop.f32.mrb[0].mxu0
    %v6257 = vadd.f32 %v6142, %v6256
    %v6258 = vpop.f32.mrb[0].mxu0
    %6259 = vmatprep.mubr.f32.mxu0 0.0
    %v6260 = vand.u32 %v4708, 4294901760
    %6261 = vmatmul.mubr.f32.gmra.mrb[0].mxu0 %v6260
    %v6262 = vpop.f32.mrb[0].mxu0
    %v6263 = vadd.f32 %v6148, %v6262
    %v6264 = vpop.f32.mrb[0].mxu0
    %6265 = vmatprep.mubr.f32.mxu0 0.0
    %v6266 = vand.u32 %v4711, 4294901760
    %6267 = vmatmul.mubr.f32.gmra.mrb[0].mxu0 %v6266
    %v6268 = vpop.f32.mrb[0].mxu0
    %v6269 = vadd.f32 %v6154, %v6268
    %v6270 = vpop.f32.mrb[0].mxu0
    %6271 = vmatprep.mubr.f32.mxu0 0.0
    %v6272 = vand.u32 %v4714, 4294901760
    %6273 = vmatmul.mubr.f32.gmra.mrb[0].mxu0 %v6272
    %v6274 = vpop.f32.mrb[0].mxu0
    %v6275 = vadd.f32 %v6160, %v6274
    %v6276 = vpop.f32.mrb[0].mxu0
    %6277 = vmatprep.mubr.f32.mxu0 0.0
    %v6278 = vand.u32 %v4717, 4294901760
    %6279 = vmatmul.mubr.f32.gmra.mrb[0].mxu0 %v6278
    %v6280 = vpop.f32.mrb[0].mxu0
    %v6281 = vadd.f32 %v6166, %v6280
    %v6282 = vpop.f32.mrb[0].mxu0
    %6283 = vmatprep.mubr.f32.mxu0 0.0
    %v6284 = vand.u32 %v4720, 4294901760
    %6285 = vmatmul.mubr.f32.gmra.mrb[0].mxu0 %v6284
    %v6286 = vpop.f32.mrb[0].mxu0
    %v6287 = vadd.f32 %v6172, %v6286
    %v6288 = vpop.f32.mrb[0].mxu0
    %6289 = vdwg.mxu0
    %v6290 = vadd.f32 %v5482, %v6245
    %v6291 = vadd.f32 %v5483, %v6251
    %v6292 = vadd.f32 %v5484, %v6257
    %v6293 = vadd.f32 %v5485, %v6263
    %v6294 = vadd.f32 %v5486, %v6269
    %v6295 = vadd.f32 %v5487, %v6275
    %v6296 = vadd.f32 %v5488, %v6281
    %v6297 = vadd.f32 %v5489, %v6287
    %vm6298 = vcmp.ge.f32.partialorder %v6290, 0.0
    %vm6299 = vcmp.ge.f32.partialorder %v6291, 0.0
    %vm6300 = vcmp.ge.f32.partialorder %v6292, 0.0
    %vm6301 = vcmp.ge.f32.partialorder %v6293, 0.0
    %vm6302 = vcmp.ge.f32.partialorder %v6294, 0.0
    %vm6303 = vcmp.ge.f32.partialorder %v6295, 0.0
    %vm6304 = vcmp.ge.f32.partialorder %v6296, 0.0
    %vm6305 = vcmp.ge.f32.partialorder %v6297, 0.0
    %v6306 = vmul.f32 %v6290, 0.01
    %v6307 = vmul.f32 %v6291, 0.01
    %v6308 = vmul.f32 %v6292, 0.01
    %v6309 = vmul.f32 %v6293, 0.01
    %v6310 = vmul.f32 %v6294, 0.01
    %v6311 = vmul.f32 %v6295, 0.01
    %v6312 = vmul.f32 %v6296, 0.01
    %v6313 = vmul.f32 %v6297, 0.01
    %v6314 = vsel %vm6298, %v6290, %v6306
    %v6315 = vsel %vm6299, %v6291, %v6307
    %v6316 = vsel %vm6300, %v6292, %v6308
    %v6317 = vsel %vm6301, %v6293, %v6309
    %v6318 = vsel %vm6302, %v6294, %v6310
    %v6319 = vsel %vm6303, %v6295, %v6311
    %v6320 = vsel %vm6304, %v6296, %v6312
    %v6321 = vsel %vm6305, %v6297, %v6313
    %6322 = vxpose.xlu0.b32.start [1/16] %v6314, 128
    %6323 = vxpose.xlu0.b32.cont [2/16] %v6315, 128
    %6324 = vxpose.xlu0.b32.cont [3/16] %v6316, 128
    %6325 = vxpose.xlu0.b32.cont [4/16] %v6317, 128
    %6326 = vxpose.xlu0.b32.cont [5/16] %v6318, 128
    %6327 = vxpose.xlu0.b32.cont [6/16] %v6319, 128
    %6328 = vxpose.xlu0.b32.cont [7/16] %v6320, 128
    %6329 = vxpose.xlu0.b32.cont [8/16] %v6321, 128
    %6330 = vxpose.xlu0.b32.cont [9/16] 0.0, 128
    %6331 = vxpose.xlu0.b32.cont [10/16] 0.0, 128
    %6332 = vxpose.xlu0.b32.cont [11/16] 0.0, 128
    %6333 = vxpose.xlu0.b32.cont [12/16] 0.0, 128
    %6334 = vxpose.xlu0.b32.cont [13/16] 0.0, 128
    %6335 = vxpose.xlu0.b32.cont [14/16] 0.0, 128
    %6336 = vxpose.xlu0.b32.cont [15/16] 0.0, 128
    %6337 = vxpose.xlu0.b32.end [16/16] 0.0, 128
    %v6338 = vpop.trf.xlu0
    %v6339 = vpop.trf.xlu0
    %v6340 = vpop.trf.xlu0
    %v6341 = vpop.trf.xlu0
    %v6342 = vpop.trf.xlu0
    %v6343 = vpop.trf.xlu0
    %v6344 = vpop.trf.xlu0
    %v6345 = vpop.trf.xlu0
    %v6346 = vpop.trf.xlu0
    %v6347 = vpop.trf.xlu0
    %v6348 = vpop.trf.xlu0
    %v6349 = vpop.trf.xlu0
    %v6350 = vpop.trf.xlu0
    %v6351 = vpop.trf.xlu0
    %v6352 = vpop.trf.xlu0
    %v6353 = vpop.trf.xlu0
    %6354 = vst.msk [vmem:[#allocation20] sm:$0xff] %vm3505, %v6338
    // Predicated region
    $region90: #{tpu_custom_call.1} parent=1 // pred_check
      _
    $region91: #{tpu_custom_call.1} parent=1 // pred_check_branch
      %6356 = sbr.rel (0) target = $region93
    $region92: #{tpu_custom_call.1} parent=1 // pred_region
      %s6358 = ssub.s32 128, 128
      %6359 = vsyncadd [#allocation4], %s6358
      %s6361 = sshll.u32 [#allocation20], 4
      %s6362 = int_to_ptr.vmem [resolvable:$true] %s6361
      %6364 = dma.vmem_to_hbm [thread:$0]  %s6362, 128, %s11, [#allocation4]
    $region93: #{tpu_custom_call.1} parent=1 // pred_fallthru
      _
    // Predicated region
    $region94: #{tpu_custom_call.1} parent=1 // pred_check
      _
    $region95: #{tpu_custom_call.1} parent=1 // pred_check_branch
      %6366 = sbr.rel (0) target = $region97
    $region96: #{tpu_custom_call.1} parent=1 // pred_region
      %6367 = dma.done [#allocation4], 128
    $region97: #{tpu_custom_call.1} parent=1 // pred_fallthru
      _
    %6368 = vsyncpa [#allocation3], 1
    %6369 = vsyncpa [#allocation6], 1
    %6370 = vsyncpa [#allocation9], 1
    %6371 = vsyncpa [#allocation12], 1
    %6372 = vsyncpa [#allocation15], 1
    %6373 = vsyncpa [#allocation18], 1
    %6374 = vsyncpa [#allocation4], 1

</llo_original>
